<compile_context>
chip_gen: v7x
topology: tpu7x:2x2x1
jax: 0.10.0
libtpu: 0.0.40
codegen_flags: <defaults>
</compile_context>

<pallas_src>
import math
import functools

import jax
import jax.numpy as jnp
from jax.experimental import pallas as pl
from jax.experimental.pallas import tpu as pltpu

EPS = 1e-5      # nn.InstanceNorm2d default eps
LANE = 128


def _pad_m(m):
    """Round a channel count up to a lane-dense multiple of 128."""
    return max(LANE, ((m + LANE - 1) // LANE) * LANE)


# --------------------------------- Pallas kernel ---------------------------------
def _instance_norm(acc):
    """Per-(batch, channel) InstanceNorm over the edge axis.  acc: (E, M) f32."""
    inv_n = 1.0 / acc.shape[0]
    s1 = jnp.sum(acc, axis=0, keepdims=True)
    s2 = jnp.sum(acc * acc, axis=0, keepdims=True)
    mean = s1 * inv_n
    var = jnp.maximum(s2 * inv_n - mean * mean, 0.0)
    return (acc - mean) * jax.lax.rsqrt(var + EPS)     # rsqrt -> EUP slot


def _meshconv_kernel(*refs, epilogue, has_residual):
    # feats: (1, E, 5C) bf16   w: (5C, M) bf16   b: (1, M) f32
    # [res: (1, E, M) bf16]    out: (1, E, M) bf16
    if has_residual:
        f_ref, w_ref, b_ref, r_ref, o_ref = refs
    else:
        f_ref, w_ref, b_ref, o_ref = refs
        r_ref = None
    # single MXU dot with K = 5*C (instead of 5 under-filled per-tap dots)
    acc = jnp.dot(f_ref[0], w_ref[...], preferred_element_type=jnp.float32)
    acc = acc + b_ref[...]
    if epilogue == "in_relu":
        acc = _instance_norm(acc)
    if r_ref is not None:                               # residual after norm, before relu
        acc = acc + r_ref[0].astype(jnp.float32)
    if epilogue in ("relu", "in_relu"):
        acc = jnp.maximum(acc, 0.0)
    o_ref[0] = acc.astype(o_ref.dtype)


# ------------------------------- pallas_call wrapper ------------------------------
def mesh_conv(x, gemm, w_taps, b, epilogue="none", residual=None):
    """MeshCNN MeshConv, channels-last, fused epilogue.

    x:        (B, E, Cx) bf16/f32 — Cx may exceed the conv's true Cin (padded
              lanes must carry zeros; the extra weight rows are zero).
    gemm:     (E, 4) int32 neighbour table.
    w_taps:   (5, Cin, M) f32 tap-major weights.
    b:        (M,) f32.
    residual: optional (B, E, Mp) — added after the norm, before ReLU.
    returns   (B, E, Mp) bf16, Mp = pad128(M); pad lanes are exact zeros
              ("none"/"relu"/"in_relu" all map zero columns to zero).
    """
    Bb, E, Cx = x.shape
    _, cin, M = w_taps.shape
    Mp = _pad_m(M)
    # zero input-channel rows for carried pad lanes, zero output cols/bias for lane-dense stores
    w_taps = jnp.pad(w_taps, ((0, 0), (0, Cx - cin), (0, Mp - M)))
    b = jnp.pad(b, (0, Mp - M))
    w_flat = w_taps.reshape(5 * Cx, Mp)          # tap-major == feature concat order

    xb = x.astype(jnp.bfloat16)
    # TODO(synk): review preferred an in-kernel sublane gather from the VMEM block;
    # bf16 sublane gathers lower unreliably, so use the sanctioned fallback: build
    # one concatenated (B, E, 5C) symmetric-feature tensor in XLA (1 kernel input).
    n1 = jnp.take(xb, gemm[:, 0], axis=1)
    n2 = jnp.take(xb, gemm[:, 1], axis=1)
    n3 = jnp.take(xb, gemm[:, 2], axis=1)
    n4 = jnp.take(xb, gemm[:, 3], axis=1)
    feats = jnp.concatenate(
        [xb, n1 + n3, n2 + n4, jnp.abs(n1 - n3), jnp.abs(n2 - n4)], axis=-1)
    K = 5 * Cx

    in_specs = [
        pl.BlockSpec((1, E, K), lambda i: (i, 0, 0)),
        pl.BlockSpec((K, Mp), lambda i: (0, 0)),
        pl.BlockSpec((1, Mp), lambda i: (0, 0)),
    ]
    args = [feats, w_flat.astype(jnp.bfloat16), b.reshape(1, Mp).astype(jnp.float32)]
    if residual is not None:
        in_specs.append(pl.BlockSpec((1, E, Mp), lambda i: (i, 0, 0)))
        args.append(residual.astype(jnp.bfloat16))

    out = pl.pallas_call(
        functools.partial(_meshconv_kernel, epilogue=epilogue,
                          has_residual=residual is not None),
        out_shape=jax.ShapeDtypeStruct((Bb, E, Mp), jnp.bfloat16),
        grid=(Bb,),
        in_specs=in_specs,
        out_specs=pl.BlockSpec((1, E, Mp), lambda i: (i, 0, 0)),
        compiler_params=pltpu.CompilerParams(dimension_semantics=("parallel",)),
    )(*args)
    return out


# ------------------------------ weight-layout helpers ------------------------------
def _mc_w(p):
    # MeshConv wraps Conv2d(Cin, Cout, (1,5)): weight (Cout, Cin, 1, 5) -> (5, Cin, Cout)
    return jnp.transpose(p["w"][:, :, 0, :], (2, 1, 0))


# ------------------------------------ UpConv ------------------------------------
def upconv_forward(p, from_up_ncw, from_down_ncw, gemm_in, gemm_out, unpool_map,
                   *, transfer_data=True, residual=True, batch_norm=True):
    """Forward of UpConv(in_channels, out_channels, blocks, unroll, residual,
    batch_norm, transfer_data).  from_up: (B, Cin, E_in) NCW; from_down:
    (B, Cout, E_out) NCW; returns (B, Cout, E_out) f32."""
    out_ch = p["up_conv"]["w"].shape[0]
    fe = jnp.transpose(from_up_ncw, (0, 2, 1)).astype(jnp.bfloat16)    # (B, E_in, Cin)

    # x1 = up_conv(from_up).squeeze(3)  — kept at padded 128-lane width (pad lanes zero)
    x1 = mesh_conv(fe, gemm_in, _mc_w(p["up_conv"]), p["up_conv"]["b"], epilogue="none")

    if unpool_map is not None:
        # TODO(synk): real MeshUnpool multiplies by the mesh's pooling groups matrix;
        # approximated by copying each unrolled edge's feature from its parent pooled edge.
        x1 = jnp.take(x1, unpool_map, axis=1)                          # (B, E_out, Mp)

    if transfer_data:
        fd = jnp.transpose(from_down_ncw, (0, 2, 1)).astype(jnp.bfloat16)
        fd = jnp.pad(fd, ((0, 0), (0, 0), (0, x1.shape[-1] - fd.shape[-1])))
        x1 = x1 + fd

    ep = "in_relu" if batch_norm else "relu"
    # x1 = relu(IN(conv1(x1)))  — one fused kernel
    x1 = mesh_conv(x1, gemm_out, _mc_w(p["conv1"]), p["conv1"]["b"], epilogue=ep)

    # residual conv2 blocks: x2 = relu(IN(conv(x1)) + x1)  — residual fused in-kernel
    x2 = x1
    for wconv in p["conv2"]:
        x2 = mesh_conv(x1, gemm_out, _mc_w(wconv), wconv["b"], epilogue=ep,
                       residual=x1 if residual else None)
        x1 = x2

    out = x2[:, :, :out_ch]                       # drop pad lanes only at the boundary
    return jnp.transpose(out, (0, 2, 1)).astype(jnp.float32)


# ------------------------------ parameter creation ------------------------------
def _xavier_normal(key, shape):
    fan_in = shape[1] * shape[2] * shape[3]
    fan_out = shape[0] * shape[2] * shape[3]
    std = math.sqrt(2.0 / (fan_in + fan_out))
    return std * jax.random.normal(key, shape, jnp.float32)


def init_meshconv(key, cin, cout):
    # MeshConv reset_params -> xavier_normal_ weights, zero bias
    return {'w': _xavier_normal(key, (cout, cin, 1, 5)),
            'b': jnp.zeros((cout,), jnp.float32)}


def init_upconv(key, cin, cout, blocks):
    ks = jax.random.split(key, 2 + max(blocks, 1))
    return {'up_conv': init_meshconv(ks[0], cin, cout),
            'conv1': init_meshconv(ks[1], cout, cout),
            'conv2': [init_meshconv(ks[2 + i], cout, cout) for i in range(blocks)]}


# -------------------------------------- main --------------------------------------
if __name__ == "__main__":
    key = jax.random.PRNGKey(0)
    k_par, k_up, k_down, k_gin, k_gout, k_unr = jax.random.split(key, 6)

    B, IN_CH, OUT_CH = 2, 128, 64          # one decoder step: 128 -> 64 channels
    E_IN, E_OUT = 300, 450                 # unroll 300 pooled edges back to 450
    BLOCKS = 1                             # exercise the residual conv2 path too

    params = init_upconv(k_par, IN_CH, OUT_CH, BLOCKS)
    from_up = jax.random.normal(k_up, (B, IN_CH, E_IN), jnp.float32)
    from_down = jax.random.normal(k_down, (B, OUT_CH, E_OUT), jnp.float32)
    # synthetic mesh: 4-neighbour (gemm_edges) tables per level + unpool parent map
    gemm_in = jax.random.randint(k_gin, (E_IN, 4), 0, E_IN, jnp.int32)
    gemm_out = jax.random.randint(k_gout, (E_OUT, 4), 0, E_OUT, jnp.int32)
    unpool_map = jax.random.randint(k_unr, (E_OUT,), 0, E_IN, jnp.int32)

    @jax.jit
    def fwd(params, from_up, from_down, gemm_in, gemm_out, unpool_map):
        return upconv_forward(params, from_up, from_down, gemm_in, gemm_out,
                              unpool_map, transfer_data=True, residual=True,
                              batch_norm=True)

    out = fwd(params, from_up, from_down, gemm_in, gemm_out, unpool_map)
    out = jax.block_until_ready(out)

    assert out.shape == (B, OUT_CH, E_OUT), out.shape
    assert bool(jnp.all(jnp.isfinite(out)))
    print("KERNEL_OK")
</pallas_src>

<mosaic_0001>
module attributes {stable_mosaic.version = 11 : i64} {
  func.func @_meshconv_kernel(%arg0: i32, %arg1: memref<1x300x640xbf16, #tpu.memory_space<vmem>>, %arg2: memref<640x128xbf16, #tpu.memory_space<vmem>>, %arg3: memref<1x128xf32, #tpu.memory_space<vmem>>, %arg4: memref<1x300x128xbf16, #tpu.memory_space<vmem>>) attributes {dimension_semantics = [#tpu.dimension_semantics<parallel>], iteration_bounds = array<i64: 2>, scalar_prefetch = 0 : i64, scratch_operands = 0 : i64, tpu.core_type = #tpu.core_type<tc>, window_params = [{transform_indices = @transform_0, window_bounds = array<i64: 1, 300, 640>}, {pipeline_mode = #tpu.pipeline_mode<synchronous>, transform_indices = @transform_1, window_bounds = array<i64: 640, 128>}, {pipeline_mode = #tpu.pipeline_mode<synchronous>, transform_indices = @transform_2, window_bounds = array<i64: 1, 128>}, {transform_indices = @transform_3, window_bounds = array<i64: 1, 300, 128>}]} {
    %c0 = arith.constant 0 : index
    %c0_0 = arith.constant 0 : index
    %c0_1 = arith.constant 0 : index
    %0 = vector.load %arg1[%c0, %c0_0, %c0_1] : memref<1x300x640xbf16, #tpu.memory_space<vmem>>, vector<1x300x640xbf16>
    %1 = vector.shape_cast %0 : vector<1x300x640xbf16> to vector<300x640xbf16>
    %c0_2 = arith.constant 0 : index
    %c0_3 = arith.constant 0 : index
    %2 = vector.load %arg2[%c0_2, %c0_3] : memref<640x128xbf16, #tpu.memory_space<vmem>>, vector<640x128xbf16>
    %cst = arith.constant dense<0.000000e+00> : vector<300x128xf32>
    %3 = tpu.matmul %1, %2, %cst {dimension_numbers = #tpu.dot_dimension_numbers<[1], [0], [0], [1], [0, 0, 1, 1], [], []>} : vector<300x640xbf16>, vector<640x128xbf16>, vector<300x128xf32> -> vector<300x128xf32>
    %c0_4 = arith.constant 0 : index
    %c0_5 = arith.constant 0 : index
    %4 = vector.load %arg3[%c0_4, %c0_5] : memref<1x128xf32, #tpu.memory_space<vmem>>, vector<1x128xf32>
    %5 = vector.broadcast %4 : vector<1x128xf32> to vector<300x128xf32>
    %6 = arith.addf %3, %5 : vector<300x128xf32>
    %7 = arith.truncf %6 : vector<300x128xf32> to vector<300x128xbf16>
    %c0_6 = arith.constant 0 : index
    %c0_7 = arith.constant 0 : index
    %c0_8 = arith.constant 0 : index
    %8 = vector.load %arg4[%c0_6, %c0_7, %c0_8] : memref<1x300x128xbf16, #tpu.memory_space<vmem>>, vector<1x300x128xbf16>
    %9 = vector.shape_cast %8 : vector<1x300x128xbf16> to vector<300x128xbf16>
    %10 = vector.shape_cast %7 : vector<300x128xbf16> to vector<1x300x128xbf16>
    tpu.vector_store %arg4[%c0_6, %c0_7, %c0_8], %10 {strides = array<i32>} : memref<1x300x128xbf16, #tpu.memory_space<vmem>>, vector<1x300x128xbf16>,
    return
  }
  func.func @transform_0(%arg0: i32) -> (i32, i32, i32) {
    %c0_i32 = arith.constant 0 : i32
    %c0_i32_0 = arith.constant 0 : i32
    %c0_i32_1 = arith.constant 0 : i32
    return %arg0, %c0_i32, %c0_i32_0 : i32, i32, i32
  }
  func.func @transform_1(%arg0: i32) -> (i32, i32) {
    %c0_i32 = arith.constant 0 : i32
    %c0_i32_0 = arith.constant 0 : i32
    %c0_i32_1 = arith.constant 0 : i32
    return %c0_i32, %c0_i32_0 : i32, i32
  }
  func.func @transform_2(%arg0: i32) -> (i32, i32) {
    %c0_i32 = arith.constant 0 : i32
    %c0_i32_0 = arith.constant 0 : i32
    %c0_i32_1 = arith.constant 0 : i32
    return %c0_i32, %c0_i32_0 : i32, i32
  }
  func.func @transform_3(%arg0: i32) -> (i32, i32, i32) {
    %c0_i32 = arith.constant 0 : i32
    %c0_i32_0 = arith.constant 0 : i32
    %c0_i32_1 = arith.constant 0 : i32
    return %arg0, %c0_i32, %c0_i32_0 : i32, i32, i32
  }
}

module attributes {stable_mosaic.version = 11 : i64} {
  func.func @_meshconv_kernel(%arg0: i32, %arg1: memref<1x450x640xbf16, #tpu.memory_space<vmem>>, %arg2: memref<640x128xbf16, #tpu.memory_space<vmem>>, %arg3: memref<1x128xf32, #tpu.memory_space<vmem>>, %arg4: memref<1x450x128xbf16, #tpu.memory_space<vmem>>) attributes {dimension_semantics = [#tpu.dimension_semantics<parallel>], iteration_bounds = array<i64: 2>, scalar_prefetch = 0 : i64, scratch_operands = 0 : i64, tpu.core_type = #tpu.core_type<tc>, window_params = [{transform_indices = @transform_0, window_bounds = array<i64: 1, 450, 640>}, {pipeline_mode = #tpu.pipeline_mode<synchronous>, transform_indices = @transform_1, window_bounds = array<i64: 640, 128>}, {pipeline_mode = #tpu.pipeline_mode<synchronous>, transform_indices = @transform_2, window_bounds = array<i64: 1, 128>}, {transform_indices = @transform_3, window_bounds = array<i64: 1, 450, 128>}]} {
    %c0 = arith.constant 0 : index
    %c0_0 = arith.constant 0 : index
    %c0_1 = arith.constant 0 : index
    %0 = vector.load %arg1[%c0, %c0_0, %c0_1] : memref<1x450x640xbf16, #tpu.memory_space<vmem>>, vector<1x450x640xbf16>
    %1 = vector.shape_cast %0 : vector<1x450x640xbf16> to vector<450x640xbf16>
    %c0_2 = arith.constant 0 : index
    %c0_3 = arith.constant 0 : index
    %2 = vector.load %arg2[%c0_2, %c0_3] : memref<640x128xbf16, #tpu.memory_space<vmem>>, vector<640x128xbf16>
    %cst = arith.constant dense<0.000000e+00> : vector<450x128xf32>
    %3 = tpu.matmul %1, %2, %cst {dimension_numbers = #tpu.dot_dimension_numbers<[1], [0], [0], [1], [0, 0, 1, 1], [], []>} : vector<450x640xbf16>, vector<640x128xbf16>, vector<450x128xf32> -> vector<450x128xf32>
    %c0_4 = arith.constant 0 : index
    %c0_5 = arith.constant 0 : index
    %4 = vector.load %arg3[%c0_4, %c0_5] : memref<1x128xf32, #tpu.memory_space<vmem>>, vector<1x128xf32>
    %5 = vector.broadcast %4 : vector<1x128xf32> to vector<450x128xf32>
    %6 = arith.addf %3, %5 : vector<450x128xf32>
    %cst_6 = arith.constant dense<0.000000e+00> : vector<128xf32>
    %7 = vector.multi_reduction <add>, %6, %cst_6 [0] : vector<450x128xf32> to vector<128xf32>
    %8 = vector.shape_cast %7 : vector<128xf32> to vector<1x128xf32>
    %9 = arith.mulf %6, %6 : vector<450x128xf32>
    %cst_7 = arith.constant dense<0.000000e+00> : vector<128xf32>
    %10 = vector.multi_reduction <add>, %9, %cst_7 [0] : vector<450x128xf32> to vector<128xf32>
    %11 = vector.shape_cast %10 : vector<128xf32> to vector<1x128xf32>
    %cst_8 = arith.constant 0.00222222228 : f32
    %12 = vector.broadcast %cst_8 : f32 to vector<1x128xf32>
    %13 = arith.mulf %8, %12 : vector<1x128xf32>
    %cst_9 = arith.constant 0.00222222228 : f32
    %14 = vector.broadcast %cst_9 : f32 to vector<1x128xf32>
    %15 = arith.mulf %11, %14 : vector<1x128xf32>
    %16 = arith.mulf %13, %13 : vector<1x128xf32>
    %17 = arith.subf %15, %16 : vector<1x128xf32>
    %cst_10 = arith.constant 0.000000e+00 : f32
    %18 = vector.broadcast %cst_10 : f32 to vector<1x128xf32>
    %19 = arith.maximumf %17, %18 : vector<1x128xf32>
    %20 = vector.broadcast %13 : vector<1x128xf32> to vector<450x128xf32>
    %21 = arith.subf %6, %20 : vector<450x128xf32>
    %cst_11 = arith.constant 9.99999974E-6 : f32
    %22 = vector.broadcast %cst_11 : f32 to vector<1x128xf32>
    %23 = arith.addf %19, %22 : vector<1x128xf32>
    %24 = math.rsqrt %23 : vector<1x128xf32>
    %25 = vector.broadcast %24 : vector<1x128xf32> to vector<450x128xf32>
    %26 = arith.mulf %21, %25 : vector<450x128xf32>
    %cst_12 = arith.constant 0.000000e+00 : f32
    %27 = vector.broadcast %cst_12 : f32 to vector<450x128xf32>
    %28 = arith.maximumf %26, %27 : vector<450x128xf32>
    %29 = arith.truncf %28 : vector<450x128xf32> to vector<450x128xbf16>
    %c0_13 = arith.constant 0 : index
    %c0_14 = arith.constant 0 : index
    %c0_15 = arith.constant 0 : index
    %30 = vector.load %arg4[%c0_13, %c0_14, %c0_15] : memref<1x450x128xbf16, #tpu.memory_space<vmem>>, vector<1x450x128xbf16>
    %31 = vector.shape_cast %30 : vector<1x450x128xbf16> to vector<450x128xbf16>
    %32 = vector.shape_cast %29 : vector<450x128xbf16> to vector<1x450x128xbf16>
    tpu.vector_store %arg4[%c0_13, %c0_14, %c0_15], %32 {strides = array<i32>} : memref<1x450x128xbf16, #tpu.memory_space<vmem>>, vector<1x450x128xbf16>,
    return
  }
  func.func @transform_0(%arg0: i32) -> (i32, i32, i32) {
    %c0_i32 = arith.constant 0 : i32
    %c0_i32_0 = arith.constant 0 : i32
    %c0_i32_1 = arith.constant 0 : i32
    return %arg0, %c0_i32, %c0_i32_0 : i32, i32, i32
  }
  func.func @transform_1(%arg0: i32) -> (i32, i32) {
    %c0_i32 = arith.constant 0 : i32
    %c0_i32_0 = arith.constant 0 : i32
    %c0_i32_1 = arith.constant 0 : i32
    return %c0_i32, %c0_i32_0 : i32, i32
  }
  func.func @transform_2(%arg0: i32) -> (i32, i32) {
    %c0_i32 = arith.constant 0 : i32
    %c0_i32_0 = arith.constant 0 : i32
    %c0_i32_1 = arith.constant 0 : i32
    return %c0_i32, %c0_i32_0 : i32, i32
  }
  func.func @transform_3(%arg0: i32) -> (i32, i32, i32) {
    %c0_i32 = arith.constant 0 : i32
    %c0_i32_0 = arith.constant 0 : i32
    %c0_i32_1 = arith.constant 0 : i32
    return %arg0, %c0_i32, %c0_i32_0 : i32, i32, i32
  }
}

module attributes {stable_mosaic.version = 11 : i64} {
  func.func @_meshconv_kernel(%arg0: i32, %arg1: memref<1x450x640xbf16, #tpu.memory_space<vmem>>, %arg2: memref<640x128xbf16, #tpu.memory_space<vmem>>, %arg3: memref<1x128xf32, #tpu.memory_space<vmem>>, %arg4: memref<1x450x128xbf16, #tpu.memory_space<vmem>>, %arg5: memref<1x450x128xbf16, #tpu.memory_space<vmem>>) attributes {dimension_semantics = [#tpu.dimension_semantics<parallel>], iteration_bounds = array<i64: 2>, scalar_prefetch = 0 : i64, scratch_operands = 0 : i64, tpu.core_type = #tpu.core_type<tc>, window_params = [{transform_indices = @transform_0, window_bounds = array<i64: 1, 450, 640>}, {pipeline_mode = #tpu.pipeline_mode<synchronous>, transform_indices = @transform_1, window_bounds = array<i64: 640, 128>}, {pipeline_mode = #tpu.pipeline_mode<synchronous>, transform_indices = @transform_2, window_bounds = array<i64: 1, 128>}, {transform_indices = @transform_3, window_bounds = array<i64: 1, 450, 128>}, {transform_indices = @transform_4, window_bounds = array<i64: 1, 450, 128>}]} {
    %c0 = arith.constant 0 : index
    %c0_0 = arith.constant 0 : index
    %c0_1 = arith.constant 0 : index
    %0 = vector.load %arg1[%c0, %c0_0, %c0_1] : memref<1x450x640xbf16, #tpu.memory_space<vmem>>, vector<1x450x640xbf16>
    %1 = vector.shape_cast %0 : vector<1x450x640xbf16> to vector<450x640xbf16>
    %c0_2 = arith.constant 0 : index
    %c0_3 = arith.constant 0 : index
    %2 = vector.load %arg2[%c0_2, %c0_3] : memref<640x128xbf16, #tpu.memory_space<vmem>>, vector<640x128xbf16>
    %cst = arith.constant dense<0.000000e+00> : vector<450x128xf32>
    %3 = tpu.matmul %1, %2, %cst {dimension_numbers = #tpu.dot_dimension_numbers<[1], [0], [0], [1], [0, 0, 1, 1], [], []>} : vector<450x640xbf16>, vector<640x128xbf16>, vector<450x128xf32> -> vector<450x128xf32>
    %c0_4 = arith.constant 0 : index
    %c0_5 = arith.constant 0 : index
    %4 = vector.load %arg3[%c0_4, %c0_5] : memref<1x128xf32, #tpu.memory_space<vmem>>, vector<1x128xf32>
    %5 = vector.broadcast %4 : vector<1x128xf32> to vector<450x128xf32>
    %6 = arith.addf %3, %5 : vector<450x128xf32>
    %cst_6 = arith.constant dense<0.000000e+00> : vector<128xf32>
    %7 = vector.multi_reduction <add>, %6, %cst_6 [0] : vector<450x128xf32> to vector<128xf32>
    %8 = vector.shape_cast %7 : vector<128xf32> to vector<1x128xf32>
    %9 = arith.mulf %6, %6 : vector<450x128xf32>
    %cst_7 = arith.constant dense<0.000000e+00> : vector<128xf32>
    %10 = vector.multi_reduction <add>, %9, %cst_7 [0] : vector<450x128xf32> to vector<128xf32>
    %11 = vector.shape_cast %10 : vector<128xf32> to vector<1x128xf32>
    %cst_8 = arith.constant 0.00222222228 : f32
    %12 = vector.broadcast %cst_8 : f32 to vector<1x128xf32>
    %13 = arith.mulf %8, %12 : vector<1x128xf32>
    %cst_9 = arith.constant 0.00222222228 : f32
    %14 = vector.broadcast %cst_9 : f32 to vector<1x128xf32>
    %15 = arith.mulf %11, %14 : vector<1x128xf32>
    %16 = arith.mulf %13, %13 : vector<1x128xf32>
    %17 = arith.subf %15, %16 : vector<1x128xf32>
    %cst_10 = arith.constant 0.000000e+00 : f32
    %18 = vector.broadcast %cst_10 : f32 to vector<1x128xf32>
    %19 = arith.maximumf %17, %18 : vector<1x128xf32>
    %20 = vector.broadcast %13 : vector<1x128xf32> to vector<450x128xf32>
    %21 = arith.subf %6, %20 : vector<450x128xf32>
    %cst_11 = arith.constant 9.99999974E-6 : f32
    %22 = vector.broadcast %cst_11 : f32 to vector<1x128xf32>
    %23 = arith.addf %19, %22 : vector<1x128xf32>
    %24 = math.rsqrt %23 : vector<1x128xf32>
    %25 = vector.broadcast %24 : vector<1x128xf32> to vector<450x128xf32>
    %26 = arith.mulf %21, %25 : vector<450x128xf32>
    %c0_12 = arith.constant 0 : index
    %c0_13 = arith.constant 0 : index
    %c0_14 = arith.constant 0 : index
    %27 = vector.load %arg4[%c0_12, %c0_13, %c0_14] : memref<1x450x128xbf16, #tpu.memory_space<vmem>>, vector<1x450x128xbf16>
    %28 = vector.shape_cast %27 : vector<1x450x128xbf16> to vector<450x128xbf16>
    %29 = arith.extf %28 : vector<450x128xbf16> to vector<450x128xf32>
    %30 = arith.addf %26, %29 : vector<450x128xf32>
    %cst_15 = arith.constant 0.000000e+00 : f32
    %31 = vector.broadcast %cst_15 : f32 to vector<450x128xf32>
    %32 = arith.maximumf %30, %31 : vector<450x128xf32>
    %33 = arith.truncf %32 : vector<450x128xf32> to vector<450x128xbf16>
    %c0_16 = arith.constant 0 : index
    %c0_17 = arith.constant 0 : index
    %c0_18 = arith.constant 0 : index
    %34 = vector.load %arg5[%c0_16, %c0_17, %c0_18] : memref<1x450x128xbf16, #tpu.memory_space<vmem>>, vector<1x450x128xbf16>
    %35 = vector.shape_cast %34 : vector<1x450x128xbf16> to vector<450x128xbf16>
    %36 = vector.shape_cast %33 : vector<450x128xbf16> to vector<1x450x128xbf16>
    tpu.vector_store %arg5[%c0_16, %c0_17, %c0_18], %36 {strides = array<i32>} : memref<1x450x128xbf16, #tpu.memory_space<vmem>>, vector<1x450x128xbf16>,
    return
  }
  func.func @transform_0(%arg0: i32) -> (i32, i32, i32) {
    %c0_i32 = arith.constant 0 : i32
    %c0_i32_0 = arith.constant 0 : i32
    %c0_i32_1 = arith.constant 0 : i32
    return %arg0, %c0_i32, %c0_i32_0 : i32, i32, i32
  }
  func.func @transform_1(%arg0: i32) -> (i32, i32) {
    %c0_i32 = arith.constant 0 : i32
    %c0_i32_0 = arith.constant 0 : i32
    %c0_i32_1 = arith.constant 0 : i32
    return %c0_i32, %c0_i32_0 : i32, i32
  }
  func.func @transform_2(%arg0: i32) -> (i32, i32) {
    %c0_i32 = arith.constant 0 : i32
    %c0_i32_0 = arith.constant 0 : i32
    %c0_i32_1 = arith.constant 0 : i32
    return %c0_i32, %c0_i32_0 : i32, i32
  }
  func.func @transform_3(%arg0: i32) -> (i32, i32, i32) {
    %c0_i32 = arith.constant 0 : i32
    %c0_i32_0 = arith.constant 0 : i32
    %c0_i32_1 = arith.constant 0 : i32
    return %arg0, %c0_i32, %c0_i32_0 : i32, i32, i32
  }
  func.func @transform_4(%arg0: i32) -> (i32, i32, i32) {
    %c0_i32 = arith.constant 0 : i32
    %c0_i32_0 = arith.constant 0 : i32
    %c0_i32_1 = arith.constant 0 : i32
    return %arg0, %c0_i32, %c0_i32_0 : i32, i32, i32
  }
}

</mosaic_0001>

<llo_original>
// kernel: fwd.3
$region0: #{fwd.3}
  #allocation0 [shape = 'u32[]', space=smem, size = 0x4, offset = 0x4, fixed_abs, tag = 'smem constant byte address 0x4 - core index']
  #allocation1 [shape = 'u32[144,128]{1,0:T(1,128)}', space=vmem, size = 0x12000, scoped, tag = 'internal scratch']
  %s0 = inlined_call_operand.vmem [shape: bf16[2,300,640], index: 0, kind: input, shape index: {}]
  %s1 = inlined_call_operand.vmem [shape: bf16[640,128], index: 1, kind: input, shape index: {}]
  %s2 = inlined_call_operand.vmem [shape: f32[1,128], index: 2, kind: input, shape index: {}]
  %s3 = inlined_call_operand.vmem [shape: bf16[2,300,128], index: 3, kind: output, shape index: {}]
  %s4 = sld [smem:[#allocation0]]
  $region45: #{fwd.3} parent=0
    _
  %s6 = ssub.s32 1, %s4
  %s7 = scalar_select 0, %s6, %s4
  loop: start=0, step=1, limit=4
  $region2: #{fwd.3} parent=0 // loop_pre_header
    _
  $region3: #{fwd.3} parent=0 // loop_header
    %s9 = sphi 0, %s13
    %p10 = scmp.ge.s32.totalorder %s9, 4
    %s19 = sphi 0, %s21
    %s22 = sphi 0, %s19
    %s23 = sphi 0, %s22
    %s39 = sphi 0, %s23
    %s43 = sphi 0, %s43
    %s45 = sphi 0, %s43
    %s46 = sphi 0, %s45
    %s60 = sphi 0, %s46
    %s64 = sphi 0, %s64
    %s66 = sphi 0, %s64
    %s67 = sphi 0, %s66
    %s81 = sphi 0, %s67
    %s87 = sphi 0, %s89
    %s90 = sphi 0, %s87
    %s91 = sphi 0, %s90
    %s107 = sphi 0, %s91
  $region4: #{fwd.3} parent=0 // loop_header_branch
    %12 = sbr.rel (%p10) target = $region8
  $region5: #{fwd.3} parent=0 // loop_body
    %s14 = ssub.s32 %s9, 1
    %s15 = ssub.s32 %s9, 2
    %s16 = sadd.s32 %s9, 1
    %s17 = ssub.s32 %s9, %s16
    %p18 = scmp.eq.s32.totalorder %s17, 0
    %s20 = sadd.s32 %s19, 1
    %s21 = scalar_select %p18, %s19, %s20
    %p24 = pneg %p18
    %p25 = scmp.eq.s32.totalorder %s9, 1
    %p26 = por %p24, %p25
    %p27 = scmp.ne.s32.totalorder %s19, %s22
    %p28 = scmp.eq.s32.totalorder %s9, 0
    %p29 = por %p27, %p28
    %p30 = scmp.ne.s32.totalorder %s19, %s22
    %p31 = scmp.eq.s32.totalorder %s14, 1
    %p32 = por %p30, %p31
    %p33 = scmp.ne.s32.totalorder %s22, %s23
    %p34 = scmp.eq.s32.totalorder %s14, 0
    %p35 = por %p33, %p34
    %p36 = scmp.ne.s32.totalorder %s22, %s23
    %p37 = scmp.eq.s32.totalorder %s15, 1
    %p38 = por %p36, %p37
    %p40 = scmp.ne.s32.totalorder %s23, %s39
    %p41 = scmp.eq.s32.totalorder %s15, 0
    %p42 = por %p40, %p41
    %s44 = sadd.s32 %s43, 1
    %p47 = scmp.eq.s32.totalorder %s9, 1
    %p48 = scmp.ne.s32.totalorder %s43, %s45
    %p49 = scmp.eq.s32.totalorder %s9, 0
    %p50 = por %p48, %p49
    %p51 = scmp.ne.s32.totalorder %s43, %s45
    %p52 = scmp.eq.s32.totalorder %s14, 1
    %p53 = por %p51, %p52
    %p54 = scmp.ne.s32.totalorder %s45, %s46
    %p55 = scmp.eq.s32.totalorder %s14, 0
    %p56 = por %p54, %p55
    %p57 = scmp.ne.s32.totalorder %s45, %s46
    %p58 = scmp.eq.s32.totalorder %s15, 1
    %p59 = por %p57, %p58
    %p61 = scmp.ne.s32.totalorder %s46, %s60
    %p62 = scmp.eq.s32.totalorder %s15, 0
    %p63 = por %p61, %p62
    %s65 = sadd.s32 %s64, 1
    %p68 = scmp.eq.s32.totalorder %s9, 1
    %p69 = scmp.ne.s32.totalorder %s64, %s66
    %p70 = scmp.eq.s32.totalorder %s9, 0
    %p71 = por %p69, %p70
    %p72 = scmp.ne.s32.totalorder %s64, %s66
    %p73 = scmp.eq.s32.totalorder %s14, 1
    %p74 = por %p72, %p73
    %p75 = scmp.ne.s32.totalorder %s66, %s67
    %p76 = scmp.eq.s32.totalorder %s14, 0
    %p77 = por %p75, %p76
    %p78 = scmp.ne.s32.totalorder %s66, %s67
    %p79 = scmp.eq.s32.totalorder %s15, 1
    %p80 = por %p78, %p79
    %p82 = scmp.ne.s32.totalorder %s67, %s81
    %p83 = scmp.eq.s32.totalorder %s15, 0
    %p84 = por %p82, %p83
    %s85 = ssub.s32 %s9, %s16
    %p86 = scmp.eq.s32.totalorder %s85, 0
    %s88 = sadd.s32 %s87, 1
    %s89 = scalar_select %p86, %s87, %s88
    %p92 = pneg %p86
    %p93 = scmp.eq.s32.totalorder %s9, 1
    %p94 = por %p92, %p93
    %p95 = scmp.ne.s32.totalorder %s87, %s90
    %p96 = scmp.eq.s32.totalorder %s9, 0
    %p97 = por %p95, %p96
    %p98 = scmp.ne.s32.totalorder %s87, %s90
    %p99 = scmp.eq.s32.totalorder %s14, 1
    %p100 = por %p98, %p99
    %p101 = scmp.ne.s32.totalorder %s90, %s91
    %p102 = scmp.eq.s32.totalorder %s14, 0
    %p103 = por %p101, %p102
    %p104 = scmp.ne.s32.totalorder %s90, %s91
    %p105 = scmp.eq.s32.totalorder %s15, 1
    %p106 = por %p104, %p105
    %p108 = scmp.ne.s32.totalorder %s91, %s107
    %p109 = scmp.eq.s32.totalorder %s15, 0
    %p110 = por %p108, %p109
    %p111 = scmp.le.s32.totalorder 1, %s9
    %p112 = scmp.lt.s32.totalorder %s9, 3
    %p113 = pnand %p111, %p112
    %p114 = pneg %p113
    // Predicated region
    $region9: #{fwd.3} parent=5 // pred_check
      _
    $region10: #{fwd.3} parent=5 // pred_check_branch
      %116 = sbr.rel (%p113) target = $region12
    $region11: #{fwd.3} parent=5 // pred_region
      %s117 = ssub.s32 %s9, 1
      // Predicated region
      $region13: #{fwd.3} parent=11 // pred_check
        %p118 = pneg %p56
      $region14: #{fwd.3} parent=11 // pred_check_branch
        %120 = sbr.rel (%p118) target = $region16
      $region15: #{fwd.3} parent=11 // pred_region
        _
      $region16: #{fwd.3} parent=11 // pred_fallthru
        _
      // Predicated region
      $region17: #{fwd.3} parent=11 // pred_check
        %p121 = pneg %p77
      $region18: #{fwd.3} parent=11 // pred_check_branch
        %123 = sbr.rel (%p121) target = $region20
      $region19: #{fwd.3} parent=11 // pred_region
        _
      $region20: #{fwd.3} parent=11 // pred_fallthru
        _
    $region12: #{fwd.3} parent=5 // pred_fallthru
      _
    %p124 = scmp.lt.s32.totalorder %s9, 2
    // Predicated region
    $region21: #{fwd.3} parent=5 // pred_check
      %p125 = pneg %p124
    $region22: #{fwd.3} parent=5 // pred_check_branch
      %127 = sbr.rel (%p125) target = $region24
    $region23: #{fwd.3} parent=5 // pred_region
      // Predicated region
      $region25: #{fwd.3} parent=23 // pred_check
        %p128 = pneg %p29
      $region26: #{fwd.3} parent=23 // pred_check_branch
        %130 = sbr.rel (%p128) target = $region28
      $region27: #{fwd.3} parent=23 // pred_region
        %p131 = scmp.lt.s32.totalorder %s9, 1
        %s132 = scalar_select %p131, %s9, 1
        %s133 = smul.addr %s132, 190
        %s134 = smul.addr %s133, 4
        %s135 = scalar_lea.vmem %s0, %s134
      $region28: #{fwd.3} parent=23 // pred_fallthru
        _
    $region24: #{fwd.3} parent=5 // pred_fallthru
      _
    %p136 = scmp.le.s32.totalorder 1, %s9
    %p137 = scmp.lt.s32.totalorder %s9, 3
    %p138 = pnand %p136, %p137
    %p139 = pneg %p138
    // Predicated region
    $region29: #{fwd.3} parent=5 // pred_check
      _
    $region30: #{fwd.3} parent=5 // pred_check_branch
      %141 = sbr.rel (%p138) target = $region32
    $region31: #{fwd.3} parent=5 // pred_region
      %s142 = ssub.s32 %s9, 1
      %p143 = scmp.lt.s32.totalorder %s14, 1
      %s144 = scalar_select %p143, %s14, 1
      %s145 = smul.addr %s144, 190
      %s146 = smul.addr %s145, 4
      %s147 = scalar_lea.vmem %s0, %s146
      %p148 = pneg %p35
      %p149 = pneg %p32
      %p150 = pneg %p56
      %p151 = pneg %p53
      %p152 = pneg %p77
      %p153 = pneg %p74
      %p154 = pneg %p103
      %p155 = pneg %p100
      %p156 = scmp.lt.s32.totalorder %s14, 1
      %s157 = scalar_select %p156, %s14, 1
      %s158 = smul.addr %s157, 38
      %s159 = smul.addr %s158, 4
      %s160 = scalar_lea.vmem %s3, %s159
      %p161 = scmp.lt.s32.totalorder %s14, 1
      %s162 = scalar_select %p161, %s14, 1
      %s163 = smul.addr %s162, 190
      %s164 = smul.addr %s163, 4
      %s165 = scalar_lea.vmem %s0, %s164
      %p166 = scmp.lt.s32.totalorder %s14, 1
      %s167 = scalar_select %p166, %s14, 1
      %s168 = smul.addr %s167, 38
      %s169 = smul.addr %s168, 4
      %s170 = scalar_lea.vmem %s3, %s169
      %v172 = vld [vmem:[%s165] sm:$0xff]
      %v173 = vld [vmem:[%s165 + $0x8] sm:$0xff]
      %v174 = vld [vmem:[%s165 + $0x10] sm:$0xf]
      %v175 = vld [vmem:[%s165 + $0x14] sm:$0xff]
      %v176 = vld [vmem:[%s165 + $0x1c] sm:$0xff]
      %v177 = vld [vmem:[%s165 + $0x24] sm:$0xf]
      %v178 = vld [vmem:[%s165 + $0x28] sm:$0xff]
      %v179 = vld [vmem:[%s165 + $0x30] sm:$0xff]
      %v180 = vld [vmem:[%s165 + $0x38] sm:$0xf]
      %v181 = vld [vmem:[%s165 + $0x3c] sm:$0xff]
      %v182 = vld [vmem:[%s165 + $0x44] sm:$0xff]
      %v183 = vld [vmem:[%s165 + $0x4c] sm:$0xf]
      %v184 = vld [vmem:[%s165 + $0x50] sm:$0xff]
      %v185 = vld [vmem:[%s165 + $0x58] sm:$0xff]
      %v186 = vld [vmem:[%s165 + $0x60] sm:$0xf]
      %v187 = vld [vmem:[%s165 + $0x64] sm:$0xff]
      %v188 = vld [vmem:[%s165 + $0x6c] sm:$0xff]
      %v189 = vld [vmem:[%s165 + $0x74] sm:$0xf]
      %v190 = vld [vmem:[%s165 + $0x78] sm:$0xff]
      %v191 = vld [vmem:[%s165 + $0x80] sm:$0xff]
      %v192 = vld [vmem:[%s165 + $0x88] sm:$0xf]
      %v193 = vld [vmem:[%s165 + $0x8c] sm:$0xff]
      %v194 = vld [vmem:[%s165 + $0x94] sm:$0xff]
      %v195 = vld [vmem:[%s165 + $0x9c] sm:$0xf]
      %v196 = vld [vmem:[%s165 + $0xa0] sm:$0xff]
      %v197 = vld [vmem:[%s165 + $0xa8] sm:$0xff]
      %v198 = vld [vmem:[%s165 + $0xb0] sm:$0xf]
      %v199 = vld [vmem:[%s165 + $0xb4] sm:$0xff]
      %v200 = vld [vmem:[%s165 + $0xbc] sm:$0xff]
      %v201 = vld [vmem:[%s165 + $0xc4] sm:$0xf]
      %v202 = vld [vmem:[%s165 + $0xc8] sm:$0xff]
      %v203 = vld [vmem:[%s165 + $0xd0] sm:$0xff]
      %v204 = vld [vmem:[%s165 + $0xd8] sm:$0xf]
      %v205 = vld [vmem:[%s165 + $0xdc] sm:$0xff]
      %v206 = vld [vmem:[%s165 + $0xe4] sm:$0xff]
      %v207 = vld [vmem:[%s165 + $0xec] sm:$0xf]
      %v208 = vld [vmem:[%s165 + $0xf0] sm:$0xff]
      %v209 = vld [vmem:[%s165 + $0xf8] sm:$0xff]
      %v210 = vld [vmem:[%s165 + $0x100] sm:$0xf]
      %v211 = vld [vmem:[%s165 + $0x104] sm:$0xff]
      %v212 = vld [vmem:[%s165 + $0x10c] sm:$0xff]
      %v213 = vld [vmem:[%s165 + $0x114] sm:$0xf]
      %v214 = vld [vmem:[%s165 + $0x118] sm:$0xff]
      %v215 = vld [vmem:[%s165 + $0x120] sm:$0xff]
      %v216 = vld [vmem:[%s165 + $0x128] sm:$0xf]
      %v217 = vld [vmem:[%s165 + $0x12c] sm:$0xff]
      %v218 = vld [vmem:[%s165 + $0x134] sm:$0xff]
      %v219 = vld [vmem:[%s165 + $0x13c] sm:$0xf]
      %v220 = vld [vmem:[%s165 + $0x140] sm:$0xff]
      %v221 = vld [vmem:[%s165 + $0x148] sm:$0xff]
      %v222 = vld [vmem:[%s165 + $0x150] sm:$0xf]
      %v223 = vld [vmem:[%s165 + $0x154] sm:$0xff]
      %v224 = vld [vmem:[%s165 + $0x15c] sm:$0xff]
      %v225 = vld [vmem:[%s165 + $0x164] sm:$0xf]
      %v226 = vld [vmem:[%s165 + $0x168] sm:$0xff]
      %v227 = vld [vmem:[%s165 + $0x170] sm:$0xff]
      %v228 = vld [vmem:[%s165 + $0x178] sm:$0xf]
      %v229 = vld [vmem:[%s165 + $0x17c] sm:$0xff]
      %v230 = vld [vmem:[%s165 + $0x184] sm:$0xff]
      %v231 = vld [vmem:[%s165 + $0x18c] sm:$0xf]
      %v232 = vld [vmem:[%s165 + $0x190] sm:$0xff]
      %v233 = vld [vmem:[%s165 + $0x198] sm:$0xff]
      %v234 = vld [vmem:[%s165 + $0x1a0] sm:$0xf]
      %v235 = vld [vmem:[%s165 + $0x1a4] sm:$0xff]
      %v236 = vld [vmem:[%s165 + $0x1ac] sm:$0xff]
      %v237 = vld [vmem:[%s165 + $0x1b4] sm:$0xf]
      %v238 = vld [vmem:[%s165 + $0x1b8] sm:$0xff]
      %v239 = vld [vmem:[%s165 + $0x1c0] sm:$0xff]
      %v240 = vld [vmem:[%s165 + $0x1c8] sm:$0xf]
      %v241 = vld [vmem:[%s165 + $0x1cc] sm:$0xff]
      %v242 = vld [vmem:[%s165 + $0x1d4] sm:$0xff]
      %v243 = vld [vmem:[%s165 + $0x1dc] sm:$0xf]
      %v244 = vld [vmem:[%s165 + $0x1e0] sm:$0xff]
      %v245 = vld [vmem:[%s165 + $0x1e8] sm:$0xff]
      %v246 = vld [vmem:[%s165 + $0x1f0] sm:$0xf]
      %v247 = vld [vmem:[%s165 + $0x1f4] sm:$0xff]
      %v248 = vld [vmem:[%s165 + $0x1fc] sm:$0xff]
      %v249 = vld [vmem:[%s165 + $0x204] sm:$0xf]
      %v250 = vld [vmem:[%s165 + $0x208] sm:$0xff]
      %v251 = vld [vmem:[%s165 + $0x210] sm:$0xff]
      %v252 = vld [vmem:[%s165 + $0x218] sm:$0xf]
      %v253 = vld [vmem:[%s165 + $0x21c] sm:$0xff]
      %v254 = vld [vmem:[%s165 + $0x224] sm:$0xff]
      %v255 = vld [vmem:[%s165 + $0x22c] sm:$0xf]
      %v256 = vld [vmem:[%s165 + $0x230] sm:$0xff]
      %v257 = vld [vmem:[%s165 + $0x238] sm:$0xff]
      %v258 = vld [vmem:[%s165 + $0x240] sm:$0xf]
      %v259 = vld [vmem:[%s165 + $0x244] sm:$0xff]
      %v260 = vld [vmem:[%s165 + $0x24c] sm:$0xff]
      %v261 = vld [vmem:[%s165 + $0x254] sm:$0xf]
      %v262 = vld [vmem:[%s165 + $0x258] sm:$0xff]
      %v263 = vld [vmem:[%s165 + $0x260] sm:$0xff]
      %v264 = vld [vmem:[%s165 + $0x268] sm:$0xf]
      %v265 = vld [vmem:[%s165 + $0x26c] sm:$0xff]
      %v266 = vld [vmem:[%s165 + $0x274] sm:$0xff]
      %v267 = vld [vmem:[%s165 + $0x27c] sm:$0xf]
      %v268 = vld [vmem:[%s165 + $0x280] sm:$0xff]
      %v269 = vld [vmem:[%s165 + $0x288] sm:$0xff]
      %v270 = vld [vmem:[%s165 + $0x290] sm:$0xf]
      %v271 = vld [vmem:[%s165 + $0x294] sm:$0xff]
      %v272 = vld [vmem:[%s165 + $0x29c] sm:$0xff]
      %v273 = vld [vmem:[%s165 + $0x2a4] sm:$0xf]
      %v274 = vld [vmem:[%s165 + $0x2a8] sm:$0xff]
      %v275 = vld [vmem:[%s165 + $0x2b0] sm:$0xff]
      %v276 = vld [vmem:[%s165 + $0x2b8] sm:$0xf]
      %v277 = vld [vmem:[%s165 + $0x2bc] sm:$0xff]
      %v278 = vld [vmem:[%s165 + $0x2c4] sm:$0xff]
      %v279 = vld [vmem:[%s165 + $0x2cc] sm:$0xf]
      %v280 = vld [vmem:[%s165 + $0x2d0] sm:$0xff]
      %v281 = vld [vmem:[%s165 + $0x2d8] sm:$0xff]
      %v282 = vld [vmem:[%s165 + $0x2e0] sm:$0xf]
      %v283 = vld [vmem:[%s165 + $0x2e4] sm:$0x33]
      %v284 = vld [vmem:[%s165 + $0x2ec] sm:$0x33]
      %v285 = vld [vmem:[%s165 + $0x2f4] sm:$0x3]
      %v286 = vld [vmem:[%s1] sm:$0xf]
      %v287 = vld [vmem:[%s1 + $0x4] sm:$0xf]
      %v288 = vld [vmem:[%s1 + $0x8] sm:$0xf]
      %v289 = vld [vmem:[%s1 + $0xc] sm:$0xf]
      %v290 = vld [vmem:[%s1 + $0x10] sm:$0xf]
      %v291 = vld [vmem:[%s1 + $0x14] sm:$0xf]
      %v292 = vld [vmem:[%s1 + $0x18] sm:$0xf]
      %v293 = vld [vmem:[%s1 + $0x1c] sm:$0xf]
      %v294 = vld [vmem:[%s1 + $0x20] sm:$0xf]
      %v295 = vld [vmem:[%s1 + $0x24] sm:$0xf]
      %v296 = vld [vmem:[%s1 + $0x28] sm:$0xf]
      %v297 = vld [vmem:[%s1 + $0x2c] sm:$0xf]
      %v298 = vld [vmem:[%s1 + $0x30] sm:$0xf]
      %v299 = vld [vmem:[%s1 + $0x34] sm:$0xf]
      %v300 = vld [vmem:[%s1 + $0x38] sm:$0xf]
      %v301 = vld [vmem:[%s1 + $0x3c] sm:$0xf]
      %v302 = vld [vmem:[%s1 + $0x40] sm:$0xf]
      %v303 = vld [vmem:[%s1 + $0x44] sm:$0xf]
      %v304 = vld [vmem:[%s1 + $0x48] sm:$0xf]
      %v305 = vld [vmem:[%s1 + $0x4c] sm:$0xf]
      %v306 = vld [vmem:[%s1 + $0x50] sm:$0xf]
      %v307 = vld [vmem:[%s1 + $0x54] sm:$0xf]
      %v308 = vld [vmem:[%s1 + $0x58] sm:$0xf]
      %v309 = vld [vmem:[%s1 + $0x5c] sm:$0xf]
      %v310 = vld [vmem:[%s1 + $0x60] sm:$0xf]
      %v311 = vld [vmem:[%s1 + $0x64] sm:$0xf]
      %v312 = vld [vmem:[%s1 + $0x68] sm:$0xf]
      %v313 = vld [vmem:[%s1 + $0x6c] sm:$0xf]
      %v314 = vld [vmem:[%s1 + $0x70] sm:$0xf]
      %v315 = vld [vmem:[%s1 + $0x74] sm:$0xf]
      %v316 = vld [vmem:[%s1 + $0x78] sm:$0xf]
      %v317 = vld [vmem:[%s1 + $0x7c] sm:$0xf]
      %v318 = vld [vmem:[%s1 + $0x80] sm:$0xf]
      %v319 = vld [vmem:[%s1 + $0x84] sm:$0xf]
      %v320 = vld [vmem:[%s1 + $0x88] sm:$0xf]
      %v321 = vld [vmem:[%s1 + $0x8c] sm:$0xf]
      %v322 = vld [vmem:[%s1 + $0x90] sm:$0xf]
      %v323 = vld [vmem:[%s1 + $0x94] sm:$0xf]
      %v324 = vld [vmem:[%s1 + $0x98] sm:$0xf]
      %v325 = vld [vmem:[%s1 + $0x9c] sm:$0xf]
      %v326 = vld [vmem:[%s1 + $0xa0] sm:$0xf]
      %v327 = vld [vmem:[%s1 + $0xa4] sm:$0xf]
      %v328 = vld [vmem:[%s1 + $0xa8] sm:$0xf]
      %v329 = vld [vmem:[%s1 + $0xac] sm:$0xf]
      %v330 = vld [vmem:[%s1 + $0xb0] sm:$0xf]
      %v331 = vld [vmem:[%s1 + $0xb4] sm:$0xf]
      %v332 = vld [vmem:[%s1 + $0xb8] sm:$0xf]
      %v333 = vld [vmem:[%s1 + $0xbc] sm:$0xf]
      %v334 = vld [vmem:[%s1 + $0xc0] sm:$0xf]
      %v335 = vld [vmem:[%s1 + $0xc4] sm:$0xf]
      %v336 = vld [vmem:[%s1 + $0xc8] sm:$0xf]
      %v337 = vld [vmem:[%s1 + $0xcc] sm:$0xf]
      %v338 = vld [vmem:[%s1 + $0xd0] sm:$0xf]
      %v339 = vld [vmem:[%s1 + $0xd4] sm:$0xf]
      %v340 = vld [vmem:[%s1 + $0xd8] sm:$0xf]
      %v341 = vld [vmem:[%s1 + $0xdc] sm:$0xf]
      %v342 = vld [vmem:[%s1 + $0xe0] sm:$0xf]
      %v343 = vld [vmem:[%s1 + $0xe4] sm:$0xf]
      %v344 = vld [vmem:[%s1 + $0xe8] sm:$0xf]
      %v345 = vld [vmem:[%s1 + $0xec] sm:$0xf]
      %v346 = vld [vmem:[%s1 + $0xf0] sm:$0xf]
      %v347 = vld [vmem:[%s1 + $0xf4] sm:$0xf]
      %v348 = vld [vmem:[%s1 + $0xf8] sm:$0xf]
      %v349 = vld [vmem:[%s1 + $0xfc] sm:$0xf]
      %v350 = vld [vmem:[%s1 + $0x100] sm:$0xf]
      %v351 = vld [vmem:[%s1 + $0x104] sm:$0xf]
      %v352 = vld [vmem:[%s1 + $0x108] sm:$0xf]
      %v353 = vld [vmem:[%s1 + $0x10c] sm:$0xf]
      %v354 = vld [vmem:[%s1 + $0x110] sm:$0xf]
      %v355 = vld [vmem:[%s1 + $0x114] sm:$0xf]
      %v356 = vld [vmem:[%s1 + $0x118] sm:$0xf]
      %v357 = vld [vmem:[%s1 + $0x11c] sm:$0xf]
      %v358 = vld [vmem:[%s1 + $0x120] sm:$0xf]
      %v359 = vld [vmem:[%s1 + $0x124] sm:$0xf]
      %v360 = vld [vmem:[%s1 + $0x128] sm:$0xf]
      %v361 = vld [vmem:[%s1 + $0x12c] sm:$0xf]
      %v362 = vld [vmem:[%s1 + $0x130] sm:$0xf]
      %v363 = vld [vmem:[%s1 + $0x134] sm:$0xf]
      %v364 = vld [vmem:[%s1 + $0x138] sm:$0xf]
      %v365 = vld [vmem:[%s1 + $0x13c] sm:$0xf]
      %v366 = vld [vmem:[%s2] sm:$0x1]
      %v368 = vlaneseq
      %v369 = vshrl.u32 %v368, 7
      %v370 = vsub.s32 0, %v369
      %v371 = vrot.slane %v366, %v370
      %v487 = vunpack.c.l.b16 %v172
      %v488 = vunpack.c.h.b16 %v172
      %v489 = vunpack.c.l.b16 %v173
      %v490 = vunpack.c.h.b16 %v173
      %v491 = vunpack.c.l.b16 %v174
      %v492 = vunpack.c.l.b16 %v175
      %v493 = vunpack.c.h.b16 %v175
      %v494 = vunpack.c.l.b16 %v176
      %v495 = vunpack.c.h.b16 %v176
      %v496 = vunpack.c.l.b16 %v177
      %v497 = vunpack.c.l.b16 %v178
      %v498 = vunpack.c.h.b16 %v178
      %v499 = vunpack.c.l.b16 %v179
      %v500 = vunpack.c.h.b16 %v179
      %v501 = vunpack.c.l.b16 %v180
      %v502 = vunpack.c.l.b16 %v181
      %v503 = vunpack.c.h.b16 %v181
      %v504 = vunpack.c.l.b16 %v182
      %v505 = vunpack.c.h.b16 %v182
      %v506 = vunpack.c.l.b16 %v183
      %v507 = vunpack.c.l.b16 %v184
      %v508 = vunpack.c.h.b16 %v184
      %v509 = vunpack.c.l.b16 %v185
      %v510 = vunpack.c.h.b16 %v185
      %v511 = vunpack.c.l.b16 %v186
      %v512 = vunpack.c.l.b16 %v187
      %v513 = vunpack.c.h.b16 %v187
      %v514 = vunpack.c.l.b16 %v188
      %v515 = vunpack.c.h.b16 %v188
      %v516 = vunpack.c.l.b16 %v189
      %v517 = vunpack.c.l.b16 %v190
      %v518 = vunpack.c.h.b16 %v190
      %v519 = vunpack.c.l.b16 %v191
      %v520 = vunpack.c.h.b16 %v191
      %v521 = vunpack.c.l.b16 %v192
      %v522 = vunpack.c.l.b16 %v193
      %v523 = vunpack.c.h.b16 %v193
      %v524 = vunpack.c.l.b16 %v194
      %v525 = vunpack.c.h.b16 %v194
      %v526 = vunpack.c.l.b16 %v195
      %v527 = vunpack.c.l.b16 %v196
      %v528 = vunpack.c.h.b16 %v196
      %v529 = vunpack.c.l.b16 %v197
      %v530 = vunpack.c.h.b16 %v197
      %v531 = vunpack.c.l.b16 %v198
      %v532 = vunpack.c.l.b16 %v199
      %v533 = vunpack.c.h.b16 %v199
      %v534 = vunpack.c.l.b16 %v200
      %v535 = vunpack.c.h.b16 %v200
      %v536 = vunpack.c.l.b16 %v201
      %v537 = vunpack.c.l.b16 %v202
      %v538 = vunpack.c.h.b16 %v202
      %v539 = vunpack.c.l.b16 %v203
      %v540 = vunpack.c.h.b16 %v203
      %v541 = vunpack.c.l.b16 %v204
      %v542 = vunpack.c.l.b16 %v205
      %v543 = vunpack.c.h.b16 %v205
      %v544 = vunpack.c.l.b16 %v206
      %v545 = vunpack.c.h.b16 %v206
      %v546 = vunpack.c.l.b16 %v207
      %v547 = vunpack.c.l.b16 %v208
      %v548 = vunpack.c.h.b16 %v208
      %v549 = vunpack.c.l.b16 %v209
      %v550 = vunpack.c.h.b16 %v209
      %v551 = vunpack.c.l.b16 %v210
      %v552 = vunpack.c.l.b16 %v211
      %v553 = vunpack.c.h.b16 %v211
      %v554 = vunpack.c.l.b16 %v212
      %v555 = vunpack.c.h.b16 %v212
      %v556 = vunpack.c.l.b16 %v213
      %v557 = vunpack.c.l.b16 %v214
      %v558 = vunpack.c.h.b16 %v214
      %v559 = vunpack.c.l.b16 %v215
      %v560 = vunpack.c.h.b16 %v215
      %v561 = vunpack.c.l.b16 %v216
      %v562 = vunpack.c.l.b16 %v217
      %v563 = vunpack.c.h.b16 %v217
      %v564 = vunpack.c.l.b16 %v218
      %v565 = vunpack.c.h.b16 %v218
      %v566 = vunpack.c.l.b16 %v219
      %v567 = vunpack.c.l.b16 %v220
      %v568 = vunpack.c.h.b16 %v220
      %v569 = vunpack.c.l.b16 %v221
      %v570 = vunpack.c.h.b16 %v221
      %v571 = vunpack.c.l.b16 %v222
      %v572 = vunpack.c.l.b16 %v223
      %v573 = vunpack.c.h.b16 %v223
      %v574 = vunpack.c.l.b16 %v224
      %v575 = vunpack.c.h.b16 %v224
      %v576 = vunpack.c.l.b16 %v225
      %v577 = vunpack.c.l.b16 %v226
      %v578 = vunpack.c.h.b16 %v226
      %v579 = vunpack.c.l.b16 %v227
      %v580 = vunpack.c.h.b16 %v227
      %v581 = vunpack.c.l.b16 %v228
      %v582 = vunpack.c.l.b16 %v229
      %v583 = vunpack.c.h.b16 %v229
      %v584 = vunpack.c.l.b16 %v230
      %v585 = vunpack.c.h.b16 %v230
      %v586 = vunpack.c.l.b16 %v231
      %v587 = vunpack.c.l.b16 %v232
      %v588 = vunpack.c.h.b16 %v232
      %v589 = vunpack.c.l.b16 %v233
      %v590 = vunpack.c.h.b16 %v233
      %v591 = vunpack.c.l.b16 %v234
      %v592 = vunpack.c.l.b16 %v235
      %v593 = vunpack.c.h.b16 %v235
      %v594 = vunpack.c.l.b16 %v236
      %v595 = vunpack.c.h.b16 %v236
      %v596 = vunpack.c.l.b16 %v237
      %v597 = vunpack.c.l.b16 %v238
      %v598 = vunpack.c.h.b16 %v238
      %v599 = vunpack.c.l.b16 %v239
      %v600 = vunpack.c.h.b16 %v239
      %v601 = vunpack.c.l.b16 %v240
      %v602 = vunpack.c.l.b16 %v241
      %v603 = vunpack.c.h.b16 %v241
      %v604 = vunpack.c.l.b16 %v242
      %v605 = vunpack.c.h.b16 %v242
      %v606 = vunpack.c.l.b16 %v243
      %v607 = vunpack.c.l.b16 %v244
      %v608 = vunpack.c.h.b16 %v244
      %v609 = vunpack.c.l.b16 %v245
      %v610 = vunpack.c.h.b16 %v245
      %v611 = vunpack.c.l.b16 %v246
      %v612 = vunpack.c.l.b16 %v247
      %v613 = vunpack.c.h.b16 %v247
      %v614 = vunpack.c.l.b16 %v248
      %v615 = vunpack.c.h.b16 %v248
      %v616 = vunpack.c.l.b16 %v249
      %v617 = vunpack.c.l.b16 %v250
      %v618 = vunpack.c.h.b16 %v250
      %v619 = vunpack.c.l.b16 %v251
      %v620 = vunpack.c.h.b16 %v251
      %v621 = vunpack.c.l.b16 %v252
      %v622 = vunpack.c.l.b16 %v253
      %v623 = vunpack.c.h.b16 %v253
      %v624 = vunpack.c.l.b16 %v254
      %v625 = vunpack.c.h.b16 %v254
      %v626 = vunpack.c.l.b16 %v255
      %v627 = vunpack.c.l.b16 %v256
      %v628 = vunpack.c.h.b16 %v256
      %v629 = vunpack.c.l.b16 %v257
      %v630 = vunpack.c.h.b16 %v257
      %v631 = vunpack.c.l.b16 %v258
      %v632 = vunpack.c.l.b16 %v259
      %v633 = vunpack.c.h.b16 %v259
      %v634 = vunpack.c.l.b16 %v260
      %v635 = vunpack.c.h.b16 %v260
      %v636 = vunpack.c.l.b16 %v261
      %v637 = vunpack.c.l.b16 %v262
      %v638 = vunpack.c.h.b16 %v262
      %v639 = vunpack.c.l.b16 %v263
      %v640 = vunpack.c.h.b16 %v263
      %v641 = vunpack.c.l.b16 %v264
      %v642 = vunpack.c.l.b16 %v265
      %v643 = vunpack.c.h.b16 %v265
      %v644 = vunpack.c.l.b16 %v266
      %v645 = vunpack.c.h.b16 %v266
      %v646 = vunpack.c.l.b16 %v267
      %v647 = vunpack.c.l.b16 %v268
      %v648 = vunpack.c.h.b16 %v268
      %v649 = vunpack.c.l.b16 %v269
      %v650 = vunpack.c.h.b16 %v269
      %v651 = vunpack.c.l.b16 %v270
      %v652 = vunpack.c.l.b16 %v271
      %v653 = vunpack.c.h.b16 %v271
      %v654 = vunpack.c.l.b16 %v272
      %v655 = vunpack.c.h.b16 %v272
      %v656 = vunpack.c.l.b16 %v273
      %v657 = vunpack.c.l.b16 %v274
      %v658 = vunpack.c.h.b16 %v274
      %v659 = vunpack.c.l.b16 %v275
      %v660 = vunpack.c.h.b16 %v275
      %v661 = vunpack.c.l.b16 %v276
      %v662 = vunpack.c.l.b16 %v277
      %v663 = vunpack.c.h.b16 %v277
      %v664 = vunpack.c.l.b16 %v278
      %v665 = vunpack.c.h.b16 %v278
      %v666 = vunpack.c.l.b16 %v279
      %v667 = vunpack.c.l.b16 %v280
      %v668 = vunpack.c.h.b16 %v280
      %v669 = vunpack.c.l.b16 %v281
      %v670 = vunpack.c.h.b16 %v281
      %v671 = vunpack.c.l.b16 %v282
      %v672 = vunpack.c.l.b16 %v283
      %v673 = vunpack.c.h.b16 %v283
      %v674 = vunpack.c.l.b16 %v284
      %v675 = vunpack.c.h.b16 %v284
      %v676 = vunpack.c.l.b16 %v285
      %v677 = vpack.c.b16 %v492, %v487
      %v678 = vpack.c.b16 %v493, %v488
      %v679 = vpack.c.b16 %v494, %v489
      %v680 = vpack.c.b16 %v495, %v490
      %v681 = vpack.c.b16 %v496, %v491
      %v682 = vpack.c.b16 %v502, %v497
      %v683 = vpack.c.b16 %v503, %v498
      %v684 = vpack.c.b16 %v504, %v499
      %v685 = vpack.c.b16 %v505, %v500
      %v686 = vpack.c.b16 %v506, %v501
      %v687 = vpack.c.b16 %v512, %v507
      %v688 = vpack.c.b16 %v513, %v508
      %v689 = vpack.c.b16 %v514, %v509
      %v690 = vpack.c.b16 %v515, %v510
      %v691 = vpack.c.b16 %v516, %v511
      %v692 = vpack.c.b16 %v522, %v517
      %v693 = vpack.c.b16 %v523, %v518
      %v694 = vpack.c.b16 %v524, %v519
      %v695 = vpack.c.b16 %v525, %v520
      %v696 = vpack.c.b16 %v526, %v521
      %v697 = vpack.c.b16 %v532, %v527
      %v698 = vpack.c.b16 %v533, %v528
      %v699 = vpack.c.b16 %v534, %v529
      %v700 = vpack.c.b16 %v535, %v530
      %v701 = vpack.c.b16 %v536, %v531
      %v702 = vpack.c.b16 %v542, %v537
      %v703 = vpack.c.b16 %v543, %v538
      %v704 = vpack.c.b16 %v544, %v539
      %v705 = vpack.c.b16 %v545, %v540
      %v706 = vpack.c.b16 %v546, %v541
      %v707 = vpack.c.b16 %v552, %v547
      %v708 = vpack.c.b16 %v553, %v548
      %v709 = vpack.c.b16 %v554, %v549
      %v710 = vpack.c.b16 %v555, %v550
      %v711 = vpack.c.b16 %v556, %v551
      %v712 = vpack.c.b16 %v562, %v557
      %v713 = vpack.c.b16 %v563, %v558
      %v714 = vpack.c.b16 %v564, %v559
      %v715 = vpack.c.b16 %v565, %v560
      %v716 = vpack.c.b16 %v566, %v561
      %v717 = vpack.c.b16 %v572, %v567
      %v718 = vpack.c.b16 %v573, %v568
      %v719 = vpack.c.b16 %v574, %v569
      %v720 = vpack.c.b16 %v575, %v570
      %v721 = vpack.c.b16 %v576, %v571
      %v722 = vpack.c.b16 %v582, %v577
      %v723 = vpack.c.b16 %v583, %v578
      %v724 = vpack.c.b16 %v584, %v579
      %v725 = vpack.c.b16 %v585, %v580
      %v726 = vpack.c.b16 %v586, %v581
      %v727 = vpack.c.b16 %v592, %v587
      %v728 = vpack.c.b16 %v593, %v588
      %v729 = vpack.c.b16 %v594, %v589
      %v730 = vpack.c.b16 %v595, %v590
      %v731 = vpack.c.b16 %v596, %v591
      %v732 = vpack.c.b16 %v602, %v597
      %v733 = vpack.c.b16 %v603, %v598
      %v734 = vpack.c.b16 %v604, %v599
      %v735 = vpack.c.b16 %v605, %v600
      %v736 = vpack.c.b16 %v606, %v601
      %v737 = vpack.c.b16 %v612, %v607
      %v738 = vpack.c.b16 %v613, %v608
      %v739 = vpack.c.b16 %v614, %v609
      %v740 = vpack.c.b16 %v615, %v610
      %v741 = vpack.c.b16 %v616, %v611
      %v742 = vpack.c.b16 %v622, %v617
      %v743 = vpack.c.b16 %v623, %v618
      %v744 = vpack.c.b16 %v624, %v619
      %v745 = vpack.c.b16 %v625, %v620
      %v746 = vpack.c.b16 %v626, %v621
      %v747 = vpack.c.b16 %v632, %v627
      %v748 = vpack.c.b16 %v633, %v628
      %v749 = vpack.c.b16 %v634, %v629
      %v750 = vpack.c.b16 %v635, %v630
      %v751 = vpack.c.b16 %v636, %v631
      %v752 = vpack.c.b16 %v642, %v637
      %v753 = vpack.c.b16 %v643, %v638
      %v754 = vpack.c.b16 %v644, %v639
      %v755 = vpack.c.b16 %v645, %v640
      %v756 = vpack.c.b16 %v646, %v641
      %v757 = vpack.c.b16 %v652, %v647
      %v758 = vpack.c.b16 %v653, %v648
      %v759 = vpack.c.b16 %v654, %v649
      %v760 = vpack.c.b16 %v655, %v650
      %v761 = vpack.c.b16 %v656, %v651
      %v762 = vpack.c.b16 %v662, %v657
      %v763 = vpack.c.b16 %v663, %v658
      %v764 = vpack.c.b16 %v664, %v659
      %v765 = vpack.c.b16 %v665, %v660
      %v766 = vpack.c.b16 %v666, %v661
      %v767 = vpack.c.b16 %v672, %v667
      %v768 = vpack.c.b16 %v673, %v668
      %v769 = vpack.c.b16 %v674, %v669
      %v770 = vpack.c.b16 %v675, %v670
      %v771 = vpack.c.b16 %v676, %v671
      %v947 = vunpack.c.l.b16 %v286
      %v948 = vunpack.c.l.b16 %v287
      %v949 = vunpack.c.l.b16 %v288
      %v950 = vunpack.c.l.b16 %v289
      %v951 = vunpack.c.l.b16 %v290
      %v952 = vunpack.c.l.b16 %v291
      %v953 = vunpack.c.l.b16 %v292
      %v954 = vunpack.c.l.b16 %v293
      %v955 = vunpack.c.l.b16 %v294
      %v956 = vunpack.c.l.b16 %v295
      %v957 = vunpack.c.l.b16 %v296
      %v958 = vunpack.c.l.b16 %v297
      %v959 = vunpack.c.l.b16 %v298
      %v960 = vunpack.c.l.b16 %v299
      %v961 = vunpack.c.l.b16 %v300
      %v962 = vunpack.c.l.b16 %v301
      %v963 = vunpack.c.l.b16 %v302
      %v964 = vunpack.c.l.b16 %v303
      %v965 = vunpack.c.l.b16 %v304
      %v966 = vunpack.c.l.b16 %v305
      %v967 = vunpack.c.l.b16 %v306
      %v968 = vunpack.c.l.b16 %v307
      %v969 = vunpack.c.l.b16 %v308
      %v970 = vunpack.c.l.b16 %v309
      %v971 = vunpack.c.l.b16 %v310
      %v972 = vunpack.c.l.b16 %v311
      %v973 = vunpack.c.l.b16 %v312
      %v974 = vunpack.c.l.b16 %v313
      %v975 = vunpack.c.l.b16 %v314
      %v976 = vunpack.c.l.b16 %v315
      %v977 = vunpack.c.l.b16 %v316
      %v978 = vunpack.c.l.b16 %v317
      %v979 = vunpack.c.l.b16 %v318
      %v980 = vunpack.c.l.b16 %v319
      %v981 = vunpack.c.l.b16 %v320
      %v982 = vunpack.c.l.b16 %v321
      %v983 = vunpack.c.l.b16 %v322
      %v984 = vunpack.c.l.b16 %v323
      %v985 = vunpack.c.l.b16 %v324
      %v986 = vunpack.c.l.b16 %v325
      %v987 = vunpack.c.l.b16 %v326
      %v988 = vunpack.c.l.b16 %v327
      %v989 = vunpack.c.l.b16 %v328
      %v990 = vunpack.c.l.b16 %v329
      %v991 = vunpack.c.l.b16 %v330
      %v992 = vunpack.c.l.b16 %v331
      %v993 = vunpack.c.l.b16 %v332
      %v994 = vunpack.c.l.b16 %v333
      %v995 = vunpack.c.l.b16 %v334
      %v996 = vunpack.c.l.b16 %v335
      %v997 = vunpack.c.l.b16 %v336
      %v998 = vunpack.c.l.b16 %v337
      %v999 = vunpack.c.l.b16 %v338
      %v1000 = vunpack.c.l.b16 %v339
      %v1001 = vunpack.c.l.b16 %v340
      %v1002 = vunpack.c.l.b16 %v341
      %v1003 = vunpack.c.l.b16 %v342
      %v1004 = vunpack.c.l.b16 %v343
      %v1005 = vunpack.c.l.b16 %v344
      %v1006 = vunpack.c.l.b16 %v345
      %v1007 = vunpack.c.l.b16 %v346
      %v1008 = vunpack.c.l.b16 %v347
      %v1009 = vunpack.c.l.b16 %v348
      %v1010 = vunpack.c.l.b16 %v349
      %v1011 = vunpack.c.l.b16 %v350
      %v1012 = vunpack.c.l.b16 %v351
      %v1013 = vunpack.c.l.b16 %v352
      %v1014 = vunpack.c.l.b16 %v353
      %v1015 = vunpack.c.l.b16 %v354
      %v1016 = vunpack.c.l.b16 %v355
      %v1017 = vunpack.c.l.b16 %v356
      %v1018 = vunpack.c.l.b16 %v357
      %v1019 = vunpack.c.l.b16 %v358
      %v1020 = vunpack.c.l.b16 %v359
      %v1021 = vunpack.c.l.b16 %v360
      %v1022 = vunpack.c.l.b16 %v361
      %v1023 = vunpack.c.l.b16 %v362
      %v1024 = vunpack.c.l.b16 %v363
      %v1025 = vunpack.c.l.b16 %v364
      %v1026 = vunpack.c.l.b16 %v365
      %v1027 = vpack.c.b16 %v948, %v947
      %v1028 = vpack.c.b16 %v950, %v949
      %v1029 = vpack.c.b16 %v952, %v951
      %v1030 = vpack.c.b16 %v954, %v953
      %v1031 = vpack.c.b16 %v956, %v955
      %v1032 = vpack.c.b16 %v958, %v957
      %v1033 = vpack.c.b16 %v960, %v959
      %v1034 = vpack.c.b16 %v962, %v961
      %v1035 = vpack.c.b16 %v964, %v963
      %v1036 = vpack.c.b16 %v966, %v965
      %v1037 = vpack.c.b16 %v968, %v967
      %v1038 = vpack.c.b16 %v970, %v969
      %v1039 = vpack.c.b16 %v972, %v971
      %v1040 = vpack.c.b16 %v974, %v973
      %v1041 = vpack.c.b16 %v976, %v975
      %v1042 = vpack.c.b16 %v978, %v977
      %v1043 = vpack.c.b16 %v980, %v979
      %v1044 = vpack.c.b16 %v982, %v981
      %v1045 = vpack.c.b16 %v984, %v983
      %v1046 = vpack.c.b16 %v986, %v985
      %v1047 = vpack.c.b16 %v988, %v987
      %v1048 = vpack.c.b16 %v990, %v989
      %v1049 = vpack.c.b16 %v992, %v991
      %v1050 = vpack.c.b16 %v994, %v993
      %v1051 = vpack.c.b16 %v996, %v995
      %v1052 = vpack.c.b16 %v998, %v997
      %v1053 = vpack.c.b16 %v1000, %v999
      %v1054 = vpack.c.b16 %v1002, %v1001
      %v1055 = vpack.c.b16 %v1004, %v1003
      %v1056 = vpack.c.b16 %v1006, %v1005
      %v1057 = vpack.c.b16 %v1008, %v1007
      %v1058 = vpack.c.b16 %v1010, %v1009
      %v1059 = vpack.c.b16 %v1012, %v1011
      %v1060 = vpack.c.b16 %v1014, %v1013
      %v1061 = vpack.c.b16 %v1016, %v1015
      %v1062 = vpack.c.b16 %v1018, %v1017
      %v1063 = vpack.c.b16 %v1020, %v1019
      %v1064 = vpack.c.b16 %v1022, %v1021
      %v1065 = vpack.c.b16 %v1024, %v1023
      %v1066 = vpack.c.b16 %v1026, %v1025
      %1107 = vmatprep.subr.bf16.mxu0 0
      %1108 = vmatpush1.bf16.msra.mxu0 %v1027
      %1109 = vmatprep.subr.bf16.mxu0 0
      %1110 = vmatpush1.bf16.msra.mxu0 %v1028
      %1111 = vmatprep.subr.bf16.mxu0 0
      %1112 = vmatpush1.bf16.msra.mxu0 %v1029
      %1113 = vmatprep.subr.bf16.mxu0 0
      %1114 = vmatpush1.bf16.msra.mxu0 %v1030
      %1115 = vmatprep.subr.bf16.mxu0 0
      %1116 = vmatpush1.bf16.msra.mxu0 %v1031
      %1117 = vmatprep.subr.bf16.mxu0 0
      %1118 = vmatpush1.bf16.msra.mxu0 %v1032
      %1119 = vmatprep.subr.bf16.mxu0 0
      %1120 = vmatpush1.bf16.msra.mxu0 %v1033
      %1121 = vmatprep.subr.bf16.mxu0 0
      %1122 = vmatpush1.bf16.msra.mxu0 %v1034
      %1123 = vmatprep.subr.bf16.mxu0 0
      %1124 = vmatpush1.bf16.msra.mxu0 %v1035
      %1125 = vmatprep.subr.bf16.mxu0 0
      %1126 = vmatpush1.bf16.msra.mxu0 %v1036
      %1127 = vmatprep.subr.bf16.mxu0 0
      %1128 = vmatpush1.bf16.msra.mxu0 %v1037
      %1129 = vmatprep.subr.bf16.mxu0 0
      %1130 = vmatpush1.bf16.msra.mxu0 %v1038
      %1131 = vmatprep.subr.bf16.mxu0 0
      %1132 = vmatpush1.bf16.msra.mxu0 %v1039
      %1133 = vmatprep.subr.bf16.mxu0 0
      %1134 = vmatpush1.bf16.msra.mxu0 %v1040
      %1135 = vmatprep.subr.bf16.mxu0 0
      %1136 = vmatpush1.bf16.msra.mxu0 %v1041
      %1137 = vmatprep.subr.bf16.mxu0 0
      %1138 = vmatpush1.bf16.msra.mxu0 %v1042
      %1139 = vmatprep.mubr.bf16.mxu0 %v678
      %1140 = vmatmul.mubr.bf16.gmra.mrb[0].mxu0 %v677
      %v1141 = vpop.f32.mrb[0].mxu0
      %v1142 = vadd.f32 %v371, %v1141
      %v1143 = vpop.f32.mrb[0].mxu0
      %v1144 = vpop.f32.mrb[0].mxu0
      %v1145 = vadd.f32 %v371, %v1144
      %v1146 = vpop.f32.mrb[0].mxu0
      %1147 = vmatprep.mubr.bf16.mxu0 %v683
      %1148 = vmatmul.mubr.bf16.gmra.mrb[0].mxu0 %v682
      %v1149 = vpop.f32.mrb[0].mxu0
      %v1150 = vadd.f32 %v371, %v1149
      %v1151 = vpop.f32.mrb[0].mxu0
      %v1152 = vpop.f32.mrb[0].mxu0
      %v1153 = vadd.f32 %v371, %v1152
      %v1154 = vpop.f32.mrb[0].mxu0
      %1155 = vmatprep.mubr.bf16.mxu0 %v688
      %1156 = vmatmul.mubr.bf16.gmra.mrb[0].mxu0 %v687
      %v1157 = vpop.f32.mrb[0].mxu0
      %v1158 = vadd.f32 %v371, %v1157
      %v1159 = vpop.f32.mrb[0].mxu0
      %v1160 = vpop.f32.mrb[0].mxu0
      %v1161 = vadd.f32 %v371, %v1160
      %v1162 = vpop.f32.mrb[0].mxu0
      %1163 = vmatprep.mubr.bf16.mxu0 %v693
      %1164 = vmatmul.mubr.bf16.gmra.mrb[0].mxu0 %v692
      %v1165 = vpop.f32.mrb[0].mxu0
      %v1166 = vadd.f32 %v371, %v1165
      %v1167 = vpop.f32.mrb[0].mxu0
      %v1168 = vpop.f32.mrb[0].mxu0
      %v1169 = vadd.f32 %v371, %v1168
      %v1170 = vpop.f32.mrb[0].mxu0
      %1171 = vmatprep.mubr.bf16.mxu0 %v698
      %1172 = vmatmul.mubr.bf16.gmra.mrb[0].mxu0 %v697
      %v1173 = vpop.f32.mrb[0].mxu0
      %v1174 = vadd.f32 %v371, %v1173
      %v1175 = vpop.f32.mrb[0].mxu0
      %v1176 = vpop.f32.mrb[0].mxu0
      %v1177 = vadd.f32 %v371, %v1176
      %v1178 = vpop.f32.mrb[0].mxu0
      %1179 = vmatprep.mubr.bf16.mxu0 %v703
      %1180 = vmatmul.mubr.bf16.gmra.mrb[0].mxu0 %v702
      %v1181 = vpop.f32.mrb[0].mxu0
      %v1182 = vadd.f32 %v371, %v1181
      %v1183 = vpop.f32.mrb[0].mxu0
      %v1184 = vpop.f32.mrb[0].mxu0
      %v1185 = vadd.f32 %v371, %v1184
      %v1186 = vpop.f32.mrb[0].mxu0
      %1187 = vmatprep.mubr.bf16.mxu0 %v708
      %1188 = vmatmul.mubr.bf16.gmra.mrb[0].mxu0 %v707
      %v1189 = vpop.f32.mrb[0].mxu0
      %v1190 = vadd.f32 %v371, %v1189
      %v1191 = vpop.f32.mrb[0].mxu0
      %v1192 = vpop.f32.mrb[0].mxu0
      %v1193 = vadd.f32 %v371, %v1192
      %v1194 = vpop.f32.mrb[0].mxu0
      %1195 = vmatprep.mubr.bf16.mxu0 %v713
      %1196 = vmatmul.mubr.bf16.gmra.mrb[0].mxu0 %v712
      %v1197 = vpop.f32.mrb[0].mxu0
      %v1198 = vadd.f32 %v371, %v1197
      %v1199 = vpop.f32.mrb[0].mxu0
      %v1200 = vpop.f32.mrb[0].mxu0
      %v1201 = vadd.f32 %v371, %v1200
      %v1202 = vpop.f32.mrb[0].mxu0
      %1203 = vmatprep.mubr.bf16.mxu0 %v718
      %1204 = vmatmul.mubr.bf16.gmra.mrb[0].mxu0 %v717
      %v1205 = vpop.f32.mrb[0].mxu0
      %v1206 = vadd.f32 %v371, %v1205
      %v1207 = vpop.f32.mrb[0].mxu0
      %v1208 = vpop.f32.mrb[0].mxu0
      %v1209 = vadd.f32 %v371, %v1208
      %v1210 = vpop.f32.mrb[0].mxu0
      %1211 = vmatprep.mubr.bf16.mxu0 %v723
      %1212 = vmatmul.mubr.bf16.gmra.mrb[0].mxu0 %v722
      %v1213 = vpop.f32.mrb[0].mxu0
      %v1214 = vadd.f32 %v371, %v1213
      %v1215 = vpop.f32.mrb[0].mxu0
      %v1216 = vpop.f32.mrb[0].mxu0
      %v1217 = vadd.f32 %v371, %v1216
      %v1218 = vpop.f32.mrb[0].mxu0
      %1219 = vmatprep.mubr.bf16.mxu0 %v728
      %1220 = vmatmul.mubr.bf16.gmra.mrb[0].mxu0 %v727
      %v1221 = vpop.f32.mrb[0].mxu0
      %v1222 = vadd.f32 %v371, %v1221
      %v1223 = vpop.f32.mrb[0].mxu0
      %v1224 = vpop.f32.mrb[0].mxu0
      %v1225 = vadd.f32 %v371, %v1224
      %v1226 = vpop.f32.mrb[0].mxu0
      %1227 = vmatprep.mubr.bf16.mxu0 %v733
      %1228 = vmatmul.mubr.bf16.gmra.mrb[0].mxu0 %v732
      %v1229 = vpop.f32.mrb[0].mxu0
      %v1230 = vadd.f32 %v371, %v1229
      %v1231 = vpop.f32.mrb[0].mxu0
      %v1232 = vpop.f32.mrb[0].mxu0
      %v1233 = vadd.f32 %v371, %v1232
      %v1234 = vpop.f32.mrb[0].mxu0
      %1235 = vmatprep.mubr.bf16.mxu0 %v738
      %1236 = vmatmul.mubr.bf16.gmra.mrb[0].mxu0 %v737
      %v1237 = vpop.f32.mrb[0].mxu0
      %v1238 = vadd.f32 %v371, %v1237
      %v1239 = vpop.f32.mrb[0].mxu0
      %v1240 = vpop.f32.mrb[0].mxu0
      %v1241 = vadd.f32 %v371, %v1240
      %v1242 = vpop.f32.mrb[0].mxu0
      %1243 = vmatprep.mubr.bf16.mxu0 %v743
      %1244 = vmatmul.mubr.bf16.gmra.mrb[0].mxu0 %v742
      %v1245 = vpop.f32.mrb[0].mxu0
      %v1246 = vadd.f32 %v371, %v1245
      %v1247 = vpop.f32.mrb[0].mxu0
      %v1248 = vpop.f32.mrb[0].mxu0
      %v1249 = vadd.f32 %v371, %v1248
      %v1250 = vpop.f32.mrb[0].mxu0
      %1251 = vmatprep.mubr.bf16.mxu0 %v748
      %1252 = vmatmul.mubr.bf16.gmra.mrb[0].mxu0 %v747
      %v1253 = vpop.f32.mrb[0].mxu0
      %v1254 = vadd.f32 %v371, %v1253
      %v1255 = vpop.f32.mrb[0].mxu0
      %v1256 = vpop.f32.mrb[0].mxu0
      %v1257 = vadd.f32 %v371, %v1256
      %v1258 = vpop.f32.mrb[0].mxu0
      %1259 = vmatprep.mubr.bf16.mxu0 %v753
      %1260 = vmatmul.mubr.bf16.gmra.mrb[0].mxu0 %v752
      %v1261 = vpop.f32.mrb[0].mxu0
      %v1262 = vadd.f32 %v371, %v1261
      %v1263 = vpop.f32.mrb[0].mxu0
      %v1264 = vpop.f32.mrb[0].mxu0
      %v1265 = vadd.f32 %v371, %v1264
      %v1266 = vpop.f32.mrb[0].mxu0
      %1267 = vmatprep.mubr.bf16.mxu0 %v758
      %1268 = vmatmul.mubr.bf16.gmra.mrb[0].mxu0 %v757
      %v1269 = vpop.f32.mrb[0].mxu0
      %v1270 = vadd.f32 %v371, %v1269
      %v1271 = vpop.f32.mrb[0].mxu0
      %v1272 = vpop.f32.mrb[0].mxu0
      %v1273 = vadd.f32 %v371, %v1272
      %v1274 = vpop.f32.mrb[0].mxu0
      %1275 = vmatprep.mubr.bf16.mxu0 %v763
      %1276 = vmatmul.mubr.bf16.gmra.mrb[0].mxu0 %v762
      %v1277 = vpop.f32.mrb[0].mxu0
      %v1278 = vadd.f32 %v371, %v1277
      %v1279 = vpop.f32.mrb[0].mxu0
      %v1280 = vpop.f32.mrb[0].mxu0
      %v1281 = vadd.f32 %v371, %v1280
      %v1282 = vpop.f32.mrb[0].mxu0
      %1283 = vmatprep.mubr.bf16.mxu0 %v768
      %1284 = vmatmul.mubr.bf16.gmra.mrb[0].mxu0 %v767
      %v1285 = vpop.f32.mrb[0].mxu0
      %v1286 = vadd.f32 %v371, %v1285
      %v1287 = vpop.f32.mrb[0].mxu0
      %v1288 = vpop.f32.mrb[0].mxu0
      %v1289 = vadd.f32 %v371, %v1288
      %v1290 = vpop.f32.mrb[0].mxu0
      %1291 = vdwg.mxu0
      %1292 = vmatprep.subr.bf16.mxu0 0
      %1293 = vmatpush1.bf16.msra.mxu0 %v1043
      %1294 = vmatprep.subr.bf16.mxu0 0
      %1295 = vmatpush1.bf16.msra.mxu0 %v1044
      %1296 = vmatprep.subr.bf16.mxu0 0
      %1297 = vmatpush1.bf16.msra.mxu0 %v1045
      %1298 = vmatprep.subr.bf16.mxu0 0
      %1299 = vmatpush1.bf16.msra.mxu0 %v1046
      %1300 = vmatprep.subr.bf16.mxu0 0
      %1301 = vmatpush1.bf16.msra.mxu0 %v1047
      %1302 = vmatprep.subr.bf16.mxu0 0
      %1303 = vmatpush1.bf16.msra.mxu0 %v1048
      %1304 = vmatprep.subr.bf16.mxu0 0
      %1305 = vmatpush1.bf16.msra.mxu0 %v1049
      %1306 = vmatprep.subr.bf16.mxu0 0
      %1307 = vmatpush1.bf16.msra.mxu0 %v1050
      %1308 = vmatprep.subr.bf16.mxu0 0
      %1309 = vmatpush1.bf16.msra.mxu0 %v1051
      %1310 = vmatprep.subr.bf16.mxu0 0
      %1311 = vmatpush1.bf16.msra.mxu0 %v1052
      %1312 = vmatprep.subr.bf16.mxu0 0
      %1313 = vmatpush1.bf16.msra.mxu0 %v1053
      %1314 = vmatprep.subr.bf16.mxu0 0
      %1315 = vmatpush1.bf16.msra.mxu0 %v1054
      %1316 = vmatprep.subr.bf16.mxu0 0
      %1317 = vmatpush1.bf16.msra.mxu0 %v1055
      %1318 = vmatprep.subr.bf16.mxu0 0
      %1319 = vmatpush1.bf16.msra.mxu0 %v1056
      %1320 = vmatprep.subr.bf16.mxu0 0
      %1321 = vmatpush1.bf16.msra.mxu0 %v1057
      %1322 = vmatprep.subr.bf16.mxu0 0
      %1323 = vmatpush1.bf16.msra.mxu0 %v1058
      %1324 = vmatprep.mubr.bf16.mxu0 %v680
      %1325 = vmatmul.mubr.bf16.gmra.mrb[0].mxu0 %v679
      %v1326 = vpop.f32.mrb[0].mxu0
      %v1327 = vadd.f32 %v1142, %v1326
      %v1328 = vpop.f32.mrb[0].mxu0
      %v1329 = vpop.f32.mrb[0].mxu0
      %v1330 = vadd.f32 %v1145, %v1329
      %v1331 = vpop.f32.mrb[0].mxu0
      %1332 = vmatprep.mubr.bf16.mxu0 %v685
      %1333 = vmatmul.mubr.bf16.gmra.mrb[0].mxu0 %v684
      %v1334 = vpop.f32.mrb[0].mxu0
      %v1335 = vadd.f32 %v1150, %v1334
      %v1336 = vpop.f32.mrb[0].mxu0
      %v1337 = vpop.f32.mrb[0].mxu0
      %v1338 = vadd.f32 %v1153, %v1337
      %v1339 = vpop.f32.mrb[0].mxu0
      %1340 = vmatprep.mubr.bf16.mxu0 %v690
      %1341 = vmatmul.mubr.bf16.gmra.mrb[0].mxu0 %v689
      %v1342 = vpop.f32.mrb[0].mxu0
      %v1343 = vadd.f32 %v1158, %v1342
      %v1344 = vpop.f32.mrb[0].mxu0
      %v1345 = vpop.f32.mrb[0].mxu0
      %v1346 = vadd.f32 %v1161, %v1345
      %v1347 = vpop.f32.mrb[0].mxu0
      %1348 = vmatprep.mubr.bf16.mxu0 %v695
      %1349 = vmatmul.mubr.bf16.gmra.mrb[0].mxu0 %v694
      %v1350 = vpop.f32.mrb[0].mxu0
      %v1351 = vadd.f32 %v1166, %v1350
      %v1352 = vpop.f32.mrb[0].mxu0
      %v1353 = vpop.f32.mrb[0].mxu0
      %v1354 = vadd.f32 %v1169, %v1353
      %v1355 = vpop.f32.mrb[0].mxu0
      %1356 = vmatprep.mubr.bf16.mxu0 %v700
      %1357 = vmatmul.mubr.bf16.gmra.mrb[0].mxu0 %v699
      %v1358 = vpop.f32.mrb[0].mxu0
      %v1359 = vadd.f32 %v1174, %v1358
      %v1360 = vpop.f32.mrb[0].mxu0
      %v1361 = vpop.f32.mrb[0].mxu0
      %v1362 = vadd.f32 %v1177, %v1361
      %v1363 = vpop.f32.mrb[0].mxu0
      %1364 = vmatprep.mubr.bf16.mxu0 %v705
      %1365 = vmatmul.mubr.bf16.gmra.mrb[0].mxu0 %v704
      %v1366 = vpop.f32.mrb[0].mxu0
      %v1367 = vadd.f32 %v1182, %v1366
      %v1368 = vpop.f32.mrb[0].mxu0
      %v1369 = vpop.f32.mrb[0].mxu0
      %v1370 = vadd.f32 %v1185, %v1369
      %v1371 = vpop.f32.mrb[0].mxu0
      %1372 = vmatprep.mubr.bf16.mxu0 %v710
      %1373 = vmatmul.mubr.bf16.gmra.mrb[0].mxu0 %v709
      %v1374 = vpop.f32.mrb[0].mxu0
      %v1375 = vadd.f32 %v1190, %v1374
      %v1376 = vpop.f32.mrb[0].mxu0
      %v1377 = vpop.f32.mrb[0].mxu0
      %v1378 = vadd.f32 %v1193, %v1377
      %v1379 = vpop.f32.mrb[0].mxu0
      %1380 = vmatprep.mubr.bf16.mxu0 %v715
      %1381 = vmatmul.mubr.bf16.gmra.mrb[0].mxu0 %v714
      %v1382 = vpop.f32.mrb[0].mxu0
      %v1383 = vadd.f32 %v1198, %v1382
      %v1384 = vpop.f32.mrb[0].mxu0
      %v1385 = vpop.f32.mrb[0].mxu0
      %v1386 = vadd.f32 %v1201, %v1385
      %v1387 = vpop.f32.mrb[0].mxu0
      %1388 = vmatprep.mubr.bf16.mxu0 %v720
      %1389 = vmatmul.mubr.bf16.gmra.mrb[0].mxu0 %v719
      %v1390 = vpop.f32.mrb[0].mxu0
      %v1391 = vadd.f32 %v1206, %v1390
      %v1392 = vpop.f32.mrb[0].mxu0
      %v1393 = vpop.f32.mrb[0].mxu0
      %v1394 = vadd.f32 %v1209, %v1393
      %v1395 = vpop.f32.mrb[0].mxu0
      %1396 = vmatprep.mubr.bf16.mxu0 %v725
      %1397 = vmatmul.mubr.bf16.gmra.mrb[0].mxu0 %v724
      %v1398 = vpop.f32.mrb[0].mxu0
      %v1399 = vadd.f32 %v1214, %v1398
      %v1400 = vpop.f32.mrb[0].mxu0
      %v1401 = vpop.f32.mrb[0].mxu0
      %v1402 = vadd.f32 %v1217, %v1401
      %v1403 = vpop.f32.mrb[0].mxu0
      %1404 = vmatprep.mubr.bf16.mxu0 %v730
      %1405 = vmatmul.mubr.bf16.gmra.mrb[0].mxu0 %v729
      %v1406 = vpop.f32.mrb[0].mxu0
      %v1407 = vadd.f32 %v1222, %v1406
      %v1408 = vpop.f32.mrb[0].mxu0
      %v1409 = vpop.f32.mrb[0].mxu0
      %v1410 = vadd.f32 %v1225, %v1409
      %v1411 = vpop.f32.mrb[0].mxu0
      %1412 = vmatprep.mubr.bf16.mxu0 %v735
      %1413 = vmatmul.mubr.bf16.gmra.mrb[0].mxu0 %v734
      %v1414 = vpop.f32.mrb[0].mxu0
      %v1415 = vadd.f32 %v1230, %v1414
      %v1416 = vpop.f32.mrb[0].mxu0
      %v1417 = vpop.f32.mrb[0].mxu0
      %v1418 = vadd.f32 %v1233, %v1417
      %v1419 = vpop.f32.mrb[0].mxu0
      %1420 = vmatprep.mubr.bf16.mxu0 %v740
      %1421 = vmatmul.mubr.bf16.gmra.mrb[0].mxu0 %v739
      %v1422 = vpop.f32.mrb[0].mxu0
      %v1423 = vadd.f32 %v1238, %v1422
      %v1424 = vpop.f32.mrb[0].mxu0
      %v1425 = vpop.f32.mrb[0].mxu0
      %v1426 = vadd.f32 %v1241, %v1425
      %v1427 = vpop.f32.mrb[0].mxu0
      %1428 = vmatprep.mubr.bf16.mxu0 %v745
      %1429 = vmatmul.mubr.bf16.gmra.mrb[0].mxu0 %v744
      %v1430 = vpop.f32.mrb[0].mxu0
      %v1431 = vadd.f32 %v1246, %v1430
      %v1432 = vpop.f32.mrb[0].mxu0
      %v1433 = vpop.f32.mrb[0].mxu0
      %v1434 = vadd.f32 %v1249, %v1433
      %v1435 = vpop.f32.mrb[0].mxu0
      %1436 = vmatprep.mubr.bf16.mxu0 %v750
      %1437 = vmatmul.mubr.bf16.gmra.mrb[0].mxu0 %v749
      %v1438 = vpop.f32.mrb[0].mxu0
      %v1439 = vadd.f32 %v1254, %v1438
      %v1440 = vpop.f32.mrb[0].mxu0
      %v1441 = vpop.f32.mrb[0].mxu0
      %v1442 = vadd.f32 %v1257, %v1441
      %v1443 = vpop.f32.mrb[0].mxu0
      %1444 = vmatprep.mubr.bf16.mxu0 %v755
      %1445 = vmatmul.mubr.bf16.gmra.mrb[0].mxu0 %v754
      %v1446 = vpop.f32.mrb[0].mxu0
      %v1447 = vadd.f32 %v1262, %v1446
      %v1448 = vpop.f32.mrb[0].mxu0
      %v1449 = vpop.f32.mrb[0].mxu0
      %v1450 = vadd.f32 %v1265, %v1449
      %v1451 = vpop.f32.mrb[0].mxu0
      %1452 = vmatprep.mubr.bf16.mxu0 %v760
      %1453 = vmatmul.mubr.bf16.gmra.mrb[0].mxu0 %v759
      %v1454 = vpop.f32.mrb[0].mxu0
      %v1455 = vadd.f32 %v1270, %v1454
      %v1456 = vpop.f32.mrb[0].mxu0
      %v1457 = vpop.f32.mrb[0].mxu0
      %v1458 = vadd.f32 %v1273, %v1457
      %v1459 = vpop.f32.mrb[0].mxu0
      %1460 = vmatprep.mubr.bf16.mxu0 %v765
      %1461 = vmatmul.mubr.bf16.gmra.mrb[0].mxu0 %v764
      %v1462 = vpop.f32.mrb[0].mxu0
      %v1463 = vadd.f32 %v1278, %v1462
      %v1464 = vpop.f32.mrb[0].mxu0
      %v1465 = vpop.f32.mrb[0].mxu0
      %v1466 = vadd.f32 %v1281, %v1465
      %v1467 = vpop.f32.mrb[0].mxu0
      %1468 = vmatprep.mubr.bf16.mxu0 %v770
      %1469 = vmatmul.mubr.bf16.gmra.mrb[0].mxu0 %v769
      %v1470 = vpop.f32.mrb[0].mxu0
      %v1471 = vadd.f32 %v1286, %v1470
      %v1472 = vpop.f32.mrb[0].mxu0
      %v1473 = vpop.f32.mrb[0].mxu0
      %v1474 = vadd.f32 %v1289, %v1473
      %v1475 = vpop.f32.mrb[0].mxu0
      %1476 = vdwg.mxu0
      %1477 = vmatprep.subr.bf16.mxu0 0
      %1478 = vmatpush1.bf16.msra.mxu0 %v1059
      %1479 = vmatprep.subr.bf16.mxu0 0
      %1480 = vmatpush1.bf16.msra.mxu0 %v1060
      %1481 = vmatprep.subr.bf16.mxu0 0
      %1482 = vmatpush1.bf16.msra.mxu0 %v1061
      %1483 = vmatprep.subr.bf16.mxu0 0
      %1484 = vmatpush1.bf16.msra.mxu0 %v1062
      %1485 = vmatprep.subr.bf16.mxu0 0
      %1486 = vmatpush1.bf16.msra.mxu0 %v1063
      %1487 = vmatprep.subr.bf16.mxu0 0
      %1488 = vmatpush1.bf16.msra.mxu0 %v1064
      %1489 = vmatprep.subr.bf16.mxu0 0
      %1490 = vmatpush1.bf16.msra.mxu0 %v1065
      %1491 = vmatprep.subr.bf16.mxu0 0
      %1492 = vmatpush1.bf16.msra.mxu0 %v1066
      %1493 = vmatprep.subr.bf16.mxu0 0
      %1494 = vmatpush1.bf16.msra.mxu0 0
      %1495 = vmatprep.subr.bf16.mxu0 0
      %1496 = vmatpush1.bf16.msra.mxu0 0
      %1497 = vmatprep.subr.bf16.mxu0 0
      %1498 = vmatpush1.bf16.msra.mxu0 0
      %1499 = vmatprep.subr.bf16.mxu0 0
      %1500 = vmatpush1.bf16.msra.mxu0 0
      %1501 = vmatprep.subr.bf16.mxu0 0
      %1502 = vmatpush1.bf16.msra.mxu0 0
      %1503 = vmatprep.subr.bf16.mxu0 0
      %1504 = vmatpush1.bf16.msra.mxu0 0
      %1505 = vmatprep.subr.bf16.mxu0 0
      %1506 = vmatpush1.bf16.msra.mxu0 0
      %1507 = vmatprep.subr.bf16.mxu0 0
      %1508 = vmatpush1.bf16.msra.mxu0 0
      %1509 = vmatprep.mubr.bf16.mxu0 0
      %1510 = vmatmul.mubr.bf16.gmra.mrb[0].mxu0 %v681
      %v1511 = vpop.f32.mrb[0].mxu0
      %v1512 = vadd.f32 %v1327, %v1511
      %v1513 = vpop.f32.mrb[0].mxu0
      %v1514 = vpop.f32.mrb[0].mxu0
      %v1515 = vadd.f32 %v1330, %v1514
      %v1516 = vpop.f32.mrb[0].mxu0
      %1517 = vmatprep.mubr.bf16.mxu0 0
      %1518 = vmatmul.mubr.bf16.gmra.mrb[0].mxu0 %v686
      %v1519 = vpop.f32.mrb[0].mxu0
      %v1520 = vadd.f32 %v1335, %v1519
      %v1521 = vpop.f32.mrb[0].mxu0
      %v1522 = vpop.f32.mrb[0].mxu0
      %v1523 = vadd.f32 %v1338, %v1522
      %v1524 = vpop.f32.mrb[0].mxu0
      %1525 = vmatprep.mubr.bf16.mxu0 0
      %1526 = vmatmul.mubr.bf16.gmra.mrb[0].mxu0 %v691
      %v1527 = vpop.f32.mrb[0].mxu0
      %v1528 = vadd.f32 %v1343, %v1527
      %v1529 = vpop.f32.mrb[0].mxu0
      %v1530 = vpop.f32.mrb[0].mxu0
      %v1531 = vadd.f32 %v1346, %v1530
      %v1532 = vpop.f32.mrb[0].mxu0
      %1533 = vmatprep.mubr.bf16.mxu0 0
      %1534 = vmatmul.mubr.bf16.gmra.mrb[0].mxu0 %v696
      %v1535 = vpop.f32.mrb[0].mxu0
      %v1536 = vadd.f32 %v1351, %v1535
      %v1537 = vpop.f32.mrb[0].mxu0
      %v1538 = vpop.f32.mrb[0].mxu0
      %v1539 = vadd.f32 %v1354, %v1538
      %v1540 = vpop.f32.mrb[0].mxu0
      %1541 = vmatprep.mubr.bf16.mxu0 0
      %1542 = vmatmul.mubr.bf16.gmra.mrb[0].mxu0 %v701
      %v1543 = vpop.f32.mrb[0].mxu0
      %v1544 = vadd.f32 %v1359, %v1543
      %v1545 = vpop.f32.mrb[0].mxu0
      %v1546 = vpop.f32.mrb[0].mxu0
      %v1547 = vadd.f32 %v1362, %v1546
      %v1548 = vpop.f32.mrb[0].mxu0
      %1549 = vmatprep.mubr.bf16.mxu0 0
      %1550 = vmatmul.mubr.bf16.gmra.mrb[0].mxu0 %v706
      %v1551 = vpop.f32.mrb[0].mxu0
      %v1552 = vadd.f32 %v1367, %v1551
      %v1553 = vpop.f32.mrb[0].mxu0
      %v1554 = vpop.f32.mrb[0].mxu0
      %v1555 = vadd.f32 %v1370, %v1554
      %v1556 = vpop.f32.mrb[0].mxu0
      %1557 = vmatprep.mubr.bf16.mxu0 0
      %1558 = vmatmul.mubr.bf16.gmra.mrb[0].mxu0 %v711
      %v1559 = vpop.f32.mrb[0].mxu0
      %v1560 = vadd.f32 %v1375, %v1559
      %v1561 = vpop.f32.mrb[0].mxu0
      %v1562 = vpop.f32.mrb[0].mxu0
      %v1563 = vadd.f32 %v1378, %v1562
      %v1564 = vpop.f32.mrb[0].mxu0
      %1565 = vmatprep.mubr.bf16.mxu0 0
      %1566 = vmatmul.mubr.bf16.gmra.mrb[0].mxu0 %v716
      %v1567 = vpop.f32.mrb[0].mxu0
      %v1568 = vadd.f32 %v1383, %v1567
      %v1569 = vpop.f32.mrb[0].mxu0
      %v1570 = vpop.f32.mrb[0].mxu0
      %v1571 = vadd.f32 %v1386, %v1570
      %v1572 = vpop.f32.mrb[0].mxu0
      %1573 = vmatprep.mubr.bf16.mxu0 0
      %1574 = vmatmul.mubr.bf16.gmra.mrb[0].mxu0 %v721
      %v1575 = vpop.f32.mrb[0].mxu0
      %v1576 = vadd.f32 %v1391, %v1575
      %v1577 = vpop.f32.mrb[0].mxu0
      %v1578 = vpop.f32.mrb[0].mxu0
      %v1579 = vadd.f32 %v1394, %v1578
      %v1580 = vpop.f32.mrb[0].mxu0
      %1581 = vmatprep.mubr.bf16.mxu0 0
      %1582 = vmatmul.mubr.bf16.gmra.mrb[0].mxu0 %v726
      %v1583 = vpop.f32.mrb[0].mxu0
      %v1584 = vadd.f32 %v1399, %v1583
      %v1585 = vpop.f32.mrb[0].mxu0
      %v1586 = vpop.f32.mrb[0].mxu0
      %v1587 = vadd.f32 %v1402, %v1586
      %v1588 = vpop.f32.mrb[0].mxu0
      %1589 = vmatprep.mubr.bf16.mxu0 0
      %1590 = vmatmul.mubr.bf16.gmra.mrb[0].mxu0 %v731
      %v1591 = vpop.f32.mrb[0].mxu0
      %v1592 = vadd.f32 %v1407, %v1591
      %v1593 = vpop.f32.mrb[0].mxu0
      %v1594 = vpop.f32.mrb[0].mxu0
      %v1595 = vadd.f32 %v1410, %v1594
      %v1596 = vpop.f32.mrb[0].mxu0
      %1597 = vmatprep.mubr.bf16.mxu0 0
      %1598 = vmatmul.mubr.bf16.gmra.mrb[0].mxu0 %v736
      %v1599 = vpop.f32.mrb[0].mxu0
      %v1600 = vadd.f32 %v1415, %v1599
      %v1601 = vpop.f32.mrb[0].mxu0
      %v1602 = vpop.f32.mrb[0].mxu0
      %v1603 = vadd.f32 %v1418, %v1602
      %v1604 = vpop.f32.mrb[0].mxu0
      %1605 = vmatprep.mubr.bf16.mxu0 0
      %1606 = vmatmul.mubr.bf16.gmra.mrb[0].mxu0 %v741
      %v1607 = vpop.f32.mrb[0].mxu0
      %v1608 = vadd.f32 %v1423, %v1607
      %v1609 = vpop.f32.mrb[0].mxu0
      %v1610 = vpop.f32.mrb[0].mxu0
      %v1611 = vadd.f32 %v1426, %v1610
      %v1612 = vpop.f32.mrb[0].mxu0
      %1613 = vmatprep.mubr.bf16.mxu0 0
      %1614 = vmatmul.mubr.bf16.gmra.mrb[0].mxu0 %v746
      %v1615 = vpop.f32.mrb[0].mxu0
      %v1616 = vadd.f32 %v1431, %v1615
      %v1617 = vpop.f32.mrb[0].mxu0
      %v1618 = vpop.f32.mrb[0].mxu0
      %v1619 = vadd.f32 %v1434, %v1618
      %v1620 = vpop.f32.mrb[0].mxu0
      %1621 = vmatprep.mubr.bf16.mxu0 0
      %1622 = vmatmul.mubr.bf16.gmra.mrb[0].mxu0 %v751
      %v1623 = vpop.f32.mrb[0].mxu0
      %v1624 = vadd.f32 %v1439, %v1623
      %v1625 = vpop.f32.mrb[0].mxu0
      %v1626 = vpop.f32.mrb[0].mxu0
      %v1627 = vadd.f32 %v1442, %v1626
      %v1628 = vpop.f32.mrb[0].mxu0
      %1629 = vmatprep.mubr.bf16.mxu0 0
      %1630 = vmatmul.mubr.bf16.gmra.mrb[0].mxu0 %v756
      %v1631 = vpop.f32.mrb[0].mxu0
      %v1632 = vadd.f32 %v1447, %v1631
      %v1633 = vpop.f32.mrb[0].mxu0
      %v1634 = vpop.f32.mrb[0].mxu0
      %v1635 = vadd.f32 %v1450, %v1634
      %v1636 = vpop.f32.mrb[0].mxu0
      %1637 = vmatprep.mubr.bf16.mxu0 0
      %1638 = vmatmul.mubr.bf16.gmra.mrb[0].mxu0 %v761
      %v1639 = vpop.f32.mrb[0].mxu0
      %v1640 = vadd.f32 %v1455, %v1639
      %v1641 = vpop.f32.mrb[0].mxu0
      %v1642 = vpop.f32.mrb[0].mxu0
      %v1643 = vadd.f32 %v1458, %v1642
      %v1644 = vpop.f32.mrb[0].mxu0
      %1645 = vmatprep.mubr.bf16.mxu0 0
      %1646 = vmatmul.mubr.bf16.gmra.mrb[0].mxu0 %v766
      %v1647 = vpop.f32.mrb[0].mxu0
      %v1648 = vadd.f32 %v1463, %v1647
      %v1649 = vpop.f32.mrb[0].mxu0
      %v1650 = vpop.f32.mrb[0].mxu0
      %v1651 = vadd.f32 %v1466, %v1650
      %v1652 = vpop.f32.mrb[0].mxu0
      %1653 = vmatprep.mubr.bf16.mxu0 0
      %1654 = vmatmul.mubr.bf16.gmra.mrb[0].mxu0 %v771
      %v1655 = vpop.f32.mrb[0].mxu0
      %v1656 = vadd.f32 %v1471, %v1655
      %v1657 = vpop.f32.mrb[0].mxu0
      %v1658 = vpop.f32.mrb[0].mxu0
      %v1659 = vadd.f32 %v1474, %v1658
      %v1660 = vpop.f32.mrb[0].mxu0
      %1661 = vdwg.mxu0
      %v1662 = vpack.c.bf16 %v1515, %v1512
      %v1663 = vpack.c.bf16 %v1523, %v1520
      %v1664 = vpack.c.bf16 %v1531, %v1528
      %v1665 = vpack.c.bf16 %v1539, %v1536
      %v1666 = vpack.c.bf16 %v1547, %v1544
      %v1667 = vpack.c.bf16 %v1555, %v1552
      %v1668 = vpack.c.bf16 %v1563, %v1560
      %v1669 = vpack.c.bf16 %v1571, %v1568
      %v1670 = vpack.c.bf16 %v1579, %v1576
      %v1671 = vpack.c.bf16 %v1587, %v1584
      %v1672 = vpack.c.bf16 %v1595, %v1592
      %v1673 = vpack.c.bf16 %v1603, %v1600
      %v1674 = vpack.c.bf16 %v1611, %v1608
      %v1675 = vpack.c.bf16 %v1619, %v1616
      %v1676 = vpack.c.bf16 %v1627, %v1624
      %v1677 = vpack.c.bf16 %v1635, %v1632
      %v1678 = vpack.c.bf16 %v1643, %v1640
      %v1679 = vpack.c.bf16 %v1651, %v1648
      %v1680 = vpack.c.bf16 %v1659, %v1656
      %v1700 = vunpack.c.l.b16 %v1662
      %v1701 = vunpack.c.h.b16 %v1662
      %v1702 = vunpack.c.l.b16 %v1663
      %v1703 = vunpack.c.h.b16 %v1663
      %v1704 = vunpack.c.l.b16 %v1664
      %v1705 = vunpack.c.h.b16 %v1664
      %v1706 = vunpack.c.l.b16 %v1665
      %v1707 = vunpack.c.h.b16 %v1665
      %v1708 = vunpack.c.l.b16 %v1666
      %v1709 = vunpack.c.h.b16 %v1666
      %v1710 = vunpack.c.l.b16 %v1667
      %v1711 = vunpack.c.h.b16 %v1667
      %v1712 = vunpack.c.l.b16 %v1668
      %v1713 = vunpack.c.h.b16 %v1668
      %v1714 = vunpack.c.l.b16 %v1669
      %v1715 = vunpack.c.h.b16 %v1669
      %v1716 = vunpack.c.l.b16 %v1670
      %v1717 = vunpack.c.h.b16 %v1670
      %v1718 = vunpack.c.l.b16 %v1671
      %v1719 = vunpack.c.h.b16 %v1671
      %v1720 = vunpack.c.l.b16 %v1672
      %v1721 = vunpack.c.h.b16 %v1672
      %v1722 = vunpack.c.l.b16 %v1673
      %v1723 = vunpack.c.h.b16 %v1673
      %v1724 = vunpack.c.l.b16 %v1674
      %v1725 = vunpack.c.h.b16 %v1674
      %v1726 = vunpack.c.l.b16 %v1675
      %v1727 = vunpack.c.h.b16 %v1675
      %v1728 = vunpack.c.l.b16 %v1676
      %v1729 = vunpack.c.h.b16 %v1676
      %v1730 = vunpack.c.l.b16 %v1677
      %v1731 = vunpack.c.h.b16 %v1677
      %v1732 = vunpack.c.l.b16 %v1678
      %v1733 = vunpack.c.h.b16 %v1678
      %v1734 = vunpack.c.l.b16 %v1679
      %v1735 = vunpack.c.h.b16 %v1679
      %v1736 = vunpack.c.l.b16 %v1680
      %v1737 = vunpack.c.h.b16 %v1680
      %v1738 = vpack.c.b16 %v1700, %v1700
      %v1739 = vpack.c.b16 %v1701, %v1701
      %v1740 = vpack.c.b16 %v1702, %v1702
      %v1741 = vpack.c.b16 %v1703, %v1703
      %v1742 = vpack.c.b16 %v1704, %v1704
      %v1743 = vpack.c.b16 %v1705, %v1705
      %v1744 = vpack.c.b16 %v1706, %v1706
      %v1745 = vpack.c.b16 %v1707, %v1707
      %v1746 = vpack.c.b16 %v1708, %v1708
      %v1747 = vpack.c.b16 %v1709, %v1709
      %v1748 = vpack.c.b16 %v1710, %v1710
      %v1749 = vpack.c.b16 %v1711, %v1711
      %v1750 = vpack.c.b16 %v1712, %v1712
      %v1751 = vpack.c.b16 %v1713, %v1713
      %v1752 = vpack.c.b16 %v1714, %v1714
      %v1753 = vpack.c.b16 %v1715, %v1715
      %v1754 = vpack.c.b16 %v1716, %v1716
      %v1755 = vpack.c.b16 %v1717, %v1717
      %v1756 = vpack.c.b16 %v1718, %v1718
      %v1757 = vpack.c.b16 %v1719, %v1719
      %v1758 = vpack.c.b16 %v1720, %v1720
      %v1759 = vpack.c.b16 %v1721, %v1721
      %v1760 = vpack.c.b16 %v1722, %v1722
      %v1761 = vpack.c.b16 %v1723, %v1723
      %v1762 = vpack.c.b16 %v1724, %v1724
      %v1763 = vpack.c.b16 %v1725, %v1725
      %v1764 = vpack.c.b16 %v1726, %v1726
      %v1765 = vpack.c.b16 %v1727, %v1727
      %v1766 = vpack.c.b16 %v1728, %v1728
      %v1767 = vpack.c.b16 %v1729, %v1729
      %v1768 = vpack.c.b16 %v1730, %v1730
      %v1769 = vpack.c.b16 %v1731, %v1731
      %v1770 = vpack.c.b16 %v1732, %v1732
      %v1771 = vpack.c.b16 %v1733, %v1733
      %v1772 = vpack.c.b16 %v1734, %v1734
      %v1773 = vpack.c.b16 %v1735, %v1735
      %v1774 = vpack.c.b16 %v1736, %v1736
      %v1775 = vpack.c.b16 %v1737, %v1737
      %1814 = vst [vmem:[%s170] sm:$0xf] %v1738
      %1815 = vst [vmem:[%s170 + $0x4] sm:$0xf] %v1739
      %1816 = vst [vmem:[%s170 + $0x8] sm:$0xf] %v1740
      %1817 = vst [vmem:[%s170 + $0xc] sm:$0xf] %v1741
      %1818 = vst [vmem:[%s170 + $0x10] sm:$0xf] %v1742
      %1819 = vst [vmem:[%s170 + $0x14] sm:$0xf] %v1743
      %1820 = vst [vmem:[%s170 + $0x18] sm:$0xf] %v1744
      %1821 = vst [vmem:[%s170 + $0x1c] sm:$0xf] %v1745
      %1822 = vst [vmem:[%s170 + $0x20] sm:$0xf] %v1746
      %1823 = vst [vmem:[%s170 + $0x24] sm:$0xf] %v1747
      %1824 = vst [vmem:[%s170 + $0x28] sm:$0xf] %v1748
      %1825 = vst [vmem:[%s170 + $0x2c] sm:$0xf] %v1749
      %1826 = vst [vmem:[%s170 + $0x30] sm:$0xf] %v1750
      %1827 = vst [vmem:[%s170 + $0x34] sm:$0xf] %v1751
      %1828 = vst [vmem:[%s170 + $0x38] sm:$0xf] %v1752
      %1829 = vst [vmem:[%s170 + $0x3c] sm:$0xf] %v1753
      %1830 = vst [vmem:[%s170 + $0x40] sm:$0xf] %v1754
      %1831 = vst [vmem:[%s170 + $0x44] sm:$0xf] %v1755
      %1832 = vst [vmem:[%s170 + $0x48] sm:$0xf] %v1756
      %1833 = vst [vmem:[%s170 + $0x4c] sm:$0xf] %v1757
      %1834 = vst [vmem:[%s170 + $0x50] sm:$0xf] %v1758
      %1835 = vst [vmem:[%s170 + $0x54] sm:$0xf] %v1759
      %1836 = vst [vmem:[%s170 + $0x58] sm:$0xf] %v1760
      %1837 = vst [vmem:[%s170 + $0x5c] sm:$0xf] %v1761
      %1838 = vst [vmem:[%s170 + $0x60] sm:$0xf] %v1762
      %1839 = vst [vmem:[%s170 + $0x64] sm:$0xf] %v1763
      %1840 = vst [vmem:[%s170 + $0x68] sm:$0xf] %v1764
      %1841 = vst [vmem:[%s170 + $0x6c] sm:$0xf] %v1765
      %1842 = vst [vmem:[%s170 + $0x70] sm:$0xf] %v1766
      %1843 = vst [vmem:[%s170 + $0x74] sm:$0xf] %v1767
      %1844 = vst [vmem:[%s170 + $0x78] sm:$0xf] %v1768
      %1845 = vst [vmem:[%s170 + $0x7c] sm:$0xf] %v1769
      %1846 = vst [vmem:[%s170 + $0x80] sm:$0xf] %v1770
      %1847 = vst [vmem:[%s170 + $0x84] sm:$0xf] %v1771
      %1848 = vst [vmem:[%s170 + $0x88] sm:$0xf] %v1772
      %1849 = vst [vmem:[%s170 + $0x8c] sm:$0xf] %v1773
      %1850 = vst [vmem:[%s170 + $0x90] sm:$0xf] %v1774
      %1851 = vst [vmem:[%s170 + $0x94] sm:$0x3] %v1775
      %p1852 = scmp.lt.s32.totalorder %s14, 1
      %s1853 = scalar_select %p1852, %s14, 1
      %s1854 = smul.addr %s1853, 38
      %s1855 = smul.addr %s1854, 4
      %s1856 = scalar_lea.vmem %s3, %s1855
      // Predicated region
      $region33: #{fwd.3} parent=31 // pred_check
        %p1857 = pneg %p100
      $region34: #{fwd.3} parent=31 // pred_check_branch
        %1859 = sbr.rel (%p1857) target = $region36
      $region35: #{fwd.3} parent=31 // pred_region
        _
      $region36: #{fwd.3} parent=31 // pred_fallthru
        _
    $region32: #{fwd.3} parent=5 // pred_fallthru
      _
    %p1860 = scmp.le.s32.totalorder 2, %s9
    // Predicated region
    $region37: #{fwd.3} parent=5 // pred_check
      %p1861 = pneg %p1860
    $region38: #{fwd.3} parent=5 // pred_check_branch
      %1863 = sbr.rel (%p1861) target = $region40
    $region39: #{fwd.3} parent=5 // pred_region
      %s1864 = ssub.s32 %s9, 2
      // Predicated region
      $region41: #{fwd.3} parent=39 // pred_check
        %p1865 = pneg %p106
      $region42: #{fwd.3} parent=39 // pred_check_branch
        %1867 = sbr.rel (%p1865) target = $region44
      $region43: #{fwd.3} parent=39 // pred_region
        %p1868 = scmp.lt.s32.totalorder %s15, 1
        %s1869 = scalar_select %p1868, %s15, 1
        %s1870 = smul.addr %s1869, 38
        %s1871 = smul.addr %s1870, 4
        %s1872 = scalar_lea.vmem %s3, %s1871
      $region44: #{fwd.3} parent=39 // pred_fallthru
        _
    $region40: #{fwd.3} parent=5 // pred_fallthru
      _
  $region6: #{fwd.3} parent=0 // loop_footer
    %s13 = sadd.s32 1, %s9
  $region7: #{fwd.3} parent=0 // loop_footer_branch
    %8 = sbr.rel target = $region3
  $region8: #{fwd.3} parent=0 // loop_exit
    _

// kernel: fwd.5
$region0: #{fwd.5}
  #allocation0 [shape = 'u32[]', space=smem, size = 0x4, offset = 0x4, fixed_abs, tag = 'smem constant byte address 0x4 - core index']
  #allocation1 [shape = 'u32[144,128]{1,0:T(1,128)}', space=vmem, size = 0x12000, scoped, tag = 'internal scratch']
  %s0 = inlined_call_operand.vmem [shape: bf16[2,450,640], index: 0, kind: input, shape index: {}]
  %s1 = inlined_call_operand.vmem [shape: bf16[640,128], index: 1, kind: input, shape index: {}]
  %s2 = inlined_call_operand.vmem [shape: f32[1,128], index: 2, kind: input, shape index: {}]
  %s3 = inlined_call_operand.vmem [shape: bf16[2,450,128], index: 3, kind: input, shape index: {}]
  %s4 = inlined_call_operand.vmem [shape: bf16[2,450,128], index: 4, kind: output, shape index: {}]
  %s5 = sld [smem:[#allocation0]]
  $region49: #{fwd.5} parent=0
    _
  %s7 = ssub.s32 1, %s5
  %s8 = scalar_select 0, %s7, %s5
  loop: start=0, step=1, limit=4
  $region2: #{fwd.5} parent=0 // loop_pre_header
    _
  $region3: #{fwd.5} parent=0 // loop_header
    %s10 = sphi 0, %s14
    %p11 = scmp.ge.s32.totalorder %s10, 4
    %s20 = sphi 0, %s22
    %s23 = sphi 0, %s20
    %s24 = sphi 0, %s23
    %s40 = sphi 0, %s24
    %s44 = sphi 0, %s44
    %s46 = sphi 0, %s44
    %s47 = sphi 0, %s46
    %s61 = sphi 0, %s47
    %s65 = sphi 0, %s65
    %s67 = sphi 0, %s65
    %s68 = sphi 0, %s67
    %s82 = sphi 0, %s68
    %s88 = sphi 0, %s90
    %s91 = sphi 0, %s88
    %s92 = sphi 0, %s91
    %s108 = sphi 0, %s92
    %s114 = sphi 0, %s116
    %s117 = sphi 0, %s114
    %s118 = sphi 0, %s117
    %s134 = sphi 0, %s118
  $region4: #{fwd.5} parent=0 // loop_header_branch
    %13 = sbr.rel (%p11) target = $region8
  $region5: #{fwd.5} parent=0 // loop_body
    %s15 = ssub.s32 %s10, 1
    %s16 = ssub.s32 %s10, 2
    %s17 = sadd.s32 %s10, 1
    %s18 = ssub.s32 %s10, %s17
    %p19 = scmp.eq.s32.totalorder %s18, 0
    %s21 = sadd.s32 %s20, 1
    %s22 = scalar_select %p19, %s20, %s21
    %p25 = pneg %p19
    %p26 = scmp.eq.s32.totalorder %s10, 1
    %p27 = por %p25, %p26
    %p28 = scmp.ne.s32.totalorder %s20, %s23
    %p29 = scmp.eq.s32.totalorder %s10, 0
    %p30 = por %p28, %p29
    %p31 = scmp.ne.s32.totalorder %s20, %s23
    %p32 = scmp.eq.s32.totalorder %s15, 1
    %p33 = por %p31, %p32
    %p34 = scmp.ne.s32.totalorder %s23, %s24
    %p35 = scmp.eq.s32.totalorder %s15, 0
    %p36 = por %p34, %p35
    %p37 = scmp.ne.s32.totalorder %s23, %s24
    %p38 = scmp.eq.s32.totalorder %s16, 1
    %p39 = por %p37, %p38
    %p41 = scmp.ne.s32.totalorder %s24, %s40
    %p42 = scmp.eq.s32.totalorder %s16, 0
    %p43 = por %p41, %p42
    %s45 = sadd.s32 %s44, 1
    %p48 = scmp.eq.s32.totalorder %s10, 1
    %p49 = scmp.ne.s32.totalorder %s44, %s46
    %p50 = scmp.eq.s32.totalorder %s10, 0
    %p51 = por %p49, %p50
    %p52 = scmp.ne.s32.totalorder %s44, %s46
    %p53 = scmp.eq.s32.totalorder %s15, 1
    %p54 = por %p52, %p53
    %p55 = scmp.ne.s32.totalorder %s46, %s47
    %p56 = scmp.eq.s32.totalorder %s15, 0
    %p57 = por %p55, %p56
    %p58 = scmp.ne.s32.totalorder %s46, %s47
    %p59 = scmp.eq.s32.totalorder %s16, 1
    %p60 = por %p58, %p59
    %p62 = scmp.ne.s32.totalorder %s47, %s61
    %p63 = scmp.eq.s32.totalorder %s16, 0
    %p64 = por %p62, %p63
    %s66 = sadd.s32 %s65, 1
    %p69 = scmp.eq.s32.totalorder %s10, 1
    %p70 = scmp.ne.s32.totalorder %s65, %s67
    %p71 = scmp.eq.s32.totalorder %s10, 0
    %p72 = por %p70, %p71
    %p73 = scmp.ne.s32.totalorder %s65, %s67
    %p74 = scmp.eq.s32.totalorder %s15, 1
    %p75 = por %p73, %p74
    %p76 = scmp.ne.s32.totalorder %s67, %s68
    %p77 = scmp.eq.s32.totalorder %s15, 0
    %p78 = por %p76, %p77
    %p79 = scmp.ne.s32.totalorder %s67, %s68
    %p80 = scmp.eq.s32.totalorder %s16, 1
    %p81 = por %p79, %p80
    %p83 = scmp.ne.s32.totalorder %s68, %s82
    %p84 = scmp.eq.s32.totalorder %s16, 0
    %p85 = por %p83, %p84
    %s86 = ssub.s32 %s10, %s17
    %p87 = scmp.eq.s32.totalorder %s86, 0
    %s89 = sadd.s32 %s88, 1
    %s90 = scalar_select %p87, %s88, %s89
    %p93 = pneg %p87
    %p94 = scmp.eq.s32.totalorder %s10, 1
    %p95 = por %p93, %p94
    %p96 = scmp.ne.s32.totalorder %s88, %s91
    %p97 = scmp.eq.s32.totalorder %s10, 0
    %p98 = por %p96, %p97
    %p99 = scmp.ne.s32.totalorder %s88, %s91
    %p100 = scmp.eq.s32.totalorder %s15, 1
    %p101 = por %p99, %p100
    %p102 = scmp.ne.s32.totalorder %s91, %s92
    %p103 = scmp.eq.s32.totalorder %s15, 0
    %p104 = por %p102, %p103
    %p105 = scmp.ne.s32.totalorder %s91, %s92
    %p106 = scmp.eq.s32.totalorder %s16, 1
    %p107 = por %p105, %p106
    %p109 = scmp.ne.s32.totalorder %s92, %s108
    %p110 = scmp.eq.s32.totalorder %s16, 0
    %p111 = por %p109, %p110
    %s112 = ssub.s32 %s10, %s17
    %p113 = scmp.eq.s32.totalorder %s112, 0
    %s115 = sadd.s32 %s114, 1
    %s116 = scalar_select %p113, %s114, %s115
    %p119 = pneg %p113
    %p120 = scmp.eq.s32.totalorder %s10, 1
    %p121 = por %p119, %p120
    %p122 = scmp.ne.s32.totalorder %s114, %s117
    %p123 = scmp.eq.s32.totalorder %s10, 0
    %p124 = por %p122, %p123
    %p125 = scmp.ne.s32.totalorder %s114, %s117
    %p126 = scmp.eq.s32.totalorder %s15, 1
    %p127 = por %p125, %p126
    %p128 = scmp.ne.s32.totalorder %s117, %s118
    %p129 = scmp.eq.s32.totalorder %s15, 0
    %p130 = por %p128, %p129
    %p131 = scmp.ne.s32.totalorder %s117, %s118
    %p132 = scmp.eq.s32.totalorder %s16, 1
    %p133 = por %p131, %p132
    %p135 = scmp.ne.s32.totalorder %s118, %s134
    %p136 = scmp.eq.s32.totalorder %s16, 0
    %p137 = por %p135, %p136
    %p138 = scmp.le.s32.totalorder 1, %s10
    %p139 = scmp.lt.s32.totalorder %s10, 3
    %p140 = pnand %p138, %p139
    %p141 = pneg %p140
    // Predicated region
    $region9: #{fwd.5} parent=5 // pred_check
      _
    $region10: #{fwd.5} parent=5 // pred_check_branch
      %143 = sbr.rel (%p140) target = $region12
    $region11: #{fwd.5} parent=5 // pred_region
      %s144 = ssub.s32 %s10, 1
      // Predicated region
      $region13: #{fwd.5} parent=11 // pred_check
        %p145 = pneg %p57
      $region14: #{fwd.5} parent=11 // pred_check_branch
        %147 = sbr.rel (%p145) target = $region16
      $region15: #{fwd.5} parent=11 // pred_region
        _
      $region16: #{fwd.5} parent=11 // pred_fallthru
        _
      // Predicated region
      $region17: #{fwd.5} parent=11 // pred_check
        %p148 = pneg %p78
      $region18: #{fwd.5} parent=11 // pred_check_branch
        %150 = sbr.rel (%p148) target = $region20
      $region19: #{fwd.5} parent=11 // pred_region
        _
      $region20: #{fwd.5} parent=11 // pred_fallthru
        _
    $region12: #{fwd.5} parent=5 // pred_fallthru
      _
    %p151 = scmp.lt.s32.totalorder %s10, 2
    // Predicated region
    $region21: #{fwd.5} parent=5 // pred_check
      %p152 = pneg %p151
    $region22: #{fwd.5} parent=5 // pred_check_branch
      %154 = sbr.rel (%p152) target = $region24
    $region23: #{fwd.5} parent=5 // pred_region
      // Predicated region
      $region25: #{fwd.5} parent=23 // pred_check
        %p155 = pneg %p30
      $region26: #{fwd.5} parent=23 // pred_check_branch
        %157 = sbr.rel (%p155) target = $region28
      $region27: #{fwd.5} parent=23 // pred_region
        %p158 = scmp.lt.s32.totalorder %s10, 1
        %s159 = scalar_select %p158, %s10, 1
        %s160 = smul.addr %s159, 285
        %s161 = smul.addr %s160, 4
        %s162 = scalar_lea.vmem %s0, %s161
      $region28: #{fwd.5} parent=23 // pred_fallthru
        _
      // Predicated region
      $region29: #{fwd.5} parent=23 // pred_check
        %p163 = pneg %p98
      $region30: #{fwd.5} parent=23 // pred_check_branch
        %165 = sbr.rel (%p163) target = $region32
      $region31: #{fwd.5} parent=23 // pred_region
        %p166 = scmp.lt.s32.totalorder %s10, 1
        %s167 = scalar_select %p166, %s10, 1
        %s168 = smul.addr %s167, 57
        %s169 = smul.addr %s168, 4
        %s170 = scalar_lea.vmem %s3, %s169
      $region32: #{fwd.5} parent=23 // pred_fallthru
        _
    $region24: #{fwd.5} parent=5 // pred_fallthru
      _
    %p171 = scmp.le.s32.totalorder 1, %s10
    %p172 = scmp.lt.s32.totalorder %s10, 3
    %p173 = pnand %p171, %p172
    %p174 = pneg %p173
    // Predicated region
    $region33: #{fwd.5} parent=5 // pred_check
      _
    $region34: #{fwd.5} parent=5 // pred_check_branch
      %176 = sbr.rel (%p173) target = $region36
    $region35: #{fwd.5} parent=5 // pred_region
      %s177 = ssub.s32 %s10, 1
      %p178 = scmp.lt.s32.totalorder %s15, 1
      %s179 = scalar_select %p178, %s15, 1
      %s180 = smul.addr %s179, 285
      %s181 = smul.addr %s180, 4
      %s182 = scalar_lea.vmem %s0, %s181
      %p183 = pneg %p36
      %p184 = pneg %p33
      %p185 = pneg %p57
      %p186 = pneg %p54
      %p187 = pneg %p78
      %p188 = pneg %p75
      %p189 = scmp.lt.s32.totalorder %s15, 1
      %s190 = scalar_select %p189, %s15, 1
      %s191 = smul.addr %s190, 57
      %s192 = smul.addr %s191, 4
      %s193 = scalar_lea.vmem %s3, %s192
      %p194 = pneg %p104
      %p195 = pneg %p101
      %p196 = pneg %p130
      %p197 = pneg %p127
      %p198 = scmp.lt.s32.totalorder %s15, 1
      %s199 = scalar_select %p198, %s15, 1
      %s200 = smul.addr %s199, 57
      %s201 = smul.addr %s200, 4
      %s202 = scalar_lea.vmem %s4, %s201
      %p203 = scmp.lt.s32.totalorder %s15, 1
      %s204 = scalar_select %p203, %s15, 1
      %s205 = smul.addr %s204, 285
      %s206 = smul.addr %s205, 4
      %s207 = scalar_lea.vmem %s0, %s206
      %p208 = scmp.lt.s32.totalorder %s15, 1
      %s209 = scalar_select %p208, %s15, 1
      %s210 = smul.addr %s209, 57
      %s211 = smul.addr %s210, 4
      %s212 = scalar_lea.vmem %s3, %s211
      %p213 = scmp.lt.s32.totalorder %s15, 1
      %s214 = scalar_select %p213, %s15, 1
      %s215 = smul.addr %s214, 57
      %s216 = smul.addr %s215, 4
      %s217 = scalar_lea.vmem %s4, %s216
      %v219 = vld [vmem:[%s207] sm:$0xff]
      %v220 = vld [vmem:[%s207 + $0x8] sm:$0xff]
      %v221 = vld [vmem:[%s207 + $0x10] sm:$0xf]
      %v222 = vld [vmem:[%s207 + $0x14] sm:$0xff]
      %v223 = vld [vmem:[%s207 + $0x1c] sm:$0xff]
      %v224 = vld [vmem:[%s207 + $0x24] sm:$0xf]
      %v225 = vld [vmem:[%s207 + $0x28] sm:$0xff]
      %v226 = vld [vmem:[%s207 + $0x30] sm:$0xff]
      %v227 = vld [vmem:[%s207 + $0x38] sm:$0xf]
      %v228 = vld [vmem:[%s207 + $0x3c] sm:$0xff]
      %v229 = vld [vmem:[%s207 + $0x44] sm:$0xff]
      %v230 = vld [vmem:[%s207 + $0x4c] sm:$0xf]
      %v231 = vld [vmem:[%s207 + $0x50] sm:$0xff]
      %v232 = vld [vmem:[%s207 + $0x58] sm:$0xff]
      %v233 = vld [vmem:[%s207 + $0x60] sm:$0xf]
      %v234 = vld [vmem:[%s207 + $0x64] sm:$0xff]
      %v235 = vld [vmem:[%s207 + $0x6c] sm:$0xff]
      %v236 = vld [vmem:[%s207 + $0x74] sm:$0xf]
      %v237 = vld [vmem:[%s207 + $0x78] sm:$0xff]
      %v238 = vld [vmem:[%s207 + $0x80] sm:$0xff]
      %v239 = vld [vmem:[%s207 + $0x88] sm:$0xf]
      %v240 = vld [vmem:[%s207 + $0x8c] sm:$0xff]
      %v241 = vld [vmem:[%s207 + $0x94] sm:$0xff]
      %v242 = vld [vmem:[%s207 + $0x9c] sm:$0xf]
      %v243 = vld [vmem:[%s207 + $0xa0] sm:$0xff]
      %v244 = vld [vmem:[%s207 + $0xa8] sm:$0xff]
      %v245 = vld [vmem:[%s207 + $0xb0] sm:$0xf]
      %v246 = vld [vmem:[%s207 + $0xb4] sm:$0xff]
      %v247 = vld [vmem:[%s207 + $0xbc] sm:$0xff]
      %v248 = vld [vmem:[%s207 + $0xc4] sm:$0xf]
      %v249 = vld [vmem:[%s207 + $0xc8] sm:$0xff]
      %v250 = vld [vmem:[%s207 + $0xd0] sm:$0xff]
      %v251 = vld [vmem:[%s207 + $0xd8] sm:$0xf]
      %v252 = vld [vmem:[%s207 + $0xdc] sm:$0xff]
      %v253 = vld [vmem:[%s207 + $0xe4] sm:$0xff]
      %v254 = vld [vmem:[%s207 + $0xec] sm:$0xf]
      %v255 = vld [vmem:[%s207 + $0xf0] sm:$0xff]
      %v256 = vld [vmem:[%s207 + $0xf8] sm:$0xff]
      %v257 = vld [vmem:[%s207 + $0x100] sm:$0xf]
      %v258 = vld [vmem:[%s207 + $0x104] sm:$0xff]
      %v259 = vld [vmem:[%s207 + $0x10c] sm:$0xff]
      %v260 = vld [vmem:[%s207 + $0x114] sm:$0xf]
      %v261 = vld [vmem:[%s207 + $0x118] sm:$0xff]
      %v262 = vld [vmem:[%s207 + $0x120] sm:$0xff]
      %v263 = vld [vmem:[%s207 + $0x128] sm:$0xf]
      %v264 = vld [vmem:[%s207 + $0x12c] sm:$0xff]
      %v265 = vld [vmem:[%s207 + $0x134] sm:$0xff]
      %v266 = vld [vmem:[%s207 + $0x13c] sm:$0xf]
      %v267 = vld [vmem:[%s207 + $0x140] sm:$0xff]
      %v268 = vld [vmem:[%s207 + $0x148] sm:$0xff]
      %v269 = vld [vmem:[%s207 + $0x150] sm:$0xf]
      %v270 = vld [vmem:[%s207 + $0x154] sm:$0xff]
      %v271 = vld [vmem:[%s207 + $0x15c] sm:$0xff]
      %v272 = vld [vmem:[%s207 + $0x164] sm:$0xf]
      %v273 = vld [vmem:[%s207 + $0x168] sm:$0xff]
      %v274 = vld [vmem:[%s207 + $0x170] sm:$0xff]
      %v275 = vld [vmem:[%s207 + $0x178] sm:$0xf]
      %v276 = vld [vmem:[%s207 + $0x17c] sm:$0xff]
      %v277 = vld [vmem:[%s207 + $0x184] sm:$0xff]
      %v278 = vld [vmem:[%s207 + $0x18c] sm:$0xf]
      %v279 = vld [vmem:[%s207 + $0x190] sm:$0xff]
      %v280 = vld [vmem:[%s207 + $0x198] sm:$0xff]
      %v281 = vld [vmem:[%s207 + $0x1a0] sm:$0xf]
      %v282 = vld [vmem:[%s207 + $0x1a4] sm:$0xff]
      %v283 = vld [vmem:[%s207 + $0x1ac] sm:$0xff]
      %v284 = vld [vmem:[%s207 + $0x1b4] sm:$0xf]
      %v285 = vld [vmem:[%s207 + $0x1b8] sm:$0xff]
      %v286 = vld [vmem:[%s207 + $0x1c0] sm:$0xff]
      %v287 = vld [vmem:[%s207 + $0x1c8] sm:$0xf]
      %v288 = vld [vmem:[%s207 + $0x1cc] sm:$0xff]
      %v289 = vld [vmem:[%s207 + $0x1d4] sm:$0xff]
      %v290 = vld [vmem:[%s207 + $0x1dc] sm:$0xf]
      %v291 = vld [vmem:[%s207 + $0x1e0] sm:$0xff]
      %v292 = vld [vmem:[%s207 + $0x1e8] sm:$0xff]
      %v293 = vld [vmem:[%s207 + $0x1f0] sm:$0xf]
      %v294 = vld [vmem:[%s207 + $0x1f4] sm:$0xff]
      %v295 = vld [vmem:[%s207 + $0x1fc] sm:$0xff]
      %v296 = vld [vmem:[%s207 + $0x204] sm:$0xf]
      %v297 = vld [vmem:[%s207 + $0x208] sm:$0xff]
      %v298 = vld [vmem:[%s207 + $0x210] sm:$0xff]
      %v299 = vld [vmem:[%s207 + $0x218] sm:$0xf]
      %v300 = vld [vmem:[%s207 + $0x21c] sm:$0xff]
      %v301 = vld [vmem:[%s207 + $0x224] sm:$0xff]
      %v302 = vld [vmem:[%s207 + $0x22c] sm:$0xf]
      %v303 = vld [vmem:[%s207 + $0x230] sm:$0xff]
      %v304 = vld [vmem:[%s207 + $0x238] sm:$0xff]
      %v305 = vld [vmem:[%s207 + $0x240] sm:$0xf]
      %v306 = vld [vmem:[%s207 + $0x244] sm:$0xff]
      %v307 = vld [vmem:[%s207 + $0x24c] sm:$0xff]
      %v308 = vld [vmem:[%s207 + $0x254] sm:$0xf]
      %v309 = vld [vmem:[%s207 + $0x258] sm:$0xff]
      %v310 = vld [vmem:[%s207 + $0x260] sm:$0xff]
      %v311 = vld [vmem:[%s207 + $0x268] sm:$0xf]
      %v312 = vld [vmem:[%s207 + $0x26c] sm:$0xff]
      %v313 = vld [vmem:[%s207 + $0x274] sm:$0xff]
      %v314 = vld [vmem:[%s207 + $0x27c] sm:$0xf]
      %v315 = vld [vmem:[%s207 + $0x280] sm:$0xff]
      %v316 = vld [vmem:[%s207 + $0x288] sm:$0xff]
      %v317 = vld [vmem:[%s207 + $0x290] sm:$0xf]
      %v318 = vld [vmem:[%s207 + $0x294] sm:$0xff]
      %v319 = vld [vmem:[%s207 + $0x29c] sm:$0xff]
      %v320 = vld [vmem:[%s207 + $0x2a4] sm:$0xf]
      %v321 = vld [vmem:[%s207 + $0x2a8] sm:$0xff]
      %v322 = vld [vmem:[%s207 + $0x2b0] sm:$0xff]
      %v323 = vld [vmem:[%s207 + $0x2b8] sm:$0xf]
      %v324 = vld [vmem:[%s207 + $0x2bc] sm:$0xff]
      %v325 = vld [vmem:[%s207 + $0x2c4] sm:$0xff]
      %v326 = vld [vmem:[%s207 + $0x2cc] sm:$0xf]
      %v327 = vld [vmem:[%s207 + $0x2d0] sm:$0xff]
      %v328 = vld [vmem:[%s207 + $0x2d8] sm:$0xff]
      %v329 = vld [vmem:[%s207 + $0x2e0] sm:$0xf]
      %v330 = vld [vmem:[%s207 + $0x2e4] sm:$0xff]
      %v331 = vld [vmem:[%s207 + $0x2ec] sm:$0xff]
      %v332 = vld [vmem:[%s207 + $0x2f4] sm:$0xf]
      %v333 = vld [vmem:[%s207 + $0x2f8] sm:$0xff]
      %v334 = vld [vmem:[%s207 + $0x300] sm:$0xff]
      %v335 = vld [vmem:[%s207 + $0x308] sm:$0xf]
      %v336 = vld [vmem:[%s207 + $0x30c] sm:$0xff]
      %v337 = vld [vmem:[%s207 + $0x314] sm:$0xff]
      %v338 = vld [vmem:[%s207 + $0x31c] sm:$0xf]
      %v339 = vld [vmem:[%s207 + $0x320] sm:$0xff]
      %v340 = vld [vmem:[%s207 + $0x328] sm:$0xff]
      %v341 = vld [vmem:[%s207 + $0x330] sm:$0xf]
      %v342 = vld [vmem:[%s207 + $0x334] sm:$0xff]
      %v343 = vld [vmem:[%s207 + $0x33c] sm:$0xff]
      %v344 = vld [vmem:[%s207 + $0x344] sm:$0xf]
      %v345 = vld [vmem:[%s207 + $0x348] sm:$0xff]
      %v346 = vld [vmem:[%s207 + $0x350] sm:$0xff]
      %v347 = vld [vmem:[%s207 + $0x358] sm:$0xf]
      %v348 = vld [vmem:[%s207 + $0x35c] sm:$0xff]
      %v349 = vld [vmem:[%s207 + $0x364] sm:$0xff]
      %v350 = vld [vmem:[%s207 + $0x36c] sm:$0xf]
      %v351 = vld [vmem:[%s207 + $0x370] sm:$0xff]
      %v352 = vld [vmem:[%s207 + $0x378] sm:$0xff]
      %v353 = vld [vmem:[%s207 + $0x380] sm:$0xf]
      %v354 = vld [vmem:[%s207 + $0x384] sm:$0xff]
      %v355 = vld [vmem:[%s207 + $0x38c] sm:$0xff]
      %v356 = vld [vmem:[%s207 + $0x394] sm:$0xf]
      %v357 = vld [vmem:[%s207 + $0x398] sm:$0xff]
      %v358 = vld [vmem:[%s207 + $0x3a0] sm:$0xff]
      %v359 = vld [vmem:[%s207 + $0x3a8] sm:$0xf]
      %v360 = vld [vmem:[%s207 + $0x3ac] sm:$0xff]
      %v361 = vld [vmem:[%s207 + $0x3b4] sm:$0xff]
      %v362 = vld [vmem:[%s207 + $0x3bc] sm:$0xf]
      %v363 = vld [vmem:[%s207 + $0x3c0] sm:$0xff]
      %v364 = vld [vmem:[%s207 + $0x3c8] sm:$0xff]
      %v365 = vld [vmem:[%s207 + $0x3d0] sm:$0xf]
      %v366 = vld [vmem:[%s207 + $0x3d4] sm:$0xff]
      %v367 = vld [vmem:[%s207 + $0x3dc] sm:$0xff]
      %v368 = vld [vmem:[%s207 + $0x3e4] sm:$0xf]
      %v369 = vld [vmem:[%s207 + $0x3e8] sm:$0xff]
      %v370 = vld [vmem:[%s207 + $0x3f0] sm:$0xff]
      %v371 = vld [vmem:[%s207 + $0x3f8] sm:$0xf]
      %v372 = vld [vmem:[%s207 + $0x3fc] sm:$0xff]
      %v373 = vld [vmem:[%s207 + $0x404] sm:$0xff]
      %v374 = vld [vmem:[%s207 + $0x40c] sm:$0xf]
      %v375 = vld [vmem:[%s207 + $0x410] sm:$0xff]
      %v376 = vld [vmem:[%s207 + $0x418] sm:$0xff]
      %v377 = vld [vmem:[%s207 + $0x420] sm:$0xf]
      %v378 = vld [vmem:[%s207 + $0x424] sm:$0xff]
      %v379 = vld [vmem:[%s207 + $0x42c] sm:$0xff]
      %v380 = vld [vmem:[%s207 + $0x434] sm:$0xf]
      %v381 = vld [vmem:[%s207 + $0x438] sm:$0xff]
      %v382 = vld [vmem:[%s207 + $0x440] sm:$0xff]
      %v383 = vld [vmem:[%s207 + $0x448] sm:$0xf]
      %v384 = vld [vmem:[%s207 + $0x44c] sm:$0xff]
      %v385 = vld [vmem:[%s207 + $0x454] sm:$0xff]
      %v386 = vld [vmem:[%s207 + $0x45c] sm:$0xf]
      %v387 = vld [vmem:[%s207 + $0x460] sm:$0x11]
      %v388 = vld [vmem:[%s207 + $0x468] sm:$0x11]
      %v389 = vld [vmem:[%s207 + $0x470] sm:$0x1]
      %v390 = vld [vmem:[%s1] sm:$0xf]
      %v391 = vld [vmem:[%s1 + $0x4] sm:$0xf]
      %v392 = vld [vmem:[%s1 + $0x8] sm:$0xf]
      %v393 = vld [vmem:[%s1 + $0xc] sm:$0xf]
      %v394 = vld [vmem:[%s1 + $0x10] sm:$0xf]
      %v395 = vld [vmem:[%s1 + $0x14] sm:$0xf]
      %v396 = vld [vmem:[%s1 + $0x18] sm:$0xf]
      %v397 = vld [vmem:[%s1 + $0x1c] sm:$0xf]
      %v398 = vld [vmem:[%s1 + $0x20] sm:$0xf]
      %v399 = vld [vmem:[%s1 + $0x24] sm:$0xf]
      %v400 = vld [vmem:[%s1 + $0x28] sm:$0xf]
      %v401 = vld [vmem:[%s1 + $0x2c] sm:$0xf]
      %v402 = vld [vmem:[%s1 + $0x30] sm:$0xf]
      %v403 = vld [vmem:[%s1 + $0x34] sm:$0xf]
      %v404 = vld [vmem:[%s1 + $0x38] sm:$0xf]
      %v405 = vld [vmem:[%s1 + $0x3c] sm:$0xf]
      %v406 = vld [vmem:[%s1 + $0x40] sm:$0xf]
      %v407 = vld [vmem:[%s1 + $0x44] sm:$0xf]
      %v408 = vld [vmem:[%s1 + $0x48] sm:$0xf]
      %v409 = vld [vmem:[%s1 + $0x4c] sm:$0xf]
      %v410 = vld [vmem:[%s1 + $0x50] sm:$0xf]
      %v411 = vld [vmem:[%s1 + $0x54] sm:$0xf]
      %v412 = vld [vmem:[%s1 + $0x58] sm:$0xf]
      %v413 = vld [vmem:[%s1 + $0x5c] sm:$0xf]
      %v414 = vld [vmem:[%s1 + $0x60] sm:$0xf]
      %v415 = vld [vmem:[%s1 + $0x64] sm:$0xf]
      %v416 = vld [vmem:[%s1 + $0x68] sm:$0xf]
      %v417 = vld [vmem:[%s1 + $0x6c] sm:$0xf]
      %v418 = vld [vmem:[%s1 + $0x70] sm:$0xf]
      %v419 = vld [vmem:[%s1 + $0x74] sm:$0xf]
      %v420 = vld [vmem:[%s1 + $0x78] sm:$0xf]
      %v421 = vld [vmem:[%s1 + $0x7c] sm:$0xf]
      %v422 = vld [vmem:[%s1 + $0x80] sm:$0xf]
      %v423 = vld [vmem:[%s1 + $0x84] sm:$0xf]
      %v424 = vld [vmem:[%s1 + $0x88] sm:$0xf]
      %v425 = vld [vmem:[%s1 + $0x8c] sm:$0xf]
      %v426 = vld [vmem:[%s1 + $0x90] sm:$0xf]
      %v427 = vld [vmem:[%s1 + $0x94] sm:$0xf]
      %v428 = vld [vmem:[%s1 + $0x98] sm:$0xf]
      %v429 = vld [vmem:[%s1 + $0x9c] sm:$0xf]
      %v430 = vld [vmem:[%s1 + $0xa0] sm:$0xf]
      %v431 = vld [vmem:[%s1 + $0xa4] sm:$0xf]
      %v432 = vld [vmem:[%s1 + $0xa8] sm:$0xf]
      %v433 = vld [vmem:[%s1 + $0xac] sm:$0xf]
      %v434 = vld [vmem:[%s1 + $0xb0] sm:$0xf]
      %v435 = vld [vmem:[%s1 + $0xb4] sm:$0xf]
      %v436 = vld [vmem:[%s1 + $0xb8] sm:$0xf]
      %v437 = vld [vmem:[%s1 + $0xbc] sm:$0xf]
      %v438 = vld [vmem:[%s1 + $0xc0] sm:$0xf]
      %v439 = vld [vmem:[%s1 + $0xc4] sm:$0xf]
      %v440 = vld [vmem:[%s1 + $0xc8] sm:$0xf]
      %v441 = vld [vmem:[%s1 + $0xcc] sm:$0xf]
      %v442 = vld [vmem:[%s1 + $0xd0] sm:$0xf]
      %v443 = vld [vmem:[%s1 + $0xd4] sm:$0xf]
      %v444 = vld [vmem:[%s1 + $0xd8] sm:$0xf]
      %v445 = vld [vmem:[%s1 + $0xdc] sm:$0xf]
      %v446 = vld [vmem:[%s1 + $0xe0] sm:$0xf]
      %v447 = vld [vmem:[%s1 + $0xe4] sm:$0xf]
      %v448 = vld [vmem:[%s1 + $0xe8] sm:$0xf]
      %v449 = vld [vmem:[%s1 + $0xec] sm:$0xf]
      %v450 = vld [vmem:[%s1 + $0xf0] sm:$0xf]
      %v451 = vld [vmem:[%s1 + $0xf4] sm:$0xf]
      %v452 = vld [vmem:[%s1 + $0xf8] sm:$0xf]
      %v453 = vld [vmem:[%s1 + $0xfc] sm:$0xf]
      %v454 = vld [vmem:[%s1 + $0x100] sm:$0xf]
      %v455 = vld [vmem:[%s1 + $0x104] sm:$0xf]
      %v456 = vld [vmem:[%s1 + $0x108] sm:$0xf]
      %v457 = vld [vmem:[%s1 + $0x10c] sm:$0xf]
      %v458 = vld [vmem:[%s1 + $0x110] sm:$0xf]
      %v459 = vld [vmem:[%s1 + $0x114] sm:$0xf]
      %v460 = vld [vmem:[%s1 + $0x118] sm:$0xf]
      %v461 = vld [vmem:[%s1 + $0x11c] sm:$0xf]
      %v462 = vld [vmem:[%s1 + $0x120] sm:$0xf]
      %v463 = vld [vmem:[%s1 + $0x124] sm:$0xf]
      %v464 = vld [vmem:[%s1 + $0x128] sm:$0xf]
      %v465 = vld [vmem:[%s1 + $0x12c] sm:$0xf]
      %v466 = vld [vmem:[%s1 + $0x130] sm:$0xf]
      %v467 = vld [vmem:[%s1 + $0x134] sm:$0xf]
      %v468 = vld [vmem:[%s1 + $0x138] sm:$0xf]
      %v469 = vld [vmem:[%s1 + $0x13c] sm:$0xf]
      %v470 = vld [vmem:[%s2] sm:$0x1]
      %v472 = vlaneseq
      %v473 = vshrl.u32 %v472, 7
      %v474 = vsub.s32 0, %v473
      %v475 = vrot.slane %v470, %v474
      %v648 = vunpack.c.l.b16 %v219
      %v649 = vunpack.c.h.b16 %v219
      %v650 = vunpack.c.l.b16 %v220
      %v651 = vunpack.c.h.b16 %v220
      %v652 = vunpack.c.l.b16 %v221
      %v653 = vunpack.c.l.b16 %v222
      %v654 = vunpack.c.h.b16 %v222
      %v655 = vunpack.c.l.b16 %v223
      %v656 = vunpack.c.h.b16 %v223
      %v657 = vunpack.c.l.b16 %v224
      %v658 = vunpack.c.l.b16 %v225
      %v659 = vunpack.c.h.b16 %v225
      %v660 = vunpack.c.l.b16 %v226
      %v661 = vunpack.c.h.b16 %v226
      %v662 = vunpack.c.l.b16 %v227
      %v663 = vunpack.c.l.b16 %v228
      %v664 = vunpack.c.h.b16 %v228
      %v665 = vunpack.c.l.b16 %v229
      %v666 = vunpack.c.h.b16 %v229
      %v667 = vunpack.c.l.b16 %v230
      %v668 = vunpack.c.l.b16 %v231
      %v669 = vunpack.c.h.b16 %v231
      %v670 = vunpack.c.l.b16 %v232
      %v671 = vunpack.c.h.b16 %v232
      %v672 = vunpack.c.l.b16 %v233
      %v673 = vunpack.c.l.b16 %v234
      %v674 = vunpack.c.h.b16 %v234
      %v675 = vunpack.c.l.b16 %v235
      %v676 = vunpack.c.h.b16 %v235
      %v677 = vunpack.c.l.b16 %v236
      %v678 = vunpack.c.l.b16 %v237
      %v679 = vunpack.c.h.b16 %v237
      %v680 = vunpack.c.l.b16 %v238
      %v681 = vunpack.c.h.b16 %v238
      %v682 = vunpack.c.l.b16 %v239
      %v683 = vunpack.c.l.b16 %v240
      %v684 = vunpack.c.h.b16 %v240
      %v685 = vunpack.c.l.b16 %v241
      %v686 = vunpack.c.h.b16 %v241
      %v687 = vunpack.c.l.b16 %v242
      %v688 = vunpack.c.l.b16 %v243
      %v689 = vunpack.c.h.b16 %v243
      %v690 = vunpack.c.l.b16 %v244
      %v691 = vunpack.c.h.b16 %v244
      %v692 = vunpack.c.l.b16 %v245
      %v693 = vunpack.c.l.b16 %v246
      %v694 = vunpack.c.h.b16 %v246
      %v695 = vunpack.c.l.b16 %v247
      %v696 = vunpack.c.h.b16 %v247
      %v697 = vunpack.c.l.b16 %v248
      %v698 = vunpack.c.l.b16 %v249
      %v699 = vunpack.c.h.b16 %v249
      %v700 = vunpack.c.l.b16 %v250
      %v701 = vunpack.c.h.b16 %v250
      %v702 = vunpack.c.l.b16 %v251
      %v703 = vunpack.c.l.b16 %v252
      %v704 = vunpack.c.h.b16 %v252
      %v705 = vunpack.c.l.b16 %v253
      %v706 = vunpack.c.h.b16 %v253
      %v707 = vunpack.c.l.b16 %v254
      %v708 = vunpack.c.l.b16 %v255
      %v709 = vunpack.c.h.b16 %v255
      %v710 = vunpack.c.l.b16 %v256
      %v711 = vunpack.c.h.b16 %v256
      %v712 = vunpack.c.l.b16 %v257
      %v713 = vunpack.c.l.b16 %v258
      %v714 = vunpack.c.h.b16 %v258
      %v715 = vunpack.c.l.b16 %v259
      %v716 = vunpack.c.h.b16 %v259
      %v717 = vunpack.c.l.b16 %v260
      %v718 = vunpack.c.l.b16 %v261
      %v719 = vunpack.c.h.b16 %v261
      %v720 = vunpack.c.l.b16 %v262
      %v721 = vunpack.c.h.b16 %v262
      %v722 = vunpack.c.l.b16 %v263
      %v723 = vunpack.c.l.b16 %v264
      %v724 = vunpack.c.h.b16 %v264
      %v725 = vunpack.c.l.b16 %v265
      %v726 = vunpack.c.h.b16 %v265
      %v727 = vunpack.c.l.b16 %v266
      %v728 = vunpack.c.l.b16 %v267
      %v729 = vunpack.c.h.b16 %v267
      %v730 = vunpack.c.l.b16 %v268
      %v731 = vunpack.c.h.b16 %v268
      %v732 = vunpack.c.l.b16 %v269
      %v733 = vunpack.c.l.b16 %v270
      %v734 = vunpack.c.h.b16 %v270
      %v735 = vunpack.c.l.b16 %v271
      %v736 = vunpack.c.h.b16 %v271
      %v737 = vunpack.c.l.b16 %v272
      %v738 = vunpack.c.l.b16 %v273
      %v739 = vunpack.c.h.b16 %v273
      %v740 = vunpack.c.l.b16 %v274
      %v741 = vunpack.c.h.b16 %v274
      %v742 = vunpack.c.l.b16 %v275
      %v743 = vunpack.c.l.b16 %v276
      %v744 = vunpack.c.h.b16 %v276
      %v745 = vunpack.c.l.b16 %v277
      %v746 = vunpack.c.h.b16 %v277
      %v747 = vunpack.c.l.b16 %v278
      %v748 = vunpack.c.l.b16 %v279
      %v749 = vunpack.c.h.b16 %v279
      %v750 = vunpack.c.l.b16 %v280
      %v751 = vunpack.c.h.b16 %v280
      %v752 = vunpack.c.l.b16 %v281
      %v753 = vunpack.c.l.b16 %v282
      %v754 = vunpack.c.h.b16 %v282
      %v755 = vunpack.c.l.b16 %v283
      %v756 = vunpack.c.h.b16 %v283
      %v757 = vunpack.c.l.b16 %v284
      %v758 = vunpack.c.l.b16 %v285
      %v759 = vunpack.c.h.b16 %v285
      %v760 = vunpack.c.l.b16 %v286
      %v761 = vunpack.c.h.b16 %v286
      %v762 = vunpack.c.l.b16 %v287
      %v763 = vunpack.c.l.b16 %v288
      %v764 = vunpack.c.h.b16 %v288
      %v765 = vunpack.c.l.b16 %v289
      %v766 = vunpack.c.h.b16 %v289
      %v767 = vunpack.c.l.b16 %v290
      %v768 = vunpack.c.l.b16 %v291
      %v769 = vunpack.c.h.b16 %v291
      %v770 = vunpack.c.l.b16 %v292
      %v771 = vunpack.c.h.b16 %v292
      %v772 = vunpack.c.l.b16 %v293
      %v773 = vunpack.c.l.b16 %v294
      %v774 = vunpack.c.h.b16 %v294
      %v775 = vunpack.c.l.b16 %v295
      %v776 = vunpack.c.h.b16 %v295
      %v777 = vunpack.c.l.b16 %v296
      %v778 = vunpack.c.l.b16 %v297
      %v779 = vunpack.c.h.b16 %v297
      %v780 = vunpack.c.l.b16 %v298
      %v781 = vunpack.c.h.b16 %v298
      %v782 = vunpack.c.l.b16 %v299
      %v783 = vunpack.c.l.b16 %v300
      %v784 = vunpack.c.h.b16 %v300
      %v785 = vunpack.c.l.b16 %v301
      %v786 = vunpack.c.h.b16 %v301
      %v787 = vunpack.c.l.b16 %v302
      %v788 = vunpack.c.l.b16 %v303
      %v789 = vunpack.c.h.b16 %v303
      %v790 = vunpack.c.l.b16 %v304
      %v791 = vunpack.c.h.b16 %v304
      %v792 = vunpack.c.l.b16 %v305
      %v793 = vunpack.c.l.b16 %v306
      %v794 = vunpack.c.h.b16 %v306
      %v795 = vunpack.c.l.b16 %v307
      %v796 = vunpack.c.h.b16 %v307
      %v797 = vunpack.c.l.b16 %v308
      %v798 = vunpack.c.l.b16 %v309
      %v799 = vunpack.c.h.b16 %v309
      %v800 = vunpack.c.l.b16 %v310
      %v801 = vunpack.c.h.b16 %v310
      %v802 = vunpack.c.l.b16 %v311
      %v803 = vunpack.c.l.b16 %v312
      %v804 = vunpack.c.h.b16 %v312
      %v805 = vunpack.c.l.b16 %v313
      %v806 = vunpack.c.h.b16 %v313
      %v807 = vunpack.c.l.b16 %v314
      %v808 = vunpack.c.l.b16 %v315
      %v809 = vunpack.c.h.b16 %v315
      %v810 = vunpack.c.l.b16 %v316
      %v811 = vunpack.c.h.b16 %v316
      %v812 = vunpack.c.l.b16 %v317
      %v813 = vunpack.c.l.b16 %v318
      %v814 = vunpack.c.h.b16 %v318
      %v815 = vunpack.c.l.b16 %v319
      %v816 = vunpack.c.h.b16 %v319
      %v817 = vunpack.c.l.b16 %v320
      %v818 = vunpack.c.l.b16 %v321
      %v819 = vunpack.c.h.b16 %v321
      %v820 = vunpack.c.l.b16 %v322
      %v821 = vunpack.c.h.b16 %v322
      %v822 = vunpack.c.l.b16 %v323
      %v823 = vunpack.c.l.b16 %v324
      %v824 = vunpack.c.h.b16 %v324
      %v825 = vunpack.c.l.b16 %v325
      %v826 = vunpack.c.h.b16 %v325
      %v827 = vunpack.c.l.b16 %v326
      %v828 = vunpack.c.l.b16 %v327
      %v829 = vunpack.c.h.b16 %v327
      %v830 = vunpack.c.l.b16 %v328
      %v831 = vunpack.c.h.b16 %v328
      %v832 = vunpack.c.l.b16 %v329
      %v833 = vunpack.c.l.b16 %v330
      %v834 = vunpack.c.h.b16 %v330
      %v835 = vunpack.c.l.b16 %v331
      %v836 = vunpack.c.h.b16 %v331
      %v837 = vunpack.c.l.b16 %v332
      %v838 = vunpack.c.l.b16 %v333
      %v839 = vunpack.c.h.b16 %v333
      %v840 = vunpack.c.l.b16 %v334
      %v841 = vunpack.c.h.b16 %v334
      %v842 = vunpack.c.l.b16 %v335
      %v843 = vunpack.c.l.b16 %v336
      %v844 = vunpack.c.h.b16 %v336
      %v845 = vunpack.c.l.b16 %v337
      %v846 = vunpack.c.h.b16 %v337
      %v847 = vunpack.c.l.b16 %v338
      %v848 = vunpack.c.l.b16 %v339
      %v849 = vunpack.c.h.b16 %v339
      %v850 = vunpack.c.l.b16 %v340
      %v851 = vunpack.c.h.b16 %v340
      %v852 = vunpack.c.l.b16 %v341
      %v853 = vunpack.c.l.b16 %v342
      %v854 = vunpack.c.h.b16 %v342
      %v855 = vunpack.c.l.b16 %v343
      %v856 = vunpack.c.h.b16 %v343
      %v857 = vunpack.c.l.b16 %v344
      %v858 = vunpack.c.l.b16 %v345
      %v859 = vunpack.c.h.b16 %v345
      %v860 = vunpack.c.l.b16 %v346
      %v861 = vunpack.c.h.b16 %v346
      %v862 = vunpack.c.l.b16 %v347
      %v863 = vunpack.c.l.b16 %v348
      %v864 = vunpack.c.h.b16 %v348
      %v865 = vunpack.c.l.b16 %v349
      %v866 = vunpack.c.h.b16 %v349
      %v867 = vunpack.c.l.b16 %v350
      %v868 = vunpack.c.l.b16 %v351
      %v869 = vunpack.c.h.b16 %v351
      %v870 = vunpack.c.l.b16 %v352
      %v871 = vunpack.c.h.b16 %v352
      %v872 = vunpack.c.l.b16 %v353
      %v873 = vunpack.c.l.b16 %v354
      %v874 = vunpack.c.h.b16 %v354
      %v875 = vunpack.c.l.b16 %v355
      %v876 = vunpack.c.h.b16 %v355
      %v877 = vunpack.c.l.b16 %v356
      %v878 = vunpack.c.l.b16 %v357
      %v879 = vunpack.c.h.b16 %v357
      %v880 = vunpack.c.l.b16 %v358
      %v881 = vunpack.c.h.b16 %v358
      %v882 = vunpack.c.l.b16 %v359
      %v883 = vunpack.c.l.b16 %v360
      %v884 = vunpack.c.h.b16 %v360
      %v885 = vunpack.c.l.b16 %v361
      %v886 = vunpack.c.h.b16 %v361
      %v887 = vunpack.c.l.b16 %v362
      %v888 = vunpack.c.l.b16 %v363
      %v889 = vunpack.c.h.b16 %v363
      %v890 = vunpack.c.l.b16 %v364
      %v891 = vunpack.c.h.b16 %v364
      %v892 = vunpack.c.l.b16 %v365
      %v893 = vunpack.c.l.b16 %v366
      %v894 = vunpack.c.h.b16 %v366
      %v895 = vunpack.c.l.b16 %v367
      %v896 = vunpack.c.h.b16 %v367
      %v897 = vunpack.c.l.b16 %v368
      %v898 = vunpack.c.l.b16 %v369
      %v899 = vunpack.c.h.b16 %v369
      %v900 = vunpack.c.l.b16 %v370
      %v901 = vunpack.c.h.b16 %v370
      %v902 = vunpack.c.l.b16 %v371
      %v903 = vunpack.c.l.b16 %v372
      %v904 = vunpack.c.h.b16 %v372
      %v905 = vunpack.c.l.b16 %v373
      %v906 = vunpack.c.h.b16 %v373
      %v907 = vunpack.c.l.b16 %v374
      %v908 = vunpack.c.l.b16 %v375
      %v909 = vunpack.c.h.b16 %v375
      %v910 = vunpack.c.l.b16 %v376
      %v911 = vunpack.c.h.b16 %v376
      %v912 = vunpack.c.l.b16 %v377
      %v913 = vunpack.c.l.b16 %v378
      %v914 = vunpack.c.h.b16 %v378
      %v915 = vunpack.c.l.b16 %v379
      %v916 = vunpack.c.h.b16 %v379
      %v917 = vunpack.c.l.b16 %v380
      %v918 = vunpack.c.l.b16 %v381
      %v919 = vunpack.c.h.b16 %v381
      %v920 = vunpack.c.l.b16 %v382
      %v921 = vunpack.c.h.b16 %v382
      %v922 = vunpack.c.l.b16 %v383
      %v923 = vunpack.c.l.b16 %v384
      %v924 = vunpack.c.h.b16 %v384
      %v925 = vunpack.c.l.b16 %v385
      %v926 = vunpack.c.h.b16 %v385
      %v927 = vunpack.c.l.b16 %v386
      %v928 = vunpack.c.l.b16 %v387
      %v929 = vunpack.c.h.b16 %v387
      %v930 = vunpack.c.l.b16 %v388
      %v931 = vunpack.c.h.b16 %v388
      %v932 = vunpack.c.l.b16 %v389
      %v933 = vpack.c.b16 %v653, %v648
      %v934 = vpack.c.b16 %v654, %v649
      %v935 = vpack.c.b16 %v655, %v650
      %v936 = vpack.c.b16 %v656, %v651
      %v937 = vpack.c.b16 %v657, %v652
      %v938 = vpack.c.b16 %v663, %v658
      %v939 = vpack.c.b16 %v664, %v659
      %v940 = vpack.c.b16 %v665, %v660
      %v941 = vpack.c.b16 %v666, %v661
      %v942 = vpack.c.b16 %v667, %v662
      %v943 = vpack.c.b16 %v673, %v668
      %v944 = vpack.c.b16 %v674, %v669
      %v945 = vpack.c.b16 %v675, %v670
      %v946 = vpack.c.b16 %v676, %v671
      %v947 = vpack.c.b16 %v677, %v672
      %v948 = vpack.c.b16 %v683, %v678
      %v949 = vpack.c.b16 %v684, %v679
      %v950 = vpack.c.b16 %v685, %v680
      %v951 = vpack.c.b16 %v686, %v681
      %v952 = vpack.c.b16 %v687, %v682
      %v953 = vpack.c.b16 %v693, %v688
      %v954 = vpack.c.b16 %v694, %v689
      %v955 = vpack.c.b16 %v695, %v690
      %v956 = vpack.c.b16 %v696, %v691
      %v957 = vpack.c.b16 %v697, %v692
      %v958 = vpack.c.b16 %v703, %v698
      %v959 = vpack.c.b16 %v704, %v699
      %v960 = vpack.c.b16 %v705, %v700
      %v961 = vpack.c.b16 %v706, %v701
      %v962 = vpack.c.b16 %v707, %v702
      %v963 = vpack.c.b16 %v713, %v708
      %v964 = vpack.c.b16 %v714, %v709
      %v965 = vpack.c.b16 %v715, %v710
      %v966 = vpack.c.b16 %v716, %v711
      %v967 = vpack.c.b16 %v717, %v712
      %v968 = vpack.c.b16 %v723, %v718
      %v969 = vpack.c.b16 %v724, %v719
      %v970 = vpack.c.b16 %v725, %v720
      %v971 = vpack.c.b16 %v726, %v721
      %v972 = vpack.c.b16 %v727, %v722
      %v973 = vpack.c.b16 %v733, %v728
      %v974 = vpack.c.b16 %v734, %v729
      %v975 = vpack.c.b16 %v735, %v730
      %v976 = vpack.c.b16 %v736, %v731
      %v977 = vpack.c.b16 %v737, %v732
      %v978 = vpack.c.b16 %v743, %v738
      %v979 = vpack.c.b16 %v744, %v739
      %v980 = vpack.c.b16 %v745, %v740
      %v981 = vpack.c.b16 %v746, %v741
      %v982 = vpack.c.b16 %v747, %v742
      %v983 = vpack.c.b16 %v753, %v748
      %v984 = vpack.c.b16 %v754, %v749
      %v985 = vpack.c.b16 %v755, %v750
      %v986 = vpack.c.b16 %v756, %v751
      %v987 = vpack.c.b16 %v757, %v752
      %v988 = vpack.c.b16 %v763, %v758
      %v989 = vpack.c.b16 %v764, %v759
      %v990 = vpack.c.b16 %v765, %v760
      %v991 = vpack.c.b16 %v766, %v761
      %v992 = vpack.c.b16 %v767, %v762
      %v993 = vpack.c.b16 %v773, %v768
      %v994 = vpack.c.b16 %v774, %v769
      %v995 = vpack.c.b16 %v775, %v770
      %v996 = vpack.c.b16 %v776, %v771
      %v997 = vpack.c.b16 %v777, %v772
      %v998 = vpack.c.b16 %v783, %v778
      %v999 = vpack.c.b16 %v784, %v779
      %v1000 = vpack.c.b16 %v785, %v780
      %v1001 = vpack.c.b16 %v786, %v781
      %v1002 = vpack.c.b16 %v787, %v782
      %v1003 = vpack.c.b16 %v793, %v788
      %v1004 = vpack.c.b16 %v794, %v789
      %v1005 = vpack.c.b16 %v795, %v790
      %v1006 = vpack.c.b16 %v796, %v791
      %v1007 = vpack.c.b16 %v797, %v792
      %v1008 = vpack.c.b16 %v803, %v798
      %v1009 = vpack.c.b16 %v804, %v799
      %v1010 = vpack.c.b16 %v805, %v800
      %v1011 = vpack.c.b16 %v806, %v801
      %v1012 = vpack.c.b16 %v807, %v802
      %v1013 = vpack.c.b16 %v813, %v808
      %v1014 = vpack.c.b16 %v814, %v809
      %v1015 = vpack.c.b16 %v815, %v810
      %v1016 = vpack.c.b16 %v816, %v811
      %v1017 = vpack.c.b16 %v817, %v812
      %v1018 = vpack.c.b16 %v823, %v818
      %v1019 = vpack.c.b16 %v824, %v819
      %v1020 = vpack.c.b16 %v825, %v820
      %v1021 = vpack.c.b16 %v826, %v821
      %v1022 = vpack.c.b16 %v827, %v822
      %v1023 = vpack.c.b16 %v833, %v828
      %v1024 = vpack.c.b16 %v834, %v829
      %v1025 = vpack.c.b16 %v835, %v830
      %v1026 = vpack.c.b16 %v836, %v831
      %v1027 = vpack.c.b16 %v837, %v832
      %v1028 = vpack.c.b16 %v843, %v838
      %v1029 = vpack.c.b16 %v844, %v839
      %v1030 = vpack.c.b16 %v845, %v840
      %v1031 = vpack.c.b16 %v846, %v841
      %v1032 = vpack.c.b16 %v847, %v842
      %v1033 = vpack.c.b16 %v853, %v848
      %v1034 = vpack.c.b16 %v854, %v849
      %v1035 = vpack.c.b16 %v855, %v850
      %v1036 = vpack.c.b16 %v856, %v851
      %v1037 = vpack.c.b16 %v857, %v852
      %v1038 = vpack.c.b16 %v863, %v858
      %v1039 = vpack.c.b16 %v864, %v859
      %v1040 = vpack.c.b16 %v865, %v860
      %v1041 = vpack.c.b16 %v866, %v861
      %v1042 = vpack.c.b16 %v867, %v862
      %v1043 = vpack.c.b16 %v873, %v868
      %v1044 = vpack.c.b16 %v874, %v869
      %v1045 = vpack.c.b16 %v875, %v870
      %v1046 = vpack.c.b16 %v876, %v871
      %v1047 = vpack.c.b16 %v877, %v872
      %v1048 = vpack.c.b16 %v883, %v878
      %v1049 = vpack.c.b16 %v884, %v879
      %v1050 = vpack.c.b16 %v885, %v880
      %v1051 = vpack.c.b16 %v886, %v881
      %v1052 = vpack.c.b16 %v887, %v882
      %v1053 = vpack.c.b16 %v893, %v888
      %v1054 = vpack.c.b16 %v894, %v889
      %v1055 = vpack.c.b16 %v895, %v890
      %v1056 = vpack.c.b16 %v896, %v891
      %v1057 = vpack.c.b16 %v897, %v892
      %v1058 = vpack.c.b16 %v903, %v898
      %v1059 = vpack.c.b16 %v904, %v899
      %v1060 = vpack.c.b16 %v905, %v900
      %v1061 = vpack.c.b16 %v906, %v901
      %v1062 = vpack.c.b16 %v907, %v902
      %v1063 = vpack.c.b16 %v913, %v908
      %v1064 = vpack.c.b16 %v914, %v909
      %v1065 = vpack.c.b16 %v915, %v910
      %v1066 = vpack.c.b16 %v916, %v911
      %v1067 = vpack.c.b16 %v917, %v912
      %v1068 = vpack.c.b16 %v923, %v918
      %v1069 = vpack.c.b16 %v924, %v919
      %v1070 = vpack.c.b16 %v925, %v920
      %v1071 = vpack.c.b16 %v926, %v921
      %v1072 = vpack.c.b16 %v927, %v922
      %v1073 = vpack.c.b16 %v928, %v928
      %v1074 = vpack.c.b16 %v929, %v929
      %v1075 = vpack.c.b16 %v930, %v930
      %v1076 = vpack.c.b16 %v931, %v931
      %v1077 = vpack.c.b16 %v932, %v932
      %v1303 = vunpack.c.l.b16 %v390
      %v1304 = vunpack.c.l.b16 %v391
      %v1305 = vunpack.c.l.b16 %v392
      %v1306 = vunpack.c.l.b16 %v393
      %v1307 = vunpack.c.l.b16 %v394
      %v1308 = vunpack.c.l.b16 %v395
      %v1309 = vunpack.c.l.b16 %v396
      %v1310 = vunpack.c.l.b16 %v397
      %v1311 = vunpack.c.l.b16 %v398
      %v1312 = vunpack.c.l.b16 %v399
      %v1313 = vunpack.c.l.b16 %v400
      %v1314 = vunpack.c.l.b16 %v401
      %v1315 = vunpack.c.l.b16 %v402
      %v1316 = vunpack.c.l.b16 %v403
      %v1317 = vunpack.c.l.b16 %v404
      %v1318 = vunpack.c.l.b16 %v405
      %v1319 = vunpack.c.l.b16 %v406
      %v1320 = vunpack.c.l.b16 %v407
      %v1321 = vunpack.c.l.b16 %v408
      %v1322 = vunpack.c.l.b16 %v409
      %v1323 = vunpack.c.l.b16 %v410
      %v1324 = vunpack.c.l.b16 %v411
      %v1325 = vunpack.c.l.b16 %v412
      %v1326 = vunpack.c.l.b16 %v413
      %v1327 = vunpack.c.l.b16 %v414
      %v1328 = vunpack.c.l.b16 %v415
      %v1329 = vunpack.c.l.b16 %v416
      %v1330 = vunpack.c.l.b16 %v417
      %v1331 = vunpack.c.l.b16 %v418
      %v1332 = vunpack.c.l.b16 %v419
      %v1333 = vunpack.c.l.b16 %v420
      %v1334 = vunpack.c.l.b16 %v421
      %v1335 = vunpack.c.l.b16 %v422
      %v1336 = vunpack.c.l.b16 %v423
      %v1337 = vunpack.c.l.b16 %v424
      %v1338 = vunpack.c.l.b16 %v425
      %v1339 = vunpack.c.l.b16 %v426
      %v1340 = vunpack.c.l.b16 %v427
      %v1341 = vunpack.c.l.b16 %v428
      %v1342 = vunpack.c.l.b16 %v429
      %v1343 = vunpack.c.l.b16 %v430
      %v1344 = vunpack.c.l.b16 %v431
      %v1345 = vunpack.c.l.b16 %v432
      %v1346 = vunpack.c.l.b16 %v433
      %v1347 = vunpack.c.l.b16 %v434
      %v1348 = vunpack.c.l.b16 %v435
      %v1349 = vunpack.c.l.b16 %v436
      %v1350 = vunpack.c.l.b16 %v437
      %v1351 = vunpack.c.l.b16 %v438
      %v1352 = vunpack.c.l.b16 %v439
      %v1353 = vunpack.c.l.b16 %v440
      %v1354 = vunpack.c.l.b16 %v441
      %v1355 = vunpack.c.l.b16 %v442
      %v1356 = vunpack.c.l.b16 %v443
      %v1357 = vunpack.c.l.b16 %v444
      %v1358 = vunpack.c.l.b16 %v445
      %v1359 = vunpack.c.l.b16 %v446
      %v1360 = vunpack.c.l.b16 %v447
      %v1361 = vunpack.c.l.b16 %v448
      %v1362 = vunpack.c.l.b16 %v449
      %v1363 = vunpack.c.l.b16 %v450
      %v1364 = vunpack.c.l.b16 %v451
      %v1365 = vunpack.c.l.b16 %v452
      %v1366 = vunpack.c.l.b16 %v453
      %v1367 = vunpack.c.l.b16 %v454
      %v1368 = vunpack.c.l.b16 %v455
      %v1369 = vunpack.c.l.b16 %v456
      %v1370 = vunpack.c.l.b16 %v457
      %v1371 = vunpack.c.l.b16 %v458
      %v1372 = vunpack.c.l.b16 %v459
      %v1373 = vunpack.c.l.b16 %v460
      %v1374 = vunpack.c.l.b16 %v461
      %v1375 = vunpack.c.l.b16 %v462
      %v1376 = vunpack.c.l.b16 %v463
      %v1377 = vunpack.c.l.b16 %v464
      %v1378 = vunpack.c.l.b16 %v465
      %v1379 = vunpack.c.l.b16 %v466
      %v1380 = vunpack.c.l.b16 %v467
      %v1381 = vunpack.c.l.b16 %v468
      %v1382 = vunpack.c.l.b16 %v469
      %v1383 = vpack.c.b16 %v1304, %v1303
      %v1384 = vpack.c.b16 %v1306, %v1305
      %v1385 = vpack.c.b16 %v1308, %v1307
      %v1386 = vpack.c.b16 %v1310, %v1309
      %v1387 = vpack.c.b16 %v1312, %v1311
      %v1388 = vpack.c.b16 %v1314, %v1313
      %v1389 = vpack.c.b16 %v1316, %v1315
      %v1390 = vpack.c.b16 %v1318, %v1317
      %v1391 = vpack.c.b16 %v1320, %v1319
      %v1392 = vpack.c.b16 %v1322, %v1321
      %v1393 = vpack.c.b16 %v1324, %v1323
      %v1394 = vpack.c.b16 %v1326, %v1325
      %v1395 = vpack.c.b16 %v1328, %v1327
      %v1396 = vpack.c.b16 %v1330, %v1329
      %v1397 = vpack.c.b16 %v1332, %v1331
      %v1398 = vpack.c.b16 %v1334, %v1333
      %v1399 = vpack.c.b16 %v1336, %v1335
      %v1400 = vpack.c.b16 %v1338, %v1337
      %v1401 = vpack.c.b16 %v1340, %v1339
      %v1402 = vpack.c.b16 %v1342, %v1341
      %v1403 = vpack.c.b16 %v1344, %v1343
      %v1404 = vpack.c.b16 %v1346, %v1345
      %v1405 = vpack.c.b16 %v1348, %v1347
      %v1406 = vpack.c.b16 %v1350, %v1349
      %v1407 = vpack.c.b16 %v1352, %v1351
      %v1408 = vpack.c.b16 %v1354, %v1353
      %v1409 = vpack.c.b16 %v1356, %v1355
      %v1410 = vpack.c.b16 %v1358, %v1357
      %v1411 = vpack.c.b16 %v1360, %v1359
      %v1412 = vpack.c.b16 %v1362, %v1361
      %v1413 = vpack.c.b16 %v1364, %v1363
      %v1414 = vpack.c.b16 %v1366, %v1365
      %v1415 = vpack.c.b16 %v1368, %v1367
      %v1416 = vpack.c.b16 %v1370, %v1369
      %v1417 = vpack.c.b16 %v1372, %v1371
      %v1418 = vpack.c.b16 %v1374, %v1373
      %v1419 = vpack.c.b16 %v1376, %v1375
      %v1420 = vpack.c.b16 %v1378, %v1377
      %v1421 = vpack.c.b16 %v1380, %v1379
      %v1422 = vpack.c.b16 %v1382, %v1381
      %1463 = vmatprep.subr.bf16.mxu0 0
      %1464 = vmatpush1.bf16.msra.mxu0 %v1383
      %1465 = vmatprep.subr.bf16.mxu0 0
      %1466 = vmatpush1.bf16.msra.mxu0 %v1384
      %1467 = vmatprep.subr.bf16.mxu0 0
      %1468 = vmatpush1.bf16.msra.mxu0 %v1385
      %1469 = vmatprep.subr.bf16.mxu0 0
      %1470 = vmatpush1.bf16.msra.mxu0 %v1386
      %1471 = vmatprep.subr.bf16.mxu0 0
      %1472 = vmatpush1.bf16.msra.mxu0 %v1387
      %1473 = vmatprep.subr.bf16.mxu0 0
      %1474 = vmatpush1.bf16.msra.mxu0 %v1388
      %1475 = vmatprep.subr.bf16.mxu0 0
      %1476 = vmatpush1.bf16.msra.mxu0 %v1389
      %1477 = vmatprep.subr.bf16.mxu0 0
      %1478 = vmatpush1.bf16.msra.mxu0 %v1390
      %1479 = vmatprep.subr.bf16.mxu0 0
      %1480 = vmatpush1.bf16.msra.mxu0 %v1391
      %1481 = vmatprep.subr.bf16.mxu0 0
      %1482 = vmatpush1.bf16.msra.mxu0 %v1392
      %1483 = vmatprep.subr.bf16.mxu0 0
      %1484 = vmatpush1.bf16.msra.mxu0 %v1393
      %1485 = vmatprep.subr.bf16.mxu0 0
      %1486 = vmatpush1.bf16.msra.mxu0 %v1394
      %1487 = vmatprep.subr.bf16.mxu0 0
      %1488 = vmatpush1.bf16.msra.mxu0 %v1395
      %1489 = vmatprep.subr.bf16.mxu0 0
      %1490 = vmatpush1.bf16.msra.mxu0 %v1396
      %1491 = vmatprep.subr.bf16.mxu0 0
      %1492 = vmatpush1.bf16.msra.mxu0 %v1397
      %1493 = vmatprep.subr.bf16.mxu0 0
      %1494 = vmatpush1.bf16.msra.mxu0 %v1398
      %1495 = vmatprep.mubr.bf16.mxu0 %v934
      %1496 = vmatmul.mubr.bf16.gmra.mrb[0].mxu0 %v933
      %v1497 = vpop.f32.mrb[0].mxu0
      %v1498 = vadd.f32 %v475, %v1497
      %v1499 = vpop.f32.mrb[0].mxu0
      %v1500 = vpop.f32.mrb[0].mxu0
      %v1501 = vadd.f32 %v475, %v1500
      %v1502 = vpop.f32.mrb[0].mxu0
      %1503 = vmatprep.mubr.bf16.mxu0 %v939
      %1504 = vmatmul.mubr.bf16.gmra.mrb[0].mxu0 %v938
      %v1505 = vpop.f32.mrb[0].mxu0
      %v1506 = vadd.f32 %v475, %v1505
      %v1507 = vpop.f32.mrb[0].mxu0
      %v1508 = vpop.f32.mrb[0].mxu0
      %v1509 = vadd.f32 %v475, %v1508
      %v1510 = vpop.f32.mrb[0].mxu0
      %1511 = vmatprep.mubr.bf16.mxu0 %v944
      %1512 = vmatmul.mubr.bf16.gmra.mrb[0].mxu0 %v943
      %v1513 = vpop.f32.mrb[0].mxu0
      %v1514 = vadd.f32 %v475, %v1513
      %v1515 = vpop.f32.mrb[0].mxu0
      %v1516 = vpop.f32.mrb[0].mxu0
      %v1517 = vadd.f32 %v475, %v1516
      %v1518 = vpop.f32.mrb[0].mxu0
      %1519 = vmatprep.mubr.bf16.mxu0 %v949
      %1520 = vmatmul.mubr.bf16.gmra.mrb[0].mxu0 %v948
      %v1521 = vpop.f32.mrb[0].mxu0
      %v1522 = vadd.f32 %v475, %v1521
      %v1523 = vpop.f32.mrb[0].mxu0
      %v1524 = vpop.f32.mrb[0].mxu0
      %v1525 = vadd.f32 %v475, %v1524
      %v1526 = vpop.f32.mrb[0].mxu0
      %1527 = vmatprep.mubr.bf16.mxu0 %v954
      %1528 = vmatmul.mubr.bf16.gmra.mrb[0].mxu0 %v953
      %v1529 = vpop.f32.mrb[0].mxu0
      %v1530 = vadd.f32 %v475, %v1529
      %v1531 = vpop.f32.mrb[0].mxu0
      %v1532 = vpop.f32.mrb[0].mxu0
      %v1533 = vadd.f32 %v475, %v1532
      %v1534 = vpop.f32.mrb[0].mxu0
      %1535 = vmatprep.mubr.bf16.mxu0 %v959
      %1536 = vmatmul.mubr.bf16.gmra.mrb[0].mxu0 %v958
      %v1537 = vpop.f32.mrb[0].mxu0
      %v1538 = vadd.f32 %v475, %v1537
      %v1539 = vpop.f32.mrb[0].mxu0
      %v1540 = vpop.f32.mrb[0].mxu0
      %v1541 = vadd.f32 %v475, %v1540
      %v1542 = vpop.f32.mrb[0].mxu0
      %1543 = vmatprep.mubr.bf16.mxu0 %v964
      %1544 = vmatmul.mubr.bf16.gmra.mrb[0].mxu0 %v963
      %v1545 = vpop.f32.mrb[0].mxu0
      %v1546 = vadd.f32 %v475, %v1545
      %v1547 = vpop.f32.mrb[0].mxu0
      %v1548 = vpop.f32.mrb[0].mxu0
      %v1549 = vadd.f32 %v475, %v1548
      %v1550 = vpop.f32.mrb[0].mxu0
      %1551 = vmatprep.mubr.bf16.mxu0 %v969
      %1552 = vmatmul.mubr.bf16.gmra.mrb[0].mxu0 %v968
      %v1553 = vpop.f32.mrb[0].mxu0
      %v1554 = vadd.f32 %v475, %v1553
      %v1555 = vpop.f32.mrb[0].mxu0
      %v1556 = vpop.f32.mrb[0].mxu0
      %v1557 = vadd.f32 %v475, %v1556
      %v1558 = vpop.f32.mrb[0].mxu0
      %1559 = vmatprep.mubr.bf16.mxu0 %v974
      %1560 = vmatmul.mubr.bf16.gmra.mrb[0].mxu0 %v973
      %v1561 = vpop.f32.mrb[0].mxu0
      %v1562 = vadd.f32 %v475, %v1561
      %v1563 = vpop.f32.mrb[0].mxu0
      %v1564 = vpop.f32.mrb[0].mxu0
      %v1565 = vadd.f32 %v475, %v1564
      %v1566 = vpop.f32.mrb[0].mxu0
      %1567 = vmatprep.mubr.bf16.mxu0 %v979
      %1568 = vmatmul.mubr.bf16.gmra.mrb[0].mxu0 %v978
      %v1569 = vpop.f32.mrb[0].mxu0
      %v1570 = vadd.f32 %v475, %v1569
      %v1571 = vpop.f32.mrb[0].mxu0
      %v1572 = vpop.f32.mrb[0].mxu0
      %v1573 = vadd.f32 %v475, %v1572
      %v1574 = vpop.f32.mrb[0].mxu0
      %1575 = vmatprep.mubr.bf16.mxu0 %v984
      %1576 = vmatmul.mubr.bf16.gmra.mrb[0].mxu0 %v983
      %v1577 = vpop.f32.mrb[0].mxu0
      %v1578 = vadd.f32 %v475, %v1577
      %v1579 = vpop.f32.mrb[0].mxu0
      %v1580 = vpop.f32.mrb[0].mxu0
      %v1581 = vadd.f32 %v475, %v1580
      %v1582 = vpop.f32.mrb[0].mxu0
      %1583 = vmatprep.mubr.bf16.mxu0 %v989
      %1584 = vmatmul.mubr.bf16.gmra.mrb[0].mxu0 %v988
      %v1585 = vpop.f32.mrb[0].mxu0
      %v1586 = vadd.f32 %v475, %v1585
      %v1587 = vpop.f32.mrb[0].mxu0
      %v1588 = vpop.f32.mrb[0].mxu0
      %v1589 = vadd.f32 %v475, %v1588
      %v1590 = vpop.f32.mrb[0].mxu0
      %1591 = vmatprep.mubr.bf16.mxu0 %v994
      %1592 = vmatmul.mubr.bf16.gmra.mrb[0].mxu0 %v993
      %v1593 = vpop.f32.mrb[0].mxu0
      %v1594 = vadd.f32 %v475, %v1593
      %v1595 = vpop.f32.mrb[0].mxu0
      %v1596 = vpop.f32.mrb[0].mxu0
      %v1597 = vadd.f32 %v475, %v1596
      %v1598 = vpop.f32.mrb[0].mxu0
      %1599 = vmatprep.mubr.bf16.mxu0 %v999
      %1600 = vmatmul.mubr.bf16.gmra.mrb[0].mxu0 %v998
      %v1601 = vpop.f32.mrb[0].mxu0
      %v1602 = vadd.f32 %v475, %v1601
      %v1603 = vpop.f32.mrb[0].mxu0
      %v1604 = vpop.f32.mrb[0].mxu0
      %v1605 = vadd.f32 %v475, %v1604
      %v1606 = vpop.f32.mrb[0].mxu0
      %1607 = vmatprep.mubr.bf16.mxu0 %v1004
      %1608 = vmatmul.mubr.bf16.gmra.mrb[0].mxu0 %v1003
      %v1609 = vpop.f32.mrb[0].mxu0
      %v1610 = vadd.f32 %v475, %v1609
      %v1611 = vpop.f32.mrb[0].mxu0
      %v1612 = vpop.f32.mrb[0].mxu0
      %v1613 = vadd.f32 %v475, %v1612
      %v1614 = vpop.f32.mrb[0].mxu0
      %1615 = vmatprep.mubr.bf16.mxu0 %v1009
      %1616 = vmatmul.mubr.bf16.gmra.mrb[0].mxu0 %v1008
      %v1617 = vpop.f32.mrb[0].mxu0
      %v1618 = vadd.f32 %v475, %v1617
      %v1619 = vpop.f32.mrb[0].mxu0
      %v1620 = vpop.f32.mrb[0].mxu0
      %v1621 = vadd.f32 %v475, %v1620
      %v1622 = vpop.f32.mrb[0].mxu0
      %1623 = vmatprep.mubr.bf16.mxu0 %v1014
      %1624 = vmatmul.mubr.bf16.gmra.mrb[0].mxu0 %v1013
      %v1625 = vpop.f32.mrb[0].mxu0
      %v1626 = vadd.f32 %v475, %v1625
      %v1627 = vpop.f32.mrb[0].mxu0
      %v1628 = vpop.f32.mrb[0].mxu0
      %v1629 = vadd.f32 %v475, %v1628
      %v1630 = vpop.f32.mrb[0].mxu0
      %1631 = vmatprep.mubr.bf16.mxu0 %v1019
      %1632 = vmatmul.mubr.bf16.gmra.mrb[0].mxu0 %v1018
      %v1633 = vpop.f32.mrb[0].mxu0
      %v1634 = vadd.f32 %v475, %v1633
      %v1635 = vpop.f32.mrb[0].mxu0
      %v1636 = vpop.f32.mrb[0].mxu0
      %v1637 = vadd.f32 %v475, %v1636
      %v1638 = vpop.f32.mrb[0].mxu0
      %1639 = vmatprep.mubr.bf16.mxu0 %v1024
      %1640 = vmatmul.mubr.bf16.gmra.mrb[0].mxu0 %v1023
      %v1641 = vpop.f32.mrb[0].mxu0
      %v1642 = vadd.f32 %v475, %v1641
      %v1643 = vpop.f32.mrb[0].mxu0
      %v1644 = vpop.f32.mrb[0].mxu0
      %v1645 = vadd.f32 %v475, %v1644
      %v1646 = vpop.f32.mrb[0].mxu0
      %1647 = vmatprep.mubr.bf16.mxu0 %v1029
      %1648 = vmatmul.mubr.bf16.gmra.mrb[0].mxu0 %v1028
      %v1649 = vpop.f32.mrb[0].mxu0
      %v1650 = vadd.f32 %v475, %v1649
      %v1651 = vpop.f32.mrb[0].mxu0
      %v1652 = vpop.f32.mrb[0].mxu0
      %v1653 = vadd.f32 %v475, %v1652
      %v1654 = vpop.f32.mrb[0].mxu0
      %1655 = vmatprep.mubr.bf16.mxu0 %v1034
      %1656 = vmatmul.mubr.bf16.gmra.mrb[0].mxu0 %v1033
      %v1657 = vpop.f32.mrb[0].mxu0
      %v1658 = vadd.f32 %v475, %v1657
      %v1659 = vpop.f32.mrb[0].mxu0
      %v1660 = vpop.f32.mrb[0].mxu0
      %v1661 = vadd.f32 %v475, %v1660
      %v1662 = vpop.f32.mrb[0].mxu0
      %1663 = vmatprep.mubr.bf16.mxu0 %v1039
      %1664 = vmatmul.mubr.bf16.gmra.mrb[0].mxu0 %v1038
      %v1665 = vpop.f32.mrb[0].mxu0
      %v1666 = vadd.f32 %v475, %v1665
      %v1667 = vpop.f32.mrb[0].mxu0
      %v1668 = vpop.f32.mrb[0].mxu0
      %v1669 = vadd.f32 %v475, %v1668
      %v1670 = vpop.f32.mrb[0].mxu0
      %1671 = vmatprep.mubr.bf16.mxu0 %v1044
      %1672 = vmatmul.mubr.bf16.gmra.mrb[0].mxu0 %v1043
      %v1673 = vpop.f32.mrb[0].mxu0
      %v1674 = vadd.f32 %v475, %v1673
      %v1675 = vpop.f32.mrb[0].mxu0
      %v1676 = vpop.f32.mrb[0].mxu0
      %v1677 = vadd.f32 %v475, %v1676
      %v1678 = vpop.f32.mrb[0].mxu0
      %1679 = vmatprep.mubr.bf16.mxu0 %v1049
      %1680 = vmatmul.mubr.bf16.gmra.mrb[0].mxu0 %v1048
      %v1681 = vpop.f32.mrb[0].mxu0
      %v1682 = vadd.f32 %v475, %v1681
      %v1683 = vpop.f32.mrb[0].mxu0
      %v1684 = vpop.f32.mrb[0].mxu0
      %v1685 = vadd.f32 %v475, %v1684
      %v1686 = vpop.f32.mrb[0].mxu0
      %1687 = vmatprep.mubr.bf16.mxu0 %v1054
      %1688 = vmatmul.mubr.bf16.gmra.mrb[0].mxu0 %v1053
      %v1689 = vpop.f32.mrb[0].mxu0
      %v1690 = vadd.f32 %v475, %v1689
      %v1691 = vpop.f32.mrb[0].mxu0
      %v1692 = vpop.f32.mrb[0].mxu0
      %v1693 = vadd.f32 %v475, %v1692
      %v1694 = vpop.f32.mrb[0].mxu0
      %1695 = vmatprep.mubr.bf16.mxu0 %v1059
      %1696 = vmatmul.mubr.bf16.gmra.mrb[0].mxu0 %v1058
      %v1697 = vpop.f32.mrb[0].mxu0
      %v1698 = vadd.f32 %v475, %v1697
      %v1699 = vpop.f32.mrb[0].mxu0
      %v1700 = vpop.f32.mrb[0].mxu0
      %v1701 = vadd.f32 %v475, %v1700
      %v1702 = vpop.f32.mrb[0].mxu0
      %1703 = vmatprep.mubr.bf16.mxu0 %v1064
      %1704 = vmatmul.mubr.bf16.gmra.mrb[0].mxu0 %v1063
      %v1705 = vpop.f32.mrb[0].mxu0
      %v1706 = vadd.f32 %v475, %v1705
      %v1707 = vpop.f32.mrb[0].mxu0
      %v1708 = vpop.f32.mrb[0].mxu0
      %v1709 = vadd.f32 %v475, %v1708
      %v1710 = vpop.f32.mrb[0].mxu0
      %1711 = vmatprep.mubr.bf16.mxu0 %v1069
      %1712 = vmatmul.mubr.bf16.gmra.mrb[0].mxu0 %v1068
      %v1713 = vpop.f32.mrb[0].mxu0
      %v1714 = vadd.f32 %v475, %v1713
      %v1715 = vpop.f32.mrb[0].mxu0
      %v1716 = vpop.f32.mrb[0].mxu0
      %v1717 = vadd.f32 %v475, %v1716
      %v1718 = vpop.f32.mrb[0].mxu0
      %1719 = vmatprep.mubr.bf16.mxu0 %v1074
      %1720 = vmatmul.mubr.bf16.gmra.mrb[0].mxu0 %v1073
      %v1721 = vpop.f32.mrb[0].mxu0
      %v1722 = vadd.f32 %v475, %v1721
      %v1723 = vpop.f32.mrb[0].mxu0
      %v1724 = vpop.f32.mrb[0].mxu0
      %v1725 = vpop.f32.mrb[0].mxu0
      %1726 = vdwg.mxu0
      %1727 = vmatprep.subr.bf16.mxu0 0
      %1728 = vmatpush1.bf16.msra.mxu0 %v1399
      %1729 = vmatprep.subr.bf16.mxu0 0
      %1730 = vmatpush1.bf16.msra.mxu0 %v1400
      %1731 = vmatprep.subr.bf16.mxu0 0
      %1732 = vmatpush1.bf16.msra.mxu0 %v1401
      %1733 = vmatprep.subr.bf16.mxu0 0
      %1734 = vmatpush1.bf16.msra.mxu0 %v1402
      %1735 = vmatprep.subr.bf16.mxu0 0
      %1736 = vmatpush1.bf16.msra.mxu0 %v1403
      %1737 = vmatprep.subr.bf16.mxu0 0
      %1738 = vmatpush1.bf16.msra.mxu0 %v1404
      %1739 = vmatprep.subr.bf16.mxu0 0
      %1740 = vmatpush1.bf16.msra.mxu0 %v1405
      %1741 = vmatprep.subr.bf16.mxu0 0
      %1742 = vmatpush1.bf16.msra.mxu0 %v1406
      %1743 = vmatprep.subr.bf16.mxu0 0
      %1744 = vmatpush1.bf16.msra.mxu0 %v1407
      %1745 = vmatprep.subr.bf16.mxu0 0
      %1746 = vmatpush1.bf16.msra.mxu0 %v1408
      %1747 = vmatprep.subr.bf16.mxu0 0
      %1748 = vmatpush1.bf16.msra.mxu0 %v1409
      %1749 = vmatprep.subr.bf16.mxu0 0
      %1750 = vmatpush1.bf16.msra.mxu0 %v1410
      %1751 = vmatprep.subr.bf16.mxu0 0
      %1752 = vmatpush1.bf16.msra.mxu0 %v1411
      %1753 = vmatprep.subr.bf16.mxu0 0
      %1754 = vmatpush1.bf16.msra.mxu0 %v1412
      %1755 = vmatprep.subr.bf16.mxu0 0
      %1756 = vmatpush1.bf16.msra.mxu0 %v1413
      %1757 = vmatprep.subr.bf16.mxu0 0
      %1758 = vmatpush1.bf16.msra.mxu0 %v1414
      %1759 = vmatprep.mubr.bf16.mxu0 %v936
      %1760 = vmatmul.mubr.bf16.gmra.mrb[0].mxu0 %v935
      %v1761 = vpop.f32.mrb[0].mxu0
      %v1762 = vadd.f32 %v1498, %v1761
      %v1763 = vpop.f32.mrb[0].mxu0
      %v1764 = vpop.f32.mrb[0].mxu0
      %v1765 = vadd.f32 %v1501, %v1764
      %v1766 = vpop.f32.mrb[0].mxu0
      %1767 = vmatprep.mubr.bf16.mxu0 %v941
      %1768 = vmatmul.mubr.bf16.gmra.mrb[0].mxu0 %v940
      %v1769 = vpop.f32.mrb[0].mxu0
      %v1770 = vadd.f32 %v1506, %v1769
      %v1771 = vpop.f32.mrb[0].mxu0
      %v1772 = vpop.f32.mrb[0].mxu0
      %v1773 = vadd.f32 %v1509, %v1772
      %v1774 = vpop.f32.mrb[0].mxu0
      %1775 = vmatprep.mubr.bf16.mxu0 %v946
      %1776 = vmatmul.mubr.bf16.gmra.mrb[0].mxu0 %v945
      %v1777 = vpop.f32.mrb[0].mxu0
      %v1778 = vadd.f32 %v1514, %v1777
      %v1779 = vpop.f32.mrb[0].mxu0
      %v1780 = vpop.f32.mrb[0].mxu0
      %v1781 = vadd.f32 %v1517, %v1780
      %v1782 = vpop.f32.mrb[0].mxu0
      %1783 = vmatprep.mubr.bf16.mxu0 %v951
      %1784 = vmatmul.mubr.bf16.gmra.mrb[0].mxu0 %v950
      %v1785 = vpop.f32.mrb[0].mxu0
      %v1786 = vadd.f32 %v1522, %v1785
      %v1787 = vpop.f32.mrb[0].mxu0
      %v1788 = vpop.f32.mrb[0].mxu0
      %v1789 = vadd.f32 %v1525, %v1788
      %v1790 = vpop.f32.mrb[0].mxu0
      %1791 = vmatprep.mubr.bf16.mxu0 %v956
      %1792 = vmatmul.mubr.bf16.gmra.mrb[0].mxu0 %v955
      %v1793 = vpop.f32.mrb[0].mxu0
      %v1794 = vadd.f32 %v1530, %v1793
      %v1795 = vpop.f32.mrb[0].mxu0
      %v1796 = vpop.f32.mrb[0].mxu0
      %v1797 = vadd.f32 %v1533, %v1796
      %v1798 = vpop.f32.mrb[0].mxu0
      %1799 = vmatprep.mubr.bf16.mxu0 %v961
      %1800 = vmatmul.mubr.bf16.gmra.mrb[0].mxu0 %v960
      %v1801 = vpop.f32.mrb[0].mxu0
      %v1802 = vadd.f32 %v1538, %v1801
      %v1803 = vpop.f32.mrb[0].mxu0
      %v1804 = vpop.f32.mrb[0].mxu0
      %v1805 = vadd.f32 %v1541, %v1804
      %v1806 = vpop.f32.mrb[0].mxu0
      %1807 = vmatprep.mubr.bf16.mxu0 %v966
      %1808 = vmatmul.mubr.bf16.gmra.mrb[0].mxu0 %v965
      %v1809 = vpop.f32.mrb[0].mxu0
      %v1810 = vadd.f32 %v1546, %v1809
      %v1811 = vpop.f32.mrb[0].mxu0
      %v1812 = vpop.f32.mrb[0].mxu0
      %v1813 = vadd.f32 %v1549, %v1812
      %v1814 = vpop.f32.mrb[0].mxu0
      %1815 = vmatprep.mubr.bf16.mxu0 %v971
      %1816 = vmatmul.mubr.bf16.gmra.mrb[0].mxu0 %v970
      %v1817 = vpop.f32.mrb[0].mxu0
      %v1818 = vadd.f32 %v1554, %v1817
      %v1819 = vpop.f32.mrb[0].mxu0
      %v1820 = vpop.f32.mrb[0].mxu0
      %v1821 = vadd.f32 %v1557, %v1820
      %v1822 = vpop.f32.mrb[0].mxu0
      %1823 = vmatprep.mubr.bf16.mxu0 %v976
      %1824 = vmatmul.mubr.bf16.gmra.mrb[0].mxu0 %v975
      %v1825 = vpop.f32.mrb[0].mxu0
      %v1826 = vadd.f32 %v1562, %v1825
      %v1827 = vpop.f32.mrb[0].mxu0
      %v1828 = vpop.f32.mrb[0].mxu0
      %v1829 = vadd.f32 %v1565, %v1828
      %v1830 = vpop.f32.mrb[0].mxu0
      %1831 = vmatprep.mubr.bf16.mxu0 %v981
      %1832 = vmatmul.mubr.bf16.gmra.mrb[0].mxu0 %v980
      %v1833 = vpop.f32.mrb[0].mxu0
      %v1834 = vadd.f32 %v1570, %v1833
      %v1835 = vpop.f32.mrb[0].mxu0
      %v1836 = vpop.f32.mrb[0].mxu0
      %v1837 = vadd.f32 %v1573, %v1836
      %v1838 = vpop.f32.mrb[0].mxu0
      %1839 = vmatprep.mubr.bf16.mxu0 %v986
      %1840 = vmatmul.mubr.bf16.gmra.mrb[0].mxu0 %v985
      %v1841 = vpop.f32.mrb[0].mxu0
      %v1842 = vadd.f32 %v1578, %v1841
      %v1843 = vpop.f32.mrb[0].mxu0
      %v1844 = vpop.f32.mrb[0].mxu0
      %v1845 = vadd.f32 %v1581, %v1844
      %v1846 = vpop.f32.mrb[0].mxu0
      %1847 = vmatprep.mubr.bf16.mxu0 %v991
      %1848 = vmatmul.mubr.bf16.gmra.mrb[0].mxu0 %v990
      %v1849 = vpop.f32.mrb[0].mxu0
      %v1850 = vadd.f32 %v1586, %v1849
      %v1851 = vpop.f32.mrb[0].mxu0
      %v1852 = vpop.f32.mrb[0].mxu0
      %v1853 = vadd.f32 %v1589, %v1852
      %v1854 = vpop.f32.mrb[0].mxu0
      %1855 = vmatprep.mubr.bf16.mxu0 %v996
      %1856 = vmatmul.mubr.bf16.gmra.mrb[0].mxu0 %v995
      %v1857 = vpop.f32.mrb[0].mxu0
      %v1858 = vadd.f32 %v1594, %v1857
      %v1859 = vpop.f32.mrb[0].mxu0
      %v1860 = vpop.f32.mrb[0].mxu0
      %v1861 = vadd.f32 %v1597, %v1860
      %v1862 = vpop.f32.mrb[0].mxu0
      %1863 = vmatprep.mubr.bf16.mxu0 %v1001
      %1864 = vmatmul.mubr.bf16.gmra.mrb[0].mxu0 %v1000
      %v1865 = vpop.f32.mrb[0].mxu0
      %v1866 = vadd.f32 %v1602, %v1865
      %v1867 = vpop.f32.mrb[0].mxu0
      %v1868 = vpop.f32.mrb[0].mxu0
      %v1869 = vadd.f32 %v1605, %v1868
      %v1870 = vpop.f32.mrb[0].mxu0
      %1871 = vmatprep.mubr.bf16.mxu0 %v1006
      %1872 = vmatmul.mubr.bf16.gmra.mrb[0].mxu0 %v1005
      %v1873 = vpop.f32.mrb[0].mxu0
      %v1874 = vadd.f32 %v1610, %v1873
      %v1875 = vpop.f32.mrb[0].mxu0
      %v1876 = vpop.f32.mrb[0].mxu0
      %v1877 = vadd.f32 %v1613, %v1876
      %v1878 = vpop.f32.mrb[0].mxu0
      %1879 = vmatprep.mubr.bf16.mxu0 %v1011
      %1880 = vmatmul.mubr.bf16.gmra.mrb[0].mxu0 %v1010
      %v1881 = vpop.f32.mrb[0].mxu0
      %v1882 = vadd.f32 %v1618, %v1881
      %v1883 = vpop.f32.mrb[0].mxu0
      %v1884 = vpop.f32.mrb[0].mxu0
      %v1885 = vadd.f32 %v1621, %v1884
      %v1886 = vpop.f32.mrb[0].mxu0
      %1887 = vmatprep.mubr.bf16.mxu0 %v1016
      %1888 = vmatmul.mubr.bf16.gmra.mrb[0].mxu0 %v1015
      %v1889 = vpop.f32.mrb[0].mxu0
      %v1890 = vadd.f32 %v1626, %v1889
      %v1891 = vpop.f32.mrb[0].mxu0
      %v1892 = vpop.f32.mrb[0].mxu0
      %v1893 = vadd.f32 %v1629, %v1892
      %v1894 = vpop.f32.mrb[0].mxu0
      %1895 = vmatprep.mubr.bf16.mxu0 %v1021
      %1896 = vmatmul.mubr.bf16.gmra.mrb[0].mxu0 %v1020
      %v1897 = vpop.f32.mrb[0].mxu0
      %v1898 = vadd.f32 %v1634, %v1897
      %v1899 = vpop.f32.mrb[0].mxu0
      %v1900 = vpop.f32.mrb[0].mxu0
      %v1901 = vadd.f32 %v1637, %v1900
      %v1902 = vpop.f32.mrb[0].mxu0
      %1903 = vmatprep.mubr.bf16.mxu0 %v1026
      %1904 = vmatmul.mubr.bf16.gmra.mrb[0].mxu0 %v1025
      %v1905 = vpop.f32.mrb[0].mxu0
      %v1906 = vadd.f32 %v1642, %v1905
      %v1907 = vpop.f32.mrb[0].mxu0
      %v1908 = vpop.f32.mrb[0].mxu0
      %v1909 = vadd.f32 %v1645, %v1908
      %v1910 = vpop.f32.mrb[0].mxu0
      %1911 = vmatprep.mubr.bf16.mxu0 %v1031
      %1912 = vmatmul.mubr.bf16.gmra.mrb[0].mxu0 %v1030
      %v1913 = vpop.f32.mrb[0].mxu0
      %v1914 = vadd.f32 %v1650, %v1913
      %v1915 = vpop.f32.mrb[0].mxu0
      %v1916 = vpop.f32.mrb[0].mxu0
      %v1917 = vadd.f32 %v1653, %v1916
      %v1918 = vpop.f32.mrb[0].mxu0
      %1919 = vmatprep.mubr.bf16.mxu0 %v1036
      %1920 = vmatmul.mubr.bf16.gmra.mrb[0].mxu0 %v1035
      %v1921 = vpop.f32.mrb[0].mxu0
      %v1922 = vadd.f32 %v1658, %v1921
      %v1923 = vpop.f32.mrb[0].mxu0
      %v1924 = vpop.f32.mrb[0].mxu0
      %v1925 = vadd.f32 %v1661, %v1924
      %v1926 = vpop.f32.mrb[0].mxu0
      %1927 = vmatprep.mubr.bf16.mxu0 %v1041
      %1928 = vmatmul.mubr.bf16.gmra.mrb[0].mxu0 %v1040
      %v1929 = vpop.f32.mrb[0].mxu0
      %v1930 = vadd.f32 %v1666, %v1929
      %v1931 = vpop.f32.mrb[0].mxu0
      %v1932 = vpop.f32.mrb[0].mxu0
      %v1933 = vadd.f32 %v1669, %v1932
      %v1934 = vpop.f32.mrb[0].mxu0
      %1935 = vmatprep.mubr.bf16.mxu0 %v1046
      %1936 = vmatmul.mubr.bf16.gmra.mrb[0].mxu0 %v1045
      %v1937 = vpop.f32.mrb[0].mxu0
      %v1938 = vadd.f32 %v1674, %v1937
      %v1939 = vpop.f32.mrb[0].mxu0
      %v1940 = vpop.f32.mrb[0].mxu0
      %v1941 = vadd.f32 %v1677, %v1940
      %v1942 = vpop.f32.mrb[0].mxu0
      %1943 = vmatprep.mubr.bf16.mxu0 %v1051
      %1944 = vmatmul.mubr.bf16.gmra.mrb[0].mxu0 %v1050
      %v1945 = vpop.f32.mrb[0].mxu0
      %v1946 = vadd.f32 %v1682, %v1945
      %v1947 = vpop.f32.mrb[0].mxu0
      %v1948 = vpop.f32.mrb[0].mxu0
      %v1949 = vadd.f32 %v1685, %v1948
      %v1950 = vpop.f32.mrb[0].mxu0
      %1951 = vmatprep.mubr.bf16.mxu0 %v1056
      %1952 = vmatmul.mubr.bf16.gmra.mrb[0].mxu0 %v1055
      %v1953 = vpop.f32.mrb[0].mxu0
      %v1954 = vadd.f32 %v1690, %v1953
      %v1955 = vpop.f32.mrb[0].mxu0
      %v1956 = vpop.f32.mrb[0].mxu0
      %v1957 = vadd.f32 %v1693, %v1956
      %v1958 = vpop.f32.mrb[0].mxu0
      %1959 = vmatprep.mubr.bf16.mxu0 %v1061
      %1960 = vmatmul.mubr.bf16.gmra.mrb[0].mxu0 %v1060
      %v1961 = vpop.f32.mrb[0].mxu0
      %v1962 = vadd.f32 %v1698, %v1961
      %v1963 = vpop.f32.mrb[0].mxu0
      %v1964 = vpop.f32.mrb[0].mxu0
      %v1965 = vadd.f32 %v1701, %v1964
      %v1966 = vpop.f32.mrb[0].mxu0
      %1967 = vmatprep.mubr.bf16.mxu0 %v1066
      %1968 = vmatmul.mubr.bf16.gmra.mrb[0].mxu0 %v1065
      %v1969 = vpop.f32.mrb[0].mxu0
      %v1970 = vadd.f32 %v1706, %v1969
      %v1971 = vpop.f32.mrb[0].mxu0
      %v1972 = vpop.f32.mrb[0].mxu0
      %v1973 = vadd.f32 %v1709, %v1972
      %v1974 = vpop.f32.mrb[0].mxu0
      %1975 = vmatprep.mubr.bf16.mxu0 %v1071
      %1976 = vmatmul.mubr.bf16.gmra.mrb[0].mxu0 %v1070
      %v1977 = vpop.f32.mrb[0].mxu0
      %v1978 = vadd.f32 %v1714, %v1977
      %v1979 = vpop.f32.mrb[0].mxu0
      %v1980 = vpop.f32.mrb[0].mxu0
      %v1981 = vadd.f32 %v1717, %v1980
      %v1982 = vpop.f32.mrb[0].mxu0
      %1983 = vmatprep.mubr.bf16.mxu0 %v1076
      %1984 = vmatmul.mubr.bf16.gmra.mrb[0].mxu0 %v1075
      %v1985 = vpop.f32.mrb[0].mxu0
      %v1986 = vadd.f32 %v1722, %v1985
      %v1987 = vpop.f32.mrb[0].mxu0
      %v1988 = vpop.f32.mrb[0].mxu0
      %v1989 = vpop.f32.mrb[0].mxu0
      %1990 = vdwg.mxu0
      %1991 = vmatprep.subr.bf16.mxu0 0
      %1992 = vmatpush1.bf16.msra.mxu0 %v1415
      %1993 = vmatprep.subr.bf16.mxu0 0
      %1994 = vmatpush1.bf16.msra.mxu0 %v1416
      %1995 = vmatprep.subr.bf16.mxu0 0
      %1996 = vmatpush1.bf16.msra.mxu0 %v1417
      %1997 = vmatprep.subr.bf16.mxu0 0
      %1998 = vmatpush1.bf16.msra.mxu0 %v1418
      %1999 = vmatprep.subr.bf16.mxu0 0
      %2000 = vmatpush1.bf16.msra.mxu0 %v1419
      %2001 = vmatprep.subr.bf16.mxu0 0
      %2002 = vmatpush1.bf16.msra.mxu0 %v1420
      %2003 = vmatprep.subr.bf16.mxu0 0
      %2004 = vmatpush1.bf16.msra.mxu0 %v1421
      %2005 = vmatprep.subr.bf16.mxu0 0
      %2006 = vmatpush1.bf16.msra.mxu0 %v1422
      %2007 = vmatprep.subr.bf16.mxu0 0
      %2008 = vmatpush1.bf16.msra.mxu0 0
      %2009 = vmatprep.subr.bf16.mxu0 0
      %2010 = vmatpush1.bf16.msra.mxu0 0
      %2011 = vmatprep.subr.bf16.mxu0 0
      %2012 = vmatpush1.bf16.msra.mxu0 0
      %2013 = vmatprep.subr.bf16.mxu0 0
      %2014 = vmatpush1.bf16.msra.mxu0 0
      %2015 = vmatprep.subr.bf16.mxu0 0
      %2016 = vmatpush1.bf16.msra.mxu0 0
      %2017 = vmatprep.subr.bf16.mxu0 0
      %2018 = vmatpush1.bf16.msra.mxu0 0
      %2019 = vmatprep.subr.bf16.mxu0 0
      %2020 = vmatpush1.bf16.msra.mxu0 0
      %2021 = vmatprep.subr.bf16.mxu0 0
      %2022 = vmatpush1.bf16.msra.mxu0 0
      %2023 = vmatprep.mubr.bf16.mxu0 0
      %2024 = vmatmul.mubr.bf16.gmra.mrb[0].mxu0 %v937
      %v2025 = vpop.f32.mrb[0].mxu0
      %v2026 = vadd.f32 %v1762, %v2025
      %v2027 = vpop.f32.mrb[0].mxu0
      %v2028 = vpop.f32.mrb[0].mxu0
      %v2029 = vadd.f32 %v1765, %v2028
      %v2030 = vpop.f32.mrb[0].mxu0
      %2031 = vmatprep.mubr.bf16.mxu0 0
      %2032 = vmatmul.mubr.bf16.gmra.mrb[0].mxu0 %v942
      %v2033 = vpop.f32.mrb[0].mxu0
      %v2034 = vadd.f32 %v1770, %v2033
      %v2035 = vpop.f32.mrb[0].mxu0
      %v2036 = vpop.f32.mrb[0].mxu0
      %v2037 = vadd.f32 %v1773, %v2036
      %v2038 = vpop.f32.mrb[0].mxu0
      %2039 = vmatprep.mubr.bf16.mxu0 0
      %2040 = vmatmul.mubr.bf16.gmra.mrb[0].mxu0 %v947
      %v2041 = vpop.f32.mrb[0].mxu0
      %v2042 = vadd.f32 %v1778, %v2041
      %v2043 = vpop.f32.mrb[0].mxu0
      %v2044 = vpop.f32.mrb[0].mxu0
      %v2045 = vadd.f32 %v1781, %v2044
      %v2046 = vpop.f32.mrb[0].mxu0
      %2047 = vmatprep.mubr.bf16.mxu0 0
      %2048 = vmatmul.mubr.bf16.gmra.mrb[0].mxu0 %v952
      %v2049 = vpop.f32.mrb[0].mxu0
      %v2050 = vadd.f32 %v1786, %v2049
      %v2051 = vpop.f32.mrb[0].mxu0
      %v2052 = vpop.f32.mrb[0].mxu0
      %v2053 = vadd.f32 %v1789, %v2052
      %v2054 = vpop.f32.mrb[0].mxu0
      %2055 = vmatprep.mubr.bf16.mxu0 0
      %2056 = vmatmul.mubr.bf16.gmra.mrb[0].mxu0 %v957
      %v2057 = vpop.f32.mrb[0].mxu0
      %v2058 = vadd.f32 %v1794, %v2057
      %v2059 = vpop.f32.mrb[0].mxu0
      %v2060 = vpop.f32.mrb[0].mxu0
      %v2061 = vadd.f32 %v1797, %v2060
      %v2062 = vpop.f32.mrb[0].mxu0
      %2063 = vmatprep.mubr.bf16.mxu0 0
      %2064 = vmatmul.mubr.bf16.gmra.mrb[0].mxu0 %v962
      %v2065 = vpop.f32.mrb[0].mxu0
      %v2066 = vadd.f32 %v1802, %v2065
      %v2067 = vpop.f32.mrb[0].mxu0
      %v2068 = vpop.f32.mrb[0].mxu0
      %v2069 = vadd.f32 %v1805, %v2068
      %v2070 = vpop.f32.mrb[0].mxu0
      %2071 = vmatprep.mubr.bf16.mxu0 0
      %2072 = vmatmul.mubr.bf16.gmra.mrb[0].mxu0 %v967
      %v2073 = vpop.f32.mrb[0].mxu0
      %v2074 = vadd.f32 %v1810, %v2073
      %v2075 = vpop.f32.mrb[0].mxu0
      %v2076 = vpop.f32.mrb[0].mxu0
      %v2077 = vadd.f32 %v1813, %v2076
      %v2078 = vpop.f32.mrb[0].mxu0
      %2079 = vmatprep.mubr.bf16.mxu0 0
      %2080 = vmatmul.mubr.bf16.gmra.mrb[0].mxu0 %v972
      %v2081 = vpop.f32.mrb[0].mxu0
      %v2082 = vadd.f32 %v1818, %v2081
      %v2083 = vpop.f32.mrb[0].mxu0
      %v2084 = vpop.f32.mrb[0].mxu0
      %v2085 = vadd.f32 %v1821, %v2084
      %v2086 = vpop.f32.mrb[0].mxu0
      %2087 = vmatprep.mubr.bf16.mxu0 0
      %2088 = vmatmul.mubr.bf16.gmra.mrb[0].mxu0 %v977
      %v2089 = vpop.f32.mrb[0].mxu0
      %v2090 = vadd.f32 %v1826, %v2089
      %v2091 = vpop.f32.mrb[0].mxu0
      %v2092 = vpop.f32.mrb[0].mxu0
      %v2093 = vadd.f32 %v1829, %v2092
      %v2094 = vpop.f32.mrb[0].mxu0
      %2095 = vmatprep.mubr.bf16.mxu0 0
      %2096 = vmatmul.mubr.bf16.gmra.mrb[0].mxu0 %v982
      %v2097 = vpop.f32.mrb[0].mxu0
      %v2098 = vadd.f32 %v1834, %v2097
      %v2099 = vpop.f32.mrb[0].mxu0
      %v2100 = vpop.f32.mrb[0].mxu0
      %v2101 = vadd.f32 %v1837, %v2100
      %v2102 = vpop.f32.mrb[0].mxu0
      %2103 = vmatprep.mubr.bf16.mxu0 0
      %2104 = vmatmul.mubr.bf16.gmra.mrb[0].mxu0 %v987
      %v2105 = vpop.f32.mrb[0].mxu0
      %v2106 = vadd.f32 %v1842, %v2105
      %v2107 = vpop.f32.mrb[0].mxu0
      %v2108 = vpop.f32.mrb[0].mxu0
      %v2109 = vadd.f32 %v1845, %v2108
      %v2110 = vpop.f32.mrb[0].mxu0
      %2111 = vmatprep.mubr.bf16.mxu0 0
      %2112 = vmatmul.mubr.bf16.gmra.mrb[0].mxu0 %v992
      %v2113 = vpop.f32.mrb[0].mxu0
      %v2114 = vadd.f32 %v1850, %v2113
      %v2115 = vpop.f32.mrb[0].mxu0
      %v2116 = vpop.f32.mrb[0].mxu0
      %v2117 = vadd.f32 %v1853, %v2116
      %v2118 = vpop.f32.mrb[0].mxu0
      %2119 = vmatprep.mubr.bf16.mxu0 0
      %2120 = vmatmul.mubr.bf16.gmra.mrb[0].mxu0 %v997
      %v2121 = vpop.f32.mrb[0].mxu0
      %v2122 = vadd.f32 %v1858, %v2121
      %v2123 = vpop.f32.mrb[0].mxu0
      %v2124 = vpop.f32.mrb[0].mxu0
      %v2125 = vadd.f32 %v1861, %v2124
      %v2126 = vpop.f32.mrb[0].mxu0
      %2127 = vmatprep.mubr.bf16.mxu0 0
      %2128 = vmatmul.mubr.bf16.gmra.mrb[0].mxu0 %v1002
      %v2129 = vpop.f32.mrb[0].mxu0
      %v2130 = vadd.f32 %v1866, %v2129
      %v2131 = vpop.f32.mrb[0].mxu0
      %v2132 = vpop.f32.mrb[0].mxu0
      %v2133 = vadd.f32 %v1869, %v2132
      %v2134 = vpop.f32.mrb[0].mxu0
      %2135 = vmatprep.mubr.bf16.mxu0 0
      %2136 = vmatmul.mubr.bf16.gmra.mrb[0].mxu0 %v1007
      %v2137 = vpop.f32.mrb[0].mxu0
      %v2138 = vadd.f32 %v1874, %v2137
      %v2139 = vpop.f32.mrb[0].mxu0
      %v2140 = vpop.f32.mrb[0].mxu0
      %v2141 = vadd.f32 %v1877, %v2140
      %v2142 = vpop.f32.mrb[0].mxu0
      %2143 = vmatprep.mubr.bf16.mxu0 0
      %2144 = vmatmul.mubr.bf16.gmra.mrb[0].mxu0 %v1012
      %v2145 = vpop.f32.mrb[0].mxu0
      %v2146 = vadd.f32 %v1882, %v2145
      %v2147 = vpop.f32.mrb[0].mxu0
      %v2148 = vpop.f32.mrb[0].mxu0
      %v2149 = vadd.f32 %v1885, %v2148
      %v2150 = vpop.f32.mrb[0].mxu0
      %2151 = vmatprep.mubr.bf16.mxu0 0
      %2152 = vmatmul.mubr.bf16.gmra.mrb[0].mxu0 %v1017
      %v2153 = vpop.f32.mrb[0].mxu0
      %v2154 = vadd.f32 %v1890, %v2153
      %v2155 = vpop.f32.mrb[0].mxu0
      %v2156 = vpop.f32.mrb[0].mxu0
      %v2157 = vadd.f32 %v1893, %v2156
      %v2158 = vpop.f32.mrb[0].mxu0
      %2159 = vmatprep.mubr.bf16.mxu0 0
      %2160 = vmatmul.mubr.bf16.gmra.mrb[0].mxu0 %v1022
      %v2161 = vpop.f32.mrb[0].mxu0
      %v2162 = vadd.f32 %v1898, %v2161
      %v2163 = vpop.f32.mrb[0].mxu0
      %v2164 = vpop.f32.mrb[0].mxu0
      %v2165 = vadd.f32 %v1901, %v2164
      %v2166 = vpop.f32.mrb[0].mxu0
      %2167 = vmatprep.mubr.bf16.mxu0 0
      %2168 = vmatmul.mubr.bf16.gmra.mrb[0].mxu0 %v1027
      %v2169 = vpop.f32.mrb[0].mxu0
      %v2170 = vadd.f32 %v1906, %v2169
      %v2171 = vpop.f32.mrb[0].mxu0
      %v2172 = vpop.f32.mrb[0].mxu0
      %v2173 = vadd.f32 %v1909, %v2172
      %v2174 = vpop.f32.mrb[0].mxu0
      %2175 = vmatprep.mubr.bf16.mxu0 0
      %2176 = vmatmul.mubr.bf16.gmra.mrb[0].mxu0 %v1032
      %v2177 = vpop.f32.mrb[0].mxu0
      %v2178 = vadd.f32 %v1914, %v2177
      %v2179 = vpop.f32.mrb[0].mxu0
      %v2180 = vpop.f32.mrb[0].mxu0
      %v2181 = vadd.f32 %v1917, %v2180
      %v2182 = vpop.f32.mrb[0].mxu0
      %2183 = vmatprep.mubr.bf16.mxu0 0
      %2184 = vmatmul.mubr.bf16.gmra.mrb[0].mxu0 %v1037
      %v2185 = vpop.f32.mrb[0].mxu0
      %v2186 = vadd.f32 %v1922, %v2185
      %v2187 = vpop.f32.mrb[0].mxu0
      %v2188 = vpop.f32.mrb[0].mxu0
      %v2189 = vadd.f32 %v1925, %v2188
      %v2190 = vpop.f32.mrb[0].mxu0
      %2191 = vmatprep.mubr.bf16.mxu0 0
      %2192 = vmatmul.mubr.bf16.gmra.mrb[0].mxu0 %v1042
      %v2193 = vpop.f32.mrb[0].mxu0
      %v2194 = vadd.f32 %v1930, %v2193
      %v2195 = vpop.f32.mrb[0].mxu0
      %v2196 = vpop.f32.mrb[0].mxu0
      %v2197 = vadd.f32 %v1933, %v2196
      %v2198 = vpop.f32.mrb[0].mxu0
      %2199 = vmatprep.mubr.bf16.mxu0 0
      %2200 = vmatmul.mubr.bf16.gmra.mrb[0].mxu0 %v1047
      %v2201 = vpop.f32.mrb[0].mxu0
      %v2202 = vadd.f32 %v1938, %v2201
      %v2203 = vpop.f32.mrb[0].mxu0
      %v2204 = vpop.f32.mrb[0].mxu0
      %v2205 = vadd.f32 %v1941, %v2204
      %v2206 = vpop.f32.mrb[0].mxu0
      %2207 = vmatprep.mubr.bf16.mxu0 0
      %2208 = vmatmul.mubr.bf16.gmra.mrb[0].mxu0 %v1052
      %v2209 = vpop.f32.mrb[0].mxu0
      %v2210 = vadd.f32 %v1946, %v2209
      %v2211 = vpop.f32.mrb[0].mxu0
      %v2212 = vpop.f32.mrb[0].mxu0
      %v2213 = vadd.f32 %v1949, %v2212
      %v2214 = vpop.f32.mrb[0].mxu0
      %2215 = vmatprep.mubr.bf16.mxu0 0
      %2216 = vmatmul.mubr.bf16.gmra.mrb[0].mxu0 %v1057
      %v2217 = vpop.f32.mrb[0].mxu0
      %v2218 = vadd.f32 %v1954, %v2217
      %v2219 = vpop.f32.mrb[0].mxu0
      %v2220 = vpop.f32.mrb[0].mxu0
      %v2221 = vadd.f32 %v1957, %v2220
      %v2222 = vpop.f32.mrb[0].mxu0
      %2223 = vmatprep.mubr.bf16.mxu0 0
      %2224 = vmatmul.mubr.bf16.gmra.mrb[0].mxu0 %v1062
      %v2225 = vpop.f32.mrb[0].mxu0
      %v2226 = vadd.f32 %v1962, %v2225
      %v2227 = vpop.f32.mrb[0].mxu0
      %v2228 = vpop.f32.mrb[0].mxu0
      %v2229 = vadd.f32 %v1965, %v2228
      %v2230 = vpop.f32.mrb[0].mxu0
      %2231 = vmatprep.mubr.bf16.mxu0 0
      %2232 = vmatmul.mubr.bf16.gmra.mrb[0].mxu0 %v1067
      %v2233 = vpop.f32.mrb[0].mxu0
      %v2234 = vadd.f32 %v1970, %v2233
      %v2235 = vpop.f32.mrb[0].mxu0
      %v2236 = vpop.f32.mrb[0].mxu0
      %v2237 = vadd.f32 %v1973, %v2236
      %v2238 = vpop.f32.mrb[0].mxu0
      %2239 = vmatprep.mubr.bf16.mxu0 0
      %2240 = vmatmul.mubr.bf16.gmra.mrb[0].mxu0 %v1072
      %v2241 = vpop.f32.mrb[0].mxu0
      %v2242 = vadd.f32 %v1978, %v2241
      %v2243 = vpop.f32.mrb[0].mxu0
      %v2244 = vpop.f32.mrb[0].mxu0
      %v2245 = vadd.f32 %v1981, %v2244
      %v2246 = vpop.f32.mrb[0].mxu0
      %2247 = vmatprep.mubr.bf16.mxu0 0
      %2248 = vmatmul.mubr.bf16.gmra.mrb[0].mxu0 %v1077
      %v2249 = vpop.f32.mrb[0].mxu0
      %v2250 = vadd.f32 %v1986, %v2249
      %v2251 = vpop.f32.mrb[0].mxu0
      %v2252 = vpop.f32.mrb[0].mxu0
      %v2253 = vpop.f32.mrb[0].mxu0
      %2254 = vdwg.mxu0
      %v2255 = vadd.f32 %v2026, %v2029
      %v2256 = vadd.f32 %v2255, %v2034
      %v2257 = vadd.f32 %v2256, %v2037
      %v2258 = vadd.f32 %v2257, %v2042
      %v2259 = vadd.f32 %v2258, %v2045
      %v2260 = vadd.f32 %v2259, %v2050
      %v2261 = vadd.f32 %v2260, %v2053
      %v2262 = vadd.f32 %v2261, %v2058
      %v2263 = vadd.f32 %v2262, %v2061
      %v2264 = vadd.f32 %v2263, %v2066
      %v2265 = vadd.f32 %v2264, %v2069
      %v2266 = vadd.f32 %v2265, %v2074
      %v2267 = vadd.f32 %v2266, %v2077
      %v2268 = vadd.f32 %v2267, %v2082
      %v2269 = vadd.f32 %v2268, %v2085
      %v2270 = vadd.f32 %v2269, %v2090
      %v2271 = vadd.f32 %v2270, %v2093
      %v2272 = vadd.f32 %v2271, %v2098
      %v2273 = vadd.f32 %v2272, %v2101
      %v2274 = vadd.f32 %v2273, %v2106
      %v2275 = vadd.f32 %v2274, %v2109
      %v2276 = vadd.f32 %v2275, %v2114
      %v2277 = vadd.f32 %v2276, %v2117
      %v2278 = vadd.f32 %v2277, %v2122
      %v2279 = vadd.f32 %v2278, %v2125
      %v2280 = vadd.f32 %v2279, %v2130
      %v2281 = vadd.f32 %v2280, %v2133
      %v2282 = vadd.f32 %v2281, %v2138
      %v2283 = vadd.f32 %v2282, %v2141
      %v2284 = vadd.f32 %v2283, %v2146
      %v2285 = vadd.f32 %v2284, %v2149
      %v2286 = vadd.f32 %v2285, %v2154
      %v2287 = vadd.f32 %v2286, %v2157
      %v2288 = vadd.f32 %v2287, %v2162
      %v2289 = vadd.f32 %v2288, %v2165
      %v2290 = vadd.f32 %v2289, %v2170
      %v2291 = vadd.f32 %v2290, %v2173
      %v2292 = vadd.f32 %v2291, %v2178
      %v2293 = vadd.f32 %v2292, %v2181
      %v2294 = vadd.f32 %v2293, %v2186
      %v2295 = vadd.f32 %v2294, %v2189
      %v2296 = vadd.f32 %v2295, %v2194
      %v2297 = vadd.f32 %v2296, %v2197
      %v2298 = vadd.f32 %v2297, %v2202
      %v2299 = vadd.f32 %v2298, %v2205
      %v2300 = vadd.f32 %v2299, %v2210
      %v2301 = vadd.f32 %v2300, %v2213
      %v2302 = vadd.f32 %v2301, %v2218
      %v2303 = vadd.f32 %v2302, %v2221
      %v2304 = vadd.f32 %v2303, %v2226
      %v2305 = vadd.f32 %v2304, %v2229
      %v2306 = vadd.f32 %v2305, %v2234
      %v2307 = vadd.f32 %v2306, %v2237
      %v2308 = vadd.f32 %v2307, %v2242
      %v2309 = vadd.f32 %v2308, %v2245
      %vm2310 = vcmask 1041408
      %v2311 = vsel %vm2310, %v2250, 0.0
      %v2312 = vadd.f32 %v2309, %v2311
      %v2313 = vrot.slane %v2312, 4
      %v2314 = vadd.f32 %v2312, %v2313
      %v2315 = vrot.slane %v2314, 2
      %v2316 = vadd.f32 %v2314, %v2315
      %v2317 = vrot.slane %v2316, 1
      %v2318 = vadd.f32 %v2316, %v2317
      %v2319 = vmul.f32 %v2026, %v2026
      %v2320 = vmul.f32 %v2029, %v2029
      %v2321 = vmul.f32 %v2034, %v2034
      %v2322 = vmul.f32 %v2037, %v2037
      %v2323 = vmul.f32 %v2042, %v2042
      %v2324 = vmul.f32 %v2045, %v2045
      %v2325 = vmul.f32 %v2050, %v2050
      %v2326 = vmul.f32 %v2053, %v2053
      %v2327 = vmul.f32 %v2058, %v2058
      %v2328 = vmul.f32 %v2061, %v2061
      %v2329 = vmul.f32 %v2066, %v2066
      %v2330 = vmul.f32 %v2069, %v2069
      %v2331 = vmul.f32 %v2074, %v2074
      %v2332 = vmul.f32 %v2077, %v2077
      %v2333 = vmul.f32 %v2082, %v2082
      %v2334 = vmul.f32 %v2085, %v2085
      %v2335 = vmul.f32 %v2090, %v2090
      %v2336 = vmul.f32 %v2093, %v2093
      %v2337 = vmul.f32 %v2098, %v2098
      %v2338 = vmul.f32 %v2101, %v2101
      %v2339 = vmul.f32 %v2106, %v2106
      %v2340 = vmul.f32 %v2109, %v2109
      %v2341 = vmul.f32 %v2114, %v2114
      %v2342 = vmul.f32 %v2117, %v2117
      %v2343 = vmul.f32 %v2122, %v2122
      %v2344 = vmul.f32 %v2125, %v2125
      %v2345 = vmul.f32 %v2130, %v2130
      %v2346 = vmul.f32 %v2133, %v2133
      %v2347 = vmul.f32 %v2138, %v2138
      %v2348 = vmul.f32 %v2141, %v2141
      %v2349 = vmul.f32 %v2146, %v2146
      %v2350 = vmul.f32 %v2149, %v2149
      %v2351 = vmul.f32 %v2154, %v2154
      %v2352 = vmul.f32 %v2157, %v2157
      %v2353 = vmul.f32 %v2162, %v2162
      %v2354 = vmul.f32 %v2165, %v2165
      %v2355 = vmul.f32 %v2170, %v2170
      %v2356 = vmul.f32 %v2173, %v2173
      %v2357 = vmul.f32 %v2178, %v2178
      %v2358 = vmul.f32 %v2181, %v2181
      %v2359 = vmul.f32 %v2186, %v2186
      %v2360 = vmul.f32 %v2189, %v2189
      %v2361 = vmul.f32 %v2194, %v2194
      %v2362 = vmul.f32 %v2197, %v2197
      %v2363 = vmul.f32 %v2202, %v2202
      %v2364 = vmul.f32 %v2205, %v2205
      %v2365 = vmul.f32 %v2210, %v2210
      %v2366 = vmul.f32 %v2213, %v2213
      %v2367 = vmul.f32 %v2218, %v2218
      %v2368 = vmul.f32 %v2221, %v2221
      %v2369 = vmul.f32 %v2226, %v2226
      %v2370 = vmul.f32 %v2229, %v2229
      %v2371 = vmul.f32 %v2234, %v2234
      %v2372 = vmul.f32 %v2237, %v2237
      %v2373 = vmul.f32 %v2242, %v2242
      %v2374 = vmul.f32 %v2245, %v2245
      %v2375 = vmul.f32 %v2250, %v2250
      %v2376 = vadd.f32 %v2319, %v2320
      %v2377 = vadd.f32 %v2376, %v2321
      %v2378 = vadd.f32 %v2377, %v2322
      %v2379 = vadd.f32 %v2378, %v2323
      %v2380 = vadd.f32 %v2379, %v2324
      %v2381 = vadd.f32 %v2380, %v2325
      %v2382 = vadd.f32 %v2381, %v2326
      %v2383 = vadd.f32 %v2382, %v2327
      %v2384 = vadd.f32 %v2383, %v2328
      %v2385 = vadd.f32 %v2384, %v2329
      %v2386 = vadd.f32 %v2385, %v2330
      %v2387 = vadd.f32 %v2386, %v2331
      %v2388 = vadd.f32 %v2387, %v2332
      %v2389 = vadd.f32 %v2388, %v2333
      %v2390 = vadd.f32 %v2389, %v2334
      %v2391 = vadd.f32 %v2390, %v2335
      %v2392 = vadd.f32 %v2391, %v2336
      %v2393 = vadd.f32 %v2392, %v2337
      %v2394 = vadd.f32 %v2393, %v2338
      %v2395 = vadd.f32 %v2394, %v2339
      %v2396 = vadd.f32 %v2395, %v2340
      %v2397 = vadd.f32 %v2396, %v2341
      %v2398 = vadd.f32 %v2397, %v2342
      %v2399 = vadd.f32 %v2398, %v2343
      %v2400 = vadd.f32 %v2399, %v2344
      %v2401 = vadd.f32 %v2400, %v2345
      %v2402 = vadd.f32 %v2401, %v2346
      %v2403 = vadd.f32 %v2402, %v2347
      %v2404 = vadd.f32 %v2403, %v2348
      %v2405 = vadd.f32 %v2404, %v2349
      %v2406 = vadd.f32 %v2405, %v2350
      %v2407 = vadd.f32 %v2406, %v2351
      %v2408 = vadd.f32 %v2407, %v2352
      %v2409 = vadd.f32 %v2408, %v2353
      %v2410 = vadd.f32 %v2409, %v2354
      %v2411 = vadd.f32 %v2410, %v2355
      %v2412 = vadd.f32 %v2411, %v2356
      %v2413 = vadd.f32 %v2412, %v2357
      %v2414 = vadd.f32 %v2413, %v2358
      %v2415 = vadd.f32 %v2414, %v2359
      %v2416 = vadd.f32 %v2415, %v2360
      %v2417 = vadd.f32 %v2416, %v2361
      %v2418 = vadd.f32 %v2417, %v2362
      %v2419 = vadd.f32 %v2418, %v2363
      %v2420 = vadd.f32 %v2419, %v2364
      %v2421 = vadd.f32 %v2420, %v2365
      %v2422 = vadd.f32 %v2421, %v2366
      %v2423 = vadd.f32 %v2422, %v2367
      %v2424 = vadd.f32 %v2423, %v2368
      %v2425 = vadd.f32 %v2424, %v2369
      %v2426 = vadd.f32 %v2425, %v2370
      %v2427 = vadd.f32 %v2426, %v2371
      %v2428 = vadd.f32 %v2427, %v2372
      %v2429 = vadd.f32 %v2428, %v2373
      %v2430 = vadd.f32 %v2429, %v2374
      %v2431 = vsel %vm2310, %v2375, 0.0
      %v2432 = vadd.f32 %v2430, %v2431
      %v2433 = vrot.slane %v2432, 4
      %v2434 = vadd.f32 %v2432, %v2433
      %v2435 = vrot.slane %v2434, 2
      %v2436 = vadd.f32 %v2434, %v2435
      %v2437 = vrot.slane %v2436, 1
      %v2438 = vadd.f32 %v2436, %v2437
      %v2439 = vmul.f32 %v2318, 0.0022222223
      %v2440 = vmul.f32 %v2438, 0.0022222223
      %v2441 = vmul.f32 %v2439, %v2439
      %v2442 = vsub.f32 %v2440, %v2441
      %v2443 = vmax.f32 %v2442, 0.0
      %v2444 = vsub.f32 %v2026, %v2439
      %v2445 = vsub.f32 %v2029, %v2439
      %v2446 = vsub.f32 %v2034, %v2439
      %v2447 = vsub.f32 %v2037, %v2439
      %v2448 = vsub.f32 %v2042, %v2439
      %v2449 = vsub.f32 %v2045, %v2439
      %v2450 = vsub.f32 %v2050, %v2439
      %v2451 = vsub.f32 %v2053, %v2439
      %v2452 = vsub.f32 %v2058, %v2439
      %v2453 = vsub.f32 %v2061, %v2439
      %v2454 = vsub.f32 %v2066, %v2439
      %v2455 = vsub.f32 %v2069, %v2439
      %v2456 = vsub.f32 %v2074, %v2439
      %v2457 = vsub.f32 %v2077, %v2439
      %v2458 = vsub.f32 %v2082, %v2439
      %v2459 = vsub.f32 %v2085, %v2439
      %v2460 = vsub.f32 %v2090, %v2439
      %v2461 = vsub.f32 %v2093, %v2439
      %v2462 = vsub.f32 %v2098, %v2439
      %v2463 = vsub.f32 %v2101, %v2439
      %v2464 = vsub.f32 %v2106, %v2439
      %v2465 = vsub.f32 %v2109, %v2439
      %v2466 = vsub.f32 %v2114, %v2439
      %v2467 = vsub.f32 %v2117, %v2439
      %v2468 = vsub.f32 %v2122, %v2439
      %v2469 = vsub.f32 %v2125, %v2439
      %v2470 = vsub.f32 %v2130, %v2439
      %v2471 = vsub.f32 %v2133, %v2439
      %v2472 = vsub.f32 %v2138, %v2439
      %v2473 = vsub.f32 %v2141, %v2439
      %v2474 = vsub.f32 %v2146, %v2439
      %v2475 = vsub.f32 %v2149, %v2439
      %v2476 = vsub.f32 %v2154, %v2439
      %v2477 = vsub.f32 %v2157, %v2439
      %v2478 = vsub.f32 %v2162, %v2439
      %v2479 = vsub.f32 %v2165, %v2439
      %v2480 = vsub.f32 %v2170, %v2439
      %v2481 = vsub.f32 %v2173, %v2439
      %v2482 = vsub.f32 %v2178, %v2439
      %v2483 = vsub.f32 %v2181, %v2439
      %v2484 = vsub.f32 %v2186, %v2439
      %v2485 = vsub.f32 %v2189, %v2439
      %v2486 = vsub.f32 %v2194, %v2439
      %v2487 = vsub.f32 %v2197, %v2439
      %v2488 = vsub.f32 %v2202, %v2439
      %v2489 = vsub.f32 %v2205, %v2439
      %v2490 = vsub.f32 %v2210, %v2439
      %v2491 = vsub.f32 %v2213, %v2439
      %v2492 = vsub.f32 %v2218, %v2439
      %v2493 = vsub.f32 %v2221, %v2439
      %v2494 = vsub.f32 %v2226, %v2439
      %v2495 = vsub.f32 %v2229, %v2439
      %v2496 = vsub.f32 %v2234, %v2439
      %v2497 = vsub.f32 %v2237, %v2439
      %v2498 = vsub.f32 %v2242, %v2439
      %v2499 = vsub.f32 %v2245, %v2439
      %v2500 = vsub.f32 %v2250, %v2439
      %v2501 = vadd.f32 %v2443, 1e-05
      %v2502 = vrsqrt.pop %v2501
      %v2503 = vmul.f32 %v2444, %v2502
      %v2504 = vmul.f32 %v2445, %v2502
      %v2505 = vmul.f32 %v2446, %v2502
      %v2506 = vmul.f32 %v2447, %v2502
      %v2507 = vmul.f32 %v2448, %v2502
      %v2508 = vmul.f32 %v2449, %v2502
      %v2509 = vmul.f32 %v2450, %v2502
      %v2510 = vmul.f32 %v2451, %v2502
      %v2511 = vmul.f32 %v2452, %v2502
      %v2512 = vmul.f32 %v2453, %v2502
      %v2513 = vmul.f32 %v2454, %v2502
      %v2514 = vmul.f32 %v2455, %v2502
      %v2515 = vmul.f32 %v2456, %v2502
      %v2516 = vmul.f32 %v2457, %v2502
      %v2517 = vmul.f32 %v2458, %v2502
      %v2518 = vmul.f32 %v2459, %v2502
      %v2519 = vmul.f32 %v2460, %v2502
      %v2520 = vmul.f32 %v2461, %v2502
      %v2521 = vmul.f32 %v2462, %v2502
      %v2522 = vmul.f32 %v2463, %v2502
      %v2523 = vmul.f32 %v2464, %v2502
      %v2524 = vmul.f32 %v2465, %v2502
      %v2525 = vmul.f32 %v2466, %v2502
      %v2526 = vmul.f32 %v2467, %v2502
      %v2527 = vmul.f32 %v2468, %v2502
      %v2528 = vmul.f32 %v2469, %v2502
      %v2529 = vmul.f32 %v2470, %v2502
      %v2530 = vmul.f32 %v2471, %v2502
      %v2531 = vmul.f32 %v2472, %v2502
      %v2532 = vmul.f32 %v2473, %v2502
      %v2533 = vmul.f32 %v2474, %v2502
      %v2534 = vmul.f32 %v2475, %v2502
      %v2535 = vmul.f32 %v2476, %v2502
      %v2536 = vmul.f32 %v2477, %v2502
      %v2537 = vmul.f32 %v2478, %v2502
      %v2538 = vmul.f32 %v2479, %v2502
      %v2539 = vmul.f32 %v2480, %v2502
      %v2540 = vmul.f32 %v2481, %v2502
      %v2541 = vmul.f32 %v2482, %v2502
      %v2542 = vmul.f32 %v2483, %v2502
      %v2543 = vmul.f32 %v2484, %v2502
      %v2544 = vmul.f32 %v2485, %v2502
      %v2545 = vmul.f32 %v2486, %v2502
      %v2546 = vmul.f32 %v2487, %v2502
      %v2547 = vmul.f32 %v2488, %v2502
      %v2548 = vmul.f32 %v2489, %v2502
      %v2549 = vmul.f32 %v2490, %v2502
      %v2550 = vmul.f32 %v2491, %v2502
      %v2551 = vmul.f32 %v2492, %v2502
      %v2552 = vmul.f32 %v2493, %v2502
      %v2553 = vmul.f32 %v2494, %v2502
      %v2554 = vmul.f32 %v2495, %v2502
      %v2555 = vmul.f32 %v2496, %v2502
      %v2556 = vmul.f32 %v2497, %v2502
      %v2557 = vmul.f32 %v2498, %v2502
      %v2558 = vmul.f32 %v2499, %v2502
      %v2559 = vmul.f32 %v2500, %v2502
      %v2560 = vld [vmem:[%s212] sm:$0xf]
      %v2561 = vld [vmem:[%s212 + $0x4] sm:$0xf]
      %v2562 = vld [vmem:[%s212 + $0x8] sm:$0xf]
      %v2563 = vld [vmem:[%s212 + $0xc] sm:$0xf]
      %v2564 = vld [vmem:[%s212 + $0x10] sm:$0xf]
      %v2565 = vld [vmem:[%s212 + $0x14] sm:$0xf]
      %v2566 = vld [vmem:[%s212 + $0x18] sm:$0xf]
      %v2567 = vld [vmem:[%s212 + $0x1c] sm:$0xf]
      %v2568 = vld [vmem:[%s212 + $0x20] sm:$0xf]
      %v2569 = vld [vmem:[%s212 + $0x24] sm:$0xf]
      %v2570 = vld [vmem:[%s212 + $0x28] sm:$0xf]
      %v2571 = vld [vmem:[%s212 + $0x2c] sm:$0xf]
      %v2572 = vld [vmem:[%s212 + $0x30] sm:$0xf]
      %v2573 = vld [vmem:[%s212 + $0x34] sm:$0xf]
      %v2574 = vld [vmem:[%s212 + $0x38] sm:$0xf]
      %v2575 = vld [vmem:[%s212 + $0x3c] sm:$0xf]
      %v2576 = vld [vmem:[%s212 + $0x40] sm:$0xf]
      %v2577 = vld [vmem:[%s212 + $0x44] sm:$0xf]
      %v2578 = vld [vmem:[%s212 + $0x48] sm:$0xf]
      %v2579 = vld [vmem:[%s212 + $0x4c] sm:$0xf]
      %v2580 = vld [vmem:[%s212 + $0x50] sm:$0xf]
      %v2581 = vld [vmem:[%s212 + $0x54] sm:$0xf]
      %v2582 = vld [vmem:[%s212 + $0x58] sm:$0xf]
      %v2583 = vld [vmem:[%s212 + $0x5c] sm:$0xf]
      %v2584 = vld [vmem:[%s212 + $0x60] sm:$0xf]
      %v2585 = vld [vmem:[%s212 + $0x64] sm:$0xf]
      %v2586 = vld [vmem:[%s212 + $0x68] sm:$0xf]
      %v2587 = vld [vmem:[%s212 + $0x6c] sm:$0xf]
      %v2588 = vld [vmem:[%s212 + $0x70] sm:$0xf]
      %v2589 = vld [vmem:[%s212 + $0x74] sm:$0xf]
      %v2590 = vld [vmem:[%s212 + $0x78] sm:$0xf]
      %v2591 = vld [vmem:[%s212 + $0x7c] sm:$0xf]
      %v2592 = vld [vmem:[%s212 + $0x80] sm:$0xf]
      %v2593 = vld [vmem:[%s212 + $0x84] sm:$0xf]
      %v2594 = vld [vmem:[%s212 + $0x88] sm:$0xf]
      %v2595 = vld [vmem:[%s212 + $0x8c] sm:$0xf]
      %v2596 = vld [vmem:[%s212 + $0x90] sm:$0xf]
      %v2597 = vld [vmem:[%s212 + $0x94] sm:$0xf]
      %v2598 = vld [vmem:[%s212 + $0x98] sm:$0xf]
      %v2599 = vld [vmem:[%s212 + $0x9c] sm:$0xf]
      %v2600 = vld [vmem:[%s212 + $0xa0] sm:$0xf]
      %v2601 = vld [vmem:[%s212 + $0xa4] sm:$0xf]
      %v2602 = vld [vmem:[%s212 + $0xa8] sm:$0xf]
      %v2603 = vld [vmem:[%s212 + $0xac] sm:$0xf]
      %v2604 = vld [vmem:[%s212 + $0xb0] sm:$0xf]
      %v2605 = vld [vmem:[%s212 + $0xb4] sm:$0xf]
      %v2606 = vld [vmem:[%s212 + $0xb8] sm:$0xf]
      %v2607 = vld [vmem:[%s212 + $0xbc] sm:$0xf]
      %v2608 = vld [vmem:[%s212 + $0xc0] sm:$0xf]
      %v2609 = vld [vmem:[%s212 + $0xc4] sm:$0xf]
      %v2610 = vld [vmem:[%s212 + $0xc8] sm:$0xf]
      %v2611 = vld [vmem:[%s212 + $0xcc] sm:$0xf]
      %v2612 = vld [vmem:[%s212 + $0xd0] sm:$0xf]
      %v2613 = vld [vmem:[%s212 + $0xd4] sm:$0xf]
      %v2614 = vld [vmem:[%s212 + $0xd8] sm:$0xf]
      %v2615 = vld [vmem:[%s212 + $0xdc] sm:$0xf]
      %v2616 = vld [vmem:[%s212 + $0xe0] sm:$0x1]
      %v2617 = vunpack.c.l.bf16 %v2560
      %v2618 = vunpack.c.l.bf16 %v2561
      %v2619 = vunpack.c.l.bf16 %v2562
      %v2620 = vunpack.c.l.bf16 %v2563
      %v2621 = vunpack.c.l.bf16 %v2564
      %v2622 = vunpack.c.l.bf16 %v2565
      %v2623 = vunpack.c.l.bf16 %v2566
      %v2624 = vunpack.c.l.bf16 %v2567
      %v2625 = vunpack.c.l.bf16 %v2568
      %v2626 = vunpack.c.l.bf16 %v2569
      %v2627 = vunpack.c.l.bf16 %v2570
      %v2628 = vunpack.c.l.bf16 %v2571
      %v2629 = vunpack.c.l.bf16 %v2572
      %v2630 = vunpack.c.l.bf16 %v2573
      %v2631 = vunpack.c.l.bf16 %v2574
      %v2632 = vunpack.c.l.bf16 %v2575
      %v2633 = vunpack.c.l.bf16 %v2576
      %v2634 = vunpack.c.l.bf16 %v2577
      %v2635 = vunpack.c.l.bf16 %v2578
      %v2636 = vunpack.c.l.bf16 %v2579
      %v2637 = vunpack.c.l.bf16 %v2580
      %v2638 = vunpack.c.l.bf16 %v2581
      %v2639 = vunpack.c.l.bf16 %v2582
      %v2640 = vunpack.c.l.bf16 %v2583
      %v2641 = vunpack.c.l.bf16 %v2584
      %v2642 = vunpack.c.l.bf16 %v2585
      %v2643 = vunpack.c.l.bf16 %v2586
      %v2644 = vunpack.c.l.bf16 %v2587
      %v2645 = vunpack.c.l.bf16 %v2588
      %v2646 = vunpack.c.l.bf16 %v2589
      %v2647 = vunpack.c.l.bf16 %v2590
      %v2648 = vunpack.c.l.bf16 %v2591
      %v2649 = vunpack.c.l.bf16 %v2592
      %v2650 = vunpack.c.l.bf16 %v2593
      %v2651 = vunpack.c.l.bf16 %v2594
      %v2652 = vunpack.c.l.bf16 %v2595
      %v2653 = vunpack.c.l.bf16 %v2596
      %v2654 = vunpack.c.l.bf16 %v2597
      %v2655 = vunpack.c.l.bf16 %v2598
      %v2656 = vunpack.c.l.bf16 %v2599
      %v2657 = vunpack.c.l.bf16 %v2600
      %v2658 = vunpack.c.l.bf16 %v2601
      %v2659 = vunpack.c.l.bf16 %v2602
      %v2660 = vunpack.c.l.bf16 %v2603
      %v2661 = vunpack.c.l.bf16 %v2604
      %v2662 = vunpack.c.l.bf16 %v2605
      %v2663 = vunpack.c.l.bf16 %v2606
      %v2664 = vunpack.c.l.bf16 %v2607
      %v2665 = vunpack.c.l.bf16 %v2608
      %v2666 = vunpack.c.l.bf16 %v2609
      %v2667 = vunpack.c.l.bf16 %v2610
      %v2668 = vunpack.c.l.bf16 %v2611
      %v2669 = vunpack.c.l.bf16 %v2612
      %v2670 = vunpack.c.l.bf16 %v2613
      %v2671 = vunpack.c.l.bf16 %v2614
      %v2672 = vunpack.c.l.bf16 %v2615
      %v2673 = vunpack.c.l.bf16 %v2616
      %v2674 = vadd.f32 %v2503, %v2617
      %v2675 = vadd.f32 %v2504, %v2618
      %v2676 = vadd.f32 %v2505, %v2619
      %v2677 = vadd.f32 %v2506, %v2620
      %v2678 = vadd.f32 %v2507, %v2621
      %v2679 = vadd.f32 %v2508, %v2622
      %v2680 = vadd.f32 %v2509, %v2623
      %v2681 = vadd.f32 %v2510, %v2624
      %v2682 = vadd.f32 %v2511, %v2625
      %v2683 = vadd.f32 %v2512, %v2626
      %v2684 = vadd.f32 %v2513, %v2627
      %v2685 = vadd.f32 %v2514, %v2628
      %v2686 = vadd.f32 %v2515, %v2629
      %v2687 = vadd.f32 %v2516, %v2630
      %v2688 = vadd.f32 %v2517, %v2631
      %v2689 = vadd.f32 %v2518, %v2632
      %v2690 = vadd.f32 %v2519, %v2633
      %v2691 = vadd.f32 %v2520, %v2634
      %v2692 = vadd.f32 %v2521, %v2635
      %v2693 = vadd.f32 %v2522, %v2636
      %v2694 = vadd.f32 %v2523, %v2637
      %v2695 = vadd.f32 %v2524, %v2638
      %v2696 = vadd.f32 %v2525, %v2639
      %v2697 = vadd.f32 %v2526, %v2640
      %v2698 = vadd.f32 %v2527, %v2641
      %v2699 = vadd.f32 %v2528, %v2642
      %v2700 = vadd.f32 %v2529, %v2643
      %v2701 = vadd.f32 %v2530, %v2644
      %v2702 = vadd.f32 %v2531, %v2645
      %v2703 = vadd.f32 %v2532, %v2646
      %v2704 = vadd.f32 %v2533, %v2647
      %v2705 = vadd.f32 %v2534, %v2648
      %v2706 = vadd.f32 %v2535, %v2649
      %v2707 = vadd.f32 %v2536, %v2650
      %v2708 = vadd.f32 %v2537, %v2651
      %v2709 = vadd.f32 %v2538, %v2652
      %v2710 = vadd.f32 %v2539, %v2653
      %v2711 = vadd.f32 %v2540, %v2654
      %v2712 = vadd.f32 %v2541, %v2655
      %v2713 = vadd.f32 %v2542, %v2656
      %v2714 = vadd.f32 %v2543, %v2657
      %v2715 = vadd.f32 %v2544, %v2658
      %v2716 = vadd.f32 %v2545, %v2659
      %v2717 = vadd.f32 %v2546, %v2660
      %v2718 = vadd.f32 %v2547, %v2661
      %v2719 = vadd.f32 %v2548, %v2662
      %v2720 = vadd.f32 %v2549, %v2663
      %v2721 = vadd.f32 %v2550, %v2664
      %v2722 = vadd.f32 %v2551, %v2665
      %v2723 = vadd.f32 %v2552, %v2666
      %v2724 = vadd.f32 %v2553, %v2667
      %v2725 = vadd.f32 %v2554, %v2668
      %v2726 = vadd.f32 %v2555, %v2669
      %v2727 = vadd.f32 %v2556, %v2670
      %v2728 = vadd.f32 %v2557, %v2671
      %v2729 = vadd.f32 %v2558, %v2672
      %v2730 = vadd.f32 %v2559, %v2673
      %v2731 = vmax.f32 %v2674, 0.0
      %v2732 = vmax.f32 %v2675, 0.0
      %v2733 = vmax.f32 %v2676, 0.0
      %v2734 = vmax.f32 %v2677, 0.0
      %v2735 = vmax.f32 %v2678, 0.0
      %v2736 = vmax.f32 %v2679, 0.0
      %v2737 = vmax.f32 %v2680, 0.0
      %v2738 = vmax.f32 %v2681, 0.0
      %v2739 = vmax.f32 %v2682, 0.0
      %v2740 = vmax.f32 %v2683, 0.0
      %v2741 = vmax.f32 %v2684, 0.0
      %v2742 = vmax.f32 %v2685, 0.0
      %v2743 = vmax.f32 %v2686, 0.0
      %v2744 = vmax.f32 %v2687, 0.0
      %v2745 = vmax.f32 %v2688, 0.0
      %v2746 = vmax.f32 %v2689, 0.0
      %v2747 = vmax.f32 %v2690, 0.0
      %v2748 = vmax.f32 %v2691, 0.0
      %v2749 = vmax.f32 %v2692, 0.0
      %v2750 = vmax.f32 %v2693, 0.0
      %v2751 = vmax.f32 %v2694, 0.0
      %v2752 = vmax.f32 %v2695, 0.0
      %v2753 = vmax.f32 %v2696, 0.0
      %v2754 = vmax.f32 %v2697, 0.0
      %v2755 = vmax.f32 %v2698, 0.0
      %v2756 = vmax.f32 %v2699, 0.0
      %v2757 = vmax.f32 %v2700, 0.0
      %v2758 = vmax.f32 %v2701, 0.0
      %v2759 = vmax.f32 %v2702, 0.0
      %v2760 = vmax.f32 %v2703, 0.0
      %v2761 = vmax.f32 %v2704, 0.0
      %v2762 = vmax.f32 %v2705, 0.0
      %v2763 = vmax.f32 %v2706, 0.0
      %v2764 = vmax.f32 %v2707, 0.0
      %v2765 = vmax.f32 %v2708, 0.0
      %v2766 = vmax.f32 %v2709, 0.0
      %v2767 = vmax.f32 %v2710, 0.0
      %v2768 = vmax.f32 %v2711, 0.0
      %v2769 = vmax.f32 %v2712, 0.0
      %v2770 = vmax.f32 %v2713, 0.0
      %v2771 = vmax.f32 %v2714, 0.0
      %v2772 = vmax.f32 %v2715, 0.0
      %v2773 = vmax.f32 %v2716, 0.0
      %v2774 = vmax.f32 %v2717, 0.0
      %v2775 = vmax.f32 %v2718, 0.0
      %v2776 = vmax.f32 %v2719, 0.0
      %v2777 = vmax.f32 %v2720, 0.0
      %v2778 = vmax.f32 %v2721, 0.0
      %v2779 = vmax.f32 %v2722, 0.0
      %v2780 = vmax.f32 %v2723, 0.0
      %v2781 = vmax.f32 %v2724, 0.0
      %v2782 = vmax.f32 %v2725, 0.0
      %v2783 = vmax.f32 %v2726, 0.0
      %v2784 = vmax.f32 %v2727, 0.0
      %v2785 = vmax.f32 %v2728, 0.0
      %v2786 = vmax.f32 %v2729, 0.0
      %v2787 = vmax.f32 %v2730, 0.0
      %v2788 = vpack.c.bf16 %v2732, %v2731
      %v2789 = vpack.c.bf16 %v2734, %v2733
      %v2790 = vpack.c.bf16 %v2736, %v2735
      %v2791 = vpack.c.bf16 %v2738, %v2737
      %v2792 = vpack.c.bf16 %v2740, %v2739
      %v2793 = vpack.c.bf16 %v2742, %v2741
      %v2794 = vpack.c.bf16 %v2744, %v2743
      %v2795 = vpack.c.bf16 %v2746, %v2745
      %v2796 = vpack.c.bf16 %v2748, %v2747
      %v2797 = vpack.c.bf16 %v2750, %v2749
      %v2798 = vpack.c.bf16 %v2752, %v2751
      %v2799 = vpack.c.bf16 %v2754, %v2753
      %v2800 = vpack.c.bf16 %v2756, %v2755
      %v2801 = vpack.c.bf16 %v2758, %v2757
      %v2802 = vpack.c.bf16 %v2760, %v2759
      %v2803 = vpack.c.bf16 %v2762, %v2761
      %v2804 = vpack.c.bf16 %v2764, %v2763
      %v2805 = vpack.c.bf16 %v2766, %v2765
      %v2806 = vpack.c.bf16 %v2768, %v2767
      %v2807 = vpack.c.bf16 %v2770, %v2769
      %v2808 = vpack.c.bf16 %v2772, %v2771
      %v2809 = vpack.c.bf16 %v2774, %v2773
      %v2810 = vpack.c.bf16 %v2776, %v2775
      %v2811 = vpack.c.bf16 %v2778, %v2777
      %v2812 = vpack.c.bf16 %v2780, %v2779
      %v2813 = vpack.c.bf16 %v2782, %v2781
      %v2814 = vpack.c.bf16 %v2784, %v2783
      %v2815 = vpack.c.bf16 %v2786, %v2785
      %v2816 = vpack.c.bf16 %v2787, %v2787
      %v2846 = vunpack.c.l.b16 %v2788
      %v2847 = vunpack.c.h.b16 %v2788
      %v2848 = vunpack.c.l.b16 %v2789
      %v2849 = vunpack.c.h.b16 %v2789
      %v2850 = vunpack.c.l.b16 %v2790
      %v2851 = vunpack.c.h.b16 %v2790
      %v2852 = vunpack.c.l.b16 %v2791
      %v2853 = vunpack.c.h.b16 %v2791
      %v2854 = vunpack.c.l.b16 %v2792
      %v2855 = vunpack.c.h.b16 %v2792
      %v2856 = vunpack.c.l.b16 %v2793
      %v2857 = vunpack.c.h.b16 %v2793
      %v2858 = vunpack.c.l.b16 %v2794
      %v2859 = vunpack.c.h.b16 %v2794
      %v2860 = vunpack.c.l.b16 %v2795
      %v2861 = vunpack.c.h.b16 %v2795
      %v2862 = vunpack.c.l.b16 %v2796
      %v2863 = vunpack.c.h.b16 %v2796
      %v2864 = vunpack.c.l.b16 %v2797
      %v2865 = vunpack.c.h.b16 %v2797
      %v2866 = vunpack.c.l.b16 %v2798
      %v2867 = vunpack.c.h.b16 %v2798
      %v2868 = vunpack.c.l.b16 %v2799
      %v2869 = vunpack.c.h.b16 %v2799
      %v2870 = vunpack.c.l.b16 %v2800
      %v2871 = vunpack.c.h.b16 %v2800
      %v2872 = vunpack.c.l.b16 %v2801
      %v2873 = vunpack.c.h.b16 %v2801
      %v2874 = vunpack.c.l.b16 %v2802
      %v2875 = vunpack.c.h.b16 %v2802
      %v2876 = vunpack.c.l.b16 %v2803
      %v2877 = vunpack.c.h.b16 %v2803
      %v2878 = vunpack.c.l.b16 %v2804
      %v2879 = vunpack.c.h.b16 %v2804
      %v2880 = vunpack.c.l.b16 %v2805
      %v2881 = vunpack.c.h.b16 %v2805
      %v2882 = vunpack.c.l.b16 %v2806
      %v2883 = vunpack.c.h.b16 %v2806
      %v2884 = vunpack.c.l.b16 %v2807
      %v2885 = vunpack.c.h.b16 %v2807
      %v2886 = vunpack.c.l.b16 %v2808
      %v2887 = vunpack.c.h.b16 %v2808
      %v2888 = vunpack.c.l.b16 %v2809
      %v2889 = vunpack.c.h.b16 %v2809
      %v2890 = vunpack.c.l.b16 %v2810
      %v2891 = vunpack.c.h.b16 %v2810
      %v2892 = vunpack.c.l.b16 %v2811
      %v2893 = vunpack.c.h.b16 %v2811
      %v2894 = vunpack.c.l.b16 %v2812
      %v2895 = vunpack.c.h.b16 %v2812
      %v2896 = vunpack.c.l.b16 %v2813
      %v2897 = vunpack.c.h.b16 %v2813
      %v2898 = vunpack.c.l.b16 %v2814
      %v2899 = vunpack.c.h.b16 %v2814
      %v2900 = vunpack.c.l.b16 %v2815
      %v2901 = vunpack.c.h.b16 %v2815
      %v2902 = vunpack.c.l.b16 %v2816
      %v2903 = vpack.c.b16 %v2846, %v2846
      %v2904 = vpack.c.b16 %v2847, %v2847
      %v2905 = vpack.c.b16 %v2848, %v2848
      %v2906 = vpack.c.b16 %v2849, %v2849
      %v2907 = vpack.c.b16 %v2850, %v2850
      %v2908 = vpack.c.b16 %v2851, %v2851
      %v2909 = vpack.c.b16 %v2852, %v2852
      %v2910 = vpack.c.b16 %v2853, %v2853
      %v2911 = vpack.c.b16 %v2854, %v2854
      %v2912 = vpack.c.b16 %v2855, %v2855
      %v2913 = vpack.c.b16 %v2856, %v2856
      %v2914 = vpack.c.b16 %v2857, %v2857
      %v2915 = vpack.c.b16 %v2858, %v2858
      %v2916 = vpack.c.b16 %v2859, %v2859
      %v2917 = vpack.c.b16 %v2860, %v2860
      %v2918 = vpack.c.b16 %v2861, %v2861
      %v2919 = vpack.c.b16 %v2862, %v2862
      %v2920 = vpack.c.b16 %v2863, %v2863
      %v2921 = vpack.c.b16 %v2864, %v2864
      %v2922 = vpack.c.b16 %v2865, %v2865
      %v2923 = vpack.c.b16 %v2866, %v2866
      %v2924 = vpack.c.b16 %v2867, %v2867
      %v2925 = vpack.c.b16 %v2868, %v2868
      %v2926 = vpack.c.b16 %v2869, %v2869
      %v2927 = vpack.c.b16 %v2870, %v2870
      %v2928 = vpack.c.b16 %v2871, %v2871
      %v2929 = vpack.c.b16 %v2872, %v2872
      %v2930 = vpack.c.b16 %v2873, %v2873
      %v2931 = vpack.c.b16 %v2874, %v2874
      %v2932 = vpack.c.b16 %v2875, %v2875
      %v2933 = vpack.c.b16 %v2876, %v2876
      %v2934 = vpack.c.b16 %v2877, %v2877
      %v2935 = vpack.c.b16 %v2878, %v2878
      %v2936 = vpack.c.b16 %v2879, %v2879
      %v2937 = vpack.c.b16 %v2880, %v2880
      %v2938 = vpack.c.b16 %v2881, %v2881
      %v2939 = vpack.c.b16 %v2882, %v2882
      %v2940 = vpack.c.b16 %v2883, %v2883
      %v2941 = vpack.c.b16 %v2884, %v2884
      %v2942 = vpack.c.b16 %v2885, %v2885
      %v2943 = vpack.c.b16 %v2886, %v2886
      %v2944 = vpack.c.b16 %v2887, %v2887
      %v2945 = vpack.c.b16 %v2888, %v2888
      %v2946 = vpack.c.b16 %v2889, %v2889
      %v2947 = vpack.c.b16 %v2890, %v2890
      %v2948 = vpack.c.b16 %v2891, %v2891
      %v2949 = vpack.c.b16 %v2892, %v2892
      %v2950 = vpack.c.b16 %v2893, %v2893
      %v2951 = vpack.c.b16 %v2894, %v2894
      %v2952 = vpack.c.b16 %v2895, %v2895
      %v2953 = vpack.c.b16 %v2896, %v2896
      %v2954 = vpack.c.b16 %v2897, %v2897
      %v2955 = vpack.c.b16 %v2898, %v2898
      %v2956 = vpack.c.b16 %v2899, %v2899
      %v2957 = vpack.c.b16 %v2900, %v2900
      %v2958 = vpack.c.b16 %v2901, %v2901
      %v2959 = vpack.c.b16 %v2902, %v2902
      %3017 = vst [vmem:[%s217] sm:$0xf] %v2903
      %3018 = vst [vmem:[%s217 + $0x4] sm:$0xf] %v2904
      %3019 = vst [vmem:[%s217 + $0x8] sm:$0xf] %v2905
      %3020 = vst [vmem:[%s217 + $0xc] sm:$0xf] %v2906
      %3021 = vst [vmem:[%s217 + $0x10] sm:$0xf] %v2907
      %3022 = vst [vmem:[%s217 + $0x14] sm:$0xf] %v2908
      %3023 = vst [vmem:[%s217 + $0x18] sm:$0xf] %v2909
      %3024 = vst [vmem:[%s217 + $0x1c] sm:$0xf] %v2910
      %3025 = vst [vmem:[%s217 + $0x20] sm:$0xf] %v2911
      %3026 = vst [vmem:[%s217 + $0x24] sm:$0xf] %v2912
      %3027 = vst [vmem:[%s217 + $0x28] sm:$0xf] %v2913
      %3028 = vst [vmem:[%s217 + $0x2c] sm:$0xf] %v2914
      %3029 = vst [vmem:[%s217 + $0x30] sm:$0xf] %v2915
      %3030 = vst [vmem:[%s217 + $0x34] sm:$0xf] %v2916
      %3031 = vst [vmem:[%s217 + $0x38] sm:$0xf] %v2917
      %3032 = vst [vmem:[%s217 + $0x3c] sm:$0xf] %v2918
      %3033 = vst [vmem:[%s217 + $0x40] sm:$0xf] %v2919
      %3034 = vst [vmem:[%s217 + $0x44] sm:$0xf] %v2920
      %3035 = vst [vmem:[%s217 + $0x48] sm:$0xf] %v2921
      %3036 = vst [vmem:[%s217 + $0x4c] sm:$0xf] %v2922
      %3037 = vst [vmem:[%s217 + $0x50] sm:$0xf] %v2923
      %3038 = vst [vmem:[%s217 + $0x54] sm:$0xf] %v2924
      %3039 = vst [vmem:[%s217 + $0x58] sm:$0xf] %v2925
      %3040 = vst [vmem:[%s217 + $0x5c] sm:$0xf] %v2926
      %3041 = vst [vmem:[%s217 + $0x60] sm:$0xf] %v2927
      %3042 = vst [vmem:[%s217 + $0x64] sm:$0xf] %v2928
      %3043 = vst [vmem:[%s217 + $0x68] sm:$0xf] %v2929
      %3044 = vst [vmem:[%s217 + $0x6c] sm:$0xf] %v2930
      %3045 = vst [vmem:[%s217 + $0x70] sm:$0xf] %v2931
      %3046 = vst [vmem:[%s217 + $0x74] sm:$0xf] %v2932
      %3047 = vst [vmem:[%s217 + $0x78] sm:$0xf] %v2933
      %3048 = vst [vmem:[%s217 + $0x7c] sm:$0xf] %v2934
      %3049 = vst [vmem:[%s217 + $0x80] sm:$0xf] %v2935
      %3050 = vst [vmem:[%s217 + $0x84] sm:$0xf] %v2936
      %3051 = vst [vmem:[%s217 + $0x88] sm:$0xf] %v2937
      %3052 = vst [vmem:[%s217 + $0x8c] sm:$0xf] %v2938
      %3053 = vst [vmem:[%s217 + $0x90] sm:$0xf] %v2939
      %3054 = vst [vmem:[%s217 + $0x94] sm:$0xf] %v2940
      %3055 = vst [vmem:[%s217 + $0x98] sm:$0xf] %v2941
      %3056 = vst [vmem:[%s217 + $0x9c] sm:$0xf] %v2942
      %3057 = vst [vmem:[%s217 + $0xa0] sm:$0xf] %v2943
      %3058 = vst [vmem:[%s217 + $0xa4] sm:$0xf] %v2944
      %3059 = vst [vmem:[%s217 + $0xa8] sm:$0xf] %v2945
      %3060 = vst [vmem:[%s217 + $0xac] sm:$0xf] %v2946
      %3061 = vst [vmem:[%s217 + $0xb0] sm:$0xf] %v2947
      %3062 = vst [vmem:[%s217 + $0xb4] sm:$0xf] %v2948
      %3063 = vst [vmem:[%s217 + $0xb8] sm:$0xf] %v2949
      %3064 = vst [vmem:[%s217 + $0xbc] sm:$0xf] %v2950
      %3065 = vst [vmem:[%s217 + $0xc0] sm:$0xf] %v2951
      %3066 = vst [vmem:[%s217 + $0xc4] sm:$0xf] %v2952
      %3067 = vst [vmem:[%s217 + $0xc8] sm:$0xf] %v2953
      %3068 = vst [vmem:[%s217 + $0xcc] sm:$0xf] %v2954
      %3069 = vst [vmem:[%s217 + $0xd0] sm:$0xf] %v2955
      %3070 = vst [vmem:[%s217 + $0xd4] sm:$0xf] %v2956
      %3071 = vst [vmem:[%s217 + $0xd8] sm:$0xf] %v2957
      %3072 = vst [vmem:[%s217 + $0xdc] sm:$0xf] %v2958
      %3073 = vst [vmem:[%s217 + $0xe0] sm:$0x1] %v2959
      %p3074 = scmp.lt.s32.totalorder %s15, 1
      %s3075 = scalar_select %p3074, %s15, 1
      %s3076 = smul.addr %s3075, 57
      %s3077 = smul.addr %s3076, 4
      %s3078 = scalar_lea.vmem %s4, %s3077
      // Predicated region
      $region37: #{fwd.5} parent=35 // pred_check
        %p3079 = pneg %p127
      $region38: #{fwd.5} parent=35 // pred_check_branch
        %3081 = sbr.rel (%p3079) target = $region40
      $region39: #{fwd.5} parent=35 // pred_region
        _
      $region40: #{fwd.5} parent=35 // pred_fallthru
        _
    $region36: #{fwd.5} parent=5 // pred_fallthru
      _
    %p3082 = scmp.le.s32.totalorder 2, %s10
    // Predicated region
    $region41: #{fwd.5} parent=5 // pred_check
      %p3083 = pneg %p3082
    $region42: #{fwd.5} parent=5 // pred_check_branch
      %3085 = sbr.rel (%p3083) target = $region44
    $region43: #{fwd.5} parent=5 // pred_region
      %s3086 = ssub.s32 %s10, 2
      // Predicated region
      $region45: #{fwd.5} parent=43 // pred_check
        %p3087 = pneg %p133
      $region46: #{fwd.5} parent=43 // pred_check_branch
        %3089 = sbr.rel (%p3087) target = $region48
      $region47: #{fwd.5} parent=43 // pred_region
        %p3090 = scmp.lt.s32.totalorder %s16, 1
        %s3091 = scalar_select %p3090, %s16, 1
        %s3092 = smul.addr %s3091, 57
        %s3093 = smul.addr %s3092, 4
        %s3094 = scalar_lea.vmem %s4, %s3093
      $region48: #{fwd.5} parent=43 // pred_fallthru
        _
    $region44: #{fwd.5} parent=5 // pred_fallthru
      _
  $region6: #{fwd.5} parent=0 // loop_footer
    %s14 = sadd.s32 1, %s10
  $region7: #{fwd.5} parent=0 // loop_footer_branch
    %9 = sbr.rel target = $region3
  $region8: #{fwd.5} parent=0 // loop_exit
    _

// kernel: fwd.4
$region0: #{fwd.4}
  #allocation0 [shape = 'u32[]', space=smem, size = 0x4, offset = 0x4, fixed_abs, tag = 'smem constant byte address 0x4 - core index']
  #allocation1 [shape = 'u32[144,128]{1,0:T(1,128)}', space=vmem, size = 0x12000, scoped, tag = 'internal scratch']
  %s0 = inlined_call_operand.vmem [shape: bf16[2,450,640], index: 0, kind: input, shape index: {}]
  %s1 = inlined_call_operand.vmem [shape: bf16[640,128], index: 1, kind: input, shape index: {}]
  %s2 = inlined_call_operand.vmem [shape: f32[1,128], index: 2, kind: input, shape index: {}]
  %s3 = inlined_call_operand.vmem [shape: bf16[2,450,128], index: 3, kind: output, shape index: {}]
  %s4 = sld [smem:[#allocation0]]
  $region45: #{fwd.4} parent=0
    _
  %s6 = ssub.s32 1, %s4
  %s7 = scalar_select 0, %s6, %s4
  loop: start=0, step=1, limit=4
  $region2: #{fwd.4} parent=0 // loop_pre_header
    _
  $region3: #{fwd.4} parent=0 // loop_header
    %s9 = sphi 0, %s13
    %p10 = scmp.ge.s32.totalorder %s9, 4
    %s19 = sphi 0, %s21
    %s22 = sphi 0, %s19
    %s23 = sphi 0, %s22
    %s39 = sphi 0, %s23
    %s43 = sphi 0, %s43
    %s45 = sphi 0, %s43
    %s46 = sphi 0, %s45
    %s60 = sphi 0, %s46
    %s64 = sphi 0, %s64
    %s66 = sphi 0, %s64
    %s67 = sphi 0, %s66
    %s81 = sphi 0, %s67
    %s87 = sphi 0, %s89
    %s90 = sphi 0, %s87
    %s91 = sphi 0, %s90
    %s107 = sphi 0, %s91
  $region4: #{fwd.4} parent=0 // loop_header_branch
    %12 = sbr.rel (%p10) target = $region8
  $region5: #{fwd.4} parent=0 // loop_body
    %s14 = ssub.s32 %s9, 1
    %s15 = ssub.s32 %s9, 2
    %s16 = sadd.s32 %s9, 1
    %s17 = ssub.s32 %s9, %s16
    %p18 = scmp.eq.s32.totalorder %s17, 0
    %s20 = sadd.s32 %s19, 1
    %s21 = scalar_select %p18, %s19, %s20
    %p24 = pneg %p18
    %p25 = scmp.eq.s32.totalorder %s9, 1
    %p26 = por %p24, %p25
    %p27 = scmp.ne.s32.totalorder %s19, %s22
    %p28 = scmp.eq.s32.totalorder %s9, 0
    %p29 = por %p27, %p28
    %p30 = scmp.ne.s32.totalorder %s19, %s22
    %p31 = scmp.eq.s32.totalorder %s14, 1
    %p32 = por %p30, %p31
    %p33 = scmp.ne.s32.totalorder %s22, %s23
    %p34 = scmp.eq.s32.totalorder %s14, 0
    %p35 = por %p33, %p34
    %p36 = scmp.ne.s32.totalorder %s22, %s23
    %p37 = scmp.eq.s32.totalorder %s15, 1
    %p38 = por %p36, %p37
    %p40 = scmp.ne.s32.totalorder %s23, %s39
    %p41 = scmp.eq.s32.totalorder %s15, 0
    %p42 = por %p40, %p41
    %s44 = sadd.s32 %s43, 1
    %p47 = scmp.eq.s32.totalorder %s9, 1
    %p48 = scmp.ne.s32.totalorder %s43, %s45
    %p49 = scmp.eq.s32.totalorder %s9, 0
    %p50 = por %p48, %p49
    %p51 = scmp.ne.s32.totalorder %s43, %s45
    %p52 = scmp.eq.s32.totalorder %s14, 1
    %p53 = por %p51, %p52
    %p54 = scmp.ne.s32.totalorder %s45, %s46
    %p55 = scmp.eq.s32.totalorder %s14, 0
    %p56 = por %p54, %p55
    %p57 = scmp.ne.s32.totalorder %s45, %s46
    %p58 = scmp.eq.s32.totalorder %s15, 1
    %p59 = por %p57, %p58
    %p61 = scmp.ne.s32.totalorder %s46, %s60
    %p62 = scmp.eq.s32.totalorder %s15, 0
    %p63 = por %p61, %p62
    %s65 = sadd.s32 %s64, 1
    %p68 = scmp.eq.s32.totalorder %s9, 1
    %p69 = scmp.ne.s32.totalorder %s64, %s66
    %p70 = scmp.eq.s32.totalorder %s9, 0
    %p71 = por %p69, %p70
    %p72 = scmp.ne.s32.totalorder %s64, %s66
    %p73 = scmp.eq.s32.totalorder %s14, 1
    %p74 = por %p72, %p73
    %p75 = scmp.ne.s32.totalorder %s66, %s67
    %p76 = scmp.eq.s32.totalorder %s14, 0
    %p77 = por %p75, %p76
    %p78 = scmp.ne.s32.totalorder %s66, %s67
    %p79 = scmp.eq.s32.totalorder %s15, 1
    %p80 = por %p78, %p79
    %p82 = scmp.ne.s32.totalorder %s67, %s81
    %p83 = scmp.eq.s32.totalorder %s15, 0
    %p84 = por %p82, %p83
    %s85 = ssub.s32 %s9, %s16
    %p86 = scmp.eq.s32.totalorder %s85, 0
    %s88 = sadd.s32 %s87, 1
    %s89 = scalar_select %p86, %s87, %s88
    %p92 = pneg %p86
    %p93 = scmp.eq.s32.totalorder %s9, 1
    %p94 = por %p92, %p93
    %p95 = scmp.ne.s32.totalorder %s87, %s90
    %p96 = scmp.eq.s32.totalorder %s9, 0
    %p97 = por %p95, %p96
    %p98 = scmp.ne.s32.totalorder %s87, %s90
    %p99 = scmp.eq.s32.totalorder %s14, 1
    %p100 = por %p98, %p99
    %p101 = scmp.ne.s32.totalorder %s90, %s91
    %p102 = scmp.eq.s32.totalorder %s14, 0
    %p103 = por %p101, %p102
    %p104 = scmp.ne.s32.totalorder %s90, %s91
    %p105 = scmp.eq.s32.totalorder %s15, 1
    %p106 = por %p104, %p105
    %p108 = scmp.ne.s32.totalorder %s91, %s107
    %p109 = scmp.eq.s32.totalorder %s15, 0
    %p110 = por %p108, %p109
    %p111 = scmp.le.s32.totalorder 1, %s9
    %p112 = scmp.lt.s32.totalorder %s9, 3
    %p113 = pnand %p111, %p112
    %p114 = pneg %p113
    // Predicated region
    $region9: #{fwd.4} parent=5 // pred_check
      _
    $region10: #{fwd.4} parent=5 // pred_check_branch
      %116 = sbr.rel (%p113) target = $region12
    $region11: #{fwd.4} parent=5 // pred_region
      %s117 = ssub.s32 %s9, 1
      // Predicated region
      $region13: #{fwd.4} parent=11 // pred_check
        %p118 = pneg %p56
      $region14: #{fwd.4} parent=11 // pred_check_branch
        %120 = sbr.rel (%p118) target = $region16
      $region15: #{fwd.4} parent=11 // pred_region
        _
      $region16: #{fwd.4} parent=11 // pred_fallthru
        _
      // Predicated region
      $region17: #{fwd.4} parent=11 // pred_check
        %p121 = pneg %p77
      $region18: #{fwd.4} parent=11 // pred_check_branch
        %123 = sbr.rel (%p121) target = $region20
      $region19: #{fwd.4} parent=11 // pred_region
        _
      $region20: #{fwd.4} parent=11 // pred_fallthru
        _
    $region12: #{fwd.4} parent=5 // pred_fallthru
      _
    %p124 = scmp.lt.s32.totalorder %s9, 2
    // Predicated region
    $region21: #{fwd.4} parent=5 // pred_check
      %p125 = pneg %p124
    $region22: #{fwd.4} parent=5 // pred_check_branch
      %127 = sbr.rel (%p125) target = $region24
    $region23: #{fwd.4} parent=5 // pred_region
      // Predicated region
      $region25: #{fwd.4} parent=23 // pred_check
        %p128 = pneg %p29
      $region26: #{fwd.4} parent=23 // pred_check_branch
        %130 = sbr.rel (%p128) target = $region28
      $region27: #{fwd.4} parent=23 // pred_region
        %p131 = scmp.lt.s32.totalorder %s9, 1
        %s132 = scalar_select %p131, %s9, 1
        %s133 = smul.addr %s132, 285
        %s134 = smul.addr %s133, 4
        %s135 = scalar_lea.vmem %s0, %s134
      $region28: #{fwd.4} parent=23 // pred_fallthru
        _
    $region24: #{fwd.4} parent=5 // pred_fallthru
      _
    %p136 = scmp.le.s32.totalorder 1, %s9
    %p137 = scmp.lt.s32.totalorder %s9, 3
    %p138 = pnand %p136, %p137
    %p139 = pneg %p138
    // Predicated region
    $region29: #{fwd.4} parent=5 // pred_check
      _
    $region30: #{fwd.4} parent=5 // pred_check_branch
      %141 = sbr.rel (%p138) target = $region32
    $region31: #{fwd.4} parent=5 // pred_region
      %s142 = ssub.s32 %s9, 1
      %p143 = scmp.lt.s32.totalorder %s14, 1
      %s144 = scalar_select %p143, %s14, 1
      %s145 = smul.addr %s144, 285
      %s146 = smul.addr %s145, 4
      %s147 = scalar_lea.vmem %s0, %s146
      %p148 = pneg %p35
      %p149 = pneg %p32
      %p150 = pneg %p56
      %p151 = pneg %p53
      %p152 = pneg %p77
      %p153 = pneg %p74
      %p154 = pneg %p103
      %p155 = pneg %p100
      %p156 = scmp.lt.s32.totalorder %s14, 1
      %s157 = scalar_select %p156, %s14, 1
      %s158 = smul.addr %s157, 57
      %s159 = smul.addr %s158, 4
      %s160 = scalar_lea.vmem %s3, %s159
      %p161 = scmp.lt.s32.totalorder %s14, 1
      %s162 = scalar_select %p161, %s14, 1
      %s163 = smul.addr %s162, 285
      %s164 = smul.addr %s163, 4
      %s165 = scalar_lea.vmem %s0, %s164
      %p166 = scmp.lt.s32.totalorder %s14, 1
      %s167 = scalar_select %p166, %s14, 1
      %s168 = smul.addr %s167, 57
      %s169 = smul.addr %s168, 4
      %s170 = scalar_lea.vmem %s3, %s169
      %v172 = vld [vmem:[%s165] sm:$0xff]
      %v173 = vld [vmem:[%s165 + $0x8] sm:$0xff]
      %v174 = vld [vmem:[%s165 + $0x10] sm:$0xf]
      %v175 = vld [vmem:[%s165 + $0x14] sm:$0xff]
      %v176 = vld [vmem:[%s165 + $0x1c] sm:$0xff]
      %v177 = vld [vmem:[%s165 + $0x24] sm:$0xf]
      %v178 = vld [vmem:[%s165 + $0x28] sm:$0xff]
      %v179 = vld [vmem:[%s165 + $0x30] sm:$0xff]
      %v180 = vld [vmem:[%s165 + $0x38] sm:$0xf]
      %v181 = vld [vmem:[%s165 + $0x3c] sm:$0xff]
      %v182 = vld [vmem:[%s165 + $0x44] sm:$0xff]
      %v183 = vld [vmem:[%s165 + $0x4c] sm:$0xf]
      %v184 = vld [vmem:[%s165 + $0x50] sm:$0xff]
      %v185 = vld [vmem:[%s165 + $0x58] sm:$0xff]
      %v186 = vld [vmem:[%s165 + $0x60] sm:$0xf]
      %v187 = vld [vmem:[%s165 + $0x64] sm:$0xff]
      %v188 = vld [vmem:[%s165 + $0x6c] sm:$0xff]
      %v189 = vld [vmem:[%s165 + $0x74] sm:$0xf]
      %v190 = vld [vmem:[%s165 + $0x78] sm:$0xff]
      %v191 = vld [vmem:[%s165 + $0x80] sm:$0xff]
      %v192 = vld [vmem:[%s165 + $0x88] sm:$0xf]
      %v193 = vld [vmem:[%s165 + $0x8c] sm:$0xff]
      %v194 = vld [vmem:[%s165 + $0x94] sm:$0xff]
      %v195 = vld [vmem:[%s165 + $0x9c] sm:$0xf]
      %v196 = vld [vmem:[%s165 + $0xa0] sm:$0xff]
      %v197 = vld [vmem:[%s165 + $0xa8] sm:$0xff]
      %v198 = vld [vmem:[%s165 + $0xb0] sm:$0xf]
      %v199 = vld [vmem:[%s165 + $0xb4] sm:$0xff]
      %v200 = vld [vmem:[%s165 + $0xbc] sm:$0xff]
      %v201 = vld [vmem:[%s165 + $0xc4] sm:$0xf]
      %v202 = vld [vmem:[%s165 + $0xc8] sm:$0xff]
      %v203 = vld [vmem:[%s165 + $0xd0] sm:$0xff]
      %v204 = vld [vmem:[%s165 + $0xd8] sm:$0xf]
      %v205 = vld [vmem:[%s165 + $0xdc] sm:$0xff]
      %v206 = vld [vmem:[%s165 + $0xe4] sm:$0xff]
      %v207 = vld [vmem:[%s165 + $0xec] sm:$0xf]
      %v208 = vld [vmem:[%s165 + $0xf0] sm:$0xff]
      %v209 = vld [vmem:[%s165 + $0xf8] sm:$0xff]
      %v210 = vld [vmem:[%s165 + $0x100] sm:$0xf]
      %v211 = vld [vmem:[%s165 + $0x104] sm:$0xff]
      %v212 = vld [vmem:[%s165 + $0x10c] sm:$0xff]
      %v213 = vld [vmem:[%s165 + $0x114] sm:$0xf]
      %v214 = vld [vmem:[%s165 + $0x118] sm:$0xff]
      %v215 = vld [vmem:[%s165 + $0x120] sm:$0xff]
      %v216 = vld [vmem:[%s165 + $0x128] sm:$0xf]
      %v217 = vld [vmem:[%s165 + $0x12c] sm:$0xff]
      %v218 = vld [vmem:[%s165 + $0x134] sm:$0xff]
      %v219 = vld [vmem:[%s165 + $0x13c] sm:$0xf]
      %v220 = vld [vmem:[%s165 + $0x140] sm:$0xff]
      %v221 = vld [vmem:[%s165 + $0x148] sm:$0xff]
      %v222 = vld [vmem:[%s165 + $0x150] sm:$0xf]
      %v223 = vld [vmem:[%s165 + $0x154] sm:$0xff]
      %v224 = vld [vmem:[%s165 + $0x15c] sm:$0xff]
      %v225 = vld [vmem:[%s165 + $0x164] sm:$0xf]
      %v226 = vld [vmem:[%s165 + $0x168] sm:$0xff]
      %v227 = vld [vmem:[%s165 + $0x170] sm:$0xff]
      %v228 = vld [vmem:[%s165 + $0x178] sm:$0xf]
      %v229 = vld [vmem:[%s165 + $0x17c] sm:$0xff]
      %v230 = vld [vmem:[%s165 + $0x184] sm:$0xff]
      %v231 = vld [vmem:[%s165 + $0x18c] sm:$0xf]
      %v232 = vld [vmem:[%s165 + $0x190] sm:$0xff]
      %v233 = vld [vmem:[%s165 + $0x198] sm:$0xff]
      %v234 = vld [vmem:[%s165 + $0x1a0] sm:$0xf]
      %v235 = vld [vmem:[%s165 + $0x1a4] sm:$0xff]
      %v236 = vld [vmem:[%s165 + $0x1ac] sm:$0xff]
      %v237 = vld [vmem:[%s165 + $0x1b4] sm:$0xf]
      %v238 = vld [vmem:[%s165 + $0x1b8] sm:$0xff]
      %v239 = vld [vmem:[%s165 + $0x1c0] sm:$0xff]
      %v240 = vld [vmem:[%s165 + $0x1c8] sm:$0xf]
      %v241 = vld [vmem:[%s165 + $0x1cc] sm:$0xff]
      %v242 = vld [vmem:[%s165 + $0x1d4] sm:$0xff]
      %v243 = vld [vmem:[%s165 + $0x1dc] sm:$0xf]
      %v244 = vld [vmem:[%s165 + $0x1e0] sm:$0xff]
      %v245 = vld [vmem:[%s165 + $0x1e8] sm:$0xff]
      %v246 = vld [vmem:[%s165 + $0x1f0] sm:$0xf]
      %v247 = vld [vmem:[%s165 + $0x1f4] sm:$0xff]
      %v248 = vld [vmem:[%s165 + $0x1fc] sm:$0xff]
      %v249 = vld [vmem:[%s165 + $0x204] sm:$0xf]
      %v250 = vld [vmem:[%s165 + $0x208] sm:$0xff]
      %v251 = vld [vmem:[%s165 + $0x210] sm:$0xff]
      %v252 = vld [vmem:[%s165 + $0x218] sm:$0xf]
      %v253 = vld [vmem:[%s165 + $0x21c] sm:$0xff]
      %v254 = vld [vmem:[%s165 + $0x224] sm:$0xff]
      %v255 = vld [vmem:[%s165 + $0x22c] sm:$0xf]
      %v256 = vld [vmem:[%s165 + $0x230] sm:$0xff]
      %v257 = vld [vmem:[%s165 + $0x238] sm:$0xff]
      %v258 = vld [vmem:[%s165 + $0x240] sm:$0xf]
      %v259 = vld [vmem:[%s165 + $0x244] sm:$0xff]
      %v260 = vld [vmem:[%s165 + $0x24c] sm:$0xff]
      %v261 = vld [vmem:[%s165 + $0x254] sm:$0xf]
      %v262 = vld [vmem:[%s165 + $0x258] sm:$0xff]
      %v263 = vld [vmem:[%s165 + $0x260] sm:$0xff]
      %v264 = vld [vmem:[%s165 + $0x268] sm:$0xf]
      %v265 = vld [vmem:[%s165 + $0x26c] sm:$0xff]
      %v266 = vld [vmem:[%s165 + $0x274] sm:$0xff]
      %v267 = vld [vmem:[%s165 + $0x27c] sm:$0xf]
      %v268 = vld [vmem:[%s165 + $0x280] sm:$0xff]
      %v269 = vld [vmem:[%s165 + $0x288] sm:$0xff]
      %v270 = vld [vmem:[%s165 + $0x290] sm:$0xf]
      %v271 = vld [vmem:[%s165 + $0x294] sm:$0xff]
      %v272 = vld [vmem:[%s165 + $0x29c] sm:$0xff]
      %v273 = vld [vmem:[%s165 + $0x2a4] sm:$0xf]
      %v274 = vld [vmem:[%s165 + $0x2a8] sm:$0xff]
      %v275 = vld [vmem:[%s165 + $0x2b0] sm:$0xff]
      %v276 = vld [vmem:[%s165 + $0x2b8] sm:$0xf]
      %v277 = vld [vmem:[%s165 + $0x2bc] sm:$0xff]
      %v278 = vld [vmem:[%s165 + $0x2c4] sm:$0xff]
      %v279 = vld [vmem:[%s165 + $0x2cc] sm:$0xf]
      %v280 = vld [vmem:[%s165 + $0x2d0] sm:$0xff]
      %v281 = vld [vmem:[%s165 + $0x2d8] sm:$0xff]
      %v282 = vld [vmem:[%s165 + $0x2e0] sm:$0xf]
      %v283 = vld [vmem:[%s165 + $0x2e4] sm:$0xff]
      %v284 = vld [vmem:[%s165 + $0x2ec] sm:$0xff]
      %v285 = vld [vmem:[%s165 + $0x2f4] sm:$0xf]
      %v286 = vld [vmem:[%s165 + $0x2f8] sm:$0xff]
      %v287 = vld [vmem:[%s165 + $0x300] sm:$0xff]
      %v288 = vld [vmem:[%s165 + $0x308] sm:$0xf]
      %v289 = vld [vmem:[%s165 + $0x30c] sm:$0xff]
      %v290 = vld [vmem:[%s165 + $0x314] sm:$0xff]
      %v291 = vld [vmem:[%s165 + $0x31c] sm:$0xf]
      %v292 = vld [vmem:[%s165 + $0x320] sm:$0xff]
      %v293 = vld [vmem:[%s165 + $0x328] sm:$0xff]
      %v294 = vld [vmem:[%s165 + $0x330] sm:$0xf]
      %v295 = vld [vmem:[%s165 + $0x334] sm:$0xff]
      %v296 = vld [vmem:[%s165 + $0x33c] sm:$0xff]
      %v297 = vld [vmem:[%s165 + $0x344] sm:$0xf]
      %v298 = vld [vmem:[%s165 + $0x348] sm:$0xff]
      %v299 = vld [vmem:[%s165 + $0x350] sm:$0xff]
      %v300 = vld [vmem:[%s165 + $0x358] sm:$0xf]
      %v301 = vld [vmem:[%s165 + $0x35c] sm:$0xff]
      %v302 = vld [vmem:[%s165 + $0x364] sm:$0xff]
      %v303 = vld [vmem:[%s165 + $0x36c] sm:$0xf]
      %v304 = vld [vmem:[%s165 + $0x370] sm:$0xff]
      %v305 = vld [vmem:[%s165 + $0x378] sm:$0xff]
      %v306 = vld [vmem:[%s165 + $0x380] sm:$0xf]
      %v307 = vld [vmem:[%s165 + $0x384] sm:$0xff]
      %v308 = vld [vmem:[%s165 + $0x38c] sm:$0xff]
      %v309 = vld [vmem:[%s165 + $0x394] sm:$0xf]
      %v310 = vld [vmem:[%s165 + $0x398] sm:$0xff]
      %v311 = vld [vmem:[%s165 + $0x3a0] sm:$0xff]
      %v312 = vld [vmem:[%s165 + $0x3a8] sm:$0xf]
      %v313 = vld [vmem:[%s165 + $0x3ac] sm:$0xff]
      %v314 = vld [vmem:[%s165 + $0x3b4] sm:$0xff]
      %v315 = vld [vmem:[%s165 + $0x3bc] sm:$0xf]
      %v316 = vld [vmem:[%s165 + $0x3c0] sm:$0xff]
      %v317 = vld [vmem:[%s165 + $0x3c8] sm:$0xff]
      %v318 = vld [vmem:[%s165 + $0x3d0] sm:$0xf]
      %v319 = vld [vmem:[%s165 + $0x3d4] sm:$0xff]
      %v320 = vld [vmem:[%s165 + $0x3dc] sm:$0xff]
      %v321 = vld [vmem:[%s165 + $0x3e4] sm:$0xf]
      %v322 = vld [vmem:[%s165 + $0x3e8] sm:$0xff]
      %v323 = vld [vmem:[%s165 + $0x3f0] sm:$0xff]
      %v324 = vld [vmem:[%s165 + $0x3f8] sm:$0xf]
      %v325 = vld [vmem:[%s165 + $0x3fc] sm:$0xff]
      %v326 = vld [vmem:[%s165 + $0x404] sm:$0xff]
      %v327 = vld [vmem:[%s165 + $0x40c] sm:$0xf]
      %v328 = vld [vmem:[%s165 + $0x410] sm:$0xff]
      %v329 = vld [vmem:[%s165 + $0x418] sm:$0xff]
      %v330 = vld [vmem:[%s165 + $0x420] sm:$0xf]
      %v331 = vld [vmem:[%s165 + $0x424] sm:$0xff]
      %v332 = vld [vmem:[%s165 + $0x42c] sm:$0xff]
      %v333 = vld [vmem:[%s165 + $0x434] sm:$0xf]
      %v334 = vld [vmem:[%s165 + $0x438] sm:$0xff]
      %v335 = vld [vmem:[%s165 + $0x440] sm:$0xff]
      %v336 = vld [vmem:[%s165 + $0x448] sm:$0xf]
      %v337 = vld [vmem:[%s165 + $0x44c] sm:$0xff]
      %v338 = vld [vmem:[%s165 + $0x454] sm:$0xff]
      %v339 = vld [vmem:[%s165 + $0x45c] sm:$0xf]
      %v340 = vld [vmem:[%s165 + $0x460] sm:$0x11]
      %v341 = vld [vmem:[%s165 + $0x468] sm:$0x11]
      %v342 = vld [vmem:[%s165 + $0x470] sm:$0x1]
      %v343 = vld [vmem:[%s1] sm:$0xf]
      %v344 = vld [vmem:[%s1 + $0x4] sm:$0xf]
      %v345 = vld [vmem:[%s1 + $0x8] sm:$0xf]
      %v346 = vld [vmem:[%s1 + $0xc] sm:$0xf]
      %v347 = vld [vmem:[%s1 + $0x10] sm:$0xf]
      %v348 = vld [vmem:[%s1 + $0x14] sm:$0xf]
      %v349 = vld [vmem:[%s1 + $0x18] sm:$0xf]
      %v350 = vld [vmem:[%s1 + $0x1c] sm:$0xf]
      %v351 = vld [vmem:[%s1 + $0x20] sm:$0xf]
      %v352 = vld [vmem:[%s1 + $0x24] sm:$0xf]
      %v353 = vld [vmem:[%s1 + $0x28] sm:$0xf]
      %v354 = vld [vmem:[%s1 + $0x2c] sm:$0xf]
      %v355 = vld [vmem:[%s1 + $0x30] sm:$0xf]
      %v356 = vld [vmem:[%s1 + $0x34] sm:$0xf]
      %v357 = vld [vmem:[%s1 + $0x38] sm:$0xf]
      %v358 = vld [vmem:[%s1 + $0x3c] sm:$0xf]
      %v359 = vld [vmem:[%s1 + $0x40] sm:$0xf]
      %v360 = vld [vmem:[%s1 + $0x44] sm:$0xf]
      %v361 = vld [vmem:[%s1 + $0x48] sm:$0xf]
      %v362 = vld [vmem:[%s1 + $0x4c] sm:$0xf]
      %v363 = vld [vmem:[%s1 + $0x50] sm:$0xf]
      %v364 = vld [vmem:[%s1 + $0x54] sm:$0xf]
      %v365 = vld [vmem:[%s1 + $0x58] sm:$0xf]
      %v366 = vld [vmem:[%s1 + $0x5c] sm:$0xf]
      %v367 = vld [vmem:[%s1 + $0x60] sm:$0xf]
      %v368 = vld [vmem:[%s1 + $0x64] sm:$0xf]
      %v369 = vld [vmem:[%s1 + $0x68] sm:$0xf]
      %v370 = vld [vmem:[%s1 + $0x6c] sm:$0xf]
      %v371 = vld [vmem:[%s1 + $0x70] sm:$0xf]
      %v372 = vld [vmem:[%s1 + $0x74] sm:$0xf]
      %v373 = vld [vmem:[%s1 + $0x78] sm:$0xf]
      %v374 = vld [vmem:[%s1 + $0x7c] sm:$0xf]
      %v375 = vld [vmem:[%s1 + $0x80] sm:$0xf]
      %v376 = vld [vmem:[%s1 + $0x84] sm:$0xf]
      %v377 = vld [vmem:[%s1 + $0x88] sm:$0xf]
      %v378 = vld [vmem:[%s1 + $0x8c] sm:$0xf]
      %v379 = vld [vmem:[%s1 + $0x90] sm:$0xf]
      %v380 = vld [vmem:[%s1 + $0x94] sm:$0xf]
      %v381 = vld [vmem:[%s1 + $0x98] sm:$0xf]
      %v382 = vld [vmem:[%s1 + $0x9c] sm:$0xf]
      %v383 = vld [vmem:[%s1 + $0xa0] sm:$0xf]
      %v384 = vld [vmem:[%s1 + $0xa4] sm:$0xf]
      %v385 = vld [vmem:[%s1 + $0xa8] sm:$0xf]
      %v386 = vld [vmem:[%s1 + $0xac] sm:$0xf]
      %v387 = vld [vmem:[%s1 + $0xb0] sm:$0xf]
      %v388 = vld [vmem:[%s1 + $0xb4] sm:$0xf]
      %v389 = vld [vmem:[%s1 + $0xb8] sm:$0xf]
      %v390 = vld [vmem:[%s1 + $0xbc] sm:$0xf]
      %v391 = vld [vmem:[%s1 + $0xc0] sm:$0xf]
      %v392 = vld [vmem:[%s1 + $0xc4] sm:$0xf]
      %v393 = vld [vmem:[%s1 + $0xc8] sm:$0xf]
      %v394 = vld [vmem:[%s1 + $0xcc] sm:$0xf]
      %v395 = vld [vmem:[%s1 + $0xd0] sm:$0xf]
      %v396 = vld [vmem:[%s1 + $0xd4] sm:$0xf]
      %v397 = vld [vmem:[%s1 + $0xd8] sm:$0xf]
      %v398 = vld [vmem:[%s1 + $0xdc] sm:$0xf]
      %v399 = vld [vmem:[%s1 + $0xe0] sm:$0xf]
      %v400 = vld [vmem:[%s1 + $0xe4] sm:$0xf]
      %v401 = vld [vmem:[%s1 + $0xe8] sm:$0xf]
      %v402 = vld [vmem:[%s1 + $0xec] sm:$0xf]
      %v403 = vld [vmem:[%s1 + $0xf0] sm:$0xf]
      %v404 = vld [vmem:[%s1 + $0xf4] sm:$0xf]
      %v405 = vld [vmem:[%s1 + $0xf8] sm:$0xf]
      %v406 = vld [vmem:[%s1 + $0xfc] sm:$0xf]
      %v407 = vld [vmem:[%s1 + $0x100] sm:$0xf]
      %v408 = vld [vmem:[%s1 + $0x104] sm:$0xf]
      %v409 = vld [vmem:[%s1 + $0x108] sm:$0xf]
      %v410 = vld [vmem:[%s1 + $0x10c] sm:$0xf]
      %v411 = vld [vmem:[%s1 + $0x110] sm:$0xf]
      %v412 = vld [vmem:[%s1 + $0x114] sm:$0xf]
      %v413 = vld [vmem:[%s1 + $0x118] sm:$0xf]
      %v414 = vld [vmem:[%s1 + $0x11c] sm:$0xf]
      %v415 = vld [vmem:[%s1 + $0x120] sm:$0xf]
      %v416 = vld [vmem:[%s1 + $0x124] sm:$0xf]
      %v417 = vld [vmem:[%s1 + $0x128] sm:$0xf]
      %v418 = vld [vmem:[%s1 + $0x12c] sm:$0xf]
      %v419 = vld [vmem:[%s1 + $0x130] sm:$0xf]
      %v420 = vld [vmem:[%s1 + $0x134] sm:$0xf]
      %v421 = vld [vmem:[%s1 + $0x138] sm:$0xf]
      %v422 = vld [vmem:[%s1 + $0x13c] sm:$0xf]
      %v423 = vld [vmem:[%s2] sm:$0x1]
      %v425 = vlaneseq
      %v426 = vshrl.u32 %v425, 7
      %v427 = vsub.s32 0, %v426
      %v428 = vrot.slane %v423, %v427
      %v601 = vunpack.c.l.b16 %v172
      %v602 = vunpack.c.h.b16 %v172
      %v603 = vunpack.c.l.b16 %v173
      %v604 = vunpack.c.h.b16 %v173
      %v605 = vunpack.c.l.b16 %v174
      %v606 = vunpack.c.l.b16 %v175
      %v607 = vunpack.c.h.b16 %v175
      %v608 = vunpack.c.l.b16 %v176
      %v609 = vunpack.c.h.b16 %v176
      %v610 = vunpack.c.l.b16 %v177
      %v611 = vunpack.c.l.b16 %v178
      %v612 = vunpack.c.h.b16 %v178
      %v613 = vunpack.c.l.b16 %v179
      %v614 = vunpack.c.h.b16 %v179
      %v615 = vunpack.c.l.b16 %v180
      %v616 = vunpack.c.l.b16 %v181
      %v617 = vunpack.c.h.b16 %v181
      %v618 = vunpack.c.l.b16 %v182
      %v619 = vunpack.c.h.b16 %v182
      %v620 = vunpack.c.l.b16 %v183
      %v621 = vunpack.c.l.b16 %v184
      %v622 = vunpack.c.h.b16 %v184
      %v623 = vunpack.c.l.b16 %v185
      %v624 = vunpack.c.h.b16 %v185
      %v625 = vunpack.c.l.b16 %v186
      %v626 = vunpack.c.l.b16 %v187
      %v627 = vunpack.c.h.b16 %v187
      %v628 = vunpack.c.l.b16 %v188
      %v629 = vunpack.c.h.b16 %v188
      %v630 = vunpack.c.l.b16 %v189
      %v631 = vunpack.c.l.b16 %v190
      %v632 = vunpack.c.h.b16 %v190
      %v633 = vunpack.c.l.b16 %v191
      %v634 = vunpack.c.h.b16 %v191
      %v635 = vunpack.c.l.b16 %v192
      %v636 = vunpack.c.l.b16 %v193
      %v637 = vunpack.c.h.b16 %v193
      %v638 = vunpack.c.l.b16 %v194
      %v639 = vunpack.c.h.b16 %v194
      %v640 = vunpack.c.l.b16 %v195
      %v641 = vunpack.c.l.b16 %v196
      %v642 = vunpack.c.h.b16 %v196
      %v643 = vunpack.c.l.b16 %v197
      %v644 = vunpack.c.h.b16 %v197
      %v645 = vunpack.c.l.b16 %v198
      %v646 = vunpack.c.l.b16 %v199
      %v647 = vunpack.c.h.b16 %v199
      %v648 = vunpack.c.l.b16 %v200
      %v649 = vunpack.c.h.b16 %v200
      %v650 = vunpack.c.l.b16 %v201
      %v651 = vunpack.c.l.b16 %v202
      %v652 = vunpack.c.h.b16 %v202
      %v653 = vunpack.c.l.b16 %v203
      %v654 = vunpack.c.h.b16 %v203
      %v655 = vunpack.c.l.b16 %v204
      %v656 = vunpack.c.l.b16 %v205
      %v657 = vunpack.c.h.b16 %v205
      %v658 = vunpack.c.l.b16 %v206
      %v659 = vunpack.c.h.b16 %v206
      %v660 = vunpack.c.l.b16 %v207
      %v661 = vunpack.c.l.b16 %v208
      %v662 = vunpack.c.h.b16 %v208
      %v663 = vunpack.c.l.b16 %v209
      %v664 = vunpack.c.h.b16 %v209
      %v665 = vunpack.c.l.b16 %v210
      %v666 = vunpack.c.l.b16 %v211
      %v667 = vunpack.c.h.b16 %v211
      %v668 = vunpack.c.l.b16 %v212
      %v669 = vunpack.c.h.b16 %v212
      %v670 = vunpack.c.l.b16 %v213
      %v671 = vunpack.c.l.b16 %v214
      %v672 = vunpack.c.h.b16 %v214
      %v673 = vunpack.c.l.b16 %v215
      %v674 = vunpack.c.h.b16 %v215
      %v675 = vunpack.c.l.b16 %v216
      %v676 = vunpack.c.l.b16 %v217
      %v677 = vunpack.c.h.b16 %v217
      %v678 = vunpack.c.l.b16 %v218
      %v679 = vunpack.c.h.b16 %v218
      %v680 = vunpack.c.l.b16 %v219
      %v681 = vunpack.c.l.b16 %v220
      %v682 = vunpack.c.h.b16 %v220
      %v683 = vunpack.c.l.b16 %v221
      %v684 = vunpack.c.h.b16 %v221
      %v685 = vunpack.c.l.b16 %v222
      %v686 = vunpack.c.l.b16 %v223
      %v687 = vunpack.c.h.b16 %v223
      %v688 = vunpack.c.l.b16 %v224
      %v689 = vunpack.c.h.b16 %v224
      %v690 = vunpack.c.l.b16 %v225
      %v691 = vunpack.c.l.b16 %v226
      %v692 = vunpack.c.h.b16 %v226
      %v693 = vunpack.c.l.b16 %v227
      %v694 = vunpack.c.h.b16 %v227
      %v695 = vunpack.c.l.b16 %v228
      %v696 = vunpack.c.l.b16 %v229
      %v697 = vunpack.c.h.b16 %v229
      %v698 = vunpack.c.l.b16 %v230
      %v699 = vunpack.c.h.b16 %v230
      %v700 = vunpack.c.l.b16 %v231
      %v701 = vunpack.c.l.b16 %v232
      %v702 = vunpack.c.h.b16 %v232
      %v703 = vunpack.c.l.b16 %v233
      %v704 = vunpack.c.h.b16 %v233
      %v705 = vunpack.c.l.b16 %v234
      %v706 = vunpack.c.l.b16 %v235
      %v707 = vunpack.c.h.b16 %v235
      %v708 = vunpack.c.l.b16 %v236
      %v709 = vunpack.c.h.b16 %v236
      %v710 = vunpack.c.l.b16 %v237
      %v711 = vunpack.c.l.b16 %v238
      %v712 = vunpack.c.h.b16 %v238
      %v713 = vunpack.c.l.b16 %v239
      %v714 = vunpack.c.h.b16 %v239
      %v715 = vunpack.c.l.b16 %v240
      %v716 = vunpack.c.l.b16 %v241
      %v717 = vunpack.c.h.b16 %v241
      %v718 = vunpack.c.l.b16 %v242
      %v719 = vunpack.c.h.b16 %v242
      %v720 = vunpack.c.l.b16 %v243
      %v721 = vunpack.c.l.b16 %v244
      %v722 = vunpack.c.h.b16 %v244
      %v723 = vunpack.c.l.b16 %v245
      %v724 = vunpack.c.h.b16 %v245
      %v725 = vunpack.c.l.b16 %v246
      %v726 = vunpack.c.l.b16 %v247
      %v727 = vunpack.c.h.b16 %v247
      %v728 = vunpack.c.l.b16 %v248
      %v729 = vunpack.c.h.b16 %v248
      %v730 = vunpack.c.l.b16 %v249
      %v731 = vunpack.c.l.b16 %v250
      %v732 = vunpack.c.h.b16 %v250
      %v733 = vunpack.c.l.b16 %v251
      %v734 = vunpack.c.h.b16 %v251
      %v735 = vunpack.c.l.b16 %v252
      %v736 = vunpack.c.l.b16 %v253
      %v737 = vunpack.c.h.b16 %v253
      %v738 = vunpack.c.l.b16 %v254
      %v739 = vunpack.c.h.b16 %v254
      %v740 = vunpack.c.l.b16 %v255
      %v741 = vunpack.c.l.b16 %v256
      %v742 = vunpack.c.h.b16 %v256
      %v743 = vunpack.c.l.b16 %v257
      %v744 = vunpack.c.h.b16 %v257
      %v745 = vunpack.c.l.b16 %v258
      %v746 = vunpack.c.l.b16 %v259
      %v747 = vunpack.c.h.b16 %v259
      %v748 = vunpack.c.l.b16 %v260
      %v749 = vunpack.c.h.b16 %v260
      %v750 = vunpack.c.l.b16 %v261
      %v751 = vunpack.c.l.b16 %v262
      %v752 = vunpack.c.h.b16 %v262
      %v753 = vunpack.c.l.b16 %v263
      %v754 = vunpack.c.h.b16 %v263
      %v755 = vunpack.c.l.b16 %v264
      %v756 = vunpack.c.l.b16 %v265
      %v757 = vunpack.c.h.b16 %v265
      %v758 = vunpack.c.l.b16 %v266
      %v759 = vunpack.c.h.b16 %v266
      %v760 = vunpack.c.l.b16 %v267
      %v761 = vunpack.c.l.b16 %v268
      %v762 = vunpack.c.h.b16 %v268
      %v763 = vunpack.c.l.b16 %v269
      %v764 = vunpack.c.h.b16 %v269
      %v765 = vunpack.c.l.b16 %v270
      %v766 = vunpack.c.l.b16 %v271
      %v767 = vunpack.c.h.b16 %v271
      %v768 = vunpack.c.l.b16 %v272
      %v769 = vunpack.c.h.b16 %v272
      %v770 = vunpack.c.l.b16 %v273
      %v771 = vunpack.c.l.b16 %v274
      %v772 = vunpack.c.h.b16 %v274
      %v773 = vunpack.c.l.b16 %v275
      %v774 = vunpack.c.h.b16 %v275
      %v775 = vunpack.c.l.b16 %v276
      %v776 = vunpack.c.l.b16 %v277
      %v777 = vunpack.c.h.b16 %v277
      %v778 = vunpack.c.l.b16 %v278
      %v779 = vunpack.c.h.b16 %v278
      %v780 = vunpack.c.l.b16 %v279
      %v781 = vunpack.c.l.b16 %v280
      %v782 = vunpack.c.h.b16 %v280
      %v783 = vunpack.c.l.b16 %v281
      %v784 = vunpack.c.h.b16 %v281
      %v785 = vunpack.c.l.b16 %v282
      %v786 = vunpack.c.l.b16 %v283
      %v787 = vunpack.c.h.b16 %v283
      %v788 = vunpack.c.l.b16 %v284
      %v789 = vunpack.c.h.b16 %v284
      %v790 = vunpack.c.l.b16 %v285
      %v791 = vunpack.c.l.b16 %v286
      %v792 = vunpack.c.h.b16 %v286
      %v793 = vunpack.c.l.b16 %v287
      %v794 = vunpack.c.h.b16 %v287
      %v795 = vunpack.c.l.b16 %v288
      %v796 = vunpack.c.l.b16 %v289
      %v797 = vunpack.c.h.b16 %v289
      %v798 = vunpack.c.l.b16 %v290
      %v799 = vunpack.c.h.b16 %v290
      %v800 = vunpack.c.l.b16 %v291
      %v801 = vunpack.c.l.b16 %v292
      %v802 = vunpack.c.h.b16 %v292
      %v803 = vunpack.c.l.b16 %v293
      %v804 = vunpack.c.h.b16 %v293
      %v805 = vunpack.c.l.b16 %v294
      %v806 = vunpack.c.l.b16 %v295
      %v807 = vunpack.c.h.b16 %v295
      %v808 = vunpack.c.l.b16 %v296
      %v809 = vunpack.c.h.b16 %v296
      %v810 = vunpack.c.l.b16 %v297
      %v811 = vunpack.c.l.b16 %v298
      %v812 = vunpack.c.h.b16 %v298
      %v813 = vunpack.c.l.b16 %v299
      %v814 = vunpack.c.h.b16 %v299
      %v815 = vunpack.c.l.b16 %v300
      %v816 = vunpack.c.l.b16 %v301
      %v817 = vunpack.c.h.b16 %v301
      %v818 = vunpack.c.l.b16 %v302
      %v819 = vunpack.c.h.b16 %v302
      %v820 = vunpack.c.l.b16 %v303
      %v821 = vunpack.c.l.b16 %v304
      %v822 = vunpack.c.h.b16 %v304
      %v823 = vunpack.c.l.b16 %v305
      %v824 = vunpack.c.h.b16 %v305
      %v825 = vunpack.c.l.b16 %v306
      %v826 = vunpack.c.l.b16 %v307
      %v827 = vunpack.c.h.b16 %v307
      %v828 = vunpack.c.l.b16 %v308
      %v829 = vunpack.c.h.b16 %v308
      %v830 = vunpack.c.l.b16 %v309
      %v831 = vunpack.c.l.b16 %v310
      %v832 = vunpack.c.h.b16 %v310
      %v833 = vunpack.c.l.b16 %v311
      %v834 = vunpack.c.h.b16 %v311
      %v835 = vunpack.c.l.b16 %v312
      %v836 = vunpack.c.l.b16 %v313
      %v837 = vunpack.c.h.b16 %v313
      %v838 = vunpack.c.l.b16 %v314
      %v839 = vunpack.c.h.b16 %v314
      %v840 = vunpack.c.l.b16 %v315
      %v841 = vunpack.c.l.b16 %v316
      %v842 = vunpack.c.h.b16 %v316
      %v843 = vunpack.c.l.b16 %v317
      %v844 = vunpack.c.h.b16 %v317
      %v845 = vunpack.c.l.b16 %v318
      %v846 = vunpack.c.l.b16 %v319
      %v847 = vunpack.c.h.b16 %v319
      %v848 = vunpack.c.l.b16 %v320
      %v849 = vunpack.c.h.b16 %v320
      %v850 = vunpack.c.l.b16 %v321
      %v851 = vunpack.c.l.b16 %v322
      %v852 = vunpack.c.h.b16 %v322
      %v853 = vunpack.c.l.b16 %v323
      %v854 = vunpack.c.h.b16 %v323
      %v855 = vunpack.c.l.b16 %v324
      %v856 = vunpack.c.l.b16 %v325
      %v857 = vunpack.c.h.b16 %v325
      %v858 = vunpack.c.l.b16 %v326
      %v859 = vunpack.c.h.b16 %v326
      %v860 = vunpack.c.l.b16 %v327
      %v861 = vunpack.c.l.b16 %v328
      %v862 = vunpack.c.h.b16 %v328
      %v863 = vunpack.c.l.b16 %v329
      %v864 = vunpack.c.h.b16 %v329
      %v865 = vunpack.c.l.b16 %v330
      %v866 = vunpack.c.l.b16 %v331
      %v867 = vunpack.c.h.b16 %v331
      %v868 = vunpack.c.l.b16 %v332
      %v869 = vunpack.c.h.b16 %v332
      %v870 = vunpack.c.l.b16 %v333
      %v871 = vunpack.c.l.b16 %v334
      %v872 = vunpack.c.h.b16 %v334
      %v873 = vunpack.c.l.b16 %v335
      %v874 = vunpack.c.h.b16 %v335
      %v875 = vunpack.c.l.b16 %v336
      %v876 = vunpack.c.l.b16 %v337
      %v877 = vunpack.c.h.b16 %v337
      %v878 = vunpack.c.l.b16 %v338
      %v879 = vunpack.c.h.b16 %v338
      %v880 = vunpack.c.l.b16 %v339
      %v881 = vunpack.c.l.b16 %v340
      %v882 = vunpack.c.h.b16 %v340
      %v883 = vunpack.c.l.b16 %v341
      %v884 = vunpack.c.h.b16 %v341
      %v885 = vunpack.c.l.b16 %v342
      %v886 = vpack.c.b16 %v606, %v601
      %v887 = vpack.c.b16 %v607, %v602
      %v888 = vpack.c.b16 %v608, %v603
      %v889 = vpack.c.b16 %v609, %v604
      %v890 = vpack.c.b16 %v610, %v605
      %v891 = vpack.c.b16 %v616, %v611
      %v892 = vpack.c.b16 %v617, %v612
      %v893 = vpack.c.b16 %v618, %v613
      %v894 = vpack.c.b16 %v619, %v614
      %v895 = vpack.c.b16 %v620, %v615
      %v896 = vpack.c.b16 %v626, %v621
      %v897 = vpack.c.b16 %v627, %v622
      %v898 = vpack.c.b16 %v628, %v623
      %v899 = vpack.c.b16 %v629, %v624
      %v900 = vpack.c.b16 %v630, %v625
      %v901 = vpack.c.b16 %v636, %v631
      %v902 = vpack.c.b16 %v637, %v632
      %v903 = vpack.c.b16 %v638, %v633
      %v904 = vpack.c.b16 %v639, %v634
      %v905 = vpack.c.b16 %v640, %v635
      %v906 = vpack.c.b16 %v646, %v641
      %v907 = vpack.c.b16 %v647, %v642
      %v908 = vpack.c.b16 %v648, %v643
      %v909 = vpack.c.b16 %v649, %v644
      %v910 = vpack.c.b16 %v650, %v645
      %v911 = vpack.c.b16 %v656, %v651
      %v912 = vpack.c.b16 %v657, %v652
      %v913 = vpack.c.b16 %v658, %v653
      %v914 = vpack.c.b16 %v659, %v654
      %v915 = vpack.c.b16 %v660, %v655
      %v916 = vpack.c.b16 %v666, %v661
      %v917 = vpack.c.b16 %v667, %v662
      %v918 = vpack.c.b16 %v668, %v663
      %v919 = vpack.c.b16 %v669, %v664
      %v920 = vpack.c.b16 %v670, %v665
      %v921 = vpack.c.b16 %v676, %v671
      %v922 = vpack.c.b16 %v677, %v672
      %v923 = vpack.c.b16 %v678, %v673
      %v924 = vpack.c.b16 %v679, %v674
      %v925 = vpack.c.b16 %v680, %v675
      %v926 = vpack.c.b16 %v686, %v681
      %v927 = vpack.c.b16 %v687, %v682
      %v928 = vpack.c.b16 %v688, %v683
      %v929 = vpack.c.b16 %v689, %v684
      %v930 = vpack.c.b16 %v690, %v685
      %v931 = vpack.c.b16 %v696, %v691
      %v932 = vpack.c.b16 %v697, %v692
      %v933 = vpack.c.b16 %v698, %v693
      %v934 = vpack.c.b16 %v699, %v694
      %v935 = vpack.c.b16 %v700, %v695
      %v936 = vpack.c.b16 %v706, %v701
      %v937 = vpack.c.b16 %v707, %v702
      %v938 = vpack.c.b16 %v708, %v703
      %v939 = vpack.c.b16 %v709, %v704
      %v940 = vpack.c.b16 %v710, %v705
      %v941 = vpack.c.b16 %v716, %v711
      %v942 = vpack.c.b16 %v717, %v712
      %v943 = vpack.c.b16 %v718, %v713
      %v944 = vpack.c.b16 %v719, %v714
      %v945 = vpack.c.b16 %v720, %v715
      %v946 = vpack.c.b16 %v726, %v721
      %v947 = vpack.c.b16 %v727, %v722
      %v948 = vpack.c.b16 %v728, %v723
      %v949 = vpack.c.b16 %v729, %v724
      %v950 = vpack.c.b16 %v730, %v725
      %v951 = vpack.c.b16 %v736, %v731
      %v952 = vpack.c.b16 %v737, %v732
      %v953 = vpack.c.b16 %v738, %v733
      %v954 = vpack.c.b16 %v739, %v734
      %v955 = vpack.c.b16 %v740, %v735
      %v956 = vpack.c.b16 %v746, %v741
      %v957 = vpack.c.b16 %v747, %v742
      %v958 = vpack.c.b16 %v748, %v743
      %v959 = vpack.c.b16 %v749, %v744
      %v960 = vpack.c.b16 %v750, %v745
      %v961 = vpack.c.b16 %v756, %v751
      %v962 = vpack.c.b16 %v757, %v752
      %v963 = vpack.c.b16 %v758, %v753
      %v964 = vpack.c.b16 %v759, %v754
      %v965 = vpack.c.b16 %v760, %v755
      %v966 = vpack.c.b16 %v766, %v761
      %v967 = vpack.c.b16 %v767, %v762
      %v968 = vpack.c.b16 %v768, %v763
      %v969 = vpack.c.b16 %v769, %v764
      %v970 = vpack.c.b16 %v770, %v765
      %v971 = vpack.c.b16 %v776, %v771
      %v972 = vpack.c.b16 %v777, %v772
      %v973 = vpack.c.b16 %v778, %v773
      %v974 = vpack.c.b16 %v779, %v774
      %v975 = vpack.c.b16 %v780, %v775
      %v976 = vpack.c.b16 %v786, %v781
      %v977 = vpack.c.b16 %v787, %v782
      %v978 = vpack.c.b16 %v788, %v783
      %v979 = vpack.c.b16 %v789, %v784
      %v980 = vpack.c.b16 %v790, %v785
      %v981 = vpack.c.b16 %v796, %v791
      %v982 = vpack.c.b16 %v797, %v792
      %v983 = vpack.c.b16 %v798, %v793
      %v984 = vpack.c.b16 %v799, %v794
      %v985 = vpack.c.b16 %v800, %v795
      %v986 = vpack.c.b16 %v806, %v801
      %v987 = vpack.c.b16 %v807, %v802
      %v988 = vpack.c.b16 %v808, %v803
      %v989 = vpack.c.b16 %v809, %v804
      %v990 = vpack.c.b16 %v810, %v805
      %v991 = vpack.c.b16 %v816, %v811
      %v992 = vpack.c.b16 %v817, %v812
      %v993 = vpack.c.b16 %v818, %v813
      %v994 = vpack.c.b16 %v819, %v814
      %v995 = vpack.c.b16 %v820, %v815
      %v996 = vpack.c.b16 %v826, %v821
      %v997 = vpack.c.b16 %v827, %v822
      %v998 = vpack.c.b16 %v828, %v823
      %v999 = vpack.c.b16 %v829, %v824
      %v1000 = vpack.c.b16 %v830, %v825
      %v1001 = vpack.c.b16 %v836, %v831
      %v1002 = vpack.c.b16 %v837, %v832
      %v1003 = vpack.c.b16 %v838, %v833
      %v1004 = vpack.c.b16 %v839, %v834
      %v1005 = vpack.c.b16 %v840, %v835
      %v1006 = vpack.c.b16 %v846, %v841
      %v1007 = vpack.c.b16 %v847, %v842
      %v1008 = vpack.c.b16 %v848, %v843
      %v1009 = vpack.c.b16 %v849, %v844
      %v1010 = vpack.c.b16 %v850, %v845
      %v1011 = vpack.c.b16 %v856, %v851
      %v1012 = vpack.c.b16 %v857, %v852
      %v1013 = vpack.c.b16 %v858, %v853
      %v1014 = vpack.c.b16 %v859, %v854
      %v1015 = vpack.c.b16 %v860, %v855
      %v1016 = vpack.c.b16 %v866, %v861
      %v1017 = vpack.c.b16 %v867, %v862
      %v1018 = vpack.c.b16 %v868, %v863
      %v1019 = vpack.c.b16 %v869, %v864
      %v1020 = vpack.c.b16 %v870, %v865
      %v1021 = vpack.c.b16 %v876, %v871
      %v1022 = vpack.c.b16 %v877, %v872
      %v1023 = vpack.c.b16 %v878, %v873
      %v1024 = vpack.c.b16 %v879, %v874
      %v1025 = vpack.c.b16 %v880, %v875
      %v1026 = vpack.c.b16 %v881, %v881
      %v1027 = vpack.c.b16 %v882, %v882
      %v1028 = vpack.c.b16 %v883, %v883
      %v1029 = vpack.c.b16 %v884, %v884
      %v1030 = vpack.c.b16 %v885, %v885
      %v1256 = vunpack.c.l.b16 %v343
      %v1257 = vunpack.c.l.b16 %v344
      %v1258 = vunpack.c.l.b16 %v345
      %v1259 = vunpack.c.l.b16 %v346
      %v1260 = vunpack.c.l.b16 %v347
      %v1261 = vunpack.c.l.b16 %v348
      %v1262 = vunpack.c.l.b16 %v349
      %v1263 = vunpack.c.l.b16 %v350
      %v1264 = vunpack.c.l.b16 %v351
      %v1265 = vunpack.c.l.b16 %v352
      %v1266 = vunpack.c.l.b16 %v353
      %v1267 = vunpack.c.l.b16 %v354
      %v1268 = vunpack.c.l.b16 %v355
      %v1269 = vunpack.c.l.b16 %v356
      %v1270 = vunpack.c.l.b16 %v357
      %v1271 = vunpack.c.l.b16 %v358
      %v1272 = vunpack.c.l.b16 %v359
      %v1273 = vunpack.c.l.b16 %v360
      %v1274 = vunpack.c.l.b16 %v361
      %v1275 = vunpack.c.l.b16 %v362
      %v1276 = vunpack.c.l.b16 %v363
      %v1277 = vunpack.c.l.b16 %v364
      %v1278 = vunpack.c.l.b16 %v365
      %v1279 = vunpack.c.l.b16 %v366
      %v1280 = vunpack.c.l.b16 %v367
      %v1281 = vunpack.c.l.b16 %v368
      %v1282 = vunpack.c.l.b16 %v369
      %v1283 = vunpack.c.l.b16 %v370
      %v1284 = vunpack.c.l.b16 %v371
      %v1285 = vunpack.c.l.b16 %v372
      %v1286 = vunpack.c.l.b16 %v373
      %v1287 = vunpack.c.l.b16 %v374
      %v1288 = vunpack.c.l.b16 %v375
      %v1289 = vunpack.c.l.b16 %v376
      %v1290 = vunpack.c.l.b16 %v377
      %v1291 = vunpack.c.l.b16 %v378
      %v1292 = vunpack.c.l.b16 %v379
      %v1293 = vunpack.c.l.b16 %v380
      %v1294 = vunpack.c.l.b16 %v381
      %v1295 = vunpack.c.l.b16 %v382
      %v1296 = vunpack.c.l.b16 %v383
      %v1297 = vunpack.c.l.b16 %v384
      %v1298 = vunpack.c.l.b16 %v385
      %v1299 = vunpack.c.l.b16 %v386
      %v1300 = vunpack.c.l.b16 %v387
      %v1301 = vunpack.c.l.b16 %v388
      %v1302 = vunpack.c.l.b16 %v389
      %v1303 = vunpack.c.l.b16 %v390
      %v1304 = vunpack.c.l.b16 %v391
      %v1305 = vunpack.c.l.b16 %v392
      %v1306 = vunpack.c.l.b16 %v393
      %v1307 = vunpack.c.l.b16 %v394
      %v1308 = vunpack.c.l.b16 %v395
      %v1309 = vunpack.c.l.b16 %v396
      %v1310 = vunpack.c.l.b16 %v397
      %v1311 = vunpack.c.l.b16 %v398
      %v1312 = vunpack.c.l.b16 %v399
      %v1313 = vunpack.c.l.b16 %v400
      %v1314 = vunpack.c.l.b16 %v401
      %v1315 = vunpack.c.l.b16 %v402
      %v1316 = vunpack.c.l.b16 %v403
      %v1317 = vunpack.c.l.b16 %v404
      %v1318 = vunpack.c.l.b16 %v405
      %v1319 = vunpack.c.l.b16 %v406
      %v1320 = vunpack.c.l.b16 %v407
      %v1321 = vunpack.c.l.b16 %v408
      %v1322 = vunpack.c.l.b16 %v409
      %v1323 = vunpack.c.l.b16 %v410
      %v1324 = vunpack.c.l.b16 %v411
      %v1325 = vunpack.c.l.b16 %v412
      %v1326 = vunpack.c.l.b16 %v413
      %v1327 = vunpack.c.l.b16 %v414
      %v1328 = vunpack.c.l.b16 %v415
      %v1329 = vunpack.c.l.b16 %v416
      %v1330 = vunpack.c.l.b16 %v417
      %v1331 = vunpack.c.l.b16 %v418
      %v1332 = vunpack.c.l.b16 %v419
      %v1333 = vunpack.c.l.b16 %v420
      %v1334 = vunpack.c.l.b16 %v421
      %v1335 = vunpack.c.l.b16 %v422
      %v1336 = vpack.c.b16 %v1257, %v1256
      %v1337 = vpack.c.b16 %v1259, %v1258
      %v1338 = vpack.c.b16 %v1261, %v1260
      %v1339 = vpack.c.b16 %v1263, %v1262
      %v1340 = vpack.c.b16 %v1265, %v1264
      %v1341 = vpack.c.b16 %v1267, %v1266
      %v1342 = vpack.c.b16 %v1269, %v1268
      %v1343 = vpack.c.b16 %v1271, %v1270
      %v1344 = vpack.c.b16 %v1273, %v1272
      %v1345 = vpack.c.b16 %v1275, %v1274
      %v1346 = vpack.c.b16 %v1277, %v1276
      %v1347 = vpack.c.b16 %v1279, %v1278
      %v1348 = vpack.c.b16 %v1281, %v1280
      %v1349 = vpack.c.b16 %v1283, %v1282
      %v1350 = vpack.c.b16 %v1285, %v1284
      %v1351 = vpack.c.b16 %v1287, %v1286
      %v1352 = vpack.c.b16 %v1289, %v1288
      %v1353 = vpack.c.b16 %v1291, %v1290
      %v1354 = vpack.c.b16 %v1293, %v1292
      %v1355 = vpack.c.b16 %v1295, %v1294
      %v1356 = vpack.c.b16 %v1297, %v1296
      %v1357 = vpack.c.b16 %v1299, %v1298
      %v1358 = vpack.c.b16 %v1301, %v1300
      %v1359 = vpack.c.b16 %v1303, %v1302
      %v1360 = vpack.c.b16 %v1305, %v1304
      %v1361 = vpack.c.b16 %v1307, %v1306
      %v1362 = vpack.c.b16 %v1309, %v1308
      %v1363 = vpack.c.b16 %v1311, %v1310
      %v1364 = vpack.c.b16 %v1313, %v1312
      %v1365 = vpack.c.b16 %v1315, %v1314
      %v1366 = vpack.c.b16 %v1317, %v1316
      %v1367 = vpack.c.b16 %v1319, %v1318
      %v1368 = vpack.c.b16 %v1321, %v1320
      %v1369 = vpack.c.b16 %v1323, %v1322
      %v1370 = vpack.c.b16 %v1325, %v1324
      %v1371 = vpack.c.b16 %v1327, %v1326
      %v1372 = vpack.c.b16 %v1329, %v1328
      %v1373 = vpack.c.b16 %v1331, %v1330
      %v1374 = vpack.c.b16 %v1333, %v1332
      %v1375 = vpack.c.b16 %v1335, %v1334
      %1416 = vmatprep.subr.bf16.mxu0 0
      %1417 = vmatpush1.bf16.msra.mxu0 %v1336
      %1418 = vmatprep.subr.bf16.mxu0 0
      %1419 = vmatpush1.bf16.msra.mxu0 %v1337
      %1420 = vmatprep.subr.bf16.mxu0 0
      %1421 = vmatpush1.bf16.msra.mxu0 %v1338
      %1422 = vmatprep.subr.bf16.mxu0 0
      %1423 = vmatpush1.bf16.msra.mxu0 %v1339
      %1424 = vmatprep.subr.bf16.mxu0 0
      %1425 = vmatpush1.bf16.msra.mxu0 %v1340
      %1426 = vmatprep.subr.bf16.mxu0 0
      %1427 = vmatpush1.bf16.msra.mxu0 %v1341
      %1428 = vmatprep.subr.bf16.mxu0 0
      %1429 = vmatpush1.bf16.msra.mxu0 %v1342
      %1430 = vmatprep.subr.bf16.mxu0 0
      %1431 = vmatpush1.bf16.msra.mxu0 %v1343
      %1432 = vmatprep.subr.bf16.mxu0 0
      %1433 = vmatpush1.bf16.msra.mxu0 %v1344
      %1434 = vmatprep.subr.bf16.mxu0 0
      %1435 = vmatpush1.bf16.msra.mxu0 %v1345
      %1436 = vmatprep.subr.bf16.mxu0 0
      %1437 = vmatpush1.bf16.msra.mxu0 %v1346
      %1438 = vmatprep.subr.bf16.mxu0 0
      %1439 = vmatpush1.bf16.msra.mxu0 %v1347
      %1440 = vmatprep.subr.bf16.mxu0 0
      %1441 = vmatpush1.bf16.msra.mxu0 %v1348
      %1442 = vmatprep.subr.bf16.mxu0 0
      %1443 = vmatpush1.bf16.msra.mxu0 %v1349
      %1444 = vmatprep.subr.bf16.mxu0 0
      %1445 = vmatpush1.bf16.msra.mxu0 %v1350
      %1446 = vmatprep.subr.bf16.mxu0 0
      %1447 = vmatpush1.bf16.msra.mxu0 %v1351
      %1448 = vmatprep.mubr.bf16.mxu0 %v887
      %1449 = vmatmul.mubr.bf16.gmra.mrb[0].mxu0 %v886
      %v1450 = vpop.f32.mrb[0].mxu0
      %v1451 = vadd.f32 %v428, %v1450
      %v1452 = vpop.f32.mrb[0].mxu0
      %v1453 = vpop.f32.mrb[0].mxu0
      %v1454 = vadd.f32 %v428, %v1453
      %v1455 = vpop.f32.mrb[0].mxu0
      %1456 = vmatprep.mubr.bf16.mxu0 %v892
      %1457 = vmatmul.mubr.bf16.gmra.mrb[0].mxu0 %v891
      %v1458 = vpop.f32.mrb[0].mxu0
      %v1459 = vadd.f32 %v428, %v1458
      %v1460 = vpop.f32.mrb[0].mxu0
      %v1461 = vpop.f32.mrb[0].mxu0
      %v1462 = vadd.f32 %v428, %v1461
      %v1463 = vpop.f32.mrb[0].mxu0
      %1464 = vmatprep.mubr.bf16.mxu0 %v897
      %1465 = vmatmul.mubr.bf16.gmra.mrb[0].mxu0 %v896
      %v1466 = vpop.f32.mrb[0].mxu0
      %v1467 = vadd.f32 %v428, %v1466
      %v1468 = vpop.f32.mrb[0].mxu0
      %v1469 = vpop.f32.mrb[0].mxu0
      %v1470 = vadd.f32 %v428, %v1469
      %v1471 = vpop.f32.mrb[0].mxu0
      %1472 = vmatprep.mubr.bf16.mxu0 %v902
      %1473 = vmatmul.mubr.bf16.gmra.mrb[0].mxu0 %v901
      %v1474 = vpop.f32.mrb[0].mxu0
      %v1475 = vadd.f32 %v428, %v1474
      %v1476 = vpop.f32.mrb[0].mxu0
      %v1477 = vpop.f32.mrb[0].mxu0
      %v1478 = vadd.f32 %v428, %v1477
      %v1479 = vpop.f32.mrb[0].mxu0
      %1480 = vmatprep.mubr.bf16.mxu0 %v907
      %1481 = vmatmul.mubr.bf16.gmra.mrb[0].mxu0 %v906
      %v1482 = vpop.f32.mrb[0].mxu0
      %v1483 = vadd.f32 %v428, %v1482
      %v1484 = vpop.f32.mrb[0].mxu0
      %v1485 = vpop.f32.mrb[0].mxu0
      %v1486 = vadd.f32 %v428, %v1485
      %v1487 = vpop.f32.mrb[0].mxu0
      %1488 = vmatprep.mubr.bf16.mxu0 %v912
      %1489 = vmatmul.mubr.bf16.gmra.mrb[0].mxu0 %v911
      %v1490 = vpop.f32.mrb[0].mxu0
      %v1491 = vadd.f32 %v428, %v1490
      %v1492 = vpop.f32.mrb[0].mxu0
      %v1493 = vpop.f32.mrb[0].mxu0
      %v1494 = vadd.f32 %v428, %v1493
      %v1495 = vpop.f32.mrb[0].mxu0
      %1496 = vmatprep.mubr.bf16.mxu0 %v917
      %1497 = vmatmul.mubr.bf16.gmra.mrb[0].mxu0 %v916
      %v1498 = vpop.f32.mrb[0].mxu0
      %v1499 = vadd.f32 %v428, %v1498
      %v1500 = vpop.f32.mrb[0].mxu0
      %v1501 = vpop.f32.mrb[0].mxu0
      %v1502 = vadd.f32 %v428, %v1501
      %v1503 = vpop.f32.mrb[0].mxu0
      %1504 = vmatprep.mubr.bf16.mxu0 %v922
      %1505 = vmatmul.mubr.bf16.gmra.mrb[0].mxu0 %v921
      %v1506 = vpop.f32.mrb[0].mxu0
      %v1507 = vadd.f32 %v428, %v1506
      %v1508 = vpop.f32.mrb[0].mxu0
      %v1509 = vpop.f32.mrb[0].mxu0
      %v1510 = vadd.f32 %v428, %v1509
      %v1511 = vpop.f32.mrb[0].mxu0
      %1512 = vmatprep.mubr.bf16.mxu0 %v927
      %1513 = vmatmul.mubr.bf16.gmra.mrb[0].mxu0 %v926
      %v1514 = vpop.f32.mrb[0].mxu0
      %v1515 = vadd.f32 %v428, %v1514
      %v1516 = vpop.f32.mrb[0].mxu0
      %v1517 = vpop.f32.mrb[0].mxu0
      %v1518 = vadd.f32 %v428, %v1517
      %v1519 = vpop.f32.mrb[0].mxu0
      %1520 = vmatprep.mubr.bf16.mxu0 %v932
      %1521 = vmatmul.mubr.bf16.gmra.mrb[0].mxu0 %v931
      %v1522 = vpop.f32.mrb[0].mxu0
      %v1523 = vadd.f32 %v428, %v1522
      %v1524 = vpop.f32.mrb[0].mxu0
      %v1525 = vpop.f32.mrb[0].mxu0
      %v1526 = vadd.f32 %v428, %v1525
      %v1527 = vpop.f32.mrb[0].mxu0
      %1528 = vmatprep.mubr.bf16.mxu0 %v937
      %1529 = vmatmul.mubr.bf16.gmra.mrb[0].mxu0 %v936
      %v1530 = vpop.f32.mrb[0].mxu0
      %v1531 = vadd.f32 %v428, %v1530
      %v1532 = vpop.f32.mrb[0].mxu0
      %v1533 = vpop.f32.mrb[0].mxu0
      %v1534 = vadd.f32 %v428, %v1533
      %v1535 = vpop.f32.mrb[0].mxu0
      %1536 = vmatprep.mubr.bf16.mxu0 %v942
      %1537 = vmatmul.mubr.bf16.gmra.mrb[0].mxu0 %v941
      %v1538 = vpop.f32.mrb[0].mxu0
      %v1539 = vadd.f32 %v428, %v1538
      %v1540 = vpop.f32.mrb[0].mxu0
      %v1541 = vpop.f32.mrb[0].mxu0
      %v1542 = vadd.f32 %v428, %v1541
      %v1543 = vpop.f32.mrb[0].mxu0
      %1544 = vmatprep.mubr.bf16.mxu0 %v947
      %1545 = vmatmul.mubr.bf16.gmra.mrb[0].mxu0 %v946
      %v1546 = vpop.f32.mrb[0].mxu0
      %v1547 = vadd.f32 %v428, %v1546
      %v1548 = vpop.f32.mrb[0].mxu0
      %v1549 = vpop.f32.mrb[0].mxu0
      %v1550 = vadd.f32 %v428, %v1549
      %v1551 = vpop.f32.mrb[0].mxu0
      %1552 = vmatprep.mubr.bf16.mxu0 %v952
      %1553 = vmatmul.mubr.bf16.gmra.mrb[0].mxu0 %v951
      %v1554 = vpop.f32.mrb[0].mxu0
      %v1555 = vadd.f32 %v428, %v1554
      %v1556 = vpop.f32.mrb[0].mxu0
      %v1557 = vpop.f32.mrb[0].mxu0
      %v1558 = vadd.f32 %v428, %v1557
      %v1559 = vpop.f32.mrb[0].mxu0
      %1560 = vmatprep.mubr.bf16.mxu0 %v957
      %1561 = vmatmul.mubr.bf16.gmra.mrb[0].mxu0 %v956
      %v1562 = vpop.f32.mrb[0].mxu0
      %v1563 = vadd.f32 %v428, %v1562
      %v1564 = vpop.f32.mrb[0].mxu0
      %v1565 = vpop.f32.mrb[0].mxu0
      %v1566 = vadd.f32 %v428, %v1565
      %v1567 = vpop.f32.mrb[0].mxu0
      %1568 = vmatprep.mubr.bf16.mxu0 %v962
      %1569 = vmatmul.mubr.bf16.gmra.mrb[0].mxu0 %v961
      %v1570 = vpop.f32.mrb[0].mxu0
      %v1571 = vadd.f32 %v428, %v1570
      %v1572 = vpop.f32.mrb[0].mxu0
      %v1573 = vpop.f32.mrb[0].mxu0
      %v1574 = vadd.f32 %v428, %v1573
      %v1575 = vpop.f32.mrb[0].mxu0
      %1576 = vmatprep.mubr.bf16.mxu0 %v967
      %1577 = vmatmul.mubr.bf16.gmra.mrb[0].mxu0 %v966
      %v1578 = vpop.f32.mrb[0].mxu0
      %v1579 = vadd.f32 %v428, %v1578
      %v1580 = vpop.f32.mrb[0].mxu0
      %v1581 = vpop.f32.mrb[0].mxu0
      %v1582 = vadd.f32 %v428, %v1581
      %v1583 = vpop.f32.mrb[0].mxu0
      %1584 = vmatprep.mubr.bf16.mxu0 %v972
      %1585 = vmatmul.mubr.bf16.gmra.mrb[0].mxu0 %v971
      %v1586 = vpop.f32.mrb[0].mxu0
      %v1587 = vadd.f32 %v428, %v1586
      %v1588 = vpop.f32.mrb[0].mxu0
      %v1589 = vpop.f32.mrb[0].mxu0
      %v1590 = vadd.f32 %v428, %v1589
      %v1591 = vpop.f32.mrb[0].mxu0
      %1592 = vmatprep.mubr.bf16.mxu0 %v977
      %1593 = vmatmul.mubr.bf16.gmra.mrb[0].mxu0 %v976
      %v1594 = vpop.f32.mrb[0].mxu0
      %v1595 = vadd.f32 %v428, %v1594
      %v1596 = vpop.f32.mrb[0].mxu0
      %v1597 = vpop.f32.mrb[0].mxu0
      %v1598 = vadd.f32 %v428, %v1597
      %v1599 = vpop.f32.mrb[0].mxu0
      %1600 = vmatprep.mubr.bf16.mxu0 %v982
      %1601 = vmatmul.mubr.bf16.gmra.mrb[0].mxu0 %v981
      %v1602 = vpop.f32.mrb[0].mxu0
      %v1603 = vadd.f32 %v428, %v1602
      %v1604 = vpop.f32.mrb[0].mxu0
      %v1605 = vpop.f32.mrb[0].mxu0
      %v1606 = vadd.f32 %v428, %v1605
      %v1607 = vpop.f32.mrb[0].mxu0
      %1608 = vmatprep.mubr.bf16.mxu0 %v987
      %1609 = vmatmul.mubr.bf16.gmra.mrb[0].mxu0 %v986
      %v1610 = vpop.f32.mrb[0].mxu0
      %v1611 = vadd.f32 %v428, %v1610
      %v1612 = vpop.f32.mrb[0].mxu0
      %v1613 = vpop.f32.mrb[0].mxu0
      %v1614 = vadd.f32 %v428, %v1613
      %v1615 = vpop.f32.mrb[0].mxu0
      %1616 = vmatprep.mubr.bf16.mxu0 %v992
      %1617 = vmatmul.mubr.bf16.gmra.mrb[0].mxu0 %v991
      %v1618 = vpop.f32.mrb[0].mxu0
      %v1619 = vadd.f32 %v428, %v1618
      %v1620 = vpop.f32.mrb[0].mxu0
      %v1621 = vpop.f32.mrb[0].mxu0
      %v1622 = vadd.f32 %v428, %v1621
      %v1623 = vpop.f32.mrb[0].mxu0
      %1624 = vmatprep.mubr.bf16.mxu0 %v997
      %1625 = vmatmul.mubr.bf16.gmra.mrb[0].mxu0 %v996
      %v1626 = vpop.f32.mrb[0].mxu0
      %v1627 = vadd.f32 %v428, %v1626
      %v1628 = vpop.f32.mrb[0].mxu0
      %v1629 = vpop.f32.mrb[0].mxu0
      %v1630 = vadd.f32 %v428, %v1629
      %v1631 = vpop.f32.mrb[0].mxu0
      %1632 = vmatprep.mubr.bf16.mxu0 %v1002
      %1633 = vmatmul.mubr.bf16.gmra.mrb[0].mxu0 %v1001
      %v1634 = vpop.f32.mrb[0].mxu0
      %v1635 = vadd.f32 %v428, %v1634
      %v1636 = vpop.f32.mrb[0].mxu0
      %v1637 = vpop.f32.mrb[0].mxu0
      %v1638 = vadd.f32 %v428, %v1637
      %v1639 = vpop.f32.mrb[0].mxu0
      %1640 = vmatprep.mubr.bf16.mxu0 %v1007
      %1641 = vmatmul.mubr.bf16.gmra.mrb[0].mxu0 %v1006
      %v1642 = vpop.f32.mrb[0].mxu0
      %v1643 = vadd.f32 %v428, %v1642
      %v1644 = vpop.f32.mrb[0].mxu0
      %v1645 = vpop.f32.mrb[0].mxu0
      %v1646 = vadd.f32 %v428, %v1645
      %v1647 = vpop.f32.mrb[0].mxu0
      %1648 = vmatprep.mubr.bf16.mxu0 %v1012
      %1649 = vmatmul.mubr.bf16.gmra.mrb[0].mxu0 %v1011
      %v1650 = vpop.f32.mrb[0].mxu0
      %v1651 = vadd.f32 %v428, %v1650
      %v1652 = vpop.f32.mrb[0].mxu0
      %v1653 = vpop.f32.mrb[0].mxu0
      %v1654 = vadd.f32 %v428, %v1653
      %v1655 = vpop.f32.mrb[0].mxu0
      %1656 = vmatprep.mubr.bf16.mxu0 %v1017
      %1657 = vmatmul.mubr.bf16.gmra.mrb[0].mxu0 %v1016
      %v1658 = vpop.f32.mrb[0].mxu0
      %v1659 = vadd.f32 %v428, %v1658
      %v1660 = vpop.f32.mrb[0].mxu0
      %v1661 = vpop.f32.mrb[0].mxu0
      %v1662 = vadd.f32 %v428, %v1661
      %v1663 = vpop.f32.mrb[0].mxu0
      %1664 = vmatprep.mubr.bf16.mxu0 %v1022
      %1665 = vmatmul.mubr.bf16.gmra.mrb[0].mxu0 %v1021
      %v1666 = vpop.f32.mrb[0].mxu0
      %v1667 = vadd.f32 %v428, %v1666
      %v1668 = vpop.f32.mrb[0].mxu0
      %v1669 = vpop.f32.mrb[0].mxu0
      %v1670 = vadd.f32 %v428, %v1669
      %v1671 = vpop.f32.mrb[0].mxu0
      %1672 = vmatprep.mubr.bf16.mxu0 %v1027
      %1673 = vmatmul.mubr.bf16.gmra.mrb[0].mxu0 %v1026
      %v1674 = vpop.f32.mrb[0].mxu0
      %v1675 = vadd.f32 %v428, %v1674
      %v1676 = vpop.f32.mrb[0].mxu0
      %v1677 = vpop.f32.mrb[0].mxu0
      %v1678 = vpop.f32.mrb[0].mxu0
      %1679 = vdwg.mxu0
      %1680 = vmatprep.subr.bf16.mxu0 0
      %1681 = vmatpush1.bf16.msra.mxu0 %v1352
      %1682 = vmatprep.subr.bf16.mxu0 0
      %1683 = vmatpush1.bf16.msra.mxu0 %v1353
      %1684 = vmatprep.subr.bf16.mxu0 0
      %1685 = vmatpush1.bf16.msra.mxu0 %v1354
      %1686 = vmatprep.subr.bf16.mxu0 0
      %1687 = vmatpush1.bf16.msra.mxu0 %v1355
      %1688 = vmatprep.subr.bf16.mxu0 0
      %1689 = vmatpush1.bf16.msra.mxu0 %v1356
      %1690 = vmatprep.subr.bf16.mxu0 0
      %1691 = vmatpush1.bf16.msra.mxu0 %v1357
      %1692 = vmatprep.subr.bf16.mxu0 0
      %1693 = vmatpush1.bf16.msra.mxu0 %v1358
      %1694 = vmatprep.subr.bf16.mxu0 0
      %1695 = vmatpush1.bf16.msra.mxu0 %v1359
      %1696 = vmatprep.subr.bf16.mxu0 0
      %1697 = vmatpush1.bf16.msra.mxu0 %v1360
      %1698 = vmatprep.subr.bf16.mxu0 0
      %1699 = vmatpush1.bf16.msra.mxu0 %v1361
      %1700 = vmatprep.subr.bf16.mxu0 0
      %1701 = vmatpush1.bf16.msra.mxu0 %v1362
      %1702 = vmatprep.subr.bf16.mxu0 0
      %1703 = vmatpush1.bf16.msra.mxu0 %v1363
      %1704 = vmatprep.subr.bf16.mxu0 0
      %1705 = vmatpush1.bf16.msra.mxu0 %v1364
      %1706 = vmatprep.subr.bf16.mxu0 0
      %1707 = vmatpush1.bf16.msra.mxu0 %v1365
      %1708 = vmatprep.subr.bf16.mxu0 0
      %1709 = vmatpush1.bf16.msra.mxu0 %v1366
      %1710 = vmatprep.subr.bf16.mxu0 0
      %1711 = vmatpush1.bf16.msra.mxu0 %v1367
      %1712 = vmatprep.mubr.bf16.mxu0 %v889
      %1713 = vmatmul.mubr.bf16.gmra.mrb[0].mxu0 %v888
      %v1714 = vpop.f32.mrb[0].mxu0
      %v1715 = vadd.f32 %v1451, %v1714
      %v1716 = vpop.f32.mrb[0].mxu0
      %v1717 = vpop.f32.mrb[0].mxu0
      %v1718 = vadd.f32 %v1454, %v1717
      %v1719 = vpop.f32.mrb[0].mxu0
      %1720 = vmatprep.mubr.bf16.mxu0 %v894
      %1721 = vmatmul.mubr.bf16.gmra.mrb[0].mxu0 %v893
      %v1722 = vpop.f32.mrb[0].mxu0
      %v1723 = vadd.f32 %v1459, %v1722
      %v1724 = vpop.f32.mrb[0].mxu0
      %v1725 = vpop.f32.mrb[0].mxu0
      %v1726 = vadd.f32 %v1462, %v1725
      %v1727 = vpop.f32.mrb[0].mxu0
      %1728 = vmatprep.mubr.bf16.mxu0 %v899
      %1729 = vmatmul.mubr.bf16.gmra.mrb[0].mxu0 %v898
      %v1730 = vpop.f32.mrb[0].mxu0
      %v1731 = vadd.f32 %v1467, %v1730
      %v1732 = vpop.f32.mrb[0].mxu0
      %v1733 = vpop.f32.mrb[0].mxu0
      %v1734 = vadd.f32 %v1470, %v1733
      %v1735 = vpop.f32.mrb[0].mxu0
      %1736 = vmatprep.mubr.bf16.mxu0 %v904
      %1737 = vmatmul.mubr.bf16.gmra.mrb[0].mxu0 %v903
      %v1738 = vpop.f32.mrb[0].mxu0
      %v1739 = vadd.f32 %v1475, %v1738
      %v1740 = vpop.f32.mrb[0].mxu0
      %v1741 = vpop.f32.mrb[0].mxu0
      %v1742 = vadd.f32 %v1478, %v1741
      %v1743 = vpop.f32.mrb[0].mxu0
      %1744 = vmatprep.mubr.bf16.mxu0 %v909
      %1745 = vmatmul.mubr.bf16.gmra.mrb[0].mxu0 %v908
      %v1746 = vpop.f32.mrb[0].mxu0
      %v1747 = vadd.f32 %v1483, %v1746
      %v1748 = vpop.f32.mrb[0].mxu0
      %v1749 = vpop.f32.mrb[0].mxu0
      %v1750 = vadd.f32 %v1486, %v1749
      %v1751 = vpop.f32.mrb[0].mxu0
      %1752 = vmatprep.mubr.bf16.mxu0 %v914
      %1753 = vmatmul.mubr.bf16.gmra.mrb[0].mxu0 %v913
      %v1754 = vpop.f32.mrb[0].mxu0
      %v1755 = vadd.f32 %v1491, %v1754
      %v1756 = vpop.f32.mrb[0].mxu0
      %v1757 = vpop.f32.mrb[0].mxu0
      %v1758 = vadd.f32 %v1494, %v1757
      %v1759 = vpop.f32.mrb[0].mxu0
      %1760 = vmatprep.mubr.bf16.mxu0 %v919
      %1761 = vmatmul.mubr.bf16.gmra.mrb[0].mxu0 %v918
      %v1762 = vpop.f32.mrb[0].mxu0
      %v1763 = vadd.f32 %v1499, %v1762
      %v1764 = vpop.f32.mrb[0].mxu0
      %v1765 = vpop.f32.mrb[0].mxu0
      %v1766 = vadd.f32 %v1502, %v1765
      %v1767 = vpop.f32.mrb[0].mxu0
      %1768 = vmatprep.mubr.bf16.mxu0 %v924
      %1769 = vmatmul.mubr.bf16.gmra.mrb[0].mxu0 %v923
      %v1770 = vpop.f32.mrb[0].mxu0
      %v1771 = vadd.f32 %v1507, %v1770
      %v1772 = vpop.f32.mrb[0].mxu0
      %v1773 = vpop.f32.mrb[0].mxu0
      %v1774 = vadd.f32 %v1510, %v1773
      %v1775 = vpop.f32.mrb[0].mxu0
      %1776 = vmatprep.mubr.bf16.mxu0 %v929
      %1777 = vmatmul.mubr.bf16.gmra.mrb[0].mxu0 %v928
      %v1778 = vpop.f32.mrb[0].mxu0
      %v1779 = vadd.f32 %v1515, %v1778
      %v1780 = vpop.f32.mrb[0].mxu0
      %v1781 = vpop.f32.mrb[0].mxu0
      %v1782 = vadd.f32 %v1518, %v1781
      %v1783 = vpop.f32.mrb[0].mxu0
      %1784 = vmatprep.mubr.bf16.mxu0 %v934
      %1785 = vmatmul.mubr.bf16.gmra.mrb[0].mxu0 %v933
      %v1786 = vpop.f32.mrb[0].mxu0
      %v1787 = vadd.f32 %v1523, %v1786
      %v1788 = vpop.f32.mrb[0].mxu0
      %v1789 = vpop.f32.mrb[0].mxu0
      %v1790 = vadd.f32 %v1526, %v1789
      %v1791 = vpop.f32.mrb[0].mxu0
      %1792 = vmatprep.mubr.bf16.mxu0 %v939
      %1793 = vmatmul.mubr.bf16.gmra.mrb[0].mxu0 %v938
      %v1794 = vpop.f32.mrb[0].mxu0
      %v1795 = vadd.f32 %v1531, %v1794
      %v1796 = vpop.f32.mrb[0].mxu0
      %v1797 = vpop.f32.mrb[0].mxu0
      %v1798 = vadd.f32 %v1534, %v1797
      %v1799 = vpop.f32.mrb[0].mxu0
      %1800 = vmatprep.mubr.bf16.mxu0 %v944
      %1801 = vmatmul.mubr.bf16.gmra.mrb[0].mxu0 %v943
      %v1802 = vpop.f32.mrb[0].mxu0
      %v1803 = vadd.f32 %v1539, %v1802
      %v1804 = vpop.f32.mrb[0].mxu0
      %v1805 = vpop.f32.mrb[0].mxu0
      %v1806 = vadd.f32 %v1542, %v1805
      %v1807 = vpop.f32.mrb[0].mxu0
      %1808 = vmatprep.mubr.bf16.mxu0 %v949
      %1809 = vmatmul.mubr.bf16.gmra.mrb[0].mxu0 %v948
      %v1810 = vpop.f32.mrb[0].mxu0
      %v1811 = vadd.f32 %v1547, %v1810
      %v1812 = vpop.f32.mrb[0].mxu0
      %v1813 = vpop.f32.mrb[0].mxu0
      %v1814 = vadd.f32 %v1550, %v1813
      %v1815 = vpop.f32.mrb[0].mxu0
      %1816 = vmatprep.mubr.bf16.mxu0 %v954
      %1817 = vmatmul.mubr.bf16.gmra.mrb[0].mxu0 %v953
      %v1818 = vpop.f32.mrb[0].mxu0
      %v1819 = vadd.f32 %v1555, %v1818
      %v1820 = vpop.f32.mrb[0].mxu0
      %v1821 = vpop.f32.mrb[0].mxu0
      %v1822 = vadd.f32 %v1558, %v1821
      %v1823 = vpop.f32.mrb[0].mxu0
      %1824 = vmatprep.mubr.bf16.mxu0 %v959
      %1825 = vmatmul.mubr.bf16.gmra.mrb[0].mxu0 %v958
      %v1826 = vpop.f32.mrb[0].mxu0
      %v1827 = vadd.f32 %v1563, %v1826
      %v1828 = vpop.f32.mrb[0].mxu0
      %v1829 = vpop.f32.mrb[0].mxu0
      %v1830 = vadd.f32 %v1566, %v1829
      %v1831 = vpop.f32.mrb[0].mxu0
      %1832 = vmatprep.mubr.bf16.mxu0 %v964
      %1833 = vmatmul.mubr.bf16.gmra.mrb[0].mxu0 %v963
      %v1834 = vpop.f32.mrb[0].mxu0
      %v1835 = vadd.f32 %v1571, %v1834
      %v1836 = vpop.f32.mrb[0].mxu0
      %v1837 = vpop.f32.mrb[0].mxu0
      %v1838 = vadd.f32 %v1574, %v1837
      %v1839 = vpop.f32.mrb[0].mxu0
      %1840 = vmatprep.mubr.bf16.mxu0 %v969
      %1841 = vmatmul.mubr.bf16.gmra.mrb[0].mxu0 %v968
      %v1842 = vpop.f32.mrb[0].mxu0
      %v1843 = vadd.f32 %v1579, %v1842
      %v1844 = vpop.f32.mrb[0].mxu0
      %v1845 = vpop.f32.mrb[0].mxu0
      %v1846 = vadd.f32 %v1582, %v1845
      %v1847 = vpop.f32.mrb[0].mxu0
      %1848 = vmatprep.mubr.bf16.mxu0 %v974
      %1849 = vmatmul.mubr.bf16.gmra.mrb[0].mxu0 %v973
      %v1850 = vpop.f32.mrb[0].mxu0
      %v1851 = vadd.f32 %v1587, %v1850
      %v1852 = vpop.f32.mrb[0].mxu0
      %v1853 = vpop.f32.mrb[0].mxu0
      %v1854 = vadd.f32 %v1590, %v1853
      %v1855 = vpop.f32.mrb[0].mxu0
      %1856 = vmatprep.mubr.bf16.mxu0 %v979
      %1857 = vmatmul.mubr.bf16.gmra.mrb[0].mxu0 %v978
      %v1858 = vpop.f32.mrb[0].mxu0
      %v1859 = vadd.f32 %v1595, %v1858
      %v1860 = vpop.f32.mrb[0].mxu0
      %v1861 = vpop.f32.mrb[0].mxu0
      %v1862 = vadd.f32 %v1598, %v1861
      %v1863 = vpop.f32.mrb[0].mxu0
      %1864 = vmatprep.mubr.bf16.mxu0 %v984
      %1865 = vmatmul.mubr.bf16.gmra.mrb[0].mxu0 %v983
      %v1866 = vpop.f32.mrb[0].mxu0
      %v1867 = vadd.f32 %v1603, %v1866
      %v1868 = vpop.f32.mrb[0].mxu0
      %v1869 = vpop.f32.mrb[0].mxu0
      %v1870 = vadd.f32 %v1606, %v1869
      %v1871 = vpop.f32.mrb[0].mxu0
      %1872 = vmatprep.mubr.bf16.mxu0 %v989
      %1873 = vmatmul.mubr.bf16.gmra.mrb[0].mxu0 %v988
      %v1874 = vpop.f32.mrb[0].mxu0
      %v1875 = vadd.f32 %v1611, %v1874
      %v1876 = vpop.f32.mrb[0].mxu0
      %v1877 = vpop.f32.mrb[0].mxu0
      %v1878 = vadd.f32 %v1614, %v1877
      %v1879 = vpop.f32.mrb[0].mxu0
      %1880 = vmatprep.mubr.bf16.mxu0 %v994
      %1881 = vmatmul.mubr.bf16.gmra.mrb[0].mxu0 %v993
      %v1882 = vpop.f32.mrb[0].mxu0
      %v1883 = vadd.f32 %v1619, %v1882
      %v1884 = vpop.f32.mrb[0].mxu0
      %v1885 = vpop.f32.mrb[0].mxu0
      %v1886 = vadd.f32 %v1622, %v1885
      %v1887 = vpop.f32.mrb[0].mxu0
      %1888 = vmatprep.mubr.bf16.mxu0 %v999
      %1889 = vmatmul.mubr.bf16.gmra.mrb[0].mxu0 %v998
      %v1890 = vpop.f32.mrb[0].mxu0
      %v1891 = vadd.f32 %v1627, %v1890
      %v1892 = vpop.f32.mrb[0].mxu0
      %v1893 = vpop.f32.mrb[0].mxu0
      %v1894 = vadd.f32 %v1630, %v1893
      %v1895 = vpop.f32.mrb[0].mxu0
      %1896 = vmatprep.mubr.bf16.mxu0 %v1004
      %1897 = vmatmul.mubr.bf16.gmra.mrb[0].mxu0 %v1003
      %v1898 = vpop.f32.mrb[0].mxu0
      %v1899 = vadd.f32 %v1635, %v1898
      %v1900 = vpop.f32.mrb[0].mxu0
      %v1901 = vpop.f32.mrb[0].mxu0
      %v1902 = vadd.f32 %v1638, %v1901
      %v1903 = vpop.f32.mrb[0].mxu0
      %1904 = vmatprep.mubr.bf16.mxu0 %v1009
      %1905 = vmatmul.mubr.bf16.gmra.mrb[0].mxu0 %v1008
      %v1906 = vpop.f32.mrb[0].mxu0
      %v1907 = vadd.f32 %v1643, %v1906
      %v1908 = vpop.f32.mrb[0].mxu0
      %v1909 = vpop.f32.mrb[0].mxu0
      %v1910 = vadd.f32 %v1646, %v1909
      %v1911 = vpop.f32.mrb[0].mxu0
      %1912 = vmatprep.mubr.bf16.mxu0 %v1014
      %1913 = vmatmul.mubr.bf16.gmra.mrb[0].mxu0 %v1013
      %v1914 = vpop.f32.mrb[0].mxu0
      %v1915 = vadd.f32 %v1651, %v1914
      %v1916 = vpop.f32.mrb[0].mxu0
      %v1917 = vpop.f32.mrb[0].mxu0
      %v1918 = vadd.f32 %v1654, %v1917
      %v1919 = vpop.f32.mrb[0].mxu0
      %1920 = vmatprep.mubr.bf16.mxu0 %v1019
      %1921 = vmatmul.mubr.bf16.gmra.mrb[0].mxu0 %v1018
      %v1922 = vpop.f32.mrb[0].mxu0
      %v1923 = vadd.f32 %v1659, %v1922
      %v1924 = vpop.f32.mrb[0].mxu0
      %v1925 = vpop.f32.mrb[0].mxu0
      %v1926 = vadd.f32 %v1662, %v1925
      %v1927 = vpop.f32.mrb[0].mxu0
      %1928 = vmatprep.mubr.bf16.mxu0 %v1024
      %1929 = vmatmul.mubr.bf16.gmra.mrb[0].mxu0 %v1023
      %v1930 = vpop.f32.mrb[0].mxu0
      %v1931 = vadd.f32 %v1667, %v1930
      %v1932 = vpop.f32.mrb[0].mxu0
      %v1933 = vpop.f32.mrb[0].mxu0
      %v1934 = vadd.f32 %v1670, %v1933
      %v1935 = vpop.f32.mrb[0].mxu0
      %1936 = vmatprep.mubr.bf16.mxu0 %v1029
      %1937 = vmatmul.mubr.bf16.gmra.mrb[0].mxu0 %v1028
      %v1938 = vpop.f32.mrb[0].mxu0
      %v1939 = vadd.f32 %v1675, %v1938
      %v1940 = vpop.f32.mrb[0].mxu0
      %v1941 = vpop.f32.mrb[0].mxu0
      %v1942 = vpop.f32.mrb[0].mxu0
      %1943 = vdwg.mxu0
      %1944 = vmatprep.subr.bf16.mxu0 0
      %1945 = vmatpush1.bf16.msra.mxu0 %v1368
      %1946 = vmatprep.subr.bf16.mxu0 0
      %1947 = vmatpush1.bf16.msra.mxu0 %v1369
      %1948 = vmatprep.subr.bf16.mxu0 0
      %1949 = vmatpush1.bf16.msra.mxu0 %v1370
      %1950 = vmatprep.subr.bf16.mxu0 0
      %1951 = vmatpush1.bf16.msra.mxu0 %v1371
      %1952 = vmatprep.subr.bf16.mxu0 0
      %1953 = vmatpush1.bf16.msra.mxu0 %v1372
      %1954 = vmatprep.subr.bf16.mxu0 0
      %1955 = vmatpush1.bf16.msra.mxu0 %v1373
      %1956 = vmatprep.subr.bf16.mxu0 0
      %1957 = vmatpush1.bf16.msra.mxu0 %v1374
      %1958 = vmatprep.subr.bf16.mxu0 0
      %1959 = vmatpush1.bf16.msra.mxu0 %v1375
      %1960 = vmatprep.subr.bf16.mxu0 0
      %1961 = vmatpush1.bf16.msra.mxu0 0
      %1962 = vmatprep.subr.bf16.mxu0 0
      %1963 = vmatpush1.bf16.msra.mxu0 0
      %1964 = vmatprep.subr.bf16.mxu0 0
      %1965 = vmatpush1.bf16.msra.mxu0 0
      %1966 = vmatprep.subr.bf16.mxu0 0
      %1967 = vmatpush1.bf16.msra.mxu0 0
      %1968 = vmatprep.subr.bf16.mxu0 0
      %1969 = vmatpush1.bf16.msra.mxu0 0
      %1970 = vmatprep.subr.bf16.mxu0 0
      %1971 = vmatpush1.bf16.msra.mxu0 0
      %1972 = vmatprep.subr.bf16.mxu0 0
      %1973 = vmatpush1.bf16.msra.mxu0 0
      %1974 = vmatprep.subr.bf16.mxu0 0
      %1975 = vmatpush1.bf16.msra.mxu0 0
      %1976 = vmatprep.mubr.bf16.mxu0 0
      %1977 = vmatmul.mubr.bf16.gmra.mrb[0].mxu0 %v890
      %v1978 = vpop.f32.mrb[0].mxu0
      %v1979 = vadd.f32 %v1715, %v1978
      %v1980 = vpop.f32.mrb[0].mxu0
      %v1981 = vpop.f32.mrb[0].mxu0
      %v1982 = vadd.f32 %v1718, %v1981
      %v1983 = vpop.f32.mrb[0].mxu0
      %1984 = vmatprep.mubr.bf16.mxu0 0
      %1985 = vmatmul.mubr.bf16.gmra.mrb[0].mxu0 %v895
      %v1986 = vpop.f32.mrb[0].mxu0
      %v1987 = vadd.f32 %v1723, %v1986
      %v1988 = vpop.f32.mrb[0].mxu0
      %v1989 = vpop.f32.mrb[0].mxu0
      %v1990 = vadd.f32 %v1726, %v1989
      %v1991 = vpop.f32.mrb[0].mxu0
      %1992 = vmatprep.mubr.bf16.mxu0 0
      %1993 = vmatmul.mubr.bf16.gmra.mrb[0].mxu0 %v900
      %v1994 = vpop.f32.mrb[0].mxu0
      %v1995 = vadd.f32 %v1731, %v1994
      %v1996 = vpop.f32.mrb[0].mxu0
      %v1997 = vpop.f32.mrb[0].mxu0
      %v1998 = vadd.f32 %v1734, %v1997
      %v1999 = vpop.f32.mrb[0].mxu0
      %2000 = vmatprep.mubr.bf16.mxu0 0
      %2001 = vmatmul.mubr.bf16.gmra.mrb[0].mxu0 %v905
      %v2002 = vpop.f32.mrb[0].mxu0
      %v2003 = vadd.f32 %v1739, %v2002
      %v2004 = vpop.f32.mrb[0].mxu0
      %v2005 = vpop.f32.mrb[0].mxu0
      %v2006 = vadd.f32 %v1742, %v2005
      %v2007 = vpop.f32.mrb[0].mxu0
      %2008 = vmatprep.mubr.bf16.mxu0 0
      %2009 = vmatmul.mubr.bf16.gmra.mrb[0].mxu0 %v910
      %v2010 = vpop.f32.mrb[0].mxu0
      %v2011 = vadd.f32 %v1747, %v2010
      %v2012 = vpop.f32.mrb[0].mxu0
      %v2013 = vpop.f32.mrb[0].mxu0
      %v2014 = vadd.f32 %v1750, %v2013
      %v2015 = vpop.f32.mrb[0].mxu0
      %2016 = vmatprep.mubr.bf16.mxu0 0
      %2017 = vmatmul.mubr.bf16.gmra.mrb[0].mxu0 %v915
      %v2018 = vpop.f32.mrb[0].mxu0
      %v2019 = vadd.f32 %v1755, %v2018
      %v2020 = vpop.f32.mrb[0].mxu0
      %v2021 = vpop.f32.mrb[0].mxu0
      %v2022 = vadd.f32 %v1758, %v2021
      %v2023 = vpop.f32.mrb[0].mxu0
      %2024 = vmatprep.mubr.bf16.mxu0 0
      %2025 = vmatmul.mubr.bf16.gmra.mrb[0].mxu0 %v920
      %v2026 = vpop.f32.mrb[0].mxu0
      %v2027 = vadd.f32 %v1763, %v2026
      %v2028 = vpop.f32.mrb[0].mxu0
      %v2029 = vpop.f32.mrb[0].mxu0
      %v2030 = vadd.f32 %v1766, %v2029
      %v2031 = vpop.f32.mrb[0].mxu0
      %2032 = vmatprep.mubr.bf16.mxu0 0
      %2033 = vmatmul.mubr.bf16.gmra.mrb[0].mxu0 %v925
      %v2034 = vpop.f32.mrb[0].mxu0
      %v2035 = vadd.f32 %v1771, %v2034
      %v2036 = vpop.f32.mrb[0].mxu0
      %v2037 = vpop.f32.mrb[0].mxu0
      %v2038 = vadd.f32 %v1774, %v2037
      %v2039 = vpop.f32.mrb[0].mxu0
      %2040 = vmatprep.mubr.bf16.mxu0 0
      %2041 = vmatmul.mubr.bf16.gmra.mrb[0].mxu0 %v930
      %v2042 = vpop.f32.mrb[0].mxu0
      %v2043 = vadd.f32 %v1779, %v2042
      %v2044 = vpop.f32.mrb[0].mxu0
      %v2045 = vpop.f32.mrb[0].mxu0
      %v2046 = vadd.f32 %v1782, %v2045
      %v2047 = vpop.f32.mrb[0].mxu0
      %2048 = vmatprep.mubr.bf16.mxu0 0
      %2049 = vmatmul.mubr.bf16.gmra.mrb[0].mxu0 %v935
      %v2050 = vpop.f32.mrb[0].mxu0
      %v2051 = vadd.f32 %v1787, %v2050
      %v2052 = vpop.f32.mrb[0].mxu0
      %v2053 = vpop.f32.mrb[0].mxu0
      %v2054 = vadd.f32 %v1790, %v2053
      %v2055 = vpop.f32.mrb[0].mxu0
      %2056 = vmatprep.mubr.bf16.mxu0 0
      %2057 = vmatmul.mubr.bf16.gmra.mrb[0].mxu0 %v940
      %v2058 = vpop.f32.mrb[0].mxu0
      %v2059 = vadd.f32 %v1795, %v2058
      %v2060 = vpop.f32.mrb[0].mxu0
      %v2061 = vpop.f32.mrb[0].mxu0
      %v2062 = vadd.f32 %v1798, %v2061
      %v2063 = vpop.f32.mrb[0].mxu0
      %2064 = vmatprep.mubr.bf16.mxu0 0
      %2065 = vmatmul.mubr.bf16.gmra.mrb[0].mxu0 %v945
      %v2066 = vpop.f32.mrb[0].mxu0
      %v2067 = vadd.f32 %v1803, %v2066
      %v2068 = vpop.f32.mrb[0].mxu0
      %v2069 = vpop.f32.mrb[0].mxu0
      %v2070 = vadd.f32 %v1806, %v2069
      %v2071 = vpop.f32.mrb[0].mxu0
      %2072 = vmatprep.mubr.bf16.mxu0 0
      %2073 = vmatmul.mubr.bf16.gmra.mrb[0].mxu0 %v950
      %v2074 = vpop.f32.mrb[0].mxu0
      %v2075 = vadd.f32 %v1811, %v2074
      %v2076 = vpop.f32.mrb[0].mxu0
      %v2077 = vpop.f32.mrb[0].mxu0
      %v2078 = vadd.f32 %v1814, %v2077
      %v2079 = vpop.f32.mrb[0].mxu0
      %2080 = vmatprep.mubr.bf16.mxu0 0
      %2081 = vmatmul.mubr.bf16.gmra.mrb[0].mxu0 %v955
      %v2082 = vpop.f32.mrb[0].mxu0
      %v2083 = vadd.f32 %v1819, %v2082
      %v2084 = vpop.f32.mrb[0].mxu0
      %v2085 = vpop.f32.mrb[0].mxu0
      %v2086 = vadd.f32 %v1822, %v2085
      %v2087 = vpop.f32.mrb[0].mxu0
      %2088 = vmatprep.mubr.bf16.mxu0 0
      %2089 = vmatmul.mubr.bf16.gmra.mrb[0].mxu0 %v960
      %v2090 = vpop.f32.mrb[0].mxu0
      %v2091 = vadd.f32 %v1827, %v2090
      %v2092 = vpop.f32.mrb[0].mxu0
      %v2093 = vpop.f32.mrb[0].mxu0
      %v2094 = vadd.f32 %v1830, %v2093
      %v2095 = vpop.f32.mrb[0].mxu0
      %2096 = vmatprep.mubr.bf16.mxu0 0
      %2097 = vmatmul.mubr.bf16.gmra.mrb[0].mxu0 %v965
      %v2098 = vpop.f32.mrb[0].mxu0
      %v2099 = vadd.f32 %v1835, %v2098
      %v2100 = vpop.f32.mrb[0].mxu0
      %v2101 = vpop.f32.mrb[0].mxu0
      %v2102 = vadd.f32 %v1838, %v2101
      %v2103 = vpop.f32.mrb[0].mxu0
      %2104 = vmatprep.mubr.bf16.mxu0 0
      %2105 = vmatmul.mubr.bf16.gmra.mrb[0].mxu0 %v970
      %v2106 = vpop.f32.mrb[0].mxu0
      %v2107 = vadd.f32 %v1843, %v2106
      %v2108 = vpop.f32.mrb[0].mxu0
      %v2109 = vpop.f32.mrb[0].mxu0
      %v2110 = vadd.f32 %v1846, %v2109
      %v2111 = vpop.f32.mrb[0].mxu0
      %2112 = vmatprep.mubr.bf16.mxu0 0
      %2113 = vmatmul.mubr.bf16.gmra.mrb[0].mxu0 %v975
      %v2114 = vpop.f32.mrb[0].mxu0
      %v2115 = vadd.f32 %v1851, %v2114
      %v2116 = vpop.f32.mrb[0].mxu0
      %v2117 = vpop.f32.mrb[0].mxu0
      %v2118 = vadd.f32 %v1854, %v2117
      %v2119 = vpop.f32.mrb[0].mxu0
      %2120 = vmatprep.mubr.bf16.mxu0 0
      %2121 = vmatmul.mubr.bf16.gmra.mrb[0].mxu0 %v980
      %v2122 = vpop.f32.mrb[0].mxu0
      %v2123 = vadd.f32 %v1859, %v2122
      %v2124 = vpop.f32.mrb[0].mxu0
      %v2125 = vpop.f32.mrb[0].mxu0
      %v2126 = vadd.f32 %v1862, %v2125
      %v2127 = vpop.f32.mrb[0].mxu0
      %2128 = vmatprep.mubr.bf16.mxu0 0
      %2129 = vmatmul.mubr.bf16.gmra.mrb[0].mxu0 %v985
      %v2130 = vpop.f32.mrb[0].mxu0
      %v2131 = vadd.f32 %v1867, %v2130
      %v2132 = vpop.f32.mrb[0].mxu0
      %v2133 = vpop.f32.mrb[0].mxu0
      %v2134 = vadd.f32 %v1870, %v2133
      %v2135 = vpop.f32.mrb[0].mxu0
      %2136 = vmatprep.mubr.bf16.mxu0 0
      %2137 = vmatmul.mubr.bf16.gmra.mrb[0].mxu0 %v990
      %v2138 = vpop.f32.mrb[0].mxu0
      %v2139 = vadd.f32 %v1875, %v2138
      %v2140 = vpop.f32.mrb[0].mxu0
      %v2141 = vpop.f32.mrb[0].mxu0
      %v2142 = vadd.f32 %v1878, %v2141
      %v2143 = vpop.f32.mrb[0].mxu0
      %2144 = vmatprep.mubr.bf16.mxu0 0
      %2145 = vmatmul.mubr.bf16.gmra.mrb[0].mxu0 %v995
      %v2146 = vpop.f32.mrb[0].mxu0
      %v2147 = vadd.f32 %v1883, %v2146
      %v2148 = vpop.f32.mrb[0].mxu0
      %v2149 = vpop.f32.mrb[0].mxu0
      %v2150 = vadd.f32 %v1886, %v2149
      %v2151 = vpop.f32.mrb[0].mxu0
      %2152 = vmatprep.mubr.bf16.mxu0 0
      %2153 = vmatmul.mubr.bf16.gmra.mrb[0].mxu0 %v1000
      %v2154 = vpop.f32.mrb[0].mxu0
      %v2155 = vadd.f32 %v1891, %v2154
      %v2156 = vpop.f32.mrb[0].mxu0
      %v2157 = vpop.f32.mrb[0].mxu0
      %v2158 = vadd.f32 %v1894, %v2157
      %v2159 = vpop.f32.mrb[0].mxu0
      %2160 = vmatprep.mubr.bf16.mxu0 0
      %2161 = vmatmul.mubr.bf16.gmra.mrb[0].mxu0 %v1005
      %v2162 = vpop.f32.mrb[0].mxu0
      %v2163 = vadd.f32 %v1899, %v2162
      %v2164 = vpop.f32.mrb[0].mxu0
      %v2165 = vpop.f32.mrb[0].mxu0
      %v2166 = vadd.f32 %v1902, %v2165
      %v2167 = vpop.f32.mrb[0].mxu0
      %2168 = vmatprep.mubr.bf16.mxu0 0
      %2169 = vmatmul.mubr.bf16.gmra.mrb[0].mxu0 %v1010
      %v2170 = vpop.f32.mrb[0].mxu0
      %v2171 = vadd.f32 %v1907, %v2170
      %v2172 = vpop.f32.mrb[0].mxu0
      %v2173 = vpop.f32.mrb[0].mxu0
      %v2174 = vadd.f32 %v1910, %v2173
      %v2175 = vpop.f32.mrb[0].mxu0
      %2176 = vmatprep.mubr.bf16.mxu0 0
      %2177 = vmatmul.mubr.bf16.gmra.mrb[0].mxu0 %v1015
      %v2178 = vpop.f32.mrb[0].mxu0
      %v2179 = vadd.f32 %v1915, %v2178
      %v2180 = vpop.f32.mrb[0].mxu0
      %v2181 = vpop.f32.mrb[0].mxu0
      %v2182 = vadd.f32 %v1918, %v2181
      %v2183 = vpop.f32.mrb[0].mxu0
      %2184 = vmatprep.mubr.bf16.mxu0 0
      %2185 = vmatmul.mubr.bf16.gmra.mrb[0].mxu0 %v1020
      %v2186 = vpop.f32.mrb[0].mxu0
      %v2187 = vadd.f32 %v1923, %v2186
      %v2188 = vpop.f32.mrb[0].mxu0
      %v2189 = vpop.f32.mrb[0].mxu0
      %v2190 = vadd.f32 %v1926, %v2189
      %v2191 = vpop.f32.mrb[0].mxu0
      %2192 = vmatprep.mubr.bf16.mxu0 0
      %2193 = vmatmul.mubr.bf16.gmra.mrb[0].mxu0 %v1025
      %v2194 = vpop.f32.mrb[0].mxu0
      %v2195 = vadd.f32 %v1931, %v2194
      %v2196 = vpop.f32.mrb[0].mxu0
      %v2197 = vpop.f32.mrb[0].mxu0
      %v2198 = vadd.f32 %v1934, %v2197
      %v2199 = vpop.f32.mrb[0].mxu0
      %2200 = vmatprep.mubr.bf16.mxu0 0
      %2201 = vmatmul.mubr.bf16.gmra.mrb[0].mxu0 %v1030
      %v2202 = vpop.f32.mrb[0].mxu0
      %v2203 = vadd.f32 %v1939, %v2202
      %v2204 = vpop.f32.mrb[0].mxu0
      %v2205 = vpop.f32.mrb[0].mxu0
      %v2206 = vpop.f32.mrb[0].mxu0
      %2207 = vdwg.mxu0
      %v2208 = vadd.f32 %v1979, %v1982
      %v2209 = vadd.f32 %v2208, %v1987
      %v2210 = vadd.f32 %v2209, %v1990
      %v2211 = vadd.f32 %v2210, %v1995
      %v2212 = vadd.f32 %v2211, %v1998
      %v2213 = vadd.f32 %v2212, %v2003
      %v2214 = vadd.f32 %v2213, %v2006
      %v2215 = vadd.f32 %v2214, %v2011
      %v2216 = vadd.f32 %v2215, %v2014
      %v2217 = vadd.f32 %v2216, %v2019
      %v2218 = vadd.f32 %v2217, %v2022
      %v2219 = vadd.f32 %v2218, %v2027
      %v2220 = vadd.f32 %v2219, %v2030
      %v2221 = vadd.f32 %v2220, %v2035
      %v2222 = vadd.f32 %v2221, %v2038
      %v2223 = vadd.f32 %v2222, %v2043
      %v2224 = vadd.f32 %v2223, %v2046
      %v2225 = vadd.f32 %v2224, %v2051
      %v2226 = vadd.f32 %v2225, %v2054
      %v2227 = vadd.f32 %v2226, %v2059
      %v2228 = vadd.f32 %v2227, %v2062
      %v2229 = vadd.f32 %v2228, %v2067
      %v2230 = vadd.f32 %v2229, %v2070
      %v2231 = vadd.f32 %v2230, %v2075
      %v2232 = vadd.f32 %v2231, %v2078
      %v2233 = vadd.f32 %v2232, %v2083
      %v2234 = vadd.f32 %v2233, %v2086
      %v2235 = vadd.f32 %v2234, %v2091
      %v2236 = vadd.f32 %v2235, %v2094
      %v2237 = vadd.f32 %v2236, %v2099
      %v2238 = vadd.f32 %v2237, %v2102
      %v2239 = vadd.f32 %v2238, %v2107
      %v2240 = vadd.f32 %v2239, %v2110
      %v2241 = vadd.f32 %v2240, %v2115
      %v2242 = vadd.f32 %v2241, %v2118
      %v2243 = vadd.f32 %v2242, %v2123
      %v2244 = vadd.f32 %v2243, %v2126
      %v2245 = vadd.f32 %v2244, %v2131
      %v2246 = vadd.f32 %v2245, %v2134
      %v2247 = vadd.f32 %v2246, %v2139
      %v2248 = vadd.f32 %v2247, %v2142
      %v2249 = vadd.f32 %v2248, %v2147
      %v2250 = vadd.f32 %v2249, %v2150
      %v2251 = vadd.f32 %v2250, %v2155
      %v2252 = vadd.f32 %v2251, %v2158
      %v2253 = vadd.f32 %v2252, %v2163
      %v2254 = vadd.f32 %v2253, %v2166
      %v2255 = vadd.f32 %v2254, %v2171
      %v2256 = vadd.f32 %v2255, %v2174
      %v2257 = vadd.f32 %v2256, %v2179
      %v2258 = vadd.f32 %v2257, %v2182
      %v2259 = vadd.f32 %v2258, %v2187
      %v2260 = vadd.f32 %v2259, %v2190
      %v2261 = vadd.f32 %v2260, %v2195
      %v2262 = vadd.f32 %v2261, %v2198
      %vm2263 = vcmask 1041408
      %v2264 = vsel %vm2263, %v2203, 0.0
      %v2265 = vadd.f32 %v2262, %v2264
      %v2266 = vrot.slane %v2265, 4
      %v2267 = vadd.f32 %v2265, %v2266
      %v2268 = vrot.slane %v2267, 2
      %v2269 = vadd.f32 %v2267, %v2268
      %v2270 = vrot.slane %v2269, 1
      %v2271 = vadd.f32 %v2269, %v2270
      %v2272 = vmul.f32 %v1979, %v1979
      %v2273 = vmul.f32 %v1982, %v1982
      %v2274 = vmul.f32 %v1987, %v1987
      %v2275 = vmul.f32 %v1990, %v1990
      %v2276 = vmul.f32 %v1995, %v1995
      %v2277 = vmul.f32 %v1998, %v1998
      %v2278 = vmul.f32 %v2003, %v2003
      %v2279 = vmul.f32 %v2006, %v2006
      %v2280 = vmul.f32 %v2011, %v2011
      %v2281 = vmul.f32 %v2014, %v2014
      %v2282 = vmul.f32 %v2019, %v2019
      %v2283 = vmul.f32 %v2022, %v2022
      %v2284 = vmul.f32 %v2027, %v2027
      %v2285 = vmul.f32 %v2030, %v2030
      %v2286 = vmul.f32 %v2035, %v2035
      %v2287 = vmul.f32 %v2038, %v2038
      %v2288 = vmul.f32 %v2043, %v2043
      %v2289 = vmul.f32 %v2046, %v2046
      %v2290 = vmul.f32 %v2051, %v2051
      %v2291 = vmul.f32 %v2054, %v2054
      %v2292 = vmul.f32 %v2059, %v2059
      %v2293 = vmul.f32 %v2062, %v2062
      %v2294 = vmul.f32 %v2067, %v2067
      %v2295 = vmul.f32 %v2070, %v2070
      %v2296 = vmul.f32 %v2075, %v2075
      %v2297 = vmul.f32 %v2078, %v2078
      %v2298 = vmul.f32 %v2083, %v2083
      %v2299 = vmul.f32 %v2086, %v2086
      %v2300 = vmul.f32 %v2091, %v2091
      %v2301 = vmul.f32 %v2094, %v2094
      %v2302 = vmul.f32 %v2099, %v2099
      %v2303 = vmul.f32 %v2102, %v2102
      %v2304 = vmul.f32 %v2107, %v2107
      %v2305 = vmul.f32 %v2110, %v2110
      %v2306 = vmul.f32 %v2115, %v2115
      %v2307 = vmul.f32 %v2118, %v2118
      %v2308 = vmul.f32 %v2123, %v2123
      %v2309 = vmul.f32 %v2126, %v2126
      %v2310 = vmul.f32 %v2131, %v2131
      %v2311 = vmul.f32 %v2134, %v2134
      %v2312 = vmul.f32 %v2139, %v2139
      %v2313 = vmul.f32 %v2142, %v2142
      %v2314 = vmul.f32 %v2147, %v2147
      %v2315 = vmul.f32 %v2150, %v2150
      %v2316 = vmul.f32 %v2155, %v2155
      %v2317 = vmul.f32 %v2158, %v2158
      %v2318 = vmul.f32 %v2163, %v2163
      %v2319 = vmul.f32 %v2166, %v2166
      %v2320 = vmul.f32 %v2171, %v2171
      %v2321 = vmul.f32 %v2174, %v2174
      %v2322 = vmul.f32 %v2179, %v2179
      %v2323 = vmul.f32 %v2182, %v2182
      %v2324 = vmul.f32 %v2187, %v2187
      %v2325 = vmul.f32 %v2190, %v2190
      %v2326 = vmul.f32 %v2195, %v2195
      %v2327 = vmul.f32 %v2198, %v2198
      %v2328 = vmul.f32 %v2203, %v2203
      %v2329 = vadd.f32 %v2272, %v2273
      %v2330 = vadd.f32 %v2329, %v2274
      %v2331 = vadd.f32 %v2330, %v2275
      %v2332 = vadd.f32 %v2331, %v2276
      %v2333 = vadd.f32 %v2332, %v2277
      %v2334 = vadd.f32 %v2333, %v2278
      %v2335 = vadd.f32 %v2334, %v2279
      %v2336 = vadd.f32 %v2335, %v2280
      %v2337 = vadd.f32 %v2336, %v2281
      %v2338 = vadd.f32 %v2337, %v2282
      %v2339 = vadd.f32 %v2338, %v2283
      %v2340 = vadd.f32 %v2339, %v2284
      %v2341 = vadd.f32 %v2340, %v2285
      %v2342 = vadd.f32 %v2341, %v2286
      %v2343 = vadd.f32 %v2342, %v2287
      %v2344 = vadd.f32 %v2343, %v2288
      %v2345 = vadd.f32 %v2344, %v2289
      %v2346 = vadd.f32 %v2345, %v2290
      %v2347 = vadd.f32 %v2346, %v2291
      %v2348 = vadd.f32 %v2347, %v2292
      %v2349 = vadd.f32 %v2348, %v2293
      %v2350 = vadd.f32 %v2349, %v2294
      %v2351 = vadd.f32 %v2350, %v2295
      %v2352 = vadd.f32 %v2351, %v2296
      %v2353 = vadd.f32 %v2352, %v2297
      %v2354 = vadd.f32 %v2353, %v2298
      %v2355 = vadd.f32 %v2354, %v2299
      %v2356 = vadd.f32 %v2355, %v2300
      %v2357 = vadd.f32 %v2356, %v2301
      %v2358 = vadd.f32 %v2357, %v2302
      %v2359 = vadd.f32 %v2358, %v2303
      %v2360 = vadd.f32 %v2359, %v2304
      %v2361 = vadd.f32 %v2360, %v2305
      %v2362 = vadd.f32 %v2361, %v2306
      %v2363 = vadd.f32 %v2362, %v2307
      %v2364 = vadd.f32 %v2363, %v2308
      %v2365 = vadd.f32 %v2364, %v2309
      %v2366 = vadd.f32 %v2365, %v2310
      %v2367 = vadd.f32 %v2366, %v2311
      %v2368 = vadd.f32 %v2367, %v2312
      %v2369 = vadd.f32 %v2368, %v2313
      %v2370 = vadd.f32 %v2369, %v2314
      %v2371 = vadd.f32 %v2370, %v2315
      %v2372 = vadd.f32 %v2371, %v2316
      %v2373 = vadd.f32 %v2372, %v2317
      %v2374 = vadd.f32 %v2373, %v2318
      %v2375 = vadd.f32 %v2374, %v2319
      %v2376 = vadd.f32 %v2375, %v2320
      %v2377 = vadd.f32 %v2376, %v2321
      %v2378 = vadd.f32 %v2377, %v2322
      %v2379 = vadd.f32 %v2378, %v2323
      %v2380 = vadd.f32 %v2379, %v2324
      %v2381 = vadd.f32 %v2380, %v2325
      %v2382 = vadd.f32 %v2381, %v2326
      %v2383 = vadd.f32 %v2382, %v2327
      %v2384 = vsel %vm2263, %v2328, 0.0
      %v2385 = vadd.f32 %v2383, %v2384
      %v2386 = vrot.slane %v2385, 4
      %v2387 = vadd.f32 %v2385, %v2386
      %v2388 = vrot.slane %v2387, 2
      %v2389 = vadd.f32 %v2387, %v2388
      %v2390 = vrot.slane %v2389, 1
      %v2391 = vadd.f32 %v2389, %v2390
      %v2392 = vmul.f32 %v2271, 0.0022222223
      %v2393 = vmul.f32 %v2391, 0.0022222223
      %v2394 = vmul.f32 %v2392, %v2392
      %v2395 = vsub.f32 %v2393, %v2394
      %v2396 = vmax.f32 %v2395, 0.0
      %v2397 = vsub.f32 %v1979, %v2392
      %v2398 = vsub.f32 %v1982, %v2392
      %v2399 = vsub.f32 %v1987, %v2392
      %v2400 = vsub.f32 %v1990, %v2392
      %v2401 = vsub.f32 %v1995, %v2392
      %v2402 = vsub.f32 %v1998, %v2392
      %v2403 = vsub.f32 %v2003, %v2392
      %v2404 = vsub.f32 %v2006, %v2392
      %v2405 = vsub.f32 %v2011, %v2392
      %v2406 = vsub.f32 %v2014, %v2392
      %v2407 = vsub.f32 %v2019, %v2392
      %v2408 = vsub.f32 %v2022, %v2392
      %v2409 = vsub.f32 %v2027, %v2392
      %v2410 = vsub.f32 %v2030, %v2392
      %v2411 = vsub.f32 %v2035, %v2392
      %v2412 = vsub.f32 %v2038, %v2392
      %v2413 = vsub.f32 %v2043, %v2392
      %v2414 = vsub.f32 %v2046, %v2392
      %v2415 = vsub.f32 %v2051, %v2392
      %v2416 = vsub.f32 %v2054, %v2392
      %v2417 = vsub.f32 %v2059, %v2392
      %v2418 = vsub.f32 %v2062, %v2392
      %v2419 = vsub.f32 %v2067, %v2392
      %v2420 = vsub.f32 %v2070, %v2392
      %v2421 = vsub.f32 %v2075, %v2392
      %v2422 = vsub.f32 %v2078, %v2392
      %v2423 = vsub.f32 %v2083, %v2392
      %v2424 = vsub.f32 %v2086, %v2392
      %v2425 = vsub.f32 %v2091, %v2392
      %v2426 = vsub.f32 %v2094, %v2392
      %v2427 = vsub.f32 %v2099, %v2392
      %v2428 = vsub.f32 %v2102, %v2392
      %v2429 = vsub.f32 %v2107, %v2392
      %v2430 = vsub.f32 %v2110, %v2392
      %v2431 = vsub.f32 %v2115, %v2392
      %v2432 = vsub.f32 %v2118, %v2392
      %v2433 = vsub.f32 %v2123, %v2392
      %v2434 = vsub.f32 %v2126, %v2392
      %v2435 = vsub.f32 %v2131, %v2392
      %v2436 = vsub.f32 %v2134, %v2392
      %v2437 = vsub.f32 %v2139, %v2392
      %v2438 = vsub.f32 %v2142, %v2392
      %v2439 = vsub.f32 %v2147, %v2392
      %v2440 = vsub.f32 %v2150, %v2392
      %v2441 = vsub.f32 %v2155, %v2392
      %v2442 = vsub.f32 %v2158, %v2392
      %v2443 = vsub.f32 %v2163, %v2392
      %v2444 = vsub.f32 %v2166, %v2392
      %v2445 = vsub.f32 %v2171, %v2392
      %v2446 = vsub.f32 %v2174, %v2392
      %v2447 = vsub.f32 %v2179, %v2392
      %v2448 = vsub.f32 %v2182, %v2392
      %v2449 = vsub.f32 %v2187, %v2392
      %v2450 = vsub.f32 %v2190, %v2392
      %v2451 = vsub.f32 %v2195, %v2392
      %v2452 = vsub.f32 %v2198, %v2392
      %v2453 = vsub.f32 %v2203, %v2392
      %v2454 = vadd.f32 %v2396, 1e-05
      %v2455 = vrsqrt.pop %v2454
      %v2456 = vmul.f32 %v2397, %v2455
      %v2457 = vmul.f32 %v2398, %v2455
      %v2458 = vmul.f32 %v2399, %v2455
      %v2459 = vmul.f32 %v2400, %v2455
      %v2460 = vmul.f32 %v2401, %v2455
      %v2461 = vmul.f32 %v2402, %v2455
      %v2462 = vmul.f32 %v2403, %v2455
      %v2463 = vmul.f32 %v2404, %v2455
      %v2464 = vmul.f32 %v2405, %v2455
      %v2465 = vmul.f32 %v2406, %v2455
      %v2466 = vmul.f32 %v2407, %v2455
      %v2467 = vmul.f32 %v2408, %v2455
      %v2468 = vmul.f32 %v2409, %v2455
      %v2469 = vmul.f32 %v2410, %v2455
      %v2470 = vmul.f32 %v2411, %v2455
      %v2471 = vmul.f32 %v2412, %v2455
      %v2472 = vmul.f32 %v2413, %v2455
      %v2473 = vmul.f32 %v2414, %v2455
      %v2474 = vmul.f32 %v2415, %v2455
      %v2475 = vmul.f32 %v2416, %v2455
      %v2476 = vmul.f32 %v2417, %v2455
      %v2477 = vmul.f32 %v2418, %v2455
      %v2478 = vmul.f32 %v2419, %v2455
      %v2479 = vmul.f32 %v2420, %v2455
      %v2480 = vmul.f32 %v2421, %v2455
      %v2481 = vmul.f32 %v2422, %v2455
      %v2482 = vmul.f32 %v2423, %v2455
      %v2483 = vmul.f32 %v2424, %v2455
      %v2484 = vmul.f32 %v2425, %v2455
      %v2485 = vmul.f32 %v2426, %v2455
      %v2486 = vmul.f32 %v2427, %v2455
      %v2487 = vmul.f32 %v2428, %v2455
      %v2488 = vmul.f32 %v2429, %v2455
      %v2489 = vmul.f32 %v2430, %v2455
      %v2490 = vmul.f32 %v2431, %v2455
      %v2491 = vmul.f32 %v2432, %v2455
      %v2492 = vmul.f32 %v2433, %v2455
      %v2493 = vmul.f32 %v2434, %v2455
      %v2494 = vmul.f32 %v2435, %v2455
      %v2495 = vmul.f32 %v2436, %v2455
      %v2496 = vmul.f32 %v2437, %v2455
      %v2497 = vmul.f32 %v2438, %v2455
      %v2498 = vmul.f32 %v2439, %v2455
      %v2499 = vmul.f32 %v2440, %v2455
      %v2500 = vmul.f32 %v2441, %v2455
      %v2501 = vmul.f32 %v2442, %v2455
      %v2502 = vmul.f32 %v2443, %v2455
      %v2503 = vmul.f32 %v2444, %v2455
      %v2504 = vmul.f32 %v2445, %v2455
      %v2505 = vmul.f32 %v2446, %v2455
      %v2506 = vmul.f32 %v2447, %v2455
      %v2507 = vmul.f32 %v2448, %v2455
      %v2508 = vmul.f32 %v2449, %v2455
      %v2509 = vmul.f32 %v2450, %v2455
      %v2510 = vmul.f32 %v2451, %v2455
      %v2511 = vmul.f32 %v2452, %v2455
      %v2512 = vmul.f32 %v2453, %v2455
      %v2513 = vmax.f32 %v2456, 0.0
      %v2514 = vmax.f32 %v2457, 0.0
      %v2515 = vmax.f32 %v2458, 0.0
      %v2516 = vmax.f32 %v2459, 0.0
      %v2517 = vmax.f32 %v2460, 0.0
      %v2518 = vmax.f32 %v2461, 0.0
      %v2519 = vmax.f32 %v2462, 0.0
      %v2520 = vmax.f32 %v2463, 0.0
      %v2521 = vmax.f32 %v2464, 0.0
      %v2522 = vmax.f32 %v2465, 0.0
      %v2523 = vmax.f32 %v2466, 0.0
      %v2524 = vmax.f32 %v2467, 0.0
      %v2525 = vmax.f32 %v2468, 0.0
      %v2526 = vmax.f32 %v2469, 0.0
      %v2527 = vmax.f32 %v2470, 0.0
      %v2528 = vmax.f32 %v2471, 0.0
      %v2529 = vmax.f32 %v2472, 0.0
      %v2530 = vmax.f32 %v2473, 0.0
      %v2531 = vmax.f32 %v2474, 0.0
      %v2532 = vmax.f32 %v2475, 0.0
      %v2533 = vmax.f32 %v2476, 0.0
      %v2534 = vmax.f32 %v2477, 0.0
      %v2535 = vmax.f32 %v2478, 0.0
      %v2536 = vmax.f32 %v2479, 0.0
      %v2537 = vmax.f32 %v2480, 0.0
      %v2538 = vmax.f32 %v2481, 0.0
      %v2539 = vmax.f32 %v2482, 0.0
      %v2540 = vmax.f32 %v2483, 0.0
      %v2541 = vmax.f32 %v2484, 0.0
      %v2542 = vmax.f32 %v2485, 0.0
      %v2543 = vmax.f32 %v2486, 0.0
      %v2544 = vmax.f32 %v2487, 0.0
      %v2545 = vmax.f32 %v2488, 0.0
      %v2546 = vmax.f32 %v2489, 0.0
      %v2547 = vmax.f32 %v2490, 0.0
      %v2548 = vmax.f32 %v2491, 0.0
      %v2549 = vmax.f32 %v2492, 0.0
      %v2550 = vmax.f32 %v2493, 0.0
      %v2551 = vmax.f32 %v2494, 0.0
      %v2552 = vmax.f32 %v2495, 0.0
      %v2553 = vmax.f32 %v2496, 0.0
      %v2554 = vmax.f32 %v2497, 0.0
      %v2555 = vmax.f32 %v2498, 0.0
      %v2556 = vmax.f32 %v2499, 0.0
      %v2557 = vmax.f32 %v2500, 0.0
      %v2558 = vmax.f32 %v2501, 0.0
      %v2559 = vmax.f32 %v2502, 0.0
      %v2560 = vmax.f32 %v2503, 0.0
      %v2561 = vmax.f32 %v2504, 0.0
      %v2562 = vmax.f32 %v2505, 0.0
      %v2563 = vmax.f32 %v2506, 0.0
      %v2564 = vmax.f32 %v2507, 0.0
      %v2565 = vmax.f32 %v2508, 0.0
      %v2566 = vmax.f32 %v2509, 0.0
      %v2567 = vmax.f32 %v2510, 0.0
      %v2568 = vmax.f32 %v2511, 0.0
      %v2569 = vmax.f32 %v2512, 0.0
      %v2570 = vpack.c.bf16 %v2514, %v2513
      %v2571 = vpack.c.bf16 %v2516, %v2515
      %v2572 = vpack.c.bf16 %v2518, %v2517
      %v2573 = vpack.c.bf16 %v2520, %v2519
      %v2574 = vpack.c.bf16 %v2522, %v2521
      %v2575 = vpack.c.bf16 %v2524, %v2523
      %v2576 = vpack.c.bf16 %v2526, %v2525
      %v2577 = vpack.c.bf16 %v2528, %v2527
      %v2578 = vpack.c.bf16 %v2530, %v2529
      %v2579 = vpack.c.bf16 %v2532, %v2531
      %v2580 = vpack.c.bf16 %v2534, %v2533
      %v2581 = vpack.c.bf16 %v2536, %v2535
      %v2582 = vpack.c.bf16 %v2538, %v2537
      %v2583 = vpack.c.bf16 %v2540, %v2539
      %v2584 = vpack.c.bf16 %v2542, %v2541
      %v2585 = vpack.c.bf16 %v2544, %v2543
      %v2586 = vpack.c.bf16 %v2546, %v2545
      %v2587 = vpack.c.bf16 %v2548, %v2547
      %v2588 = vpack.c.bf16 %v2550, %v2549
      %v2589 = vpack.c.bf16 %v2552, %v2551
      %v2590 = vpack.c.bf16 %v2554, %v2553
      %v2591 = vpack.c.bf16 %v2556, %v2555
      %v2592 = vpack.c.bf16 %v2558, %v2557
      %v2593 = vpack.c.bf16 %v2560, %v2559
      %v2594 = vpack.c.bf16 %v2562, %v2561
      %v2595 = vpack.c.bf16 %v2564, %v2563
      %v2596 = vpack.c.bf16 %v2566, %v2565
      %v2597 = vpack.c.bf16 %v2568, %v2567
      %v2598 = vpack.c.bf16 %v2569, %v2569
      %v2628 = vunpack.c.l.b16 %v2570
      %v2629 = vunpack.c.h.b16 %v2570
      %v2630 = vunpack.c.l.b16 %v2571
      %v2631 = vunpack.c.h.b16 %v2571
      %v2632 = vunpack.c.l.b16 %v2572
      %v2633 = vunpack.c.h.b16 %v2572
      %v2634 = vunpack.c.l.b16 %v2573
      %v2635 = vunpack.c.h.b16 %v2573
      %v2636 = vunpack.c.l.b16 %v2574
      %v2637 = vunpack.c.h.b16 %v2574
      %v2638 = vunpack.c.l.b16 %v2575
      %v2639 = vunpack.c.h.b16 %v2575
      %v2640 = vunpack.c.l.b16 %v2576
      %v2641 = vunpack.c.h.b16 %v2576
      %v2642 = vunpack.c.l.b16 %v2577
      %v2643 = vunpack.c.h.b16 %v2577
      %v2644 = vunpack.c.l.b16 %v2578
      %v2645 = vunpack.c.h.b16 %v2578
      %v2646 = vunpack.c.l.b16 %v2579
      %v2647 = vunpack.c.h.b16 %v2579
      %v2648 = vunpack.c.l.b16 %v2580
      %v2649 = vunpack.c.h.b16 %v2580
      %v2650 = vunpack.c.l.b16 %v2581
      %v2651 = vunpack.c.h.b16 %v2581
      %v2652 = vunpack.c.l.b16 %v2582
      %v2653 = vunpack.c.h.b16 %v2582
      %v2654 = vunpack.c.l.b16 %v2583
      %v2655 = vunpack.c.h.b16 %v2583
      %v2656 = vunpack.c.l.b16 %v2584
      %v2657 = vunpack.c.h.b16 %v2584
      %v2658 = vunpack.c.l.b16 %v2585
      %v2659 = vunpack.c.h.b16 %v2585
      %v2660 = vunpack.c.l.b16 %v2586
      %v2661 = vunpack.c.h.b16 %v2586
      %v2662 = vunpack.c.l.b16 %v2587
      %v2663 = vunpack.c.h.b16 %v2587
      %v2664 = vunpack.c.l.b16 %v2588
      %v2665 = vunpack.c.h.b16 %v2588
      %v2666 = vunpack.c.l.b16 %v2589
      %v2667 = vunpack.c.h.b16 %v2589
      %v2668 = vunpack.c.l.b16 %v2590
      %v2669 = vunpack.c.h.b16 %v2590
      %v2670 = vunpack.c.l.b16 %v2591
      %v2671 = vunpack.c.h.b16 %v2591
      %v2672 = vunpack.c.l.b16 %v2592
      %v2673 = vunpack.c.h.b16 %v2592
      %v2674 = vunpack.c.l.b16 %v2593
      %v2675 = vunpack.c.h.b16 %v2593
      %v2676 = vunpack.c.l.b16 %v2594
      %v2677 = vunpack.c.h.b16 %v2594
      %v2678 = vunpack.c.l.b16 %v2595
      %v2679 = vunpack.c.h.b16 %v2595
      %v2680 = vunpack.c.l.b16 %v2596
      %v2681 = vunpack.c.h.b16 %v2596
      %v2682 = vunpack.c.l.b16 %v2597
      %v2683 = vunpack.c.h.b16 %v2597
      %v2684 = vunpack.c.l.b16 %v2598
      %v2685 = vpack.c.b16 %v2628, %v2628
      %v2686 = vpack.c.b16 %v2629, %v2629
      %v2687 = vpack.c.b16 %v2630, %v2630
      %v2688 = vpack.c.b16 %v2631, %v2631
      %v2689 = vpack.c.b16 %v2632, %v2632
      %v2690 = vpack.c.b16 %v2633, %v2633
      %v2691 = vpack.c.b16 %v2634, %v2634
      %v2692 = vpack.c.b16 %v2635, %v2635
      %v2693 = vpack.c.b16 %v2636, %v2636
      %v2694 = vpack.c.b16 %v2637, %v2637
      %v2695 = vpack.c.b16 %v2638, %v2638
      %v2696 = vpack.c.b16 %v2639, %v2639
      %v2697 = vpack.c.b16 %v2640, %v2640
      %v2698 = vpack.c.b16 %v2641, %v2641
      %v2699 = vpack.c.b16 %v2642, %v2642
      %v2700 = vpack.c.b16 %v2643, %v2643
      %v2701 = vpack.c.b16 %v2644, %v2644
      %v2702 = vpack.c.b16 %v2645, %v2645
      %v2703 = vpack.c.b16 %v2646, %v2646
      %v2704 = vpack.c.b16 %v2647, %v2647
      %v2705 = vpack.c.b16 %v2648, %v2648
      %v2706 = vpack.c.b16 %v2649, %v2649
      %v2707 = vpack.c.b16 %v2650, %v2650
      %v2708 = vpack.c.b16 %v2651, %v2651
      %v2709 = vpack.c.b16 %v2652, %v2652
      %v2710 = vpack.c.b16 %v2653, %v2653
      %v2711 = vpack.c.b16 %v2654, %v2654
      %v2712 = vpack.c.b16 %v2655, %v2655
      %v2713 = vpack.c.b16 %v2656, %v2656
      %v2714 = vpack.c.b16 %v2657, %v2657
      %v2715 = vpack.c.b16 %v2658, %v2658
      %v2716 = vpack.c.b16 %v2659, %v2659
      %v2717 = vpack.c.b16 %v2660, %v2660
      %v2718 = vpack.c.b16 %v2661, %v2661
      %v2719 = vpack.c.b16 %v2662, %v2662
      %v2720 = vpack.c.b16 %v2663, %v2663
      %v2721 = vpack.c.b16 %v2664, %v2664
      %v2722 = vpack.c.b16 %v2665, %v2665
      %v2723 = vpack.c.b16 %v2666, %v2666
      %v2724 = vpack.c.b16 %v2667, %v2667
      %v2725 = vpack.c.b16 %v2668, %v2668
      %v2726 = vpack.c.b16 %v2669, %v2669
      %v2727 = vpack.c.b16 %v2670, %v2670
      %v2728 = vpack.c.b16 %v2671, %v2671
      %v2729 = vpack.c.b16 %v2672, %v2672
      %v2730 = vpack.c.b16 %v2673, %v2673
      %v2731 = vpack.c.b16 %v2674, %v2674
      %v2732 = vpack.c.b16 %v2675, %v2675
      %v2733 = vpack.c.b16 %v2676, %v2676
      %v2734 = vpack.c.b16 %v2677, %v2677
      %v2735 = vpack.c.b16 %v2678, %v2678
      %v2736 = vpack.c.b16 %v2679, %v2679
      %v2737 = vpack.c.b16 %v2680, %v2680
      %v2738 = vpack.c.b16 %v2681, %v2681
      %v2739 = vpack.c.b16 %v2682, %v2682
      %v2740 = vpack.c.b16 %v2683, %v2683
      %v2741 = vpack.c.b16 %v2684, %v2684
      %2799 = vst [vmem:[%s170] sm:$0xf] %v2685
      %2800 = vst [vmem:[%s170 + $0x4] sm:$0xf] %v2686
      %2801 = vst [vmem:[%s170 + $0x8] sm:$0xf] %v2687
      %2802 = vst [vmem:[%s170 + $0xc] sm:$0xf] %v2688
      %2803 = vst [vmem:[%s170 + $0x10] sm:$0xf] %v2689
      %2804 = vst [vmem:[%s170 + $0x14] sm:$0xf] %v2690
      %2805 = vst [vmem:[%s170 + $0x18] sm:$0xf] %v2691
      %2806 = vst [vmem:[%s170 + $0x1c] sm:$0xf] %v2692
      %2807 = vst [vmem:[%s170 + $0x20] sm:$0xf] %v2693
      %2808 = vst [vmem:[%s170 + $0x24] sm:$0xf] %v2694
      %2809 = vst [vmem:[%s170 + $0x28] sm:$0xf] %v2695
      %2810 = vst [vmem:[%s170 + $0x2c] sm:$0xf] %v2696
      %2811 = vst [vmem:[%s170 + $0x30] sm:$0xf] %v2697
      %2812 = vst [vmem:[%s170 + $0x34] sm:$0xf] %v2698
      %2813 = vst [vmem:[%s170 + $0x38] sm:$0xf] %v2699
      %2814 = vst [vmem:[%s170 + $0x3c] sm:$0xf] %v2700
      %2815 = vst [vmem:[%s170 + $0x40] sm:$0xf] %v2701
      %2816 = vst [vmem:[%s170 + $0x44] sm:$0xf] %v2702
      %2817 = vst [vmem:[%s170 + $0x48] sm:$0xf] %v2703
      %2818 = vst [vmem:[%s170 + $0x4c] sm:$0xf] %v2704
      %2819 = vst [vmem:[%s170 + $0x50] sm:$0xf] %v2705
      %2820 = vst [vmem:[%s170 + $0x54] sm:$0xf] %v2706
      %2821 = vst [vmem:[%s170 + $0x58] sm:$0xf] %v2707
      %2822 = vst [vmem:[%s170 + $0x5c] sm:$0xf] %v2708
      %2823 = vst [vmem:[%s170 + $0x60] sm:$0xf] %v2709
      %2824 = vst [vmem:[%s170 + $0x64] sm:$0xf] %v2710
      %2825 = vst [vmem:[%s170 + $0x68] sm:$0xf] %v2711
      %2826 = vst [vmem:[%s170 + $0x6c] sm:$0xf] %v2712
      %2827 = vst [vmem:[%s170 + $0x70] sm:$0xf] %v2713
      %2828 = vst [vmem:[%s170 + $0x74] sm:$0xf] %v2714
      %2829 = vst [vmem:[%s170 + $0x78] sm:$0xf] %v2715
      %2830 = vst [vmem:[%s170 + $0x7c] sm:$0xf] %v2716
      %2831 = vst [vmem:[%s170 + $0x80] sm:$0xf] %v2717
      %2832 = vst [vmem:[%s170 + $0x84] sm:$0xf] %v2718
      %2833 = vst [vmem:[%s170 + $0x88] sm:$0xf] %v2719
      %2834 = vst [vmem:[%s170 + $0x8c] sm:$0xf] %v2720
      %2835 = vst [vmem:[%s170 + $0x90] sm:$0xf] %v2721
      %2836 = vst [vmem:[%s170 + $0x94] sm:$0xf] %v2722
      %2837 = vst [vmem:[%s170 + $0x98] sm:$0xf] %v2723
      %2838 = vst [vmem:[%s170 + $0x9c] sm:$0xf] %v2724
      %2839 = vst [vmem:[%s170 + $0xa0] sm:$0xf] %v2725
      %2840 = vst [vmem:[%s170 + $0xa4] sm:$0xf] %v2726
      %2841 = vst [vmem:[%s170 + $0xa8] sm:$0xf] %v2727
      %2842 = vst [vmem:[%s170 + $0xac] sm:$0xf] %v2728
      %2843 = vst [vmem:[%s170 + $0xb0] sm:$0xf] %v2729
      %2844 = vst [vmem:[%s170 + $0xb4] sm:$0xf] %v2730
      %2845 = vst [vmem:[%s170 + $0xb8] sm:$0xf] %v2731
      %2846 = vst [vmem:[%s170 + $0xbc] sm:$0xf] %v2732
      %2847 = vst [vmem:[%s170 + $0xc0] sm:$0xf] %v2733
      %2848 = vst [vmem:[%s170 + $0xc4] sm:$0xf] %v2734
      %2849 = vst [vmem:[%s170 + $0xc8] sm:$0xf] %v2735
      %2850 = vst [vmem:[%s170 + $0xcc] sm:$0xf] %v2736
      %2851 = vst [vmem:[%s170 + $0xd0] sm:$0xf] %v2737
      %2852 = vst [vmem:[%s170 + $0xd4] sm:$0xf] %v2738
      %2853 = vst [vmem:[%s170 + $0xd8] sm:$0xf] %v2739
      %2854 = vst [vmem:[%s170 + $0xdc] sm:$0xf] %v2740
      %2855 = vst [vmem:[%s170 + $0xe0] sm:$0x1] %v2741
      %p2856 = scmp.lt.s32.totalorder %s14, 1
      %s2857 = scalar_select %p2856, %s14, 1
      %s2858 = smul.addr %s2857, 57
      %s2859 = smul.addr %s2858, 4
      %s2860 = scalar_lea.vmem %s3, %s2859
      // Predicated region
      $region33: #{fwd.4} parent=31 // pred_check
        %p2861 = pneg %p100
      $region34: #{fwd.4} parent=31 // pred_check_branch
        %2863 = sbr.rel (%p2861) target = $region36
      $region35: #{fwd.4} parent=31 // pred_region
        _
      $region36: #{fwd.4} parent=31 // pred_fallthru
        _
    $region32: #{fwd.4} parent=5 // pred_fallthru
      _
    %p2864 = scmp.le.s32.totalorder 2, %s9
    // Predicated region
    $region37: #{fwd.4} parent=5 // pred_check
      %p2865 = pneg %p2864
    $region38: #{fwd.4} parent=5 // pred_check_branch
      %2867 = sbr.rel (%p2865) target = $region40
    $region39: #{fwd.4} parent=5 // pred_region
      %s2868 = ssub.s32 %s9, 2
      // Predicated region
      $region41: #{fwd.4} parent=39 // pred_check
        %p2869 = pneg %p106
      $region42: #{fwd.4} parent=39 // pred_check_branch
        %2871 = sbr.rel (%p2869) target = $region44
      $region43: #{fwd.4} parent=39 // pred_region
        %p2872 = scmp.lt.s32.totalorder %s15, 1
        %s2873 = scalar_select %p2872, %s15, 1
        %s2874 = smul.addr %s2873, 57
        %s2875 = smul.addr %s2874, 4
        %s2876 = scalar_lea.vmem %s3, %s2875
      $region44: #{fwd.4} parent=39 // pred_fallthru
        _
    $region40: #{fwd.4} parent=5 // pred_fallthru
      _
  $region6: #{fwd.4} parent=0 // loop_footer
    %s13 = sadd.s32 1, %s9
  $region7: #{fwd.4} parent=0 // loop_footer_branch
    %8 = sbr.rel target = $region3
  $region8: #{fwd.4} parent=0 // loop_exit
    _

</llo_original>
